<compile_context>
chip_gen: v5e
topology: v5e:2x2
jax: 0.10.0
libtpu: 0.0.40
codegen_flags: <defaults>
</compile_context>

<pallas_src>
import jax
import jax.numpy as jnp
from jax.experimental import pallas as pl
from jax.experimental.pallas import tpu as pltpu

IMAGE_SIZE_X = 15
IMAGE_SIZE_Y = 16
LATENT_DIM = 100
BN_EPS = 1e-5

IN_DIM = LATENT_DIM + 1                 # 101
OUT_DIM = IMAGE_SIZE_Y * IMAGE_SIZE_X   # 240
OUT_PAD = 256                           # lane-aligned padded output width (sliced to 240 in wrapper)


def generator_kernel(z_ref, m_ref,
                     w1z_ref, w1m_ref, b1_ref,
                     w2q_ref, s2_ref, g2_ref, be2_ref,
                     w3q_ref, s3_ref, g3_ref, be3_ref,
                     w4q_ref, s4_ref, b4_ref,
                     o_ref,
                     w2v, w3v, w4v):
    # --- One-time int8 -> bf16 decode into resident VMEM scratch. Weights are
    # grid-invariant (constant index_map), so this only runs on the first grid step;
    # the per-channel scales are applied post-matmul (exactly equivalent).
    @pl.when(pl.program_id(0) == 0)
    def _():
        w2v[...] = w2q_ref[...].astype(jnp.float32).astype(jnp.bfloat16)
        w3v[...] = w3q_ref[...].astype(jnp.float32).astype(jnp.bfloat16)
        w4v[...] = w4q_ref[...].astype(jnp.float32).astype(jnp.bfloat16)

    # --- Layer 1: fused input glue.  x = cat([z, m], 1);  x@W1 = z@W1[:100] + m*W1[100]
    z = z_ref[...].astype(jnp.bfloat16)                  # (Bc, 100)
    m = m_ref[...]                                       # (Bc, 1) f32
    h = jnp.dot(z, w1z_ref[...], preferred_element_type=jnp.float32)
    h = h + m * w1m_ref[...] + b1_ref[...]
    h = jnp.maximum(h, 0.0)

    def int8_linear_bn_relu(a, wv, s_ref, g_ref, be_ref):
        # Raw matmul against integer-valued bf16 weights (exact), f32 accumulate.
        hr = jnp.dot(a.astype(jnp.bfloat16), wv[...],
                     preferred_element_type=jnp.float32)
        # Training-mode batch stats of the (unscaled) pre-activation; the per-channel
        # weight scale s factors out: mean(hr*s)=s*mu, var(hr*s)=s^2*var.
        mu = jnp.mean(hr, axis=0, keepdims=True)
        var = jnp.maximum(jnp.mean(hr * hr, axis=0, keepdims=True) - mu * mu, 0.0)
        s = s_ref[...]
        a_vec = s * g_ref[...] * jax.lax.rsqrt(var * (s * s) + BN_EPS)   # (1, N)
        b_vec = be_ref[...] - mu * a_vec                                 # (1, N)
        # Single broadcast FMA covers dequant-scale + BN normalize + affine.
        return jnp.maximum(hr * a_vec + b_vec, 0.0)

    # --- Layer 2 + BN(512) + ReLU   (Linear bias cancels against BN mean-subtraction)
    h = int8_linear_bn_relu(h, w2v, s2_ref, g2_ref, be2_ref)
    # --- Layer 3 + BN(1024) + ReLU
    h = int8_linear_bn_relu(h, w3v, s3_ref, g3_ref, be3_ref)

    # --- Layer 4 (1024 -> 256 padded) + Tanh; lane-dense store, wrapper slices :240.
    h = jnp.dot(h.astype(jnp.bfloat16), w4v[...], preferred_element_type=jnp.float32)
    h = h * s4_ref[...] + b4_ref[...]
    o_ref[...] = jnp.tanh(h)


def init_params(key):
    """PyTorch-style init: W,b ~ U(-1/sqrt(fan_in), 1/sqrt(fan_in)); W stored as W.T.
    BatchNorm affine defaults: gamma=1, beta=0."""
    dims = [(IN_DIM, 256), (256, 512), (512, 1024), (1024, OUT_DIM)]
    params = {}
    for i, (fin, fout) in enumerate(dims, start=1):
        key, kw, kb = jax.random.split(key, 3)
        bound = 1.0 / jnp.sqrt(jnp.float32(fin))
        params[f"w{i}"] = jax.random.uniform(kw, (fin, fout), jnp.float32, -bound, bound)
        params[f"b{i}"] = jax.random.uniform(kb, (1, fout), jnp.float32, -bound, bound)
    params["g2"] = jnp.ones((1, 512), jnp.float32)
    params["be2"] = jnp.zeros((1, 512), jnp.float32)
    params["g3"] = jnp.ones((1, 1024), jnp.float32)
    params["be3"] = jnp.zeros((1, 1024), jnp.float32)
    return params


def _quantize_int8(w):
    """Per-output-channel symmetric int8 quantization. Returns (int8 weights, f32 scale)."""
    amax = jnp.max(jnp.abs(w), axis=0, keepdims=True)            # (1, out)
    scale = jnp.where(amax > 0.0, amax / 127.0, 1.0)
    wq = jnp.clip(jnp.round(w / scale), -127.0, 127.0).astype(jnp.int8)
    return wq, scale.astype(jnp.float32)


def prepare_params(params):
    """One-time prep: split W1 for the fused concat, pad the output layer to 256 lanes,
    quantize the big streamed weights to int8 + per-channel f32 scales.
    (b2/b3 intentionally dropped — they cancel against training-mode BN.)"""
    w1 = params["w1"]
    w4 = jnp.zeros((1024, OUT_PAD), jnp.float32).at[:, :OUT_DIM].set(params["w4"])
    b4 = jnp.zeros((1, OUT_PAD), jnp.float32).at[:, :OUT_DIM].set(params["b4"])
    w2q, s2 = _quantize_int8(params["w2"])
    w3q, s3 = _quantize_int8(params["w3"])
    w4q, s4 = _quantize_int8(w4)
    return {
        "w1z": w1[:LATENT_DIM, :].astype(jnp.bfloat16),   # (100, 256) bf16
        "w1m": w1[LATENT_DIM:, :],                        # (1, 256) f32 (rank-1 measurement row)
        "b1": params["b1"],
        "w2q": w2q, "s2": s2, "g2": params["g2"], "be2": params["be2"],
        "w3q": w3q, "s3": s3, "g3": params["g3"], "be3": params["be3"],
        "w4q": w4q, "s4": s4, "b4": b4,
    }


def _run_generator(x_z, x_m, prepped, num_groups):
    """Core pallas_call. x_z:(G*Bc,100) f32, x_m:(G*Bc,1) f32; each of the G groups is an
    independent training-mode BN batch. Weights use constant index_maps so they are
    DMA'd (and int8-decoded) once and stay resident across grid steps."""
    total = x_z.shape[0]
    assert total % num_groups == 0
    bc = total // num_groups
    if num_groups > 1:
        assert bc % 8 == 0, "per-group batch must be a multiple of 8 when num_groups > 1"

    batch_map = lambda g: (g, 0)
    const_map = lambda g: (0, 0)

    operands = (
        x_z, x_m,
        prepped["w1z"], prepped["w1m"], prepped["b1"],
        prepped["w2q"], prepped["s2"], prepped["g2"], prepped["be2"],
        prepped["w3q"], prepped["s3"], prepped["g3"], prepped["be3"],
        prepped["w4q"], prepped["s4"], prepped["b4"],
    )
    in_specs = [
        pl.BlockSpec((bc, LATENT_DIM), batch_map),
        pl.BlockSpec((bc, 1), batch_map),
    ] + [pl.BlockSpec(op.shape, const_map) for op in operands[2:]]

    return pl.pallas_call(
        generator_kernel,
        out_shape=jax.ShapeDtypeStruct((total, OUT_PAD), jnp.float32),
        grid=(num_groups,),
        in_specs=in_specs,
        out_specs=pl.BlockSpec((bc, OUT_PAD), batch_map),
        scratch_shapes=[
            pltpu.VMEM((256, 512), jnp.bfloat16),     # decoded w2 (resident)
            pltpu.VMEM((512, 1024), jnp.bfloat16),    # decoded w3 (resident)
            pltpu.VMEM((1024, OUT_PAD), jnp.bfloat16),# decoded w4 (resident)
        ],
        compiler_params=pltpu.CompilerParams(
            # Weight-DMA-bound regime: keep the group axis sequential (single core);
            # marking it "parallel" would duplicate the weight stream per core on v7x.
            dimension_semantics=("arbitrary",),
            vmem_limit_bytes=16 << 20,
        ),
    )(*operands)


def generator_forward(z, measurement, prepped):
    """Module-equivalent forward: one BN batch. z:(B,100), measurement:(B,)."""
    B = z.shape[0]
    x_m = measurement.reshape(-1, 1).astype(jnp.float32)
    out = _run_generator(z.astype(jnp.float32), x_m, prepped, num_groups=1)
    return out[:, :OUT_DIM].reshape(B, 1, IMAGE_SIZE_Y, IMAGE_SIZE_X)


def generator_forward_many(z, measurement, prepped):
    """Throughput path: z:(G,B,100), measurement:(G,B) — G independent BN batches
    generated in ONE pallas_call; weights stream/decode once and stay in VMEM."""
    G, B, _ = z.shape
    x_z = z.reshape(G * B, LATENT_DIM).astype(jnp.float32)
    x_m = measurement.reshape(G * B, 1).astype(jnp.float32)
    out = _run_generator(x_z, x_m, prepped, num_groups=G)
    return out[:, :OUT_DIM].reshape(G, B, 1, IMAGE_SIZE_Y, IMAGE_SIZE_X)


def generator_reference(z, measurement, prepped):
    """Plain-JAX f32 reference using the same (dequantized) parameters."""
    def deq(wq, s):
        return wq.astype(jnp.float32) * s

    def bn_relu(h, g, be):
        mu = jnp.mean(h, axis=0, keepdims=True)
        var = jnp.maximum(jnp.mean(h * h, axis=0, keepdims=True) - mu * mu, 0.0)
        return jnp.maximum((h - mu) * jax.lax.rsqrt(var + BN_EPS) * g + be, 0.0)

    B = z.shape[0]
    x_m = measurement.reshape(-1, 1).astype(jnp.float32)
    h = (z.astype(jnp.float32) @ prepped["w1z"].astype(jnp.float32)
         + x_m * prepped["w1m"] + prepped["b1"])
    h = jnp.maximum(h, 0.0)
    h = bn_relu(h @ deq(prepped["w2q"], prepped["s2"]), prepped["g2"], prepped["be2"])
    h = bn_relu(h @ deq(prepped["w3q"], prepped["s3"]), prepped["g3"], prepped["be3"])
    h = jnp.tanh(h @ deq(prepped["w4q"], prepped["s4"]) + prepped["b4"])
    return h[:, :OUT_DIM].reshape(B, 1, IMAGE_SIZE_Y, IMAGE_SIZE_X)


if __name__ == "__main__":
    key = jax.random.PRNGKey(0)
    kp, kz, km = jax.random.split(key, 3)

    params = init_params(kp)
    prepped = prepare_params(params)   # pad + quantize once, amortized across calls

    B = 16  # multiple of 16: fills bf16 [16,128] sublane packing on the MXU LHS
    z = jax.random.normal(kz, (B, LATENT_DIM), jnp.float32)
    measurement = jax.random.normal(km, (B,), jnp.float32)

    img = generator_forward(z, measurement, prepped)
    jax.block_until_ready(img)

    assert img.shape == (B, 1, IMAGE_SIZE_Y, IMAGE_SIZE_X), img.shape
    assert bool(jnp.all(jnp.isfinite(img)))
    assert bool(jnp.all(jnp.abs(img) <= 1.0))  # tanh range

    ref = generator_reference(z, measurement, prepped)
    err = float(jnp.max(jnp.abs(img - ref)))
    assert err < 0.1, f"max |kernel - ref| = {err}"

    print("KERNEL_OK")
</pallas_src>

<mosaic_0001>
module attributes {stable_mosaic.version = 11 : i64} {
  func.func @generator_kernel(%arg0: i32, %arg1: memref<16x100xf32, #tpu.memory_space<vmem>>, %arg2: memref<16x1xf32, #tpu.memory_space<vmem>>, %arg3: memref<100x256xbf16, #tpu.memory_space<vmem>>, %arg4: memref<1x256xf32, #tpu.memory_space<vmem>>, %arg5: memref<1x256xf32, #tpu.memory_space<vmem>>, %arg6: memref<256x512xi8, #tpu.memory_space<vmem>>, %arg7: memref<1x512xf32, #tpu.memory_space<vmem>>, %arg8: memref<1x512xf32, #tpu.memory_space<vmem>>, %arg9: memref<1x512xf32, #tpu.memory_space<vmem>>, %arg10: memref<512x1024xi8, #tpu.memory_space<vmem>>, %arg11: memref<1x1024xf32, #tpu.memory_space<vmem>>, %arg12: memref<1x1024xf32, #tpu.memory_space<vmem>>, %arg13: memref<1x1024xf32, #tpu.memory_space<vmem>>, %arg14: memref<1024x256xi8, #tpu.memory_space<vmem>>, %arg15: memref<1x256xf32, #tpu.memory_space<vmem>>, %arg16: memref<1x256xf32, #tpu.memory_space<vmem>>, %arg17: memref<16x256xf32, #tpu.memory_space<vmem>>, %arg18: memref<256x512xbf16, #tpu.memory_space<vmem>>, %arg19: memref<512x1024xbf16, #tpu.memory_space<vmem>>, %arg20: memref<1024x256xbf16, #tpu.memory_space<vmem>>) attributes {dimension_semantics = [#tpu.dimension_semantics<arbitrary>], iteration_bounds = array<i64: 1>, scalar_prefetch = 0 : i64, scratch_operands = 3 : i64, tpu.core_type = #tpu.core_type<tc>, window_params = [{transform_indices = @transform_0, window_bounds = array<i64: 16, 100>}, {transform_indices = @transform_1, window_bounds = array<i64: 16, 1>}, {pipeline_mode = #tpu.pipeline_mode<synchronous>, transform_indices = @transform_2, window_bounds = array<i64: 100, 256>}, {pipeline_mode = #tpu.pipeline_mode<synchronous>, transform_indices = @transform_3, window_bounds = array<i64: 1, 256>}, {pipeline_mode = #tpu.pipeline_mode<synchronous>, transform_indices = @transform_4, window_bounds = array<i64: 1, 256>}, {pipeline_mode = #tpu.pipeline_mode<synchronous>, transform_indices = @transform_5, window_bounds = array<i64: 256, 512>}, {pipeline_mode = #tpu.pipeline_mode<synchronous>, transform_indices = @transform_6, window_bounds = array<i64: 1, 512>}, {pipeline_mode = #tpu.pipeline_mode<synchronous>, transform_indices = @transform_7, window_bounds = array<i64: 1, 512>}, {pipeline_mode = #tpu.pipeline_mode<synchronous>, transform_indices = @transform_8, window_bounds = array<i64: 1, 512>}, {pipeline_mode = #tpu.pipeline_mode<synchronous>, transform_indices = @transform_9, window_bounds = array<i64: 512, 1024>}, {pipeline_mode = #tpu.pipeline_mode<synchronous>, transform_indices = @transform_10, window_bounds = array<i64: 1, 1024>}, {pipeline_mode = #tpu.pipeline_mode<synchronous>, transform_indices = @transform_11, window_bounds = array<i64: 1, 1024>}, {pipeline_mode = #tpu.pipeline_mode<synchronous>, transform_indices = @transform_12, window_bounds = array<i64: 1, 1024>}, {pipeline_mode = #tpu.pipeline_mode<synchronous>, transform_indices = @transform_13, window_bounds = array<i64: 1024, 256>}, {pipeline_mode = #tpu.pipeline_mode<synchronous>, transform_indices = @transform_14, window_bounds = array<i64: 1, 256>}, {pipeline_mode = #tpu.pipeline_mode<synchronous>, transform_indices = @transform_15, window_bounds = array<i64: 1, 256>}, {transform_indices = @transform_16, window_bounds = array<i64: 16, 256>}]} {
    %c0_i32 = arith.constant 0 : i32
    %0 = arith.cmpi eq, %arg0, %c0_i32 : i32
    %1 = arith.extui %0 : i1 to i32
    %c0_i32_0 = arith.constant 0 : i32
    %2 = arith.cmpi ne, %1, %c0_i32_0 : i32
    scf.if %2 {
      %c0_52 = arith.constant 0 : index
      %c0_53 = arith.constant 0 : index
      %97 = vector.load %arg6[%c0_52, %c0_53] : memref<256x512xi8, #tpu.memory_space<vmem>>, vector<256x512xi8>
      %98 = arith.sitofp %97 : vector<256x512xi8> to vector<256x512xf32>
      %99 = arith.truncf %98 : vector<256x512xf32> to vector<256x512xbf16>
      %c0_54 = arith.constant 0 : index
      %c0_55 = arith.constant 0 : index
      %100 = vector.load %arg18[%c0_54, %c0_55] : memref<256x512xbf16, #tpu.memory_space<vmem>>, vector<256x512xbf16>
      tpu.vector_store %arg18[%c0_54, %c0_55], %99 {strides = array<i32>} : memref<256x512xbf16, #tpu.memory_space<vmem>>, vector<256x512xbf16>,
      %c0_56 = arith.constant 0 : index
      %c0_57 = arith.constant 0 : index
      %101 = vector.load %arg10[%c0_56, %c0_57] : memref<512x1024xi8, #tpu.memory_space<vmem>>, vector<512x1024xi8>
      %102 = arith.sitofp %101 : vector<512x1024xi8> to vector<512x1024xf32>
      %103 = arith.truncf %102 : vector<512x1024xf32> to vector<512x1024xbf16>
      %c0_58 = arith.constant 0 : index
      %c0_59 = arith.constant 0 : index
      %104 = vector.load %arg19[%c0_58, %c0_59] : memref<512x1024xbf16, #tpu.memory_space<vmem>>, vector<512x1024xbf16>
      tpu.vector_store %arg19[%c0_58, %c0_59], %103 {strides = array<i32>} : memref<512x1024xbf16, #tpu.memory_space<vmem>>, vector<512x1024xbf16>,
      %c0_60 = arith.constant 0 : index
      %c0_61 = arith.constant 0 : index
      %105 = vector.load %arg14[%c0_60, %c0_61] : memref<1024x256xi8, #tpu.memory_space<vmem>>, vector<1024x256xi8>
      %106 = arith.sitofp %105 : vector<1024x256xi8> to vector<1024x256xf32>
      %107 = arith.truncf %106 : vector<1024x256xf32> to vector<1024x256xbf16>
      %c0_62 = arith.constant 0 : index
      %c0_63 = arith.constant 0 : index
      %108 = vector.load %arg20[%c0_62, %c0_63] : memref<1024x256xbf16, #tpu.memory_space<vmem>>, vector<1024x256xbf16>
      tpu.vector_store %arg20[%c0_62, %c0_63], %107 {strides = array<i32>} : memref<1024x256xbf16, #tpu.memory_space<vmem>>, vector<1024x256xbf16>,
    } else {
    }
    %c0 = arith.constant 0 : index
    %c0_1 = arith.constant 0 : index
    %3 = vector.load %arg1[%c0, %c0_1] : memref<16x100xf32, #tpu.memory_space<vmem>>, vector<16x100xf32>
    %4 = arith.truncf %3 : vector<16x100xf32> to vector<16x100xbf16>
    %c0_2 = arith.constant 0 : index
    %c0_3 = arith.constant 0 : index
    %5 = vector.load %arg2[%c0_2, %c0_3] : memref<16x1xf32, #tpu.memory_space<vmem>>, vector<16x1xf32>
    %c0_4 = arith.constant 0 : index
    %c0_5 = arith.constant 0 : index
    %6 = vector.load %arg3[%c0_4, %c0_5] : memref<100x256xbf16, #tpu.memory_space<vmem>>, vector<100x256xbf16>
    %cst = arith.constant dense<0.000000e+00> : vector<16x256xf32>
    %7 = tpu.matmul %4, %6, %cst {dimension_numbers = #tpu.dot_dimension_numbers<[1], [0], [0], [1], [0, 0, 1, 1], [], []>} : vector<16x100xbf16>, vector<100x256xbf16>, vector<16x256xf32> -> vector<16x256xf32>
    %c0_6 = arith.constant 0 : index
    %c0_7 = arith.constant 0 : index
    %8 = vector.load %arg4[%c0_6, %c0_7] : memref<1x256xf32, #tpu.memory_space<vmem>>, vector<1x256xf32>
    %9 = vector.broadcast %5 : vector<16x1xf32> to vector<16x256xf32>
    %10 = vector.broadcast %8 : vector<1x256xf32> to vector<16x256xf32>
    %11 = arith.mulf %9, %10 : vector<16x256xf32>
    %12 = arith.addf %7, %11 : vector<16x256xf32>
    %c0_8 = arith.constant 0 : index
    %c0_9 = arith.constant 0 : index
    %13 = vector.load %arg5[%c0_8, %c0_9] : memref<1x256xf32, #tpu.memory_space<vmem>>, vector<1x256xf32>
    %14 = vector.broadcast %13 : vector<1x256xf32> to vector<16x256xf32>
    %15 = arith.addf %12, %14 : vector<16x256xf32>
    %cst_10 = arith.constant 0.000000e+00 : f32
    %16 = vector.broadcast %cst_10 : f32 to vector<16x256xf32>
    %17 = arith.maximumf %15, %16 : vector<16x256xf32>
    %18 = arith.truncf %17 : vector<16x256xf32> to vector<16x256xbf16>
    %c0_11 = arith.constant 0 : index
    %c0_12 = arith.constant 0 : index
    %19 = vector.load %arg18[%c0_11, %c0_12] : memref<256x512xbf16, #tpu.memory_space<vmem>>, vector<256x512xbf16>
    %cst_13 = arith.constant dense<0.000000e+00> : vector<16x512xf32>
    %20 = tpu.matmul %18, %19, %cst_13 {dimension_numbers = #tpu.dot_dimension_numbers<[1], [0], [0], [1], [0, 0, 1, 1], [], []>} : vector<16x256xbf16>, vector<256x512xbf16>, vector<16x512xf32> -> vector<16x512xf32>
    %cst_14 = arith.constant dense<0.000000e+00> : vector<512xf32>
    %21 = vector.multi_reduction <add>, %20, %cst_14 [0] : vector<16x512xf32> to vector<512xf32>
    %22 = vector.shape_cast %21 : vector<512xf32> to vector<1x512xf32>
    %cst_15 = arith.constant 1.600000e+01 : f32
    %23 = vector.broadcast %cst_15 : f32 to vector<1x512xf32>
    %24 = arith.divf %22, %23 : vector<1x512xf32>
    %25 = arith.mulf %20, %20 : vector<16x512xf32>
    %cst_16 = arith.constant dense<0.000000e+00> : vector<512xf32>
    %26 = vector.multi_reduction <add>, %25, %cst_16 [0] : vector<16x512xf32> to vector<512xf32>
    %27 = vector.shape_cast %26 : vector<512xf32> to vector<1x512xf32>
    %cst_17 = arith.constant 1.600000e+01 : f32
    %28 = vector.broadcast %cst_17 : f32 to vector<1x512xf32>
    %29 = arith.divf %27, %28 : vector<1x512xf32>
    %30 = arith.mulf %24, %24 : vector<1x512xf32>
    %31 = arith.subf %29, %30 : vector<1x512xf32>
    %cst_18 = arith.constant 0.000000e+00 : f32
    %32 = vector.broadcast %cst_18 : f32 to vector<1x512xf32>
    %33 = arith.maximumf %31, %32 : vector<1x512xf32>
    %c0_19 = arith.constant 0 : index
    %c0_20 = arith.constant 0 : index
    %34 = vector.load %arg7[%c0_19, %c0_20] : memref<1x512xf32, #tpu.memory_space<vmem>>, vector<1x512xf32>
    %c0_21 = arith.constant 0 : index
    %c0_22 = arith.constant 0 : index
    %35 = vector.load %arg8[%c0_21, %c0_22] : memref<1x512xf32, #tpu.memory_space<vmem>>, vector<1x512xf32>
    %36 = arith.mulf %34, %35 : vector<1x512xf32>
    %37 = arith.mulf %34, %34 : vector<1x512xf32>
    %38 = arith.mulf %33, %37 : vector<1x512xf32>
    %cst_23 = arith.constant 9.99999974E-6 : f32
    %39 = vector.broadcast %cst_23 : f32 to vector<1x512xf32>
    %40 = arith.addf %38, %39 : vector<1x512xf32>
    %41 = math.rsqrt %40 : vector<1x512xf32>
    %42 = arith.mulf %36, %41 : vector<1x512xf32>
    %c0_24 = arith.constant 0 : index
    %c0_25 = arith.constant 0 : index
    %43 = vector.load %arg9[%c0_24, %c0_25] : memref<1x512xf32, #tpu.memory_space<vmem>>, vector<1x512xf32>
    %44 = arith.mulf %24, %42 : vector<1x512xf32>
    %45 = arith.subf %43, %44 : vector<1x512xf32>
    %46 = vector.broadcast %42 : vector<1x512xf32> to vector<16x512xf32>
    %47 = arith.mulf %20, %46 : vector<16x512xf32>
    %48 = vector.broadcast %45 : vector<1x512xf32> to vector<16x512xf32>
    %49 = arith.addf %47, %48 : vector<16x512xf32>
    %cst_26 = arith.constant 0.000000e+00 : f32
    %50 = vector.broadcast %cst_26 : f32 to vector<16x512xf32>
    %51 = arith.maximumf %49, %50 : vector<16x512xf32>
    %52 = arith.truncf %51 : vector<16x512xf32> to vector<16x512xbf16>
    %c0_27 = arith.constant 0 : index
    %c0_28 = arith.constant 0 : index
    %53 = vector.load %arg19[%c0_27, %c0_28] : memref<512x1024xbf16, #tpu.memory_space<vmem>>, vector<512x1024xbf16>
    %cst_29 = arith.constant dense<0.000000e+00> : vector<16x1024xf32>
    %54 = tpu.matmul %52, %53, %cst_29 {dimension_numbers = #tpu.dot_dimension_numbers<[1], [0], [0], [1], [0, 0, 1, 1], [], []>} : vector<16x512xbf16>, vector<512x1024xbf16>, vector<16x1024xf32> -> vector<16x1024xf32>
    %cst_30 = arith.constant dense<0.000000e+00> : vector<1024xf32>
    %55 = vector.multi_reduction <add>, %54, %cst_30 [0] : vector<16x1024xf32> to vector<1024xf32>
    %56 = vector.shape_cast %55 : vector<1024xf32> to vector<1x1024xf32>
    %cst_31 = arith.constant 1.600000e+01 : f32
    %57 = vector.broadcast %cst_31 : f32 to vector<1x1024xf32>
    %58 = arith.divf %56, %57 : vector<1x1024xf32>
    %59 = arith.mulf %54, %54 : vector<16x1024xf32>
    %cst_32 = arith.constant dense<0.000000e+00> : vector<1024xf32>
    %60 = vector.multi_reduction <add>, %59, %cst_32 [0] : vector<16x1024xf32> to vector<1024xf32>
    %61 = vector.shape_cast %60 : vector<1024xf32> to vector<1x1024xf32>
    %cst_33 = arith.constant 1.600000e+01 : f32
    %62 = vector.broadcast %cst_33 : f32 to vector<1x1024xf32>
    %63 = arith.divf %61, %62 : vector<1x1024xf32>
    %64 = arith.mulf %58, %58 : vector<1x1024xf32>
    %65 = arith.subf %63, %64 : vector<1x1024xf32>
    %cst_34 = arith.constant 0.000000e+00 : f32
    %66 = vector.broadcast %cst_34 : f32 to vector<1x1024xf32>
    %67 = arith.maximumf %65, %66 : vector<1x1024xf32>
    %c0_35 = arith.constant 0 : index
    %c0_36 = arith.constant 0 : index
    %68 = vector.load %arg11[%c0_35, %c0_36] : memref<1x1024xf32, #tpu.memory_space<vmem>>, vector<1x1024xf32>
    %c0_37 = arith.constant 0 : index
    %c0_38 = arith.constant 0 : index
    %69 = vector.load %arg12[%c0_37, %c0_38] : memref<1x1024xf32, #tpu.memory_space<vmem>>, vector<1x1024xf32>
    %70 = arith.mulf %68, %69 : vector<1x1024xf32>
    %71 = arith.mulf %68, %68 : vector<1x1024xf32>
    %72 = arith.mulf %67, %71 : vector<1x1024xf32>
    %cst_39 = arith.constant 9.99999974E-6 : f32
    %73 = vector.broadcast %cst_39 : f32 to vector<1x1024xf32>
    %74 = arith.addf %72, %73 : vector<1x1024xf32>
    %75 = math.rsqrt %74 : vector<1x1024xf32>
    %76 = arith.mulf %70, %75 : vector<1x1024xf32>
    %c0_40 = arith.constant 0 : index
    %c0_41 = arith.constant 0 : index
    %77 = vector.load %arg13[%c0_40, %c0_41] : memref<1x1024xf32, #tpu.memory_space<vmem>>, vector<1x1024xf32>
    %78 = arith.mulf %58, %76 : vector<1x1024xf32>
    %79 = arith.subf %77, %78 : vector<1x1024xf32>
    %80 = vector.broadcast %76 : vector<1x1024xf32> to vector<16x1024xf32>
    %81 = arith.mulf %54, %80 : vector<16x1024xf32>
    %82 = vector.broadcast %79 : vector<1x1024xf32> to vector<16x1024xf32>
    %83 = arith.addf %81, %82 : vector<16x1024xf32>
    %cst_42 = arith.constant 0.000000e+00 : f32
    %84 = vector.broadcast %cst_42 : f32 to vector<16x1024xf32>
    %85 = arith.maximumf %83, %84 : vector<16x1024xf32>
    %86 = arith.truncf %85 : vector<16x1024xf32> to vector<16x1024xbf16>
    %c0_43 = arith.constant 0 : index
    %c0_44 = arith.constant 0 : index
    %87 = vector.load %arg20[%c0_43, %c0_44] : memref<1024x256xbf16, #tpu.memory_space<vmem>>, vector<1024x256xbf16>
    %cst_45 = arith.constant dense<0.000000e+00> : vector<16x256xf32>
    %88 = tpu.matmul %86, %87, %cst_45 {dimension_numbers = #tpu.dot_dimension_numbers<[1], [0], [0], [1], [0, 0, 1, 1], [], []>} : vector<16x1024xbf16>, vector<1024x256xbf16>, vector<16x256xf32> -> vector<16x256xf32>
    %c0_46 = arith.constant 0 : index
    %c0_47 = arith.constant 0 : index
    %89 = vector.load %arg15[%c0_46, %c0_47] : memref<1x256xf32, #tpu.memory_space<vmem>>, vector<1x256xf32>
    %90 = vector.broadcast %89 : vector<1x256xf32> to vector<16x256xf32>
    %91 = arith.mulf %88, %90 : vector<16x256xf32>
    %c0_48 = arith.constant 0 : index
    %c0_49 = arith.constant 0 : index
    %92 = vector.load %arg16[%c0_48, %c0_49] : memref<1x256xf32, #tpu.memory_space<vmem>>, vector<1x256xf32>
    %93 = vector.broadcast %92 : vector<1x256xf32> to vector<16x256xf32>
    %94 = arith.addf %91, %93 : vector<16x256xf32>
    %95 = math.tanh %94 : vector<16x256xf32>
    %c0_50 = arith.constant 0 : index
    %c0_51 = arith.constant 0 : index
    %96 = vector.load %arg17[%c0_50, %c0_51] : memref<16x256xf32, #tpu.memory_space<vmem>>, vector<16x256xf32>
    tpu.vector_store %arg17[%c0_50, %c0_51], %95 {strides = array<i32>} : memref<16x256xf32, #tpu.memory_space<vmem>>, vector<16x256xf32>,
    return
  }
  func.func @transform_0(%arg0: i32) -> (i32, i32) {
    %c0_i32 = arith.constant 0 : i32
    %c0_i32_0 = arith.constant 0 : i32
    return %arg0, %c0_i32 : i32, i32
  }
  func.func @transform_1(%arg0: i32) -> (i32, i32) {
    %c0_i32 = arith.constant 0 : i32
    %c0_i32_0 = arith.constant 0 : i32
    return %arg0, %c0_i32 : i32, i32
  }
  func.func @transform_2(%arg0: i32) -> (i32, i32) {
    %c0_i32 = arith.constant 0 : i32
    %c0_i32_0 = arith.constant 0 : i32
    %c0_i32_1 = arith.constant 0 : i32
    return %c0_i32, %c0_i32_0 : i32, i32
  }
  func.func @transform_3(%arg0: i32) -> (i32, i32) {
    %c0_i32 = arith.constant 0 : i32
    %c0_i32_0 = arith.constant 0 : i32
    %c0_i32_1 = arith.constant 0 : i32
    return %c0_i32, %c0_i32_0 : i32, i32
  }
  func.func @transform_4(%arg0: i32) -> (i32, i32) {
    %c0_i32 = arith.constant 0 : i32
    %c0_i32_0 = arith.constant 0 : i32
    %c0_i32_1 = arith.constant 0 : i32
    return %c0_i32, %c0_i32_0 : i32, i32
  }
  func.func @transform_5(%arg0: i32) -> (i32, i32) {
    %c0_i32 = arith.constant 0 : i32
    %c0_i32_0 = arith.constant 0 : i32
    %c0_i32_1 = arith.constant 0 : i32
    return %c0_i32, %c0_i32_0 : i32, i32
  }
  func.func @transform_6(%arg0: i32) -> (i32, i32) {
    %c0_i32 = arith.constant 0 : i32
    %c0_i32_0 = arith.constant 0 : i32
    %c0_i32_1 = arith.constant 0 : i32
    return %c0_i32, %c0_i32_0 : i32, i32
  }
  func.func @transform_7(%arg0: i32) -> (i32, i32) {
    %c0_i32 = arith.constant 0 : i32
    %c0_i32_0 = arith.constant 0 : i32
    %c0_i32_1 = arith.constant 0 : i32
    return %c0_i32, %c0_i32_0 : i32, i32
  }
  func.func @transform_8(%arg0: i32) -> (i32, i32) {
    %c0_i32 = arith.constant 0 : i32
    %c0_i32_0 = arith.constant 0 : i32
    %c0_i32_1 = arith.constant 0 : i32
    return %c0_i32, %c0_i32_0 : i32, i32
  }
  func.func @transform_9(%arg0: i32) -> (i32, i32) {
    %c0_i32 = arith.constant 0 : i32
    %c0_i32_0 = arith.constant 0 : i32
    %c0_i32_1 = arith.constant 0 : i32
    return %c0_i32, %c0_i32_0 : i32, i32
  }
  func.func @transform_10(%arg0: i32) -> (i32, i32) {
    %c0_i32 = arith.constant 0 : i32
    %c0_i32_0 = arith.constant 0 : i32
    %c0_i32_1 = arith.constant 0 : i32
    return %c0_i32, %c0_i32_0 : i32, i32
  }
  func.func @transform_11(%arg0: i32) -> (i32, i32) {
    %c0_i32 = arith.constant 0 : i32
    %c0_i32_0 = arith.constant 0 : i32
    %c0_i32_1 = arith.constant 0 : i32
    return %c0_i32, %c0_i32_0 : i32, i32
  }
  func.func @transform_12(%arg0: i32) -> (i32, i32) {
    %c0_i32 = arith.constant 0 : i32
    %c0_i32_0 = arith.constant 0 : i32
    %c0_i32_1 = arith.constant 0 : i32
    return %c0_i32, %c0_i32_0 : i32, i32
  }
  func.func @transform_13(%arg0: i32) -> (i32, i32) {
    %c0_i32 = arith.constant 0 : i32
    %c0_i32_0 = arith.constant 0 : i32
    %c0_i32_1 = arith.constant 0 : i32
    return %c0_i32, %c0_i32_0 : i32, i32
  }
  func.func @transform_14(%arg0: i32) -> (i32, i32) {
    %c0_i32 = arith.constant 0 : i32
    %c0_i32_0 = arith.constant 0 : i32
    %c0_i32_1 = arith.constant 0 : i32
    return %c0_i32, %c0_i32_0 : i32, i32
  }
  func.func @transform_15(%arg0: i32) -> (i32, i32) {
    %c0_i32 = arith.constant 0 : i32
    %c0_i32_0 = arith.constant 0 : i32
    %c0_i32_1 = arith.constant 0 : i32
    return %c0_i32, %c0_i32_0 : i32, i32
  }
  func.func @transform_16(%arg0: i32) -> (i32, i32) {
    %c0_i32 = arith.constant 0 : i32
    %c0_i32_0 = arith.constant 0 : i32
    return %arg0, %c0_i32 : i32, i32
  }
}

</mosaic_0001>

<llo_original>
// kernel: tpu_custom_call.1
$region0: #{tpu_custom_call.1}
  #allocation0 [shape = 'u32[]', space=smem, size = 0x4, offset = 0x4, fixed_abs, tag = 'smem constant byte address 0x4 - core index']
  #allocation1 [shape = 'u32[72,128]{1,0:T(1,128)}', space=vmem, size = 0x9000, scoped, tag = 'internal scratch']
  #allocation2 [shape = 'bf16[256,512]{1,0:T(8,128)(2,1)}', space=vmem, size = 0x40000, scoped, tag = 'scratch operand']
  #allocation3 [shape = 'bf16[512,1024]{1,0:T(8,128)(2,1)}', space=vmem, size = 0x100000, scoped, tag = 'scratch operand']
  #allocation4 [shape = 'bf16[1024,256]{1,0:T(8,128)(2,1)}', space=vmem, size = 0x80000, scoped, tag = 'scratch operand']
  %s0 = inlined_call_operand.vmem [shape: f32[16,100], index: 0, kind: input, shape index: {}]
  %s1 = inlined_call_operand.vmem [shape: f32[16,1], index: 1, kind: input, shape index: {}]
  %s2 = inlined_call_operand.hbm [shape: bf16[100,256], index: 2, kind: input, shape index: {}]
  %s3 = inlined_call_operand.hbm [shape: f32[1,256], index: 3, kind: input, shape index: {}]
  %s4 = inlined_call_operand.hbm [shape: f32[1,256], index: 4, kind: input, shape index: {}]
  %s5 = inlined_call_operand.hbm [shape: s8[256,512], index: 5, kind: input, shape index: {}]
  %s6 = inlined_call_operand.hbm [shape: f32[1,512], index: 6, kind: input, shape index: {}]
  %s7 = inlined_call_operand.hbm [shape: f32[1,512], index: 7, kind: input, shape index: {}]
  %s8 = inlined_call_operand.hbm [shape: f32[1,512], index: 8, kind: input, shape index: {}]
  %s9 = inlined_call_operand.hbm [shape: s8[512,1024], index: 9, kind: input, shape index: {}]
  %s10 = inlined_call_operand.vmem [shape: f32[1,1024], index: 10, kind: input, shape index: {}]
  %s11 = inlined_call_operand.hbm [shape: f32[1,1024], index: 11, kind: input, shape index: {}]
  %s12 = inlined_call_operand.hbm [shape: f32[1,1024], index: 12, kind: input, shape index: {}]
  %s13 = inlined_call_operand.hbm [shape: s8[1024,256], index: 13, kind: input, shape index: {}]
  %s14 = inlined_call_operand.vmem [shape: f32[1,256], index: 14, kind: input, shape index: {}]
  %s15 = inlined_call_operand.vmem [shape: f32[1,256], index: 15, kind: input, shape index: {}]
  %s16 = inlined_call_operand.hbm [shape: f32[16,256], index: 16, kind: output, shape index: {}]
  %s17 = sld [smem:[#allocation0]]
  $region122: #{tpu_custom_call.1} parent=0
    _
  %s19 = ssub.s32 1, %s17
  %s20 = scalar_select 0, %s19, %s17
  $region1: #{tpu_custom_call.1} parent=0
    #allocation5 [shape = 'u8[53248]{0}', space=vmem, size = 0xd000, scoped, tag = 'input window, operand 2, single buffered']
    #allocation6 [shape = 's32[1]{0}', space=sflag, size = 0x4, scoped, tag = 'scoped memory for tpu_custom_call.1']
    #allocation7 [shape = 's32[1]{0}', space=sflag, size = 0x4, scoped, tag = 'scoped memory for tpu_custom_call.1']
    #allocation8 [shape = 'u8[1024]{0}', space=vmem, size = 0x400, scoped, tag = 'input window, operand 3, single buffered']
    #allocation9 [shape = 's32[1]{0}', space=sflag, size = 0x4, scoped, tag = 'scoped memory for tpu_custom_call.1']
    #allocation10 [shape = 'u8[1024]{0}', space=vmem, size = 0x400, scoped, tag = 'input window, operand 4, single buffered']
    #allocation11 [shape = 'u8[131072]{0}', space=vmem, size = 0x20000, scoped, tag = 'input window, operand 5, single buffered']
    #allocation12 [shape = 's32[1]{0}', space=sflag, size = 0x4, scoped, tag = 'scoped memory for tpu_custom_call.1']
    #allocation13 [shape = 'u8[2048]{0}', space=vmem, size = 0x800, scoped, tag = 'input window, operand 6, single buffered']
    #allocation14 [shape = 'u8[2048]{0}', space=vmem, size = 0x800, scoped, tag = 'input window, operand 7, single buffered']
    #allocation15 [shape = 's32[1]{0}', space=sflag, size = 0x4, scoped, tag = 'scoped memory for tpu_custom_call.1']
    #allocation16 [shape = 'u8[2048]{0}', space=vmem, size = 0x800, scoped, tag = 'input window, operand 8, single buffered']
    #allocation17 [shape = 'u8[524288]{0}', space=vmem, size = 0x80000, scoped, tag = 'input window, operand 9, single buffered']
    #allocation18 [shape = 's32[1]{0}', space=sflag, size = 0x4, scoped, tag = 'scoped memory for tpu_custom_call.1']
    #allocation19 [shape = 'u8[4096]{0}', space=vmem, size = 0x1000, scoped, tag = 'input window, operand 11, single buffered']
    #allocation20 [shape = 'u8[4096]{0}', space=vmem, size = 0x1000, scoped, tag = 'input window, operand 12, single buffered']
    #allocation21 [shape = 's32[1]{0}', space=sflag, size = 0x4, scoped, tag = 'scoped memory for tpu_custom_call.1']
    #allocation22 [shape = 'u8[262144]{0}', space=vmem, size = 0x40000, scoped, tag = 'input window, operand 13, single buffered']
    #allocation23 [shape = 'u8[16384]{0}', space=vmem, size = 0x4000, scoped, tag = 'output window, operand 0, single buffered']
    %21 = vsyncpa [#allocation6], 0
    %22 = vsyncpa [#allocation9], 0
    %23 = vsyncpa [#allocation12], 0
    %24 = vsyncpa [#allocation15], 0
    %25 = vsyncpa [#allocation18], 0
    %26 = vsyncpa [#allocation21], 0
    %27 = vsyncpa [#allocation7], 0
    // Predicated region
    $region2: #{tpu_custom_call.1} parent=1 // pred_check
      _
    $region3: #{tpu_custom_call.1} parent=1 // pred_check_branch
      %29 = sbr.rel (0) target = $region5
    $region4: #{tpu_custom_call.1} parent=1 // pred_region
      _
    $region5: #{tpu_custom_call.1} parent=1 // pred_fallthru
      _
    // Predicated region
    $region6: #{tpu_custom_call.1} parent=1 // pred_check
      _
    $region7: #{tpu_custom_call.1} parent=1 // pred_check_branch
      %31 = sbr.rel (0) target = $region9
    $region8: #{tpu_custom_call.1} parent=1 // pred_region
      _
    $region9: #{tpu_custom_call.1} parent=1 // pred_fallthru
      _
    // Predicated region
    $region10: #{tpu_custom_call.1} parent=1 // pred_check
      _
    $region11: #{tpu_custom_call.1} parent=1 // pred_check_branch
      %33 = sbr.rel (0) target = $region13
    $region12: #{tpu_custom_call.1} parent=1 // pred_region
      %35 = vsyncadd [#allocation6], 0
      %s36 = sshll.u32 %s2, 4
      %s37 = int_to_ptr.hbm [resolvable:$true] %s36
      %s38 = sshll.u32 [#allocation5], 4
      %s39 = int_to_ptr.vmem [resolvable:$true] %s38
      %44 = dma.hbm_to_vmem [thread:$0]  %s37, 1664, %s39, [#allocation6], 128, 128, 8
    $region13: #{tpu_custom_call.1} parent=1 // pred_fallthru
      _
    // Predicated region
    $region14: #{tpu_custom_call.1} parent=1 // pred_check
      _
    $region15: #{tpu_custom_call.1} parent=1 // pred_check_branch
      %46 = sbr.rel (0) target = $region17
    $region16: #{tpu_custom_call.1} parent=1 // pred_region
      %48 = vsyncadd [#allocation9], 0
      %s50 = sshll.u32 %s3, 4
      %s51 = int_to_ptr.hbm [resolvable:$true] %s50
      %s52 = sshll.u32 [#allocation8], 4
      %s53 = int_to_ptr.vmem [resolvable:$true] %s52
      %55 = dma.hbm_to_vmem [thread:$0]  %s51, 32, %s53, [#allocation9]
    $region17: #{tpu_custom_call.1} parent=1 // pred_fallthru
      _
    // Predicated region
    $region18: #{tpu_custom_call.1} parent=1 // pred_check
      _
    $region19: #{tpu_custom_call.1} parent=1 // pred_check_branch
      %57 = sbr.rel (0) target = $region21
    $region20: #{tpu_custom_call.1} parent=1 // pred_region
      %59 = vsyncadd [#allocation9], 0
      %s61 = sshll.u32 %s4, 4
      %s62 = int_to_ptr.hbm [resolvable:$true] %s61
      %s63 = sshll.u32 [#allocation10], 4
      %s64 = int_to_ptr.vmem [resolvable:$true] %s63
      %66 = dma.hbm_to_vmem [thread:$0]  %s62, 32, %s64, [#allocation9]
    $region21: #{tpu_custom_call.1} parent=1 // pred_fallthru
      _
    // Predicated region
    $region22: #{tpu_custom_call.1} parent=1 // pred_check
      _
    $region23: #{tpu_custom_call.1} parent=1 // pred_check_branch
      %68 = sbr.rel (0) target = $region25
    $region24: #{tpu_custom_call.1} parent=1 // pred_region
      %70 = vsyncadd [#allocation12], 0
      %s71 = sshll.u32 %s5, 4
      %s72 = int_to_ptr.hbm [resolvable:$true] %s71
      %s73 = sshll.u32 [#allocation11], 4
      %s74 = int_to_ptr.vmem [resolvable:$true] %s73
      %79 = dma.hbm_to_vmem [thread:$0]  %s72, 4096, %s74, [#allocation12], 512, 512, 32
    $region25: #{tpu_custom_call.1} parent=1 // pred_fallthru
      _
    // Predicated region
    $region26: #{tpu_custom_call.1} parent=1 // pred_check
      _
    $region27: #{tpu_custom_call.1} parent=1 // pred_check_branch
      %81 = sbr.rel (0) target = $region29
    $region28: #{tpu_custom_call.1} parent=1 // pred_region
      %83 = vsyncadd [#allocation12], 0
      %s85 = sshll.u32 %s6, 4
      %s86 = int_to_ptr.hbm [resolvable:$true] %s85
      %s87 = sshll.u32 [#allocation13], 4
      %s88 = int_to_ptr.vmem [resolvable:$true] %s87
      %90 = dma.hbm_to_vmem [thread:$0]  %s86, 64, %s88, [#allocation12]
    $region29: #{tpu_custom_call.1} parent=1 // pred_fallthru
      _
    // Predicated region
    $region30: #{tpu_custom_call.1} parent=1 // pred_check
      _
    $region31: #{tpu_custom_call.1} parent=1 // pred_check_branch
      %92 = sbr.rel (0) target = $region33
    $region32: #{tpu_custom_call.1} parent=1 // pred_region
      %94 = vsyncadd [#allocation15], 0
      %s96 = sshll.u32 %s7, 4
      %s97 = int_to_ptr.hbm [resolvable:$true] %s96
      %s98 = sshll.u32 [#allocation14], 4
      %s99 = int_to_ptr.vmem [resolvable:$true] %s98
      %101 = dma.hbm_to_vmem [thread:$0]  %s97, 64, %s99, [#allocation15]
    $region33: #{tpu_custom_call.1} parent=1 // pred_fallthru
      _
    // Predicated region
    $region34: #{tpu_custom_call.1} parent=1 // pred_check
      _
    $region35: #{tpu_custom_call.1} parent=1 // pred_check_branch
      %103 = sbr.rel (0) target = $region37
    $region36: #{tpu_custom_call.1} parent=1 // pred_region
      %105 = vsyncadd [#allocation15], 0
      %s107 = sshll.u32 %s8, 4
      %s108 = int_to_ptr.hbm [resolvable:$true] %s107
      %s109 = sshll.u32 [#allocation16], 4
      %s110 = int_to_ptr.vmem [resolvable:$true] %s109
      %112 = dma.hbm_to_vmem [thread:$0]  %s108, 64, %s110, [#allocation15]
    $region37: #{tpu_custom_call.1} parent=1 // pred_fallthru
      _
    // Predicated region
    $region38: #{tpu_custom_call.1} parent=1 // pred_check
      _
    $region39: #{tpu_custom_call.1} parent=1 // pred_check_branch
      %114 = sbr.rel (0) target = $region41
    $region40: #{tpu_custom_call.1} parent=1 // pred_region
      %116 = vsyncadd [#allocation18], 0
      %s117 = sshll.u32 %s9, 4
      %s118 = int_to_ptr.hbm [resolvable:$true] %s117
      %s119 = sshll.u32 [#allocation17], 4
      %s120 = int_to_ptr.vmem [resolvable:$true] %s119
      %125 = dma.hbm_to_vmem [thread:$0]  %s118, 16384, %s120, [#allocation18], 1024, 1024, 64
    $region41: #{tpu_custom_call.1} parent=1 // pred_fallthru
      _
    // Predicated region
    $region42: #{tpu_custom_call.1} parent=1 // pred_check
      _
    $region43: #{tpu_custom_call.1} parent=1 // pred_check_branch
      %127 = sbr.rel (0) target = $region45
    $region44: #{tpu_custom_call.1} parent=1 // pred_region
      _
    $region45: #{tpu_custom_call.1} parent=1 // pred_fallthru
      _
    // Predicated region
    $region46: #{tpu_custom_call.1} parent=1 // pred_check
      _
    $region47: #{tpu_custom_call.1} parent=1 // pred_check_branch
      %129 = sbr.rel (0) target = $region49
    $region48: #{tpu_custom_call.1} parent=1 // pred_region
      %131 = vsyncadd [#allocation18], 0
      %s133 = sshll.u32 %s11, 4
      %s134 = int_to_ptr.hbm [resolvable:$true] %s133
      %s135 = sshll.u32 [#allocation19], 4
      %s136 = int_to_ptr.vmem [resolvable:$true] %s135
      %138 = dma.hbm_to_vmem [thread:$0]  %s134, 128, %s136, [#allocation18]
    $region49: #{tpu_custom_call.1} parent=1 // pred_fallthru
      _
    // Predicated region
    $region50: #{tpu_custom_call.1} parent=1 // pred_check
      _
    $region51: #{tpu_custom_call.1} parent=1 // pred_check_branch
      %140 = sbr.rel (0) target = $region53
    $region52: #{tpu_custom_call.1} parent=1 // pred_region
      %142 = vsyncadd [#allocation21], 0
      %s144 = sshll.u32 %s12, 4
      %s145 = int_to_ptr.hbm [resolvable:$true] %s144
      %s146 = sshll.u32 [#allocation20], 4
      %s147 = int_to_ptr.vmem [resolvable:$true] %s146
      %149 = dma.hbm_to_vmem [thread:$0]  %s145, 128, %s147, [#allocation21]
    $region53: #{tpu_custom_call.1} parent=1 // pred_fallthru
      _
    // Predicated region
    $region54: #{tpu_custom_call.1} parent=1 // pred_check
      _
    $region55: #{tpu_custom_call.1} parent=1 // pred_check_branch
      %151 = sbr.rel (0) target = $region57
    $region56: #{tpu_custom_call.1} parent=1 // pred_region
      %153 = vsyncadd [#allocation21], 0
      %s154 = sshll.u32 %s13, 4
      %s155 = int_to_ptr.hbm [resolvable:$true] %s154
      %s156 = sshll.u32 [#allocation22], 4
      %s157 = int_to_ptr.vmem [resolvable:$true] %s156
      %162 = dma.hbm_to_vmem [thread:$0]  %s155, 8192, %s157, [#allocation21], 256, 256, 16
    $region57: #{tpu_custom_call.1} parent=1 // pred_fallthru
      _
    // Predicated region
    $region58: #{tpu_custom_call.1} parent=1 // pred_check
      _
    $region59: #{tpu_custom_call.1} parent=1 // pred_check_branch
      %164 = sbr.rel (0) target = $region61
    $region60: #{tpu_custom_call.1} parent=1 // pred_region
      _
    $region61: #{tpu_custom_call.1} parent=1 // pred_fallthru
      _
    // Predicated region
    $region62: #{tpu_custom_call.1} parent=1 // pred_check
      _
    $region63: #{tpu_custom_call.1} parent=1 // pred_check_branch
      %166 = sbr.rel (0) target = $region65
    $region64: #{tpu_custom_call.1} parent=1 // pred_region
      _
    $region65: #{tpu_custom_call.1} parent=1 // pred_fallthru
      _
    // Predicated region
    $region66: #{tpu_custom_call.1} parent=1 // pred_check
      _
    $region67: #{tpu_custom_call.1} parent=1 // pred_check_branch
      %168 = sbr.rel (0) target = $region69
    $region68: #{tpu_custom_call.1} parent=1 // pred_region
      %170 = dma.done [#allocation6], 1664
    $region69: #{tpu_custom_call.1} parent=1 // pred_fallthru
      _
    // Predicated region
    $region70: #{tpu_custom_call.1} parent=1 // pred_check
      _
    $region71: #{tpu_custom_call.1} parent=1 // pred_check_branch
      %172 = sbr.rel (0) target = $region73
    $region72: #{tpu_custom_call.1} parent=1 // pred_region
      %174 = dma.done [#allocation9], 32
    $region73: #{tpu_custom_call.1} parent=1 // pred_fallthru
      _
    // Predicated region
    $region74: #{tpu_custom_call.1} parent=1 // pred_check
      _
    $region75: #{tpu_custom_call.1} parent=1 // pred_check_branch
      %176 = sbr.rel (0) target = $region77
    $region76: #{tpu_custom_call.1} parent=1 // pred_region
      %178 = dma.done [#allocation9], 32
    $region77: #{tpu_custom_call.1} parent=1 // pred_fallthru
      _
    // Predicated region
    $region78: #{tpu_custom_call.1} parent=1 // pred_check
      _
    $region79: #{tpu_custom_call.1} parent=1 // pred_check_branch
      %180 = sbr.rel (0) target = $region81
    $region80: #{tpu_custom_call.1} parent=1 // pred_region
      %182 = dma.done [#allocation12], 4096
    $region81: #{tpu_custom_call.1} parent=1 // pred_fallthru
      _
    // Predicated region
    $region82: #{tpu_custom_call.1} parent=1 // pred_check
      _
    $region83: #{tpu_custom_call.1} parent=1 // pred_check_branch
      %184 = sbr.rel (0) target = $region85
    $region84: #{tpu_custom_call.1} parent=1 // pred_region
      %186 = dma.done [#allocation12], 64
    $region85: #{tpu_custom_call.1} parent=1 // pred_fallthru
      _
    // Predicated region
    $region86: #{tpu_custom_call.1} parent=1 // pred_check
      _
    $region87: #{tpu_custom_call.1} parent=1 // pred_check_branch
      %188 = sbr.rel (0) target = $region89
    $region88: #{tpu_custom_call.1} parent=1 // pred_region
      %190 = dma.done [#allocation15], 64
    $region89: #{tpu_custom_call.1} parent=1 // pred_fallthru
      _
    // Predicated region
    $region90: #{tpu_custom_call.1} parent=1 // pred_check
      _
    $region91: #{tpu_custom_call.1} parent=1 // pred_check_branch
      %192 = sbr.rel (0) target = $region93
    $region92: #{tpu_custom_call.1} parent=1 // pred_region
      %194 = dma.done [#allocation15], 64
    $region93: #{tpu_custom_call.1} parent=1 // pred_fallthru
      _
    // Predicated region
    $region94: #{tpu_custom_call.1} parent=1 // pred_check
      _
    $region95: #{tpu_custom_call.1} parent=1 // pred_check_branch
      %196 = sbr.rel (0) target = $region97
    $region96: #{tpu_custom_call.1} parent=1 // pred_region
      %198 = dma.done [#allocation18], 16384
    $region97: #{tpu_custom_call.1} parent=1 // pred_fallthru
      _
    // Predicated region
    $region98: #{tpu_custom_call.1} parent=1 // pred_check
      _
    $region99: #{tpu_custom_call.1} parent=1 // pred_check_branch
      %200 = sbr.rel (0) target = $region101
    $region100: #{tpu_custom_call.1} parent=1 // pred_region
      %202 = dma.done [#allocation18], 128
    $region101: #{tpu_custom_call.1} parent=1 // pred_fallthru
      _
    // Predicated region
    $region102: #{tpu_custom_call.1} parent=1 // pred_check
      _
    $region103: #{tpu_custom_call.1} parent=1 // pred_check_branch
      %204 = sbr.rel (0) target = $region105
    $region104: #{tpu_custom_call.1} parent=1 // pred_region
      %206 = dma.done [#allocation21], 128
    $region105: #{tpu_custom_call.1} parent=1 // pred_fallthru
      _
    // Predicated region
    $region106: #{tpu_custom_call.1} parent=1 // pred_check
      _
    $region107: #{tpu_custom_call.1} parent=1 // pred_check_branch
      %208 = sbr.rel (0) target = $region109
    $region108: #{tpu_custom_call.1} parent=1 // pred_region
      %210 = dma.done [#allocation21], 8192
    $region109: #{tpu_custom_call.1} parent=1 // pred_fallthru
      _
    %p212 = scmp.eq.s32.totalorder 0, 0
    // Predicated region
    $region110: #{tpu_custom_call.1} parent=1 // pred_check
      %p213 = pneg %p212
    $region111: #{tpu_custom_call.1} parent=1 // pred_check_branch
      %215 = sbr.rel (%p213) target = $region113
    $region112: #{tpu_custom_call.1} parent=1 // pred_region
      %v216 = vld [vmem:[#allocation11] sm:$0xff]
      %v217 = vld [vmem:[#allocation11 + $0x8] sm:$0xff]
      %v218 = vld [vmem:[#allocation11 + $0x10] sm:$0xff]
      %v219 = vld [vmem:[#allocation11 + $0x18] sm:$0xff]
      %v220 = vld [vmem:[#allocation11 + $0x20] sm:$0xff]
      %v221 = vld [vmem:[#allocation11 + $0x28] sm:$0xff]
      %v222 = vld [vmem:[#allocation11 + $0x30] sm:$0xff]
      %v223 = vld [vmem:[#allocation11 + $0x38] sm:$0xff]
      %v224 = vld [vmem:[#allocation11 + $0x40] sm:$0xff]
      %v225 = vld [vmem:[#allocation11 + $0x48] sm:$0xff]
      %v226 = vld [vmem:[#allocation11 + $0x50] sm:$0xff]
      %v227 = vld [vmem:[#allocation11 + $0x58] sm:$0xff]
      %v228 = vld [vmem:[#allocation11 + $0x60] sm:$0xff]
      %v229 = vld [vmem:[#allocation11 + $0x68] sm:$0xff]
      %v230 = vld [vmem:[#allocation11 + $0x70] sm:$0xff]
      %v231 = vld [vmem:[#allocation11 + $0x78] sm:$0xff]
      %v232 = vld [vmem:[#allocation11 + $0x80] sm:$0xff]
      %v233 = vld [vmem:[#allocation11 + $0x88] sm:$0xff]
      %v234 = vld [vmem:[#allocation11 + $0x90] sm:$0xff]
      %v235 = vld [vmem:[#allocation11 + $0x98] sm:$0xff]
      %v236 = vld [vmem:[#allocation11 + $0xa0] sm:$0xff]
      %v237 = vld [vmem:[#allocation11 + $0xa8] sm:$0xff]
      %v238 = vld [vmem:[#allocation11 + $0xb0] sm:$0xff]
      %v239 = vld [vmem:[#allocation11 + $0xb8] sm:$0xff]
      %v240 = vld [vmem:[#allocation11 + $0xc0] sm:$0xff]
      %v241 = vld [vmem:[#allocation11 + $0xc8] sm:$0xff]
      %v242 = vld [vmem:[#allocation11 + $0xd0] sm:$0xff]
      %v243 = vld [vmem:[#allocation11 + $0xd8] sm:$0xff]
      %v244 = vld [vmem:[#allocation11 + $0xe0] sm:$0xff]
      %v245 = vld [vmem:[#allocation11 + $0xe8] sm:$0xff]
      %v246 = vld [vmem:[#allocation11 + $0xf0] sm:$0xff]
      %v247 = vld [vmem:[#allocation11 + $0xf8] sm:$0xff]
      %v248 = vunpack.c.0.s8 %v216
      %v249 = vunpack.c.0.s8 %v217
      %v250 = vunpack.c.0.s8 %v218
      %v251 = vunpack.c.0.s8 %v219
      %v252 = vunpack.c.1.s8 %v216
      %v253 = vunpack.c.1.s8 %v217
      %v254 = vunpack.c.1.s8 %v218
      %v255 = vunpack.c.1.s8 %v219
      %v256 = vunpack.c.2.s8 %v216
      %v257 = vunpack.c.2.s8 %v217
      %v258 = vunpack.c.2.s8 %v218
      %v259 = vunpack.c.2.s8 %v219
      %v260 = vunpack.c.3.s8 %v216
      %v261 = vunpack.c.3.s8 %v217
      %v262 = vunpack.c.3.s8 %v218
      %v263 = vunpack.c.3.s8 %v219
      %v264 = vunpack.c.0.s8 %v220
      %v265 = vunpack.c.0.s8 %v221
      %v266 = vunpack.c.0.s8 %v222
      %v267 = vunpack.c.0.s8 %v223
      %v268 = vunpack.c.1.s8 %v220
      %v269 = vunpack.c.1.s8 %v221
      %v270 = vunpack.c.1.s8 %v222
      %v271 = vunpack.c.1.s8 %v223
      %v272 = vunpack.c.2.s8 %v220
      %v273 = vunpack.c.2.s8 %v221
      %v274 = vunpack.c.2.s8 %v222
      %v275 = vunpack.c.2.s8 %v223
      %v276 = vunpack.c.3.s8 %v220
      %v277 = vunpack.c.3.s8 %v221
      %v278 = vunpack.c.3.s8 %v222
      %v279 = vunpack.c.3.s8 %v223
      %v280 = vunpack.c.0.s8 %v224
      %v281 = vunpack.c.0.s8 %v225
      %v282 = vunpack.c.0.s8 %v226
      %v283 = vunpack.c.0.s8 %v227
      %v284 = vunpack.c.1.s8 %v224
      %v285 = vunpack.c.1.s8 %v225
      %v286 = vunpack.c.1.s8 %v226
      %v287 = vunpack.c.1.s8 %v227
      %v288 = vunpack.c.2.s8 %v224
      %v289 = vunpack.c.2.s8 %v225
      %v290 = vunpack.c.2.s8 %v226
      %v291 = vunpack.c.2.s8 %v227
      %v292 = vunpack.c.3.s8 %v224
      %v293 = vunpack.c.3.s8 %v225
      %v294 = vunpack.c.3.s8 %v226
      %v295 = vunpack.c.3.s8 %v227
      %v296 = vunpack.c.0.s8 %v228
      %v297 = vunpack.c.0.s8 %v229
      %v298 = vunpack.c.0.s8 %v230
      %v299 = vunpack.c.0.s8 %v231
      %v300 = vunpack.c.1.s8 %v228
      %v301 = vunpack.c.1.s8 %v229
      %v302 = vunpack.c.1.s8 %v230
      %v303 = vunpack.c.1.s8 %v231
      %v304 = vunpack.c.2.s8 %v228
      %v305 = vunpack.c.2.s8 %v229
      %v306 = vunpack.c.2.s8 %v230
      %v307 = vunpack.c.2.s8 %v231
      %v308 = vunpack.c.3.s8 %v228
      %v309 = vunpack.c.3.s8 %v229
      %v310 = vunpack.c.3.s8 %v230
      %v311 = vunpack.c.3.s8 %v231
      %v312 = vunpack.c.0.s8 %v232
      %v313 = vunpack.c.0.s8 %v233
      %v314 = vunpack.c.0.s8 %v234
      %v315 = vunpack.c.0.s8 %v235
      %v316 = vunpack.c.1.s8 %v232
      %v317 = vunpack.c.1.s8 %v233
      %v318 = vunpack.c.1.s8 %v234
      %v319 = vunpack.c.1.s8 %v235
      %v320 = vunpack.c.2.s8 %v232
      %v321 = vunpack.c.2.s8 %v233
      %v322 = vunpack.c.2.s8 %v234
      %v323 = vunpack.c.2.s8 %v235
      %v324 = vunpack.c.3.s8 %v232
      %v325 = vunpack.c.3.s8 %v233
      %v326 = vunpack.c.3.s8 %v234
      %v327 = vunpack.c.3.s8 %v235
      %v328 = vunpack.c.0.s8 %v236
      %v329 = vunpack.c.0.s8 %v237
      %v330 = vunpack.c.0.s8 %v238
      %v331 = vunpack.c.0.s8 %v239
      %v332 = vunpack.c.1.s8 %v236
      %v333 = vunpack.c.1.s8 %v237
      %v334 = vunpack.c.1.s8 %v238
      %v335 = vunpack.c.1.s8 %v239
      %v336 = vunpack.c.2.s8 %v236
      %v337 = vunpack.c.2.s8 %v237
      %v338 = vunpack.c.2.s8 %v238
      %v339 = vunpack.c.2.s8 %v239
      %v340 = vunpack.c.3.s8 %v236
      %v341 = vunpack.c.3.s8 %v237
      %v342 = vunpack.c.3.s8 %v238
      %v343 = vunpack.c.3.s8 %v239
      %v344 = vunpack.c.0.s8 %v240
      %v345 = vunpack.c.0.s8 %v241
      %v346 = vunpack.c.0.s8 %v242
      %v347 = vunpack.c.0.s8 %v243
      %v348 = vunpack.c.1.s8 %v240
      %v349 = vunpack.c.1.s8 %v241
      %v350 = vunpack.c.1.s8 %v242
      %v351 = vunpack.c.1.s8 %v243
      %v352 = vunpack.c.2.s8 %v240
      %v353 = vunpack.c.2.s8 %v241
      %v354 = vunpack.c.2.s8 %v242
      %v355 = vunpack.c.2.s8 %v243
      %v356 = vunpack.c.3.s8 %v240
      %v357 = vunpack.c.3.s8 %v241
      %v358 = vunpack.c.3.s8 %v242
      %v359 = vunpack.c.3.s8 %v243
      %v360 = vunpack.c.0.s8 %v244
      %v361 = vunpack.c.0.s8 %v245
      %v362 = vunpack.c.0.s8 %v246
      %v363 = vunpack.c.0.s8 %v247
      %v364 = vunpack.c.1.s8 %v244
      %v365 = vunpack.c.1.s8 %v245
      %v366 = vunpack.c.1.s8 %v246
      %v367 = vunpack.c.1.s8 %v247
      %v368 = vunpack.c.2.s8 %v244
      %v369 = vunpack.c.2.s8 %v245
      %v370 = vunpack.c.2.s8 %v246
      %v371 = vunpack.c.2.s8 %v247
      %v372 = vunpack.c.3.s8 %v244
      %v373 = vunpack.c.3.s8 %v245
      %v374 = vunpack.c.3.s8 %v246
      %v375 = vunpack.c.3.s8 %v247
      %v376 = vcvt.s32.f32 %v248
      %v377 = vcvt.s32.f32 %v249
      %v378 = vcvt.s32.f32 %v250
      %v379 = vcvt.s32.f32 %v251
      %v380 = vcvt.s32.f32 %v252
      %v381 = vcvt.s32.f32 %v253
      %v382 = vcvt.s32.f32 %v254
      %v383 = vcvt.s32.f32 %v255
      %v384 = vcvt.s32.f32 %v256
      %v385 = vcvt.s32.f32 %v257
      %v386 = vcvt.s32.f32 %v258
      %v387 = vcvt.s32.f32 %v259
      %v388 = vcvt.s32.f32 %v260
      %v389 = vcvt.s32.f32 %v261
      %v390 = vcvt.s32.f32 %v262
      %v391 = vcvt.s32.f32 %v263
      %v392 = vcvt.s32.f32 %v264
      %v393 = vcvt.s32.f32 %v265
      %v394 = vcvt.s32.f32 %v266
      %v395 = vcvt.s32.f32 %v267
      %v396 = vcvt.s32.f32 %v268
      %v397 = vcvt.s32.f32 %v269
      %v398 = vcvt.s32.f32 %v270
      %v399 = vcvt.s32.f32 %v271
      %v400 = vcvt.s32.f32 %v272
      %v401 = vcvt.s32.f32 %v273
      %v402 = vcvt.s32.f32 %v274
      %v403 = vcvt.s32.f32 %v275
      %v404 = vcvt.s32.f32 %v276
      %v405 = vcvt.s32.f32 %v277
      %v406 = vcvt.s32.f32 %v278
      %v407 = vcvt.s32.f32 %v279
      %v408 = vcvt.s32.f32 %v280
      %v409 = vcvt.s32.f32 %v281
      %v410 = vcvt.s32.f32 %v282
      %v411 = vcvt.s32.f32 %v283
      %v412 = vcvt.s32.f32 %v284
      %v413 = vcvt.s32.f32 %v285
      %v414 = vcvt.s32.f32 %v286
      %v415 = vcvt.s32.f32 %v287
      %v416 = vcvt.s32.f32 %v288
      %v417 = vcvt.s32.f32 %v289
      %v418 = vcvt.s32.f32 %v290
      %v419 = vcvt.s32.f32 %v291
      %v420 = vcvt.s32.f32 %v292
      %v421 = vcvt.s32.f32 %v293
      %v422 = vcvt.s32.f32 %v294
      %v423 = vcvt.s32.f32 %v295
      %v424 = vcvt.s32.f32 %v296
      %v425 = vcvt.s32.f32 %v297
      %v426 = vcvt.s32.f32 %v298
      %v427 = vcvt.s32.f32 %v299
      %v428 = vcvt.s32.f32 %v300
      %v429 = vcvt.s32.f32 %v301
      %v430 = vcvt.s32.f32 %v302
      %v431 = vcvt.s32.f32 %v303
      %v432 = vcvt.s32.f32 %v304
      %v433 = vcvt.s32.f32 %v305
      %v434 = vcvt.s32.f32 %v306
      %v435 = vcvt.s32.f32 %v307
      %v436 = vcvt.s32.f32 %v308
      %v437 = vcvt.s32.f32 %v309
      %v438 = vcvt.s32.f32 %v310
      %v439 = vcvt.s32.f32 %v311
      %v440 = vcvt.s32.f32 %v312
      %v441 = vcvt.s32.f32 %v313
      %v442 = vcvt.s32.f32 %v314
      %v443 = vcvt.s32.f32 %v315
      %v444 = vcvt.s32.f32 %v316
      %v445 = vcvt.s32.f32 %v317
      %v446 = vcvt.s32.f32 %v318
      %v447 = vcvt.s32.f32 %v319
      %v448 = vcvt.s32.f32 %v320
      %v449 = vcvt.s32.f32 %v321
      %v450 = vcvt.s32.f32 %v322
      %v451 = vcvt.s32.f32 %v323
      %v452 = vcvt.s32.f32 %v324
      %v453 = vcvt.s32.f32 %v325
      %v454 = vcvt.s32.f32 %v326
      %v455 = vcvt.s32.f32 %v327
      %v456 = vcvt.s32.f32 %v328
      %v457 = vcvt.s32.f32 %v329
      %v458 = vcvt.s32.f32 %v330
      %v459 = vcvt.s32.f32 %v331
      %v460 = vcvt.s32.f32 %v332
      %v461 = vcvt.s32.f32 %v333
      %v462 = vcvt.s32.f32 %v334
      %v463 = vcvt.s32.f32 %v335
      %v464 = vcvt.s32.f32 %v336
      %v465 = vcvt.s32.f32 %v337
      %v466 = vcvt.s32.f32 %v338
      %v467 = vcvt.s32.f32 %v339
      %v468 = vcvt.s32.f32 %v340
      %v469 = vcvt.s32.f32 %v341
      %v470 = vcvt.s32.f32 %v342
      %v471 = vcvt.s32.f32 %v343
      %v472 = vcvt.s32.f32 %v344
      %v473 = vcvt.s32.f32 %v345
      %v474 = vcvt.s32.f32 %v346
      %v475 = vcvt.s32.f32 %v347
      %v476 = vcvt.s32.f32 %v348
      %v477 = vcvt.s32.f32 %v349
      %v478 = vcvt.s32.f32 %v350
      %v479 = vcvt.s32.f32 %v351
      %v480 = vcvt.s32.f32 %v352
      %v481 = vcvt.s32.f32 %v353
      %v482 = vcvt.s32.f32 %v354
      %v483 = vcvt.s32.f32 %v355
      %v484 = vcvt.s32.f32 %v356
      %v485 = vcvt.s32.f32 %v357
      %v486 = vcvt.s32.f32 %v358
      %v487 = vcvt.s32.f32 %v359
      %v488 = vcvt.s32.f32 %v360
      %v489 = vcvt.s32.f32 %v361
      %v490 = vcvt.s32.f32 %v362
      %v491 = vcvt.s32.f32 %v363
      %v492 = vcvt.s32.f32 %v364
      %v493 = vcvt.s32.f32 %v365
      %v494 = vcvt.s32.f32 %v366
      %v495 = vcvt.s32.f32 %v367
      %v496 = vcvt.s32.f32 %v368
      %v497 = vcvt.s32.f32 %v369
      %v498 = vcvt.s32.f32 %v370
      %v499 = vcvt.s32.f32 %v371
      %v500 = vcvt.s32.f32 %v372
      %v501 = vcvt.s32.f32 %v373
      %v502 = vcvt.s32.f32 %v374
      %v503 = vcvt.s32.f32 %v375
      %v504 = vpack.c.bf16 %v377, %v376
      %v505 = vpack.c.bf16 %v379, %v378
      %v506 = vpack.c.bf16 %v381, %v380
      %v507 = vpack.c.bf16 %v383, %v382
      %v508 = vpack.c.bf16 %v385, %v384
      %v509 = vpack.c.bf16 %v387, %v386
      %v510 = vpack.c.bf16 %v389, %v388
      %v511 = vpack.c.bf16 %v391, %v390
      %v512 = vpack.c.bf16 %v393, %v392
      %v513 = vpack.c.bf16 %v395, %v394
      %v514 = vpack.c.bf16 %v397, %v396
      %v515 = vpack.c.bf16 %v399, %v398
      %v516 = vpack.c.bf16 %v401, %v400
      %v517 = vpack.c.bf16 %v403, %v402
      %v518 = vpack.c.bf16 %v405, %v404
      %v519 = vpack.c.bf16 %v407, %v406
      %v520 = vpack.c.bf16 %v409, %v408
      %v521 = vpack.c.bf16 %v411, %v410
      %v522 = vpack.c.bf16 %v413, %v412
      %v523 = vpack.c.bf16 %v415, %v414
      %v524 = vpack.c.bf16 %v417, %v416
      %v525 = vpack.c.bf16 %v419, %v418
      %v526 = vpack.c.bf16 %v421, %v420
      %v527 = vpack.c.bf16 %v423, %v422
      %v528 = vpack.c.bf16 %v425, %v424
      %v529 = vpack.c.bf16 %v427, %v426
      %v530 = vpack.c.bf16 %v429, %v428
      %v531 = vpack.c.bf16 %v431, %v430
      %v532 = vpack.c.bf16 %v433, %v432
      %v533 = vpack.c.bf16 %v435, %v434
      %v534 = vpack.c.bf16 %v437, %v436
      %v535 = vpack.c.bf16 %v439, %v438
      %v536 = vpack.c.bf16 %v441, %v440
      %v537 = vpack.c.bf16 %v443, %v442
      %v538 = vpack.c.bf16 %v445, %v444
      %v539 = vpack.c.bf16 %v447, %v446
      %v540 = vpack.c.bf16 %v449, %v448
      %v541 = vpack.c.bf16 %v451, %v450
      %v542 = vpack.c.bf16 %v453, %v452
      %v543 = vpack.c.bf16 %v455, %v454
      %v544 = vpack.c.bf16 %v457, %v456
      %v545 = vpack.c.bf16 %v459, %v458
      %v546 = vpack.c.bf16 %v461, %v460
      %v547 = vpack.c.bf16 %v463, %v462
      %v548 = vpack.c.bf16 %v465, %v464
      %v549 = vpack.c.bf16 %v467, %v466
      %v550 = vpack.c.bf16 %v469, %v468
      %v551 = vpack.c.bf16 %v471, %v470
      %v552 = vpack.c.bf16 %v473, %v472
      %v553 = vpack.c.bf16 %v475, %v474
      %v554 = vpack.c.bf16 %v477, %v476
      %v555 = vpack.c.bf16 %v479, %v478
      %v556 = vpack.c.bf16 %v481, %v480
      %v557 = vpack.c.bf16 %v483, %v482
      %v558 = vpack.c.bf16 %v485, %v484
      %v559 = vpack.c.bf16 %v487, %v486
      %v560 = vpack.c.bf16 %v489, %v488
      %v561 = vpack.c.bf16 %v491, %v490
      %v562 = vpack.c.bf16 %v493, %v492
      %v563 = vpack.c.bf16 %v495, %v494
      %v564 = vpack.c.bf16 %v497, %v496
      %v565 = vpack.c.bf16 %v499, %v498
      %v566 = vpack.c.bf16 %v501, %v500
      %v567 = vpack.c.bf16 %v503, %v502
      %568 = vst [vmem:[#allocation2] sm:$0xff] %v504
      %569 = vst [vmem:[#allocation2 + $0x8] sm:$0xff] %v505
      %570 = vst [vmem:[#allocation2 + $0x10] sm:$0xff] %v506
      %571 = vst [vmem:[#allocation2 + $0x18] sm:$0xff] %v507
      %572 = vst [vmem:[#allocation2 + $0x20] sm:$0xff] %v508
      %573 = vst [vmem:[#allocation2 + $0x28] sm:$0xff] %v509
      %574 = vst [vmem:[#allocation2 + $0x30] sm:$0xff] %v510
      %575 = vst [vmem:[#allocation2 + $0x38] sm:$0xff] %v511
      %576 = vst [vmem:[#allocation2 + $0x40] sm:$0xff] %v512
      %577 = vst [vmem:[#allocation2 + $0x48] sm:$0xff] %v513
      %578 = vst [vmem:[#allocation2 + $0x50] sm:$0xff] %v514
      %579 = vst [vmem:[#allocation2 + $0x58] sm:$0xff] %v515
      %580 = vst [vmem:[#allocation2 + $0x60] sm:$0xff] %v516
      %581 = vst [vmem:[#allocation2 + $0x68] sm:$0xff] %v517
      %582 = vst [vmem:[#allocation2 + $0x70] sm:$0xff] %v518
      %583 = vst [vmem:[#allocation2 + $0x78] sm:$0xff] %v519
      %584 = vst [vmem:[#allocation2 + $0x80] sm:$0xff] %v520
      %585 = vst [vmem:[#allocation2 + $0x88] sm:$0xff] %v521
      %586 = vst [vmem:[#allocation2 + $0x90] sm:$0xff] %v522
      %587 = vst [vmem:[#allocation2 + $0x98] sm:$0xff] %v523
      %588 = vst [vmem:[#allocation2 + $0xa0] sm:$0xff] %v524
      %589 = vst [vmem:[#allocation2 + $0xa8] sm:$0xff] %v525
      %590 = vst [vmem:[#allocation2 + $0xb0] sm:$0xff] %v526
      %591 = vst [vmem:[#allocation2 + $0xb8] sm:$0xff] %v527
      %592 = vst [vmem:[#allocation2 + $0xc0] sm:$0xff] %v528
      %593 = vst [vmem:[#allocation2 + $0xc8] sm:$0xff] %v529
      %594 = vst [vmem:[#allocation2 + $0xd0] sm:$0xff] %v530
      %595 = vst [vmem:[#allocation2 + $0xd8] sm:$0xff] %v531
      %596 = vst [vmem:[#allocation2 + $0xe0] sm:$0xff] %v532
      %597 = vst [vmem:[#allocation2 + $0xe8] sm:$0xff] %v533
      %598 = vst [vmem:[#allocation2 + $0xf0] sm:$0xff] %v534
      %599 = vst [vmem:[#allocation2 + $0xf8] sm:$0xff] %v535
      %600 = vst [vmem:[#allocation2 + $0x100] sm:$0xff] %v536
      %601 = vst [vmem:[#allocation2 + $0x108] sm:$0xff] %v537
      %602 = vst [vmem:[#allocation2 + $0x110] sm:$0xff] %v538
      %603 = vst [vmem:[#allocation2 + $0x118] sm:$0xff] %v539
      %604 = vst [vmem:[#allocation2 + $0x120] sm:$0xff] %v540
      %605 = vst [vmem:[#allocation2 + $0x128] sm:$0xff] %v541
      %606 = vst [vmem:[#allocation2 + $0x130] sm:$0xff] %v542
      %607 = vst [vmem:[#allocation2 + $0x138] sm:$0xff] %v543
      %608 = vst [vmem:[#allocation2 + $0x140] sm:$0xff] %v544
      %609 = vst [vmem:[#allocation2 + $0x148] sm:$0xff] %v545
      %610 = vst [vmem:[#allocation2 + $0x150] sm:$0xff] %v546
      %611 = vst [vmem:[#allocation2 + $0x158] sm:$0xff] %v547
      %612 = vst [vmem:[#allocation2 + $0x160] sm:$0xff] %v548
      %613 = vst [vmem:[#allocation2 + $0x168] sm:$0xff] %v549
      %614 = vst [vmem:[#allocation2 + $0x170] sm:$0xff] %v550
      %615 = vst [vmem:[#allocation2 + $0x178] sm:$0xff] %v551
      %616 = vst [vmem:[#allocation2 + $0x180] sm:$0xff] %v552
      %617 = vst [vmem:[#allocation2 + $0x188] sm:$0xff] %v553
      %618 = vst [vmem:[#allocation2 + $0x190] sm:$0xff] %v554
      %619 = vst [vmem:[#allocation2 + $0x198] sm:$0xff] %v555
      %620 = vst [vmem:[#allocation2 + $0x1a0] sm:$0xff] %v556
      %621 = vst [vmem:[#allocation2 + $0x1a8] sm:$0xff] %v557
      %622 = vst [vmem:[#allocation2 + $0x1b0] sm:$0xff] %v558
      %623 = vst [vmem:[#allocation2 + $0x1b8] sm:$0xff] %v559
      %624 = vst [vmem:[#allocation2 + $0x1c0] sm:$0xff] %v560
      %625 = vst [vmem:[#allocation2 + $0x1c8] sm:$0xff] %v561
      %626 = vst [vmem:[#allocation2 + $0x1d0] sm:$0xff] %v562
      %627 = vst [vmem:[#allocation2 + $0x1d8] sm:$0xff] %v563
      %628 = vst [vmem:[#allocation2 + $0x1e0] sm:$0xff] %v564
      %629 = vst [vmem:[#allocation2 + $0x1e8] sm:$0xff] %v565
      %630 = vst [vmem:[#allocation2 + $0x1f0] sm:$0xff] %v566
      %631 = vst [vmem:[#allocation2 + $0x1f8] sm:$0xff] %v567
      %v632 = vld [vmem:[#allocation17] sm:$0xff]
      %v633 = vld [vmem:[#allocation17 + $0x8] sm:$0xff]
      %v634 = vld [vmem:[#allocation17 + $0x10] sm:$0xff]
      %v635 = vld [vmem:[#allocation17 + $0x18] sm:$0xff]
      %v636 = vld [vmem:[#allocation17 + $0x20] sm:$0xff]
      %v637 = vld [vmem:[#allocation17 + $0x28] sm:$0xff]
      %v638 = vld [vmem:[#allocation17 + $0x30] sm:$0xff]
      %v639 = vld [vmem:[#allocation17 + $0x38] sm:$0xff]
      %v640 = vld [vmem:[#allocation17 + $0x40] sm:$0xff]
      %v641 = vld [vmem:[#allocation17 + $0x48] sm:$0xff]
      %v642 = vld [vmem:[#allocation17 + $0x50] sm:$0xff]
      %v643 = vld [vmem:[#allocation17 + $0x58] sm:$0xff]
      %v644 = vld [vmem:[#allocation17 + $0x60] sm:$0xff]
      %v645 = vld [vmem:[#allocation17 + $0x68] sm:$0xff]
      %v646 = vld [vmem:[#allocation17 + $0x70] sm:$0xff]
      %v647 = vld [vmem:[#allocation17 + $0x78] sm:$0xff]
      %v648 = vld [vmem:[#allocation17 + $0x80] sm:$0xff]
      %v649 = vld [vmem:[#allocation17 + $0x88] sm:$0xff]
      %v650 = vld [vmem:[#allocation17 + $0x90] sm:$0xff]
      %v651 = vld [vmem:[#allocation17 + $0x98] sm:$0xff]
      %v652 = vld [vmem:[#allocation17 + $0xa0] sm:$0xff]
      %v653 = vld [vmem:[#allocation17 + $0xa8] sm:$0xff]
      %v654 = vld [vmem:[#allocation17 + $0xb0] sm:$0xff]
      %v655 = vld [vmem:[#allocation17 + $0xb8] sm:$0xff]
      %v656 = vld [vmem:[#allocation17 + $0xc0] sm:$0xff]
      %v657 = vld [vmem:[#allocation17 + $0xc8] sm:$0xff]
      %v658 = vld [vmem:[#allocation17 + $0xd0] sm:$0xff]
      %v659 = vld [vmem:[#allocation17 + $0xd8] sm:$0xff]
      %v660 = vld [vmem:[#allocation17 + $0xe0] sm:$0xff]
      %v661 = vld [vmem:[#allocation17 + $0xe8] sm:$0xff]
      %v662 = vld [vmem:[#allocation17 + $0xf0] sm:$0xff]
      %v663 = vld [vmem:[#allocation17 + $0xf8] sm:$0xff]
      %v664 = vld [vmem:[#allocation17 + $0x100] sm:$0xff]
      %v665 = vld [vmem:[#allocation17 + $0x108] sm:$0xff]
      %v666 = vld [vmem:[#allocation17 + $0x110] sm:$0xff]
      %v667 = vld [vmem:[#allocation17 + $0x118] sm:$0xff]
      %v668 = vld [vmem:[#allocation17 + $0x120] sm:$0xff]
      %v669 = vld [vmem:[#allocation17 + $0x128] sm:$0xff]
      %v670 = vld [vmem:[#allocation17 + $0x130] sm:$0xff]
      %v671 = vld [vmem:[#allocation17 + $0x138] sm:$0xff]
      %v672 = vld [vmem:[#allocation17 + $0x140] sm:$0xff]
      %v673 = vld [vmem:[#allocation17 + $0x148] sm:$0xff]
      %v674 = vld [vmem:[#allocation17 + $0x150] sm:$0xff]
      %v675 = vld [vmem:[#allocation17 + $0x158] sm:$0xff]
      %v676 = vld [vmem:[#allocation17 + $0x160] sm:$0xff]
      %v677 = vld [vmem:[#allocation17 + $0x168] sm:$0xff]
      %v678 = vld [vmem:[#allocation17 + $0x170] sm:$0xff]
      %v679 = vld [vmem:[#allocation17 + $0x178] sm:$0xff]
      %v680 = vld [vmem:[#allocation17 + $0x180] sm:$0xff]
      %v681 = vld [vmem:[#allocation17 + $0x188] sm:$0xff]
      %v682 = vld [vmem:[#allocation17 + $0x190] sm:$0xff]
      %v683 = vld [vmem:[#allocation17 + $0x198] sm:$0xff]
      %v684 = vld [vmem:[#allocation17 + $0x1a0] sm:$0xff]
      %v685 = vld [vmem:[#allocation17 + $0x1a8] sm:$0xff]
      %v686 = vld [vmem:[#allocation17 + $0x1b0] sm:$0xff]
      %v687 = vld [vmem:[#allocation17 + $0x1b8] sm:$0xff]
      %v688 = vld [vmem:[#allocation17 + $0x1c0] sm:$0xff]
      %v689 = vld [vmem:[#allocation17 + $0x1c8] sm:$0xff]
      %v690 = vld [vmem:[#allocation17 + $0x1d0] sm:$0xff]
      %v691 = vld [vmem:[#allocation17 + $0x1d8] sm:$0xff]
      %v692 = vld [vmem:[#allocation17 + $0x1e0] sm:$0xff]
      %v693 = vld [vmem:[#allocation17 + $0x1e8] sm:$0xff]
      %v694 = vld [vmem:[#allocation17 + $0x1f0] sm:$0xff]
      %v695 = vld [vmem:[#allocation17 + $0x1f8] sm:$0xff]
      %v696 = vld [vmem:[#allocation17 + $0x200] sm:$0xff]
      %v697 = vld [vmem:[#allocation17 + $0x208] sm:$0xff]
      %v698 = vld [vmem:[#allocation17 + $0x210] sm:$0xff]
      %v699 = vld [vmem:[#allocation17 + $0x218] sm:$0xff]
      %v700 = vld [vmem:[#allocation17 + $0x220] sm:$0xff]
      %v701 = vld [vmem:[#allocation17 + $0x228] sm:$0xff]
      %v702 = vld [vmem:[#allocation17 + $0x230] sm:$0xff]
      %v703 = vld [vmem:[#allocation17 + $0x238] sm:$0xff]
      %v704 = vld [vmem:[#allocation17 + $0x240] sm:$0xff]
      %v705 = vld [vmem:[#allocation17 + $0x248] sm:$0xff]
      %v706 = vld [vmem:[#allocation17 + $0x250] sm:$0xff]
      %v707 = vld [vmem:[#allocation17 + $0x258] sm:$0xff]
      %v708 = vld [vmem:[#allocation17 + $0x260] sm:$0xff]
      %v709 = vld [vmem:[#allocation17 + $0x268] sm:$0xff]
      %v710 = vld [vmem:[#allocation17 + $0x270] sm:$0xff]
      %v711 = vld [vmem:[#allocation17 + $0x278] sm:$0xff]
      %v712 = vld [vmem:[#allocation17 + $0x280] sm:$0xff]
      %v713 = vld [vmem:[#allocation17 + $0x288] sm:$0xff]
      %v714 = vld [vmem:[#allocation17 + $0x290] sm:$0xff]
      %v715 = vld [vmem:[#allocation17 + $0x298] sm:$0xff]
      %v716 = vld [vmem:[#allocation17 + $0x2a0] sm:$0xff]
      %v717 = vld [vmem:[#allocation17 + $0x2a8] sm:$0xff]
      %v718 = vld [vmem:[#allocation17 + $0x2b0] sm:$0xff]
      %v719 = vld [vmem:[#allocation17 + $0x2b8] sm:$0xff]
      %v720 = vld [vmem:[#allocation17 + $0x2c0] sm:$0xff]
      %v721 = vld [vmem:[#allocation17 + $0x2c8] sm:$0xff]
      %v722 = vld [vmem:[#allocation17 + $0x2d0] sm:$0xff]
      %v723 = vld [vmem:[#allocation17 + $0x2d8] sm:$0xff]
      %v724 = vld [vmem:[#allocation17 + $0x2e0] sm:$0xff]
      %v725 = vld [vmem:[#allocation17 + $0x2e8] sm:$0xff]
      %v726 = vld [vmem:[#allocation17 + $0x2f0] sm:$0xff]
      %v727 = vld [vmem:[#allocation17 + $0x2f8] sm:$0xff]
      %v728 = vld [vmem:[#allocation17 + $0x300] sm:$0xff]
      %v729 = vld [vmem:[#allocation17 + $0x308] sm:$0xff]
      %v730 = vld [vmem:[#allocation17 + $0x310] sm:$0xff]
      %v731 = vld [vmem:[#allocation17 + $0x318] sm:$0xff]
      %v732 = vld [vmem:[#allocation17 + $0x320] sm:$0xff]
      %v733 = vld [vmem:[#allocation17 + $0x328] sm:$0xff]
      %v734 = vld [vmem:[#allocation17 + $0x330] sm:$0xff]
      %v735 = vld [vmem:[#allocation17 + $0x338] sm:$0xff]
      %v736 = vld [vmem:[#allocation17 + $0x340] sm:$0xff]
      %v737 = vld [vmem:[#allocation17 + $0x348] sm:$0xff]
      %v738 = vld [vmem:[#allocation17 + $0x350] sm:$0xff]
      %v739 = vld [vmem:[#allocation17 + $0x358] sm:$0xff]
      %v740 = vld [vmem:[#allocation17 + $0x360] sm:$0xff]
      %v741 = vld [vmem:[#allocation17 + $0x368] sm:$0xff]
      %v742 = vld [vmem:[#allocation17 + $0x370] sm:$0xff]
      %v743 = vld [vmem:[#allocation17 + $0x378] sm:$0xff]
      %v744 = vld [vmem:[#allocation17 + $0x380] sm:$0xff]
      %v745 = vld [vmem:[#allocation17 + $0x388] sm:$0xff]
      %v746 = vld [vmem:[#allocation17 + $0x390] sm:$0xff]
      %v747 = vld [vmem:[#allocation17 + $0x398] sm:$0xff]
      %v748 = vld [vmem:[#allocation17 + $0x3a0] sm:$0xff]
      %v749 = vld [vmem:[#allocation17 + $0x3a8] sm:$0xff]
      %v750 = vld [vmem:[#allocation17 + $0x3b0] sm:$0xff]
      %v751 = vld [vmem:[#allocation17 + $0x3b8] sm:$0xff]
      %v752 = vld [vmem:[#allocation17 + $0x3c0] sm:$0xff]
      %v753 = vld [vmem:[#allocation17 + $0x3c8] sm:$0xff]
      %v754 = vld [vmem:[#allocation17 + $0x3d0] sm:$0xff]
      %v755 = vld [vmem:[#allocation17 + $0x3d8] sm:$0xff]
      %v756 = vld [vmem:[#allocation17 + $0x3e0] sm:$0xff]
      %v757 = vld [vmem:[#allocation17 + $0x3e8] sm:$0xff]
      %v758 = vld [vmem:[#allocation17 + $0x3f0] sm:$0xff]
      %v759 = vld [vmem:[#allocation17 + $0x3f8] sm:$0xff]
      %v760 = vunpack.c.0.s8 %v632
      %v761 = vunpack.c.0.s8 %v633
      %v762 = vunpack.c.0.s8 %v634
      %v763 = vunpack.c.0.s8 %v635
      %v764 = vunpack.c.0.s8 %v636
      %v765 = vunpack.c.0.s8 %v637
      %v766 = vunpack.c.0.s8 %v638
      %v767 = vunpack.c.0.s8 %v639
      %v768 = vunpack.c.1.s8 %v632
      %v769 = vunpack.c.1.s8 %v633
      %v770 = vunpack.c.1.s8 %v634
      %v771 = vunpack.c.1.s8 %v635
      %v772 = vunpack.c.1.s8 %v636
      %v773 = vunpack.c.1.s8 %v637
      %v774 = vunpack.c.1.s8 %v638
      %v775 = vunpack.c.1.s8 %v639
      %v776 = vunpack.c.2.s8 %v632
      %v777 = vunpack.c.2.s8 %v633
      %v778 = vunpack.c.2.s8 %v634
      %v779 = vunpack.c.2.s8 %v635
      %v780 = vunpack.c.2.s8 %v636
      %v781 = vunpack.c.2.s8 %v637
      %v782 = vunpack.c.2.s8 %v638
      %v783 = vunpack.c.2.s8 %v639
      %v784 = vunpack.c.3.s8 %v632
      %v785 = vunpack.c.3.s8 %v633
      %v786 = vunpack.c.3.s8 %v634
      %v787 = vunpack.c.3.s8 %v635
      %v788 = vunpack.c.3.s8 %v636
      %v789 = vunpack.c.3.s8 %v637
      %v790 = vunpack.c.3.s8 %v638
      %v791 = vunpack.c.3.s8 %v639
      %v792 = vunpack.c.0.s8 %v640
      %v793 = vunpack.c.0.s8 %v641
      %v794 = vunpack.c.0.s8 %v642
      %v795 = vunpack.c.0.s8 %v643
      %v796 = vunpack.c.0.s8 %v644
      %v797 = vunpack.c.0.s8 %v645
      %v798 = vunpack.c.0.s8 %v646
      %v799 = vunpack.c.0.s8 %v647
      %v800 = vunpack.c.1.s8 %v640
      %v801 = vunpack.c.1.s8 %v641
      %v802 = vunpack.c.1.s8 %v642
      %v803 = vunpack.c.1.s8 %v643
      %v804 = vunpack.c.1.s8 %v644
      %v805 = vunpack.c.1.s8 %v645
      %v806 = vunpack.c.1.s8 %v646
      %v807 = vunpack.c.1.s8 %v647
      %v808 = vunpack.c.2.s8 %v640
      %v809 = vunpack.c.2.s8 %v641
      %v810 = vunpack.c.2.s8 %v642
      %v811 = vunpack.c.2.s8 %v643
      %v812 = vunpack.c.2.s8 %v644
      %v813 = vunpack.c.2.s8 %v645
      %v814 = vunpack.c.2.s8 %v646
      %v815 = vunpack.c.2.s8 %v647
      %v816 = vunpack.c.3.s8 %v640
      %v817 = vunpack.c.3.s8 %v641
      %v818 = vunpack.c.3.s8 %v642
      %v819 = vunpack.c.3.s8 %v643
      %v820 = vunpack.c.3.s8 %v644
      %v821 = vunpack.c.3.s8 %v645
      %v822 = vunpack.c.3.s8 %v646
      %v823 = vunpack.c.3.s8 %v647
      %v824 = vunpack.c.0.s8 %v648
      %v825 = vunpack.c.0.s8 %v649
      %v826 = vunpack.c.0.s8 %v650
      %v827 = vunpack.c.0.s8 %v651
      %v828 = vunpack.c.0.s8 %v652
      %v829 = vunpack.c.0.s8 %v653
      %v830 = vunpack.c.0.s8 %v654
      %v831 = vunpack.c.0.s8 %v655
      %v832 = vunpack.c.1.s8 %v648
      %v833 = vunpack.c.1.s8 %v649
      %v834 = vunpack.c.1.s8 %v650
      %v835 = vunpack.c.1.s8 %v651
      %v836 = vunpack.c.1.s8 %v652
      %v837 = vunpack.c.1.s8 %v653
      %v838 = vunpack.c.1.s8 %v654
      %v839 = vunpack.c.1.s8 %v655
      %v840 = vunpack.c.2.s8 %v648
      %v841 = vunpack.c.2.s8 %v649
      %v842 = vunpack.c.2.s8 %v650
      %v843 = vunpack.c.2.s8 %v651
      %v844 = vunpack.c.2.s8 %v652
      %v845 = vunpack.c.2.s8 %v653
      %v846 = vunpack.c.2.s8 %v654
      %v847 = vunpack.c.2.s8 %v655
      %v848 = vunpack.c.3.s8 %v648
      %v849 = vunpack.c.3.s8 %v649
      %v850 = vunpack.c.3.s8 %v650
      %v851 = vunpack.c.3.s8 %v651
      %v852 = vunpack.c.3.s8 %v652
      %v853 = vunpack.c.3.s8 %v653
      %v854 = vunpack.c.3.s8 %v654
      %v855 = vunpack.c.3.s8 %v655
      %v856 = vunpack.c.0.s8 %v656
      %v857 = vunpack.c.0.s8 %v657
      %v858 = vunpack.c.0.s8 %v658
      %v859 = vunpack.c.0.s8 %v659
      %v860 = vunpack.c.0.s8 %v660
      %v861 = vunpack.c.0.s8 %v661
      %v862 = vunpack.c.0.s8 %v662
      %v863 = vunpack.c.0.s8 %v663
      %v864 = vunpack.c.1.s8 %v656
      %v865 = vunpack.c.1.s8 %v657
      %v866 = vunpack.c.1.s8 %v658
      %v867 = vunpack.c.1.s8 %v659
      %v868 = vunpack.c.1.s8 %v660
      %v869 = vunpack.c.1.s8 %v661
      %v870 = vunpack.c.1.s8 %v662
      %v871 = vunpack.c.1.s8 %v663
      %v872 = vunpack.c.2.s8 %v656
      %v873 = vunpack.c.2.s8 %v657
      %v874 = vunpack.c.2.s8 %v658
      %v875 = vunpack.c.2.s8 %v659
      %v876 = vunpack.c.2.s8 %v660
      %v877 = vunpack.c.2.s8 %v661
      %v878 = vunpack.c.2.s8 %v662
      %v879 = vunpack.c.2.s8 %v663
      %v880 = vunpack.c.3.s8 %v656
      %v881 = vunpack.c.3.s8 %v657
      %v882 = vunpack.c.3.s8 %v658
      %v883 = vunpack.c.3.s8 %v659
      %v884 = vunpack.c.3.s8 %v660
      %v885 = vunpack.c.3.s8 %v661
      %v886 = vunpack.c.3.s8 %v662
      %v887 = vunpack.c.3.s8 %v663
      %v888 = vunpack.c.0.s8 %v664
      %v889 = vunpack.c.0.s8 %v665
      %v890 = vunpack.c.0.s8 %v666
      %v891 = vunpack.c.0.s8 %v667
      %v892 = vunpack.c.0.s8 %v668
      %v893 = vunpack.c.0.s8 %v669
      %v894 = vunpack.c.0.s8 %v670
      %v895 = vunpack.c.0.s8 %v671
      %v896 = vunpack.c.1.s8 %v664
      %v897 = vunpack.c.1.s8 %v665
      %v898 = vunpack.c.1.s8 %v666
      %v899 = vunpack.c.1.s8 %v667
      %v900 = vunpack.c.1.s8 %v668
      %v901 = vunpack.c.1.s8 %v669
      %v902 = vunpack.c.1.s8 %v670
      %v903 = vunpack.c.1.s8 %v671
      %v904 = vunpack.c.2.s8 %v664
      %v905 = vunpack.c.2.s8 %v665
      %v906 = vunpack.c.2.s8 %v666
      %v907 = vunpack.c.2.s8 %v667
      %v908 = vunpack.c.2.s8 %v668
      %v909 = vunpack.c.2.s8 %v669
      %v910 = vunpack.c.2.s8 %v670
      %v911 = vunpack.c.2.s8 %v671
      %v912 = vunpack.c.3.s8 %v664
      %v913 = vunpack.c.3.s8 %v665
      %v914 = vunpack.c.3.s8 %v666
      %v915 = vunpack.c.3.s8 %v667
      %v916 = vunpack.c.3.s8 %v668
      %v917 = vunpack.c.3.s8 %v669
      %v918 = vunpack.c.3.s8 %v670
      %v919 = vunpack.c.3.s8 %v671
      %v920 = vunpack.c.0.s8 %v672
      %v921 = vunpack.c.0.s8 %v673
      %v922 = vunpack.c.0.s8 %v674
      %v923 = vunpack.c.0.s8 %v675
      %v924 = vunpack.c.0.s8 %v676
      %v925 = vunpack.c.0.s8 %v677
      %v926 = vunpack.c.0.s8 %v678
      %v927 = vunpack.c.0.s8 %v679
      %v928 = vunpack.c.1.s8 %v672
      %v929 = vunpack.c.1.s8 %v673
      %v930 = vunpack.c.1.s8 %v674
      %v931 = vunpack.c.1.s8 %v675
      %v932 = vunpack.c.1.s8 %v676
      %v933 = vunpack.c.1.s8 %v677
      %v934 = vunpack.c.1.s8 %v678
      %v935 = vunpack.c.1.s8 %v679
      %v936 = vunpack.c.2.s8 %v672
      %v937 = vunpack.c.2.s8 %v673
      %v938 = vunpack.c.2.s8 %v674
      %v939 = vunpack.c.2.s8 %v675
      %v940 = vunpack.c.2.s8 %v676
      %v941 = vunpack.c.2.s8 %v677
      %v942 = vunpack.c.2.s8 %v678
      %v943 = vunpack.c.2.s8 %v679
      %v944 = vunpack.c.3.s8 %v672
      %v945 = vunpack.c.3.s8 %v673
      %v946 = vunpack.c.3.s8 %v674
      %v947 = vunpack.c.3.s8 %v675
      %v948 = vunpack.c.3.s8 %v676
      %v949 = vunpack.c.3.s8 %v677
      %v950 = vunpack.c.3.s8 %v678
      %v951 = vunpack.c.3.s8 %v679
      %v952 = vunpack.c.0.s8 %v680
      %v953 = vunpack.c.0.s8 %v681
      %v954 = vunpack.c.0.s8 %v682
      %v955 = vunpack.c.0.s8 %v683
      %v956 = vunpack.c.0.s8 %v684
      %v957 = vunpack.c.0.s8 %v685
      %v958 = vunpack.c.0.s8 %v686
      %v959 = vunpack.c.0.s8 %v687
      %v960 = vunpack.c.1.s8 %v680
      %v961 = vunpack.c.1.s8 %v681
      %v962 = vunpack.c.1.s8 %v682
      %v963 = vunpack.c.1.s8 %v683
      %v964 = vunpack.c.1.s8 %v684
      %v965 = vunpack.c.1.s8 %v685
      %v966 = vunpack.c.1.s8 %v686
      %v967 = vunpack.c.1.s8 %v687
      %v968 = vunpack.c.2.s8 %v680
      %v969 = vunpack.c.2.s8 %v681
      %v970 = vunpack.c.2.s8 %v682
      %v971 = vunpack.c.2.s8 %v683
      %v972 = vunpack.c.2.s8 %v684
      %v973 = vunpack.c.2.s8 %v685
      %v974 = vunpack.c.2.s8 %v686
      %v975 = vunpack.c.2.s8 %v687
      %v976 = vunpack.c.3.s8 %v680
      %v977 = vunpack.c.3.s8 %v681
      %v978 = vunpack.c.3.s8 %v682
      %v979 = vunpack.c.3.s8 %v683
      %v980 = vunpack.c.3.s8 %v684
      %v981 = vunpack.c.3.s8 %v685
      %v982 = vunpack.c.3.s8 %v686
      %v983 = vunpack.c.3.s8 %v687
      %v984 = vunpack.c.0.s8 %v688
      %v985 = vunpack.c.0.s8 %v689
      %v986 = vunpack.c.0.s8 %v690
      %v987 = vunpack.c.0.s8 %v691
      %v988 = vunpack.c.0.s8 %v692
      %v989 = vunpack.c.0.s8 %v693
      %v990 = vunpack.c.0.s8 %v694
      %v991 = vunpack.c.0.s8 %v695
      %v992 = vunpack.c.1.s8 %v688
      %v993 = vunpack.c.1.s8 %v689
      %v994 = vunpack.c.1.s8 %v690
      %v995 = vunpack.c.1.s8 %v691
      %v996 = vunpack.c.1.s8 %v692
      %v997 = vunpack.c.1.s8 %v693
      %v998 = vunpack.c.1.s8 %v694
      %v999 = vunpack.c.1.s8 %v695
      %v1000 = vunpack.c.2.s8 %v688
      %v1001 = vunpack.c.2.s8 %v689
      %v1002 = vunpack.c.2.s8 %v690
      %v1003 = vunpack.c.2.s8 %v691
      %v1004 = vunpack.c.2.s8 %v692
      %v1005 = vunpack.c.2.s8 %v693
      %v1006 = vunpack.c.2.s8 %v694
      %v1007 = vunpack.c.2.s8 %v695
      %v1008 = vunpack.c.3.s8 %v688
      %v1009 = vunpack.c.3.s8 %v689
      %v1010 = vunpack.c.3.s8 %v690
      %v1011 = vunpack.c.3.s8 %v691
      %v1012 = vunpack.c.3.s8 %v692
      %v1013 = vunpack.c.3.s8 %v693
      %v1014 = vunpack.c.3.s8 %v694
      %v1015 = vunpack.c.3.s8 %v695
      %v1016 = vunpack.c.0.s8 %v696
      %v1017 = vunpack.c.0.s8 %v697
      %v1018 = vunpack.c.0.s8 %v698
      %v1019 = vunpack.c.0.s8 %v699
      %v1020 = vunpack.c.0.s8 %v700
      %v1021 = vunpack.c.0.s8 %v701
      %v1022 = vunpack.c.0.s8 %v702
      %v1023 = vunpack.c.0.s8 %v703
      %v1024 = vunpack.c.1.s8 %v696
      %v1025 = vunpack.c.1.s8 %v697
      %v1026 = vunpack.c.1.s8 %v698
      %v1027 = vunpack.c.1.s8 %v699
      %v1028 = vunpack.c.1.s8 %v700
      %v1029 = vunpack.c.1.s8 %v701
      %v1030 = vunpack.c.1.s8 %v702
      %v1031 = vunpack.c.1.s8 %v703
      %v1032 = vunpack.c.2.s8 %v696
      %v1033 = vunpack.c.2.s8 %v697
      %v1034 = vunpack.c.2.s8 %v698
      %v1035 = vunpack.c.2.s8 %v699
      %v1036 = vunpack.c.2.s8 %v700
      %v1037 = vunpack.c.2.s8 %v701
      %v1038 = vunpack.c.2.s8 %v702
      %v1039 = vunpack.c.2.s8 %v703
      %v1040 = vunpack.c.3.s8 %v696
      %v1041 = vunpack.c.3.s8 %v697
      %v1042 = vunpack.c.3.s8 %v698
      %v1043 = vunpack.c.3.s8 %v699
      %v1044 = vunpack.c.3.s8 %v700
      %v1045 = vunpack.c.3.s8 %v701
      %v1046 = vunpack.c.3.s8 %v702
      %v1047 = vunpack.c.3.s8 %v703
      %v1048 = vunpack.c.0.s8 %v704
      %v1049 = vunpack.c.0.s8 %v705
      %v1050 = vunpack.c.0.s8 %v706
      %v1051 = vunpack.c.0.s8 %v707
      %v1052 = vunpack.c.0.s8 %v708
      %v1053 = vunpack.c.0.s8 %v709
      %v1054 = vunpack.c.0.s8 %v710
      %v1055 = vunpack.c.0.s8 %v711
      %v1056 = vunpack.c.1.s8 %v704
      %v1057 = vunpack.c.1.s8 %v705
      %v1058 = vunpack.c.1.s8 %v706
      %v1059 = vunpack.c.1.s8 %v707
      %v1060 = vunpack.c.1.s8 %v708
      %v1061 = vunpack.c.1.s8 %v709
      %v1062 = vunpack.c.1.s8 %v710
      %v1063 = vunpack.c.1.s8 %v711
      %v1064 = vunpack.c.2.s8 %v704
      %v1065 = vunpack.c.2.s8 %v705
      %v1066 = vunpack.c.2.s8 %v706
      %v1067 = vunpack.c.2.s8 %v707
      %v1068 = vunpack.c.2.s8 %v708
      %v1069 = vunpack.c.2.s8 %v709
      %v1070 = vunpack.c.2.s8 %v710
      %v1071 = vunpack.c.2.s8 %v711
      %v1072 = vunpack.c.3.s8 %v704
      %v1073 = vunpack.c.3.s8 %v705
      %v1074 = vunpack.c.3.s8 %v706
      %v1075 = vunpack.c.3.s8 %v707
      %v1076 = vunpack.c.3.s8 %v708
      %v1077 = vunpack.c.3.s8 %v709
      %v1078 = vunpack.c.3.s8 %v710
      %v1079 = vunpack.c.3.s8 %v711
      %v1080 = vunpack.c.0.s8 %v712
      %v1081 = vunpack.c.0.s8 %v713
      %v1082 = vunpack.c.0.s8 %v714
      %v1083 = vunpack.c.0.s8 %v715
      %v1084 = vunpack.c.0.s8 %v716
      %v1085 = vunpack.c.0.s8 %v717
      %v1086 = vunpack.c.0.s8 %v718
      %v1087 = vunpack.c.0.s8 %v719
      %v1088 = vunpack.c.1.s8 %v712
      %v1089 = vunpack.c.1.s8 %v713
      %v1090 = vunpack.c.1.s8 %v714
      %v1091 = vunpack.c.1.s8 %v715
      %v1092 = vunpack.c.1.s8 %v716
      %v1093 = vunpack.c.1.s8 %v717
      %v1094 = vunpack.c.1.s8 %v718
      %v1095 = vunpack.c.1.s8 %v719
      %v1096 = vunpack.c.2.s8 %v712
      %v1097 = vunpack.c.2.s8 %v713
      %v1098 = vunpack.c.2.s8 %v714
      %v1099 = vunpack.c.2.s8 %v715
      %v1100 = vunpack.c.2.s8 %v716
      %v1101 = vunpack.c.2.s8 %v717
      %v1102 = vunpack.c.2.s8 %v718
      %v1103 = vunpack.c.2.s8 %v719
      %v1104 = vunpack.c.3.s8 %v712
      %v1105 = vunpack.c.3.s8 %v713
      %v1106 = vunpack.c.3.s8 %v714
      %v1107 = vunpack.c.3.s8 %v715
      %v1108 = vunpack.c.3.s8 %v716
      %v1109 = vunpack.c.3.s8 %v717
      %v1110 = vunpack.c.3.s8 %v718
      %v1111 = vunpack.c.3.s8 %v719
      %v1112 = vunpack.c.0.s8 %v720
      %v1113 = vunpack.c.0.s8 %v721
      %v1114 = vunpack.c.0.s8 %v722
      %v1115 = vunpack.c.0.s8 %v723
      %v1116 = vunpack.c.0.s8 %v724
      %v1117 = vunpack.c.0.s8 %v725
      %v1118 = vunpack.c.0.s8 %v726
      %v1119 = vunpack.c.0.s8 %v727
      %v1120 = vunpack.c.1.s8 %v720
      %v1121 = vunpack.c.1.s8 %v721
      %v1122 = vunpack.c.1.s8 %v722
      %v1123 = vunpack.c.1.s8 %v723
      %v1124 = vunpack.c.1.s8 %v724
      %v1125 = vunpack.c.1.s8 %v725
      %v1126 = vunpack.c.1.s8 %v726
      %v1127 = vunpack.c.1.s8 %v727
      %v1128 = vunpack.c.2.s8 %v720
      %v1129 = vunpack.c.2.s8 %v721
      %v1130 = vunpack.c.2.s8 %v722
      %v1131 = vunpack.c.2.s8 %v723
      %v1132 = vunpack.c.2.s8 %v724
      %v1133 = vunpack.c.2.s8 %v725
      %v1134 = vunpack.c.2.s8 %v726
      %v1135 = vunpack.c.2.s8 %v727
      %v1136 = vunpack.c.3.s8 %v720
      %v1137 = vunpack.c.3.s8 %v721
      %v1138 = vunpack.c.3.s8 %v722
      %v1139 = vunpack.c.3.s8 %v723
      %v1140 = vunpack.c.3.s8 %v724
      %v1141 = vunpack.c.3.s8 %v725
      %v1142 = vunpack.c.3.s8 %v726
      %v1143 = vunpack.c.3.s8 %v727
      %v1144 = vunpack.c.0.s8 %v728
      %v1145 = vunpack.c.0.s8 %v729
      %v1146 = vunpack.c.0.s8 %v730
      %v1147 = vunpack.c.0.s8 %v731
      %v1148 = vunpack.c.0.s8 %v732
      %v1149 = vunpack.c.0.s8 %v733
      %v1150 = vunpack.c.0.s8 %v734
      %v1151 = vunpack.c.0.s8 %v735
      %v1152 = vunpack.c.1.s8 %v728
      %v1153 = vunpack.c.1.s8 %v729
      %v1154 = vunpack.c.1.s8 %v730
      %v1155 = vunpack.c.1.s8 %v731
      %v1156 = vunpack.c.1.s8 %v732
      %v1157 = vunpack.c.1.s8 %v733
      %v1158 = vunpack.c.1.s8 %v734
      %v1159 = vunpack.c.1.s8 %v735
      %v1160 = vunpack.c.2.s8 %v728
      %v1161 = vunpack.c.2.s8 %v729
      %v1162 = vunpack.c.2.s8 %v730
      %v1163 = vunpack.c.2.s8 %v731
      %v1164 = vunpack.c.2.s8 %v732
      %v1165 = vunpack.c.2.s8 %v733
      %v1166 = vunpack.c.2.s8 %v734
      %v1167 = vunpack.c.2.s8 %v735
      %v1168 = vunpack.c.3.s8 %v728
      %v1169 = vunpack.c.3.s8 %v729
      %v1170 = vunpack.c.3.s8 %v730
      %v1171 = vunpack.c.3.s8 %v731
      %v1172 = vunpack.c.3.s8 %v732
      %v1173 = vunpack.c.3.s8 %v733
      %v1174 = vunpack.c.3.s8 %v734
      %v1175 = vunpack.c.3.s8 %v735
      %v1176 = vunpack.c.0.s8 %v736
      %v1177 = vunpack.c.0.s8 %v737
      %v1178 = vunpack.c.0.s8 %v738
      %v1179 = vunpack.c.0.s8 %v739
      %v1180 = vunpack.c.0.s8 %v740
      %v1181 = vunpack.c.0.s8 %v741
      %v1182 = vunpack.c.0.s8 %v742
      %v1183 = vunpack.c.0.s8 %v743
      %v1184 = vunpack.c.1.s8 %v736
      %v1185 = vunpack.c.1.s8 %v737
      %v1186 = vunpack.c.1.s8 %v738
      %v1187 = vunpack.c.1.s8 %v739
      %v1188 = vunpack.c.1.s8 %v740
      %v1189 = vunpack.c.1.s8 %v741
      %v1190 = vunpack.c.1.s8 %v742
      %v1191 = vunpack.c.1.s8 %v743
      %v1192 = vunpack.c.2.s8 %v736
      %v1193 = vunpack.c.2.s8 %v737
      %v1194 = vunpack.c.2.s8 %v738
      %v1195 = vunpack.c.2.s8 %v739
      %v1196 = vunpack.c.2.s8 %v740
      %v1197 = vunpack.c.2.s8 %v741
      %v1198 = vunpack.c.2.s8 %v742
      %v1199 = vunpack.c.2.s8 %v743
      %v1200 = vunpack.c.3.s8 %v736
      %v1201 = vunpack.c.3.s8 %v737
      %v1202 = vunpack.c.3.s8 %v738
      %v1203 = vunpack.c.3.s8 %v739
      %v1204 = vunpack.c.3.s8 %v740
      %v1205 = vunpack.c.3.s8 %v741
      %v1206 = vunpack.c.3.s8 %v742
      %v1207 = vunpack.c.3.s8 %v743
      %v1208 = vunpack.c.0.s8 %v744
      %v1209 = vunpack.c.0.s8 %v745
      %v1210 = vunpack.c.0.s8 %v746
      %v1211 = vunpack.c.0.s8 %v747
      %v1212 = vunpack.c.0.s8 %v748
      %v1213 = vunpack.c.0.s8 %v749
      %v1214 = vunpack.c.0.s8 %v750
      %v1215 = vunpack.c.0.s8 %v751
      %v1216 = vunpack.c.1.s8 %v744
      %v1217 = vunpack.c.1.s8 %v745
      %v1218 = vunpack.c.1.s8 %v746
      %v1219 = vunpack.c.1.s8 %v747
      %v1220 = vunpack.c.1.s8 %v748
      %v1221 = vunpack.c.1.s8 %v749
      %v1222 = vunpack.c.1.s8 %v750
      %v1223 = vunpack.c.1.s8 %v751
      %v1224 = vunpack.c.2.s8 %v744
      %v1225 = vunpack.c.2.s8 %v745
      %v1226 = vunpack.c.2.s8 %v746
      %v1227 = vunpack.c.2.s8 %v747
      %v1228 = vunpack.c.2.s8 %v748
      %v1229 = vunpack.c.2.s8 %v749
      %v1230 = vunpack.c.2.s8 %v750
      %v1231 = vunpack.c.2.s8 %v751
      %v1232 = vunpack.c.3.s8 %v744
      %v1233 = vunpack.c.3.s8 %v745
      %v1234 = vunpack.c.3.s8 %v746
      %v1235 = vunpack.c.3.s8 %v747
      %v1236 = vunpack.c.3.s8 %v748
      %v1237 = vunpack.c.3.s8 %v749
      %v1238 = vunpack.c.3.s8 %v750
      %v1239 = vunpack.c.3.s8 %v751
      %v1240 = vunpack.c.0.s8 %v752
      %v1241 = vunpack.c.0.s8 %v753
      %v1242 = vunpack.c.0.s8 %v754
      %v1243 = vunpack.c.0.s8 %v755
      %v1244 = vunpack.c.0.s8 %v756
      %v1245 = vunpack.c.0.s8 %v757
      %v1246 = vunpack.c.0.s8 %v758
      %v1247 = vunpack.c.0.s8 %v759
      %v1248 = vunpack.c.1.s8 %v752
      %v1249 = vunpack.c.1.s8 %v753
      %v1250 = vunpack.c.1.s8 %v754
      %v1251 = vunpack.c.1.s8 %v755
      %v1252 = vunpack.c.1.s8 %v756
      %v1253 = vunpack.c.1.s8 %v757
      %v1254 = vunpack.c.1.s8 %v758
      %v1255 = vunpack.c.1.s8 %v759
      %v1256 = vunpack.c.2.s8 %v752
      %v1257 = vunpack.c.2.s8 %v753
      %v1258 = vunpack.c.2.s8 %v754
      %v1259 = vunpack.c.2.s8 %v755
      %v1260 = vunpack.c.2.s8 %v756
      %v1261 = vunpack.c.2.s8 %v757
      %v1262 = vunpack.c.2.s8 %v758
      %v1263 = vunpack.c.2.s8 %v759
      %v1264 = vunpack.c.3.s8 %v752
      %v1265 = vunpack.c.3.s8 %v753
      %v1266 = vunpack.c.3.s8 %v754
      %v1267 = vunpack.c.3.s8 %v755
      %v1268 = vunpack.c.3.s8 %v756
      %v1269 = vunpack.c.3.s8 %v757
      %v1270 = vunpack.c.3.s8 %v758
      %v1271 = vunpack.c.3.s8 %v759
      %v1272 = vcvt.s32.f32 %v760
      %v1273 = vcvt.s32.f32 %v761
      %v1274 = vcvt.s32.f32 %v762
      %v1275 = vcvt.s32.f32 %v763
      %v1276 = vcvt.s32.f32 %v764
      %v1277 = vcvt.s32.f32 %v765
      %v1278 = vcvt.s32.f32 %v766
      %v1279 = vcvt.s32.f32 %v767
      %v1280 = vcvt.s32.f32 %v768
      %v1281 = vcvt.s32.f32 %v769
      %v1282 = vcvt.s32.f32 %v770
      %v1283 = vcvt.s32.f32 %v771
      %v1284 = vcvt.s32.f32 %v772
      %v1285 = vcvt.s32.f32 %v773
      %v1286 = vcvt.s32.f32 %v774
      %v1287 = vcvt.s32.f32 %v775
      %v1288 = vcvt.s32.f32 %v776
      %v1289 = vcvt.s32.f32 %v777
      %v1290 = vcvt.s32.f32 %v778
      %v1291 = vcvt.s32.f32 %v779
      %v1292 = vcvt.s32.f32 %v780
      %v1293 = vcvt.s32.f32 %v781
      %v1294 = vcvt.s32.f32 %v782
      %v1295 = vcvt.s32.f32 %v783
      %v1296 = vcvt.s32.f32 %v784
      %v1297 = vcvt.s32.f32 %v785
      %v1298 = vcvt.s32.f32 %v786
      %v1299 = vcvt.s32.f32 %v787
      %v1300 = vcvt.s32.f32 %v788
      %v1301 = vcvt.s32.f32 %v789
      %v1302 = vcvt.s32.f32 %v790
      %v1303 = vcvt.s32.f32 %v791
      %v1304 = vcvt.s32.f32 %v792
      %v1305 = vcvt.s32.f32 %v793
      %v1306 = vcvt.s32.f32 %v794
      %v1307 = vcvt.s32.f32 %v795
      %v1308 = vcvt.s32.f32 %v796
      %v1309 = vcvt.s32.f32 %v797
      %v1310 = vcvt.s32.f32 %v798
      %v1311 = vcvt.s32.f32 %v799
      %v1312 = vcvt.s32.f32 %v800
      %v1313 = vcvt.s32.f32 %v801
      %v1314 = vcvt.s32.f32 %v802
      %v1315 = vcvt.s32.f32 %v803
      %v1316 = vcvt.s32.f32 %v804
      %v1317 = vcvt.s32.f32 %v805
      %v1318 = vcvt.s32.f32 %v806
      %v1319 = vcvt.s32.f32 %v807
      %v1320 = vcvt.s32.f32 %v808
      %v1321 = vcvt.s32.f32 %v809
      %v1322 = vcvt.s32.f32 %v810
      %v1323 = vcvt.s32.f32 %v811
      %v1324 = vcvt.s32.f32 %v812
      %v1325 = vcvt.s32.f32 %v813
      %v1326 = vcvt.s32.f32 %v814
      %v1327 = vcvt.s32.f32 %v815
      %v1328 = vcvt.s32.f32 %v816
      %v1329 = vcvt.s32.f32 %v817
      %v1330 = vcvt.s32.f32 %v818
      %v1331 = vcvt.s32.f32 %v819
      %v1332 = vcvt.s32.f32 %v820
      %v1333 = vcvt.s32.f32 %v821
      %v1334 = vcvt.s32.f32 %v822
      %v1335 = vcvt.s32.f32 %v823
      %v1336 = vcvt.s32.f32 %v824
      %v1337 = vcvt.s32.f32 %v825
      %v1338 = vcvt.s32.f32 %v826
      %v1339 = vcvt.s32.f32 %v827
      %v1340 = vcvt.s32.f32 %v828
      %v1341 = vcvt.s32.f32 %v829
      %v1342 = vcvt.s32.f32 %v830
      %v1343 = vcvt.s32.f32 %v831
      %v1344 = vcvt.s32.f32 %v832
      %v1345 = vcvt.s32.f32 %v833
      %v1346 = vcvt.s32.f32 %v834
      %v1347 = vcvt.s32.f32 %v835
      %v1348 = vcvt.s32.f32 %v836
      %v1349 = vcvt.s32.f32 %v837
      %v1350 = vcvt.s32.f32 %v838
      %v1351 = vcvt.s32.f32 %v839
      %v1352 = vcvt.s32.f32 %v840
      %v1353 = vcvt.s32.f32 %v841
      %v1354 = vcvt.s32.f32 %v842
      %v1355 = vcvt.s32.f32 %v843
      %v1356 = vcvt.s32.f32 %v844
      %v1357 = vcvt.s32.f32 %v845
      %v1358 = vcvt.s32.f32 %v846
      %v1359 = vcvt.s32.f32 %v847
      %v1360 = vcvt.s32.f32 %v848
      %v1361 = vcvt.s32.f32 %v849
      %v1362 = vcvt.s32.f32 %v850
      %v1363 = vcvt.s32.f32 %v851
      %v1364 = vcvt.s32.f32 %v852
      %v1365 = vcvt.s32.f32 %v853
      %v1366 = vcvt.s32.f32 %v854
      %v1367 = vcvt.s32.f32 %v855
      %v1368 = vcvt.s32.f32 %v856
      %v1369 = vcvt.s32.f32 %v857
      %v1370 = vcvt.s32.f32 %v858
      %v1371 = vcvt.s32.f32 %v859
      %v1372 = vcvt.s32.f32 %v860
      %v1373 = vcvt.s32.f32 %v861
      %v1374 = vcvt.s32.f32 %v862
      %v1375 = vcvt.s32.f32 %v863
      %v1376 = vcvt.s32.f32 %v864
      %v1377 = vcvt.s32.f32 %v865
      %v1378 = vcvt.s32.f32 %v866
      %v1379 = vcvt.s32.f32 %v867
      %v1380 = vcvt.s32.f32 %v868
      %v1381 = vcvt.s32.f32 %v869
      %v1382 = vcvt.s32.f32 %v870
      %v1383 = vcvt.s32.f32 %v871
      %v1384 = vcvt.s32.f32 %v872
      %v1385 = vcvt.s32.f32 %v873
      %v1386 = vcvt.s32.f32 %v874
      %v1387 = vcvt.s32.f32 %v875
      %v1388 = vcvt.s32.f32 %v876
      %v1389 = vcvt.s32.f32 %v877
      %v1390 = vcvt.s32.f32 %v878
      %v1391 = vcvt.s32.f32 %v879
      %v1392 = vcvt.s32.f32 %v880
      %v1393 = vcvt.s32.f32 %v881
      %v1394 = vcvt.s32.f32 %v882
      %v1395 = vcvt.s32.f32 %v883
      %v1396 = vcvt.s32.f32 %v884
      %v1397 = vcvt.s32.f32 %v885
      %v1398 = vcvt.s32.f32 %v886
      %v1399 = vcvt.s32.f32 %v887
      %v1400 = vcvt.s32.f32 %v888
      %v1401 = vcvt.s32.f32 %v889
      %v1402 = vcvt.s32.f32 %v890
      %v1403 = vcvt.s32.f32 %v891
      %v1404 = vcvt.s32.f32 %v892
      %v1405 = vcvt.s32.f32 %v893
      %v1406 = vcvt.s32.f32 %v894
      %v1407 = vcvt.s32.f32 %v895
      %v1408 = vcvt.s32.f32 %v896
      %v1409 = vcvt.s32.f32 %v897
      %v1410 = vcvt.s32.f32 %v898
      %v1411 = vcvt.s32.f32 %v899
      %v1412 = vcvt.s32.f32 %v900
      %v1413 = vcvt.s32.f32 %v901
      %v1414 = vcvt.s32.f32 %v902
      %v1415 = vcvt.s32.f32 %v903
      %v1416 = vcvt.s32.f32 %v904
      %v1417 = vcvt.s32.f32 %v905
      %v1418 = vcvt.s32.f32 %v906
      %v1419 = vcvt.s32.f32 %v907
      %v1420 = vcvt.s32.f32 %v908
      %v1421 = vcvt.s32.f32 %v909
      %v1422 = vcvt.s32.f32 %v910
      %v1423 = vcvt.s32.f32 %v911
      %v1424 = vcvt.s32.f32 %v912
      %v1425 = vcvt.s32.f32 %v913
      %v1426 = vcvt.s32.f32 %v914
      %v1427 = vcvt.s32.f32 %v915
      %v1428 = vcvt.s32.f32 %v916
      %v1429 = vcvt.s32.f32 %v917
      %v1430 = vcvt.s32.f32 %v918
      %v1431 = vcvt.s32.f32 %v919
      %v1432 = vcvt.s32.f32 %v920
      %v1433 = vcvt.s32.f32 %v921
      %v1434 = vcvt.s32.f32 %v922
      %v1435 = vcvt.s32.f32 %v923
      %v1436 = vcvt.s32.f32 %v924
      %v1437 = vcvt.s32.f32 %v925
      %v1438 = vcvt.s32.f32 %v926
      %v1439 = vcvt.s32.f32 %v927
      %v1440 = vcvt.s32.f32 %v928
      %v1441 = vcvt.s32.f32 %v929
      %v1442 = vcvt.s32.f32 %v930
      %v1443 = vcvt.s32.f32 %v931
      %v1444 = vcvt.s32.f32 %v932
      %v1445 = vcvt.s32.f32 %v933
      %v1446 = vcvt.s32.f32 %v934
      %v1447 = vcvt.s32.f32 %v935
      %v1448 = vcvt.s32.f32 %v936
      %v1449 = vcvt.s32.f32 %v937
      %v1450 = vcvt.s32.f32 %v938
      %v1451 = vcvt.s32.f32 %v939
      %v1452 = vcvt.s32.f32 %v940
      %v1453 = vcvt.s32.f32 %v941
      %v1454 = vcvt.s32.f32 %v942
      %v1455 = vcvt.s32.f32 %v943
      %v1456 = vcvt.s32.f32 %v944
      %v1457 = vcvt.s32.f32 %v945
      %v1458 = vcvt.s32.f32 %v946
      %v1459 = vcvt.s32.f32 %v947
      %v1460 = vcvt.s32.f32 %v948
      %v1461 = vcvt.s32.f32 %v949
      %v1462 = vcvt.s32.f32 %v950
      %v1463 = vcvt.s32.f32 %v951
      %v1464 = vcvt.s32.f32 %v952
      %v1465 = vcvt.s32.f32 %v953
      %v1466 = vcvt.s32.f32 %v954
      %v1467 = vcvt.s32.f32 %v955
      %v1468 = vcvt.s32.f32 %v956
      %v1469 = vcvt.s32.f32 %v957
      %v1470 = vcvt.s32.f32 %v958
      %v1471 = vcvt.s32.f32 %v959
      %v1472 = vcvt.s32.f32 %v960
      %v1473 = vcvt.s32.f32 %v961
      %v1474 = vcvt.s32.f32 %v962
      %v1475 = vcvt.s32.f32 %v963
      %v1476 = vcvt.s32.f32 %v964
      %v1477 = vcvt.s32.f32 %v965
      %v1478 = vcvt.s32.f32 %v966
      %v1479 = vcvt.s32.f32 %v967
      %v1480 = vcvt.s32.f32 %v968
      %v1481 = vcvt.s32.f32 %v969
      %v1482 = vcvt.s32.f32 %v970
      %v1483 = vcvt.s32.f32 %v971
      %v1484 = vcvt.s32.f32 %v972
      %v1485 = vcvt.s32.f32 %v973
      %v1486 = vcvt.s32.f32 %v974
      %v1487 = vcvt.s32.f32 %v975
      %v1488 = vcvt.s32.f32 %v976
      %v1489 = vcvt.s32.f32 %v977
      %v1490 = vcvt.s32.f32 %v978
      %v1491 = vcvt.s32.f32 %v979
      %v1492 = vcvt.s32.f32 %v980
      %v1493 = vcvt.s32.f32 %v981
      %v1494 = vcvt.s32.f32 %v982
      %v1495 = vcvt.s32.f32 %v983
      %v1496 = vcvt.s32.f32 %v984
      %v1497 = vcvt.s32.f32 %v985
      %v1498 = vcvt.s32.f32 %v986
      %v1499 = vcvt.s32.f32 %v987
      %v1500 = vcvt.s32.f32 %v988
      %v1501 = vcvt.s32.f32 %v989
      %v1502 = vcvt.s32.f32 %v990
      %v1503 = vcvt.s32.f32 %v991
      %v1504 = vcvt.s32.f32 %v992
      %v1505 = vcvt.s32.f32 %v993
      %v1506 = vcvt.s32.f32 %v994
      %v1507 = vcvt.s32.f32 %v995
      %v1508 = vcvt.s32.f32 %v996
      %v1509 = vcvt.s32.f32 %v997
      %v1510 = vcvt.s32.f32 %v998
      %v1511 = vcvt.s32.f32 %v999
      %v1512 = vcvt.s32.f32 %v1000
      %v1513 = vcvt.s32.f32 %v1001
      %v1514 = vcvt.s32.f32 %v1002
      %v1515 = vcvt.s32.f32 %v1003
      %v1516 = vcvt.s32.f32 %v1004
      %v1517 = vcvt.s32.f32 %v1005
      %v1518 = vcvt.s32.f32 %v1006
      %v1519 = vcvt.s32.f32 %v1007
      %v1520 = vcvt.s32.f32 %v1008
      %v1521 = vcvt.s32.f32 %v1009
      %v1522 = vcvt.s32.f32 %v1010
      %v1523 = vcvt.s32.f32 %v1011
      %v1524 = vcvt.s32.f32 %v1012
      %v1525 = vcvt.s32.f32 %v1013
      %v1526 = vcvt.s32.f32 %v1014
      %v1527 = vcvt.s32.f32 %v1015
      %v1528 = vcvt.s32.f32 %v1016
      %v1529 = vcvt.s32.f32 %v1017
      %v1530 = vcvt.s32.f32 %v1018
      %v1531 = vcvt.s32.f32 %v1019
      %v1532 = vcvt.s32.f32 %v1020
      %v1533 = vcvt.s32.f32 %v1021
      %v1534 = vcvt.s32.f32 %v1022
      %v1535 = vcvt.s32.f32 %v1023
      %v1536 = vcvt.s32.f32 %v1024
      %v1537 = vcvt.s32.f32 %v1025
      %v1538 = vcvt.s32.f32 %v1026
      %v1539 = vcvt.s32.f32 %v1027
      %v1540 = vcvt.s32.f32 %v1028
      %v1541 = vcvt.s32.f32 %v1029
      %v1542 = vcvt.s32.f32 %v1030
      %v1543 = vcvt.s32.f32 %v1031
      %v1544 = vcvt.s32.f32 %v1032
      %v1545 = vcvt.s32.f32 %v1033
      %v1546 = vcvt.s32.f32 %v1034
      %v1547 = vcvt.s32.f32 %v1035
      %v1548 = vcvt.s32.f32 %v1036
      %v1549 = vcvt.s32.f32 %v1037
      %v1550 = vcvt.s32.f32 %v1038
      %v1551 = vcvt.s32.f32 %v1039
      %v1552 = vcvt.s32.f32 %v1040
      %v1553 = vcvt.s32.f32 %v1041
      %v1554 = vcvt.s32.f32 %v1042
      %v1555 = vcvt.s32.f32 %v1043
      %v1556 = vcvt.s32.f32 %v1044
      %v1557 = vcvt.s32.f32 %v1045
      %v1558 = vcvt.s32.f32 %v1046
      %v1559 = vcvt.s32.f32 %v1047
      %v1560 = vcvt.s32.f32 %v1048
      %v1561 = vcvt.s32.f32 %v1049
      %v1562 = vcvt.s32.f32 %v1050
      %v1563 = vcvt.s32.f32 %v1051
      %v1564 = vcvt.s32.f32 %v1052
      %v1565 = vcvt.s32.f32 %v1053
      %v1566 = vcvt.s32.f32 %v1054
      %v1567 = vcvt.s32.f32 %v1055
      %v1568 = vcvt.s32.f32 %v1056
      %v1569 = vcvt.s32.f32 %v1057
      %v1570 = vcvt.s32.f32 %v1058
      %v1571 = vcvt.s32.f32 %v1059
      %v1572 = vcvt.s32.f32 %v1060
      %v1573 = vcvt.s32.f32 %v1061
      %v1574 = vcvt.s32.f32 %v1062
      %v1575 = vcvt.s32.f32 %v1063
      %v1576 = vcvt.s32.f32 %v1064
      %v1577 = vcvt.s32.f32 %v1065
      %v1578 = vcvt.s32.f32 %v1066
      %v1579 = vcvt.s32.f32 %v1067
      %v1580 = vcvt.s32.f32 %v1068
      %v1581 = vcvt.s32.f32 %v1069
      %v1582 = vcvt.s32.f32 %v1070
      %v1583 = vcvt.s32.f32 %v1071
      %v1584 = vcvt.s32.f32 %v1072
      %v1585 = vcvt.s32.f32 %v1073
      %v1586 = vcvt.s32.f32 %v1074
      %v1587 = vcvt.s32.f32 %v1075
      %v1588 = vcvt.s32.f32 %v1076
      %v1589 = vcvt.s32.f32 %v1077
      %v1590 = vcvt.s32.f32 %v1078
      %v1591 = vcvt.s32.f32 %v1079
      %v1592 = vcvt.s32.f32 %v1080
      %v1593 = vcvt.s32.f32 %v1081
      %v1594 = vcvt.s32.f32 %v1082
      %v1595 = vcvt.s32.f32 %v1083
      %v1596 = vcvt.s32.f32 %v1084
      %v1597 = vcvt.s32.f32 %v1085
      %v1598 = vcvt.s32.f32 %v1086
      %v1599 = vcvt.s32.f32 %v1087
      %v1600 = vcvt.s32.f32 %v1088
      %v1601 = vcvt.s32.f32 %v1089
      %v1602 = vcvt.s32.f32 %v1090
      %v1603 = vcvt.s32.f32 %v1091
      %v1604 = vcvt.s32.f32 %v1092
      %v1605 = vcvt.s32.f32 %v1093
      %v1606 = vcvt.s32.f32 %v1094
      %v1607 = vcvt.s32.f32 %v1095
      %v1608 = vcvt.s32.f32 %v1096
      %v1609 = vcvt.s32.f32 %v1097
      %v1610 = vcvt.s32.f32 %v1098
      %v1611 = vcvt.s32.f32 %v1099
      %v1612 = vcvt.s32.f32 %v1100
      %v1613 = vcvt.s32.f32 %v1101
      %v1614 = vcvt.s32.f32 %v1102
      %v1615 = vcvt.s32.f32 %v1103
      %v1616 = vcvt.s32.f32 %v1104
      %v1617 = vcvt.s32.f32 %v1105
      %v1618 = vcvt.s32.f32 %v1106
      %v1619 = vcvt.s32.f32 %v1107
      %v1620 = vcvt.s32.f32 %v1108
      %v1621 = vcvt.s32.f32 %v1109
      %v1622 = vcvt.s32.f32 %v1110
      %v1623 = vcvt.s32.f32 %v1111
      %v1624 = vcvt.s32.f32 %v1112
      %v1625 = vcvt.s32.f32 %v1113
      %v1626 = vcvt.s32.f32 %v1114
      %v1627 = vcvt.s32.f32 %v1115
      %v1628 = vcvt.s32.f32 %v1116
      %v1629 = vcvt.s32.f32 %v1117
      %v1630 = vcvt.s32.f32 %v1118
      %v1631 = vcvt.s32.f32 %v1119
      %v1632 = vcvt.s32.f32 %v1120
      %v1633 = vcvt.s32.f32 %v1121
      %v1634 = vcvt.s32.f32 %v1122
      %v1635 = vcvt.s32.f32 %v1123
      %v1636 = vcvt.s32.f32 %v1124
      %v1637 = vcvt.s32.f32 %v1125
      %v1638 = vcvt.s32.f32 %v1126
      %v1639 = vcvt.s32.f32 %v1127
      %v1640 = vcvt.s32.f32 %v1128
      %v1641 = vcvt.s32.f32 %v1129
      %v1642 = vcvt.s32.f32 %v1130
      %v1643 = vcvt.s32.f32 %v1131
      %v1644 = vcvt.s32.f32 %v1132
      %v1645 = vcvt.s32.f32 %v1133
      %v1646 = vcvt.s32.f32 %v1134
      %v1647 = vcvt.s32.f32 %v1135
      %v1648 = vcvt.s32.f32 %v1136
      %v1649 = vcvt.s32.f32 %v1137
      %v1650 = vcvt.s32.f32 %v1138
      %v1651 = vcvt.s32.f32 %v1139
      %v1652 = vcvt.s32.f32 %v1140
      %v1653 = vcvt.s32.f32 %v1141
      %v1654 = vcvt.s32.f32 %v1142
      %v1655 = vcvt.s32.f32 %v1143
      %v1656 = vcvt.s32.f32 %v1144
      %v1657 = vcvt.s32.f32 %v1145
      %v1658 = vcvt.s32.f32 %v1146
      %v1659 = vcvt.s32.f32 %v1147
      %v1660 = vcvt.s32.f32 %v1148
      %v1661 = vcvt.s32.f32 %v1149
      %v1662 = vcvt.s32.f32 %v1150
      %v1663 = vcvt.s32.f32 %v1151
      %v1664 = vcvt.s32.f32 %v1152
      %v1665 = vcvt.s32.f32 %v1153
      %v1666 = vcvt.s32.f32 %v1154
      %v1667 = vcvt.s32.f32 %v1155
      %v1668 = vcvt.s32.f32 %v1156
      %v1669 = vcvt.s32.f32 %v1157
      %v1670 = vcvt.s32.f32 %v1158
      %v1671 = vcvt.s32.f32 %v1159
      %v1672 = vcvt.s32.f32 %v1160
      %v1673 = vcvt.s32.f32 %v1161
      %v1674 = vcvt.s32.f32 %v1162
      %v1675 = vcvt.s32.f32 %v1163
      %v1676 = vcvt.s32.f32 %v1164
      %v1677 = vcvt.s32.f32 %v1165
      %v1678 = vcvt.s32.f32 %v1166
      %v1679 = vcvt.s32.f32 %v1167
      %v1680 = vcvt.s32.f32 %v1168
      %v1681 = vcvt.s32.f32 %v1169
      %v1682 = vcvt.s32.f32 %v1170
      %v1683 = vcvt.s32.f32 %v1171
      %v1684 = vcvt.s32.f32 %v1172
      %v1685 = vcvt.s32.f32 %v1173
      %v1686 = vcvt.s32.f32 %v1174
      %v1687 = vcvt.s32.f32 %v1175
      %v1688 = vcvt.s32.f32 %v1176
      %v1689 = vcvt.s32.f32 %v1177
      %v1690 = vcvt.s32.f32 %v1178
      %v1691 = vcvt.s32.f32 %v1179
      %v1692 = vcvt.s32.f32 %v1180
      %v1693 = vcvt.s32.f32 %v1181
      %v1694 = vcvt.s32.f32 %v1182
      %v1695 = vcvt.s32.f32 %v1183
      %v1696 = vcvt.s32.f32 %v1184
      %v1697 = vcvt.s32.f32 %v1185
      %v1698 = vcvt.s32.f32 %v1186
      %v1699 = vcvt.s32.f32 %v1187
      %v1700 = vcvt.s32.f32 %v1188
      %v1701 = vcvt.s32.f32 %v1189
      %v1702 = vcvt.s32.f32 %v1190
      %v1703 = vcvt.s32.f32 %v1191
      %v1704 = vcvt.s32.f32 %v1192
      %v1705 = vcvt.s32.f32 %v1193
      %v1706 = vcvt.s32.f32 %v1194
      %v1707 = vcvt.s32.f32 %v1195
      %v1708 = vcvt.s32.f32 %v1196
      %v1709 = vcvt.s32.f32 %v1197
      %v1710 = vcvt.s32.f32 %v1198
      %v1711 = vcvt.s32.f32 %v1199
      %v1712 = vcvt.s32.f32 %v1200
      %v1713 = vcvt.s32.f32 %v1201
      %v1714 = vcvt.s32.f32 %v1202
      %v1715 = vcvt.s32.f32 %v1203
      %v1716 = vcvt.s32.f32 %v1204
      %v1717 = vcvt.s32.f32 %v1205
      %v1718 = vcvt.s32.f32 %v1206
      %v1719 = vcvt.s32.f32 %v1207
      %v1720 = vcvt.s32.f32 %v1208
      %v1721 = vcvt.s32.f32 %v1209
      %v1722 = vcvt.s32.f32 %v1210
      %v1723 = vcvt.s32.f32 %v1211
      %v1724 = vcvt.s32.f32 %v1212
      %v1725 = vcvt.s32.f32 %v1213
      %v1726 = vcvt.s32.f32 %v1214
      %v1727 = vcvt.s32.f32 %v1215
      %v1728 = vcvt.s32.f32 %v1216
      %v1729 = vcvt.s32.f32 %v1217
      %v1730 = vcvt.s32.f32 %v1218
      %v1731 = vcvt.s32.f32 %v1219
      %v1732 = vcvt.s32.f32 %v1220
      %v1733 = vcvt.s32.f32 %v1221
      %v1734 = vcvt.s32.f32 %v1222
      %v1735 = vcvt.s32.f32 %v1223
      %v1736 = vcvt.s32.f32 %v1224
      %v1737 = vcvt.s32.f32 %v1225
      %v1738 = vcvt.s32.f32 %v1226
      %v1739 = vcvt.s32.f32 %v1227
      %v1740 = vcvt.s32.f32 %v1228
      %v1741 = vcvt.s32.f32 %v1229
      %v1742 = vcvt.s32.f32 %v1230
      %v1743 = vcvt.s32.f32 %v1231
      %v1744 = vcvt.s32.f32 %v1232
      %v1745 = vcvt.s32.f32 %v1233
      %v1746 = vcvt.s32.f32 %v1234
      %v1747 = vcvt.s32.f32 %v1235
      %v1748 = vcvt.s32.f32 %v1236
      %v1749 = vcvt.s32.f32 %v1237
      %v1750 = vcvt.s32.f32 %v1238
      %v1751 = vcvt.s32.f32 %v1239
      %v1752 = vcvt.s32.f32 %v1240
      %v1753 = vcvt.s32.f32 %v1241
      %v1754 = vcvt.s32.f32 %v1242
      %v1755 = vcvt.s32.f32 %v1243
      %v1756 = vcvt.s32.f32 %v1244
      %v1757 = vcvt.s32.f32 %v1245
      %v1758 = vcvt.s32.f32 %v1246
      %v1759 = vcvt.s32.f32 %v1247
      %v1760 = vcvt.s32.f32 %v1248
      %v1761 = vcvt.s32.f32 %v1249
      %v1762 = vcvt.s32.f32 %v1250
      %v1763 = vcvt.s32.f32 %v1251
      %v1764 = vcvt.s32.f32 %v1252
      %v1765 = vcvt.s32.f32 %v1253
      %v1766 = vcvt.s32.f32 %v1254
      %v1767 = vcvt.s32.f32 %v1255
      %v1768 = vcvt.s32.f32 %v1256
      %v1769 = vcvt.s32.f32 %v1257
      %v1770 = vcvt.s32.f32 %v1258
      %v1771 = vcvt.s32.f32 %v1259
      %v1772 = vcvt.s32.f32 %v1260
      %v1773 = vcvt.s32.f32 %v1261
      %v1774 = vcvt.s32.f32 %v1262
      %v1775 = vcvt.s32.f32 %v1263
      %v1776 = vcvt.s32.f32 %v1264
      %v1777 = vcvt.s32.f32 %v1265
      %v1778 = vcvt.s32.f32 %v1266
      %v1779 = vcvt.s32.f32 %v1267
      %v1780 = vcvt.s32.f32 %v1268
      %v1781 = vcvt.s32.f32 %v1269
      %v1782 = vcvt.s32.f32 %v1270
      %v1783 = vcvt.s32.f32 %v1271
      %v1784 = vpack.c.bf16 %v1273, %v1272
      %v1785 = vpack.c.bf16 %v1275, %v1274
      %v1786 = vpack.c.bf16 %v1277, %v1276
      %v1787 = vpack.c.bf16 %v1279, %v1278
      %v1788 = vpack.c.bf16 %v1281, %v1280
      %v1789 = vpack.c.bf16 %v1283, %v1282
      %v1790 = vpack.c.bf16 %v1285, %v1284
      %v1791 = vpack.c.bf16 %v1287, %v1286
      %v1792 = vpack.c.bf16 %v1289, %v1288
      %v1793 = vpack.c.bf16 %v1291, %v1290
      %v1794 = vpack.c.bf16 %v1293, %v1292
      %v1795 = vpack.c.bf16 %v1295, %v1294
      %v1796 = vpack.c.bf16 %v1297, %v1296
      %v1797 = vpack.c.bf16 %v1299, %v1298
      %v1798 = vpack.c.bf16 %v1301, %v1300
      %v1799 = vpack.c.bf16 %v1303, %v1302
      %v1800 = vpack.c.bf16 %v1305, %v1304
      %v1801 = vpack.c.bf16 %v1307, %v1306
      %v1802 = vpack.c.bf16 %v1309, %v1308
      %v1803 = vpack.c.bf16 %v1311, %v1310
      %v1804 = vpack.c.bf16 %v1313, %v1312
      %v1805 = vpack.c.bf16 %v1315, %v1314
      %v1806 = vpack.c.bf16 %v1317, %v1316
      %v1807 = vpack.c.bf16 %v1319, %v1318
      %v1808 = vpack.c.bf16 %v1321, %v1320
      %v1809 = vpack.c.bf16 %v1323, %v1322
      %v1810 = vpack.c.bf16 %v1325, %v1324
      %v1811 = vpack.c.bf16 %v1327, %v1326
      %v1812 = vpack.c.bf16 %v1329, %v1328
      %v1813 = vpack.c.bf16 %v1331, %v1330
      %v1814 = vpack.c.bf16 %v1333, %v1332
      %v1815 = vpack.c.bf16 %v1335, %v1334
      %v1816 = vpack.c.bf16 %v1337, %v1336
      %v1817 = vpack.c.bf16 %v1339, %v1338
      %v1818 = vpack.c.bf16 %v1341, %v1340
      %v1819 = vpack.c.bf16 %v1343, %v1342
      %v1820 = vpack.c.bf16 %v1345, %v1344
      %v1821 = vpack.c.bf16 %v1347, %v1346
      %v1822 = vpack.c.bf16 %v1349, %v1348
      %v1823 = vpack.c.bf16 %v1351, %v1350
      %v1824 = vpack.c.bf16 %v1353, %v1352
      %v1825 = vpack.c.bf16 %v1355, %v1354
      %v1826 = vpack.c.bf16 %v1357, %v1356
      %v1827 = vpack.c.bf16 %v1359, %v1358
      %v1828 = vpack.c.bf16 %v1361, %v1360
      %v1829 = vpack.c.bf16 %v1363, %v1362
      %v1830 = vpack.c.bf16 %v1365, %v1364
      %v1831 = vpack.c.bf16 %v1367, %v1366
      %v1832 = vpack.c.bf16 %v1369, %v1368
      %v1833 = vpack.c.bf16 %v1371, %v1370
      %v1834 = vpack.c.bf16 %v1373, %v1372
      %v1835 = vpack.c.bf16 %v1375, %v1374
      %v1836 = vpack.c.bf16 %v1377, %v1376
      %v1837 = vpack.c.bf16 %v1379, %v1378
      %v1838 = vpack.c.bf16 %v1381, %v1380
      %v1839 = vpack.c.bf16 %v1383, %v1382
      %v1840 = vpack.c.bf16 %v1385, %v1384
      %v1841 = vpack.c.bf16 %v1387, %v1386
      %v1842 = vpack.c.bf16 %v1389, %v1388
      %v1843 = vpack.c.bf16 %v1391, %v1390
      %v1844 = vpack.c.bf16 %v1393, %v1392
      %v1845 = vpack.c.bf16 %v1395, %v1394
      %v1846 = vpack.c.bf16 %v1397, %v1396
      %v1847 = vpack.c.bf16 %v1399, %v1398
      %v1848 = vpack.c.bf16 %v1401, %v1400
      %v1849 = vpack.c.bf16 %v1403, %v1402
      %v1850 = vpack.c.bf16 %v1405, %v1404
      %v1851 = vpack.c.bf16 %v1407, %v1406
      %v1852 = vpack.c.bf16 %v1409, %v1408
      %v1853 = vpack.c.bf16 %v1411, %v1410
      %v1854 = vpack.c.bf16 %v1413, %v1412
      %v1855 = vpack.c.bf16 %v1415, %v1414
      %v1856 = vpack.c.bf16 %v1417, %v1416
      %v1857 = vpack.c.bf16 %v1419, %v1418
      %v1858 = vpack.c.bf16 %v1421, %v1420
      %v1859 = vpack.c.bf16 %v1423, %v1422
      %v1860 = vpack.c.bf16 %v1425, %v1424
      %v1861 = vpack.c.bf16 %v1427, %v1426
      %v1862 = vpack.c.bf16 %v1429, %v1428
      %v1863 = vpack.c.bf16 %v1431, %v1430
      %v1864 = vpack.c.bf16 %v1433, %v1432
      %v1865 = vpack.c.bf16 %v1435, %v1434
      %v1866 = vpack.c.bf16 %v1437, %v1436
      %v1867 = vpack.c.bf16 %v1439, %v1438
      %v1868 = vpack.c.bf16 %v1441, %v1440
      %v1869 = vpack.c.bf16 %v1443, %v1442
      %v1870 = vpack.c.bf16 %v1445, %v1444
      %v1871 = vpack.c.bf16 %v1447, %v1446
      %v1872 = vpack.c.bf16 %v1449, %v1448
      %v1873 = vpack.c.bf16 %v1451, %v1450
      %v1874 = vpack.c.bf16 %v1453, %v1452
      %v1875 = vpack.c.bf16 %v1455, %v1454
      %v1876 = vpack.c.bf16 %v1457, %v1456
      %v1877 = vpack.c.bf16 %v1459, %v1458
      %v1878 = vpack.c.bf16 %v1461, %v1460
      %v1879 = vpack.c.bf16 %v1463, %v1462
      %v1880 = vpack.c.bf16 %v1465, %v1464
      %v1881 = vpack.c.bf16 %v1467, %v1466
      %v1882 = vpack.c.bf16 %v1469, %v1468
      %v1883 = vpack.c.bf16 %v1471, %v1470
      %v1884 = vpack.c.bf16 %v1473, %v1472
      %v1885 = vpack.c.bf16 %v1475, %v1474
      %v1886 = vpack.c.bf16 %v1477, %v1476
      %v1887 = vpack.c.bf16 %v1479, %v1478
      %v1888 = vpack.c.bf16 %v1481, %v1480
      %v1889 = vpack.c.bf16 %v1483, %v1482
      %v1890 = vpack.c.bf16 %v1485, %v1484
      %v1891 = vpack.c.bf16 %v1487, %v1486
      %v1892 = vpack.c.bf16 %v1489, %v1488
      %v1893 = vpack.c.bf16 %v1491, %v1490
      %v1894 = vpack.c.bf16 %v1493, %v1492
      %v1895 = vpack.c.bf16 %v1495, %v1494
      %v1896 = vpack.c.bf16 %v1497, %v1496
      %v1897 = vpack.c.bf16 %v1499, %v1498
      %v1898 = vpack.c.bf16 %v1501, %v1500
      %v1899 = vpack.c.bf16 %v1503, %v1502
      %v1900 = vpack.c.bf16 %v1505, %v1504
      %v1901 = vpack.c.bf16 %v1507, %v1506
      %v1902 = vpack.c.bf16 %v1509, %v1508
      %v1903 = vpack.c.bf16 %v1511, %v1510
      %v1904 = vpack.c.bf16 %v1513, %v1512
      %v1905 = vpack.c.bf16 %v1515, %v1514
      %v1906 = vpack.c.bf16 %v1517, %v1516
      %v1907 = vpack.c.bf16 %v1519, %v1518
      %v1908 = vpack.c.bf16 %v1521, %v1520
      %v1909 = vpack.c.bf16 %v1523, %v1522
      %v1910 = vpack.c.bf16 %v1525, %v1524
      %v1911 = vpack.c.bf16 %v1527, %v1526
      %v1912 = vpack.c.bf16 %v1529, %v1528
      %v1913 = vpack.c.bf16 %v1531, %v1530
      %v1914 = vpack.c.bf16 %v1533, %v1532
      %v1915 = vpack.c.bf16 %v1535, %v1534
      %v1916 = vpack.c.bf16 %v1537, %v1536
      %v1917 = vpack.c.bf16 %v1539, %v1538
      %v1918 = vpack.c.bf16 %v1541, %v1540
      %v1919 = vpack.c.bf16 %v1543, %v1542
      %v1920 = vpack.c.bf16 %v1545, %v1544
      %v1921 = vpack.c.bf16 %v1547, %v1546
      %v1922 = vpack.c.bf16 %v1549, %v1548
      %v1923 = vpack.c.bf16 %v1551, %v1550
      %v1924 = vpack.c.bf16 %v1553, %v1552
      %v1925 = vpack.c.bf16 %v1555, %v1554
      %v1926 = vpack.c.bf16 %v1557, %v1556
      %v1927 = vpack.c.bf16 %v1559, %v1558
      %v1928 = vpack.c.bf16 %v1561, %v1560
      %v1929 = vpack.c.bf16 %v1563, %v1562
      %v1930 = vpack.c.bf16 %v1565, %v1564
      %v1931 = vpack.c.bf16 %v1567, %v1566
      %v1932 = vpack.c.bf16 %v1569, %v1568
      %v1933 = vpack.c.bf16 %v1571, %v1570
      %v1934 = vpack.c.bf16 %v1573, %v1572
      %v1935 = vpack.c.bf16 %v1575, %v1574
      %v1936 = vpack.c.bf16 %v1577, %v1576
      %v1937 = vpack.c.bf16 %v1579, %v1578
      %v1938 = vpack.c.bf16 %v1581, %v1580
      %v1939 = vpack.c.bf16 %v1583, %v1582
      %v1940 = vpack.c.bf16 %v1585, %v1584
      %v1941 = vpack.c.bf16 %v1587, %v1586
      %v1942 = vpack.c.bf16 %v1589, %v1588
      %v1943 = vpack.c.bf16 %v1591, %v1590
      %v1944 = vpack.c.bf16 %v1593, %v1592
      %v1945 = vpack.c.bf16 %v1595, %v1594
      %v1946 = vpack.c.bf16 %v1597, %v1596
      %v1947 = vpack.c.bf16 %v1599, %v1598
      %v1948 = vpack.c.bf16 %v1601, %v1600
      %v1949 = vpack.c.bf16 %v1603, %v1602
      %v1950 = vpack.c.bf16 %v1605, %v1604
      %v1951 = vpack.c.bf16 %v1607, %v1606
      %v1952 = vpack.c.bf16 %v1609, %v1608
      %v1953 = vpack.c.bf16 %v1611, %v1610
      %v1954 = vpack.c.bf16 %v1613, %v1612
      %v1955 = vpack.c.bf16 %v1615, %v1614
      %v1956 = vpack.c.bf16 %v1617, %v1616
      %v1957 = vpack.c.bf16 %v1619, %v1618
      %v1958 = vpack.c.bf16 %v1621, %v1620
      %v1959 = vpack.c.bf16 %v1623, %v1622
      %v1960 = vpack.c.bf16 %v1625, %v1624
      %v1961 = vpack.c.bf16 %v1627, %v1626
      %v1962 = vpack.c.bf16 %v1629, %v1628
      %v1963 = vpack.c.bf16 %v1631, %v1630
      %v1964 = vpack.c.bf16 %v1633, %v1632
      %v1965 = vpack.c.bf16 %v1635, %v1634
      %v1966 = vpack.c.bf16 %v1637, %v1636
      %v1967 = vpack.c.bf16 %v1639, %v1638
      %v1968 = vpack.c.bf16 %v1641, %v1640
      %v1969 = vpack.c.bf16 %v1643, %v1642
      %v1970 = vpack.c.bf16 %v1645, %v1644
      %v1971 = vpack.c.bf16 %v1647, %v1646
      %v1972 = vpack.c.bf16 %v1649, %v1648
      %v1973 = vpack.c.bf16 %v1651, %v1650
      %v1974 = vpack.c.bf16 %v1653, %v1652
      %v1975 = vpack.c.bf16 %v1655, %v1654
      %v1976 = vpack.c.bf16 %v1657, %v1656
      %v1977 = vpack.c.bf16 %v1659, %v1658
      %v1978 = vpack.c.bf16 %v1661, %v1660
      %v1979 = vpack.c.bf16 %v1663, %v1662
      %v1980 = vpack.c.bf16 %v1665, %v1664
      %v1981 = vpack.c.bf16 %v1667, %v1666
      %v1982 = vpack.c.bf16 %v1669, %v1668
      %v1983 = vpack.c.bf16 %v1671, %v1670
      %v1984 = vpack.c.bf16 %v1673, %v1672
      %v1985 = vpack.c.bf16 %v1675, %v1674
      %v1986 = vpack.c.bf16 %v1677, %v1676
      %v1987 = vpack.c.bf16 %v1679, %v1678
      %v1988 = vpack.c.bf16 %v1681, %v1680
      %v1989 = vpack.c.bf16 %v1683, %v1682
      %v1990 = vpack.c.bf16 %v1685, %v1684
      %v1991 = vpack.c.bf16 %v1687, %v1686
      %v1992 = vpack.c.bf16 %v1689, %v1688
      %v1993 = vpack.c.bf16 %v1691, %v1690
      %v1994 = vpack.c.bf16 %v1693, %v1692
      %v1995 = vpack.c.bf16 %v1695, %v1694
      %v1996 = vpack.c.bf16 %v1697, %v1696
      %v1997 = vpack.c.bf16 %v1699, %v1698
      %v1998 = vpack.c.bf16 %v1701, %v1700
      %v1999 = vpack.c.bf16 %v1703, %v1702
      %v2000 = vpack.c.bf16 %v1705, %v1704
      %v2001 = vpack.c.bf16 %v1707, %v1706
      %v2002 = vpack.c.bf16 %v1709, %v1708
      %v2003 = vpack.c.bf16 %v1711, %v1710
      %v2004 = vpack.c.bf16 %v1713, %v1712
      %v2005 = vpack.c.bf16 %v1715, %v1714
      %v2006 = vpack.c.bf16 %v1717, %v1716
      %v2007 = vpack.c.bf16 %v1719, %v1718
      %v2008 = vpack.c.bf16 %v1721, %v1720
      %v2009 = vpack.c.bf16 %v1723, %v1722
      %v2010 = vpack.c.bf16 %v1725, %v1724
      %v2011 = vpack.c.bf16 %v1727, %v1726
      %v2012 = vpack.c.bf16 %v1729, %v1728
      %v2013 = vpack.c.bf16 %v1731, %v1730
      %v2014 = vpack.c.bf16 %v1733, %v1732
      %v2015 = vpack.c.bf16 %v1735, %v1734
      %v2016 = vpack.c.bf16 %v1737, %v1736
      %v2017 = vpack.c.bf16 %v1739, %v1738
      %v2018 = vpack.c.bf16 %v1741, %v1740
      %v2019 = vpack.c.bf16 %v1743, %v1742
      %v2020 = vpack.c.bf16 %v1745, %v1744
      %v2021 = vpack.c.bf16 %v1747, %v1746
      %v2022 = vpack.c.bf16 %v1749, %v1748
      %v2023 = vpack.c.bf16 %v1751, %v1750
      %v2024 = vpack.c.bf16 %v1753, %v1752
      %v2025 = vpack.c.bf16 %v1755, %v1754
      %v2026 = vpack.c.bf16 %v1757, %v1756
      %v2027 = vpack.c.bf16 %v1759, %v1758
      %v2028 = vpack.c.bf16 %v1761, %v1760
      %v2029 = vpack.c.bf16 %v1763, %v1762
      %v2030 = vpack.c.bf16 %v1765, %v1764
      %v2031 = vpack.c.bf16 %v1767, %v1766
      %v2032 = vpack.c.bf16 %v1769, %v1768
      %v2033 = vpack.c.bf16 %v1771, %v1770
      %v2034 = vpack.c.bf16 %v1773, %v1772
      %v2035 = vpack.c.bf16 %v1775, %v1774
      %v2036 = vpack.c.bf16 %v1777, %v1776
      %v2037 = vpack.c.bf16 %v1779, %v1778
      %v2038 = vpack.c.bf16 %v1781, %v1780
      %v2039 = vpack.c.bf16 %v1783, %v1782
      %2040 = vst [vmem:[#allocation3] sm:$0xff] %v1784
      %2041 = vst [vmem:[#allocation3 + $0x8] sm:$0xff] %v1785
      %2042 = vst [vmem:[#allocation3 + $0x10] sm:$0xff] %v1786
      %2043 = vst [vmem:[#allocation3 + $0x18] sm:$0xff] %v1787
      %2044 = vst [vmem:[#allocation3 + $0x20] sm:$0xff] %v1788
      %2045 = vst [vmem:[#allocation3 + $0x28] sm:$0xff] %v1789
      %2046 = vst [vmem:[#allocation3 + $0x30] sm:$0xff] %v1790
      %2047 = vst [vmem:[#allocation3 + $0x38] sm:$0xff] %v1791
      %2048 = vst [vmem:[#allocation3 + $0x40] sm:$0xff] %v1792
      %2049 = vst [vmem:[#allocation3 + $0x48] sm:$0xff] %v1793
      %2050 = vst [vmem:[#allocation3 + $0x50] sm:$0xff] %v1794
      %2051 = vst [vmem:[#allocation3 + $0x58] sm:$0xff] %v1795
      %2052 = vst [vmem:[#allocation3 + $0x60] sm:$0xff] %v1796
      %2053 = vst [vmem:[#allocation3 + $0x68] sm:$0xff] %v1797
      %2054 = vst [vmem:[#allocation3 + $0x70] sm:$0xff] %v1798
      %2055 = vst [vmem:[#allocation3 + $0x78] sm:$0xff] %v1799
      %2056 = vst [vmem:[#allocation3 + $0x80] sm:$0xff] %v1800
      %2057 = vst [vmem:[#allocation3 + $0x88] sm:$0xff] %v1801
      %2058 = vst [vmem:[#allocation3 + $0x90] sm:$0xff] %v1802
      %2059 = vst [vmem:[#allocation3 + $0x98] sm:$0xff] %v1803
      %2060 = vst [vmem:[#allocation3 + $0xa0] sm:$0xff] %v1804
      %2061 = vst [vmem:[#allocation3 + $0xa8] sm:$0xff] %v1805
      %2062 = vst [vmem:[#allocation3 + $0xb0] sm:$0xff] %v1806
      %2063 = vst [vmem:[#allocation3 + $0xb8] sm:$0xff] %v1807
      %2064 = vst [vmem:[#allocation3 + $0xc0] sm:$0xff] %v1808
      %2065 = vst [vmem:[#allocation3 + $0xc8] sm:$0xff] %v1809
      %2066 = vst [vmem:[#allocation3 + $0xd0] sm:$0xff] %v1810
      %2067 = vst [vmem:[#allocation3 + $0xd8] sm:$0xff] %v1811
      %2068 = vst [vmem:[#allocation3 + $0xe0] sm:$0xff] %v1812
      %2069 = vst [vmem:[#allocation3 + $0xe8] sm:$0xff] %v1813
      %2070 = vst [vmem:[#allocation3 + $0xf0] sm:$0xff] %v1814
      %2071 = vst [vmem:[#allocation3 + $0xf8] sm:$0xff] %v1815
      %2072 = vst [vmem:[#allocation3 + $0x100] sm:$0xff] %v1816
      %2073 = vst [vmem:[#allocation3 + $0x108] sm:$0xff] %v1817
      %2074 = vst [vmem:[#allocation3 + $0x110] sm:$0xff] %v1818
      %2075 = vst [vmem:[#allocation3 + $0x118] sm:$0xff] %v1819
      %2076 = vst [vmem:[#allocation3 + $0x120] sm:$0xff] %v1820
      %2077 = vst [vmem:[#allocation3 + $0x128] sm:$0xff] %v1821
      %2078 = vst [vmem:[#allocation3 + $0x130] sm:$0xff] %v1822
      %2079 = vst [vmem:[#allocation3 + $0x138] sm:$0xff] %v1823
      %2080 = vst [vmem:[#allocation3 + $0x140] sm:$0xff] %v1824
      %2081 = vst [vmem:[#allocation3 + $0x148] sm:$0xff] %v1825
      %2082 = vst [vmem:[#allocation3 + $0x150] sm:$0xff] %v1826
      %2083 = vst [vmem:[#allocation3 + $0x158] sm:$0xff] %v1827
      %2084 = vst [vmem:[#allocation3 + $0x160] sm:$0xff] %v1828
      %2085 = vst [vmem:[#allocation3 + $0x168] sm:$0xff] %v1829
      %2086 = vst [vmem:[#allocation3 + $0x170] sm:$0xff] %v1830
      %2087 = vst [vmem:[#allocation3 + $0x178] sm:$0xff] %v1831
      %2088 = vst [vmem:[#allocation3 + $0x180] sm:$0xff] %v1832
      %2089 = vst [vmem:[#allocation3 + $0x188] sm:$0xff] %v1833
      %2090 = vst [vmem:[#allocation3 + $0x190] sm:$0xff] %v1834
      %2091 = vst [vmem:[#allocation3 + $0x198] sm:$0xff] %v1835
      %2092 = vst [vmem:[#allocation3 + $0x1a0] sm:$0xff] %v1836
      %2093 = vst [vmem:[#allocation3 + $0x1a8] sm:$0xff] %v1837
      %2094 = vst [vmem:[#allocation3 + $0x1b0] sm:$0xff] %v1838
      %2095 = vst [vmem:[#allocation3 + $0x1b8] sm:$0xff] %v1839
      %2096 = vst [vmem:[#allocation3 + $0x1c0] sm:$0xff] %v1840
      %2097 = vst [vmem:[#allocation3 + $0x1c8] sm:$0xff] %v1841
      %2098 = vst [vmem:[#allocation3 + $0x1d0] sm:$0xff] %v1842
      %2099 = vst [vmem:[#allocation3 + $0x1d8] sm:$0xff] %v1843
      %2100 = vst [vmem:[#allocation3 + $0x1e0] sm:$0xff] %v1844
      %2101 = vst [vmem:[#allocation3 + $0x1e8] sm:$0xff] %v1845
      %2102 = vst [vmem:[#allocation3 + $0x1f0] sm:$0xff] %v1846
      %2103 = vst [vmem:[#allocation3 + $0x1f8] sm:$0xff] %v1847
      %2104 = vst [vmem:[#allocation3 + $0x200] sm:$0xff] %v1848
      %2105 = vst [vmem:[#allocation3 + $0x208] sm:$0xff] %v1849
      %2106 = vst [vmem:[#allocation3 + $0x210] sm:$0xff] %v1850
      %2107 = vst [vmem:[#allocation3 + $0x218] sm:$0xff] %v1851
      %2108 = vst [vmem:[#allocation3 + $0x220] sm:$0xff] %v1852
      %2109 = vst [vmem:[#allocation3 + $0x228] sm:$0xff] %v1853
      %2110 = vst [vmem:[#allocation3 + $0x230] sm:$0xff] %v1854
      %2111 = vst [vmem:[#allocation3 + $0x238] sm:$0xff] %v1855
      %2112 = vst [vmem:[#allocation3 + $0x240] sm:$0xff] %v1856
      %2113 = vst [vmem:[#allocation3 + $0x248] sm:$0xff] %v1857
      %2114 = vst [vmem:[#allocation3 + $0x250] sm:$0xff] %v1858
      %2115 = vst [vmem:[#allocation3 + $0x258] sm:$0xff] %v1859
      %2116 = vst [vmem:[#allocation3 + $0x260] sm:$0xff] %v1860
      %2117 = vst [vmem:[#allocation3 + $0x268] sm:$0xff] %v1861
      %2118 = vst [vmem:[#allocation3 + $0x270] sm:$0xff] %v1862
      %2119 = vst [vmem:[#allocation3 + $0x278] sm:$0xff] %v1863
      %2120 = vst [vmem:[#allocation3 + $0x280] sm:$0xff] %v1864
      %2121 = vst [vmem:[#allocation3 + $0x288] sm:$0xff] %v1865
      %2122 = vst [vmem:[#allocation3 + $0x290] sm:$0xff] %v1866
      %2123 = vst [vmem:[#allocation3 + $0x298] sm:$0xff] %v1867
      %2124 = vst [vmem:[#allocation3 + $0x2a0] sm:$0xff] %v1868
      %2125 = vst [vmem:[#allocation3 + $0x2a8] sm:$0xff] %v1869
      %2126 = vst [vmem:[#allocation3 + $0x2b0] sm:$0xff] %v1870
      %2127 = vst [vmem:[#allocation3 + $0x2b8] sm:$0xff] %v1871
      %2128 = vst [vmem:[#allocation3 + $0x2c0] sm:$0xff] %v1872
      %2129 = vst [vmem:[#allocation3 + $0x2c8] sm:$0xff] %v1873
      %2130 = vst [vmem:[#allocation3 + $0x2d0] sm:$0xff] %v1874
      %2131 = vst [vmem:[#allocation3 + $0x2d8] sm:$0xff] %v1875
      %2132 = vst [vmem:[#allocation3 + $0x2e0] sm:$0xff] %v1876
      %2133 = vst [vmem:[#allocation3 + $0x2e8] sm:$0xff] %v1877
      %2134 = vst [vmem:[#allocation3 + $0x2f0] sm:$0xff] %v1878
      %2135 = vst [vmem:[#allocation3 + $0x2f8] sm:$0xff] %v1879
      %2136 = vst [vmem:[#allocation3 + $0x300] sm:$0xff] %v1880
      %2137 = vst [vmem:[#allocation3 + $0x308] sm:$0xff] %v1881
      %2138 = vst [vmem:[#allocation3 + $0x310] sm:$0xff] %v1882
      %2139 = vst [vmem:[#allocation3 + $0x318] sm:$0xff] %v1883
      %2140 = vst [vmem:[#allocation3 + $0x320] sm:$0xff] %v1884
      %2141 = vst [vmem:[#allocation3 + $0x328] sm:$0xff] %v1885
      %2142 = vst [vmem:[#allocation3 + $0x330] sm:$0xff] %v1886
      %2143 = vst [vmem:[#allocation3 + $0x338] sm:$0xff] %v1887
      %2144 = vst [vmem:[#allocation3 + $0x340] sm:$0xff] %v1888
      %2145 = vst [vmem:[#allocation3 + $0x348] sm:$0xff] %v1889
      %2146 = vst [vmem:[#allocation3 + $0x350] sm:$0xff] %v1890
      %2147 = vst [vmem:[#allocation3 + $0x358] sm:$0xff] %v1891
      %2148 = vst [vmem:[#allocation3 + $0x360] sm:$0xff] %v1892
      %2149 = vst [vmem:[#allocation3 + $0x368] sm:$0xff] %v1893
      %2150 = vst [vmem:[#allocation3 + $0x370] sm:$0xff] %v1894
      %2151 = vst [vmem:[#allocation3 + $0x378] sm:$0xff] %v1895
      %2152 = vst [vmem:[#allocation3 + $0x380] sm:$0xff] %v1896
      %2153 = vst [vmem:[#allocation3 + $0x388] sm:$0xff] %v1897
      %2154 = vst [vmem:[#allocation3 + $0x390] sm:$0xff] %v1898
      %2155 = vst [vmem:[#allocation3 + $0x398] sm:$0xff] %v1899
      %2156 = vst [vmem:[#allocation3 + $0x3a0] sm:$0xff] %v1900
      %2157 = vst [vmem:[#allocation3 + $0x3a8] sm:$0xff] %v1901
      %2158 = vst [vmem:[#allocation3 + $0x3b0] sm:$0xff] %v1902
      %2159 = vst [vmem:[#allocation3 + $0x3b8] sm:$0xff] %v1903
      %2160 = vst [vmem:[#allocation3 + $0x3c0] sm:$0xff] %v1904
      %2161 = vst [vmem:[#allocation3 + $0x3c8] sm:$0xff] %v1905
      %2162 = vst [vmem:[#allocation3 + $0x3d0] sm:$0xff] %v1906
      %2163 = vst [vmem:[#allocation3 + $0x3d8] sm:$0xff] %v1907
      %2164 = vst [vmem:[#allocation3 + $0x3e0] sm:$0xff] %v1908
      %2165 = vst [vmem:[#allocation3 + $0x3e8] sm:$0xff] %v1909
      %2166 = vst [vmem:[#allocation3 + $0x3f0] sm:$0xff] %v1910
      %2167 = vst [vmem:[#allocation3 + $0x3f8] sm:$0xff] %v1911
      %2168 = vst [vmem:[#allocation3 + $0x400] sm:$0xff] %v1912
      %2169 = vst [vmem:[#allocation3 + $0x408] sm:$0xff] %v1913
      %2170 = vst [vmem:[#allocation3 + $0x410] sm:$0xff] %v1914
      %2171 = vst [vmem:[#allocation3 + $0x418] sm:$0xff] %v1915
      %2172 = vst [vmem:[#allocation3 + $0x420] sm:$0xff] %v1916
      %2173 = vst [vmem:[#allocation3 + $0x428] sm:$0xff] %v1917
      %2174 = vst [vmem:[#allocation3 + $0x430] sm:$0xff] %v1918
      %2175 = vst [vmem:[#allocation3 + $0x438] sm:$0xff] %v1919
      %2176 = vst [vmem:[#allocation3 + $0x440] sm:$0xff] %v1920
      %2177 = vst [vmem:[#allocation3 + $0x448] sm:$0xff] %v1921
      %2178 = vst [vmem:[#allocation3 + $0x450] sm:$0xff] %v1922
      %2179 = vst [vmem:[#allocation3 + $0x458] sm:$0xff] %v1923
      %2180 = vst [vmem:[#allocation3 + $0x460] sm:$0xff] %v1924
      %2181 = vst [vmem:[#allocation3 + $0x468] sm:$0xff] %v1925
      %2182 = vst [vmem:[#allocation3 + $0x470] sm:$0xff] %v1926
      %2183 = vst [vmem:[#allocation3 + $0x478] sm:$0xff] %v1927
      %2184 = vst [vmem:[#allocation3 + $0x480] sm:$0xff] %v1928
      %2185 = vst [vmem:[#allocation3 + $0x488] sm:$0xff] %v1929
      %2186 = vst [vmem:[#allocation3 + $0x490] sm:$0xff] %v1930
      %2187 = vst [vmem:[#allocation3 + $0x498] sm:$0xff] %v1931
      %2188 = vst [vmem:[#allocation3 + $0x4a0] sm:$0xff] %v1932
      %2189 = vst [vmem:[#allocation3 + $0x4a8] sm:$0xff] %v1933
      %2190 = vst [vmem:[#allocation3 + $0x4b0] sm:$0xff] %v1934
      %2191 = vst [vmem:[#allocation3 + $0x4b8] sm:$0xff] %v1935
      %2192 = vst [vmem:[#allocation3 + $0x4c0] sm:$0xff] %v1936
      %2193 = vst [vmem:[#allocation3 + $0x4c8] sm:$0xff] %v1937
      %2194 = vst [vmem:[#allocation3 + $0x4d0] sm:$0xff] %v1938
      %2195 = vst [vmem:[#allocation3 + $0x4d8] sm:$0xff] %v1939
      %2196 = vst [vmem:[#allocation3 + $0x4e0] sm:$0xff] %v1940
      %2197 = vst [vmem:[#allocation3 + $0x4e8] sm:$0xff] %v1941
      %2198 = vst [vmem:[#allocation3 + $0x4f0] sm:$0xff] %v1942
      %2199 = vst [vmem:[#allocation3 + $0x4f8] sm:$0xff] %v1943
      %2200 = vst [vmem:[#allocation3 + $0x500] sm:$0xff] %v1944
      %2201 = vst [vmem:[#allocation3 + $0x508] sm:$0xff] %v1945
      %2202 = vst [vmem:[#allocation3 + $0x510] sm:$0xff] %v1946
      %2203 = vst [vmem:[#allocation3 + $0x518] sm:$0xff] %v1947
      %2204 = vst [vmem:[#allocation3 + $0x520] sm:$0xff] %v1948
      %2205 = vst [vmem:[#allocation3 + $0x528] sm:$0xff] %v1949
      %2206 = vst [vmem:[#allocation3 + $0x530] sm:$0xff] %v1950
      %2207 = vst [vmem:[#allocation3 + $0x538] sm:$0xff] %v1951
      %2208 = vst [vmem:[#allocation3 + $0x540] sm:$0xff] %v1952
      %2209 = vst [vmem:[#allocation3 + $0x548] sm:$0xff] %v1953
      %2210 = vst [vmem:[#allocation3 + $0x550] sm:$0xff] %v1954
      %2211 = vst [vmem:[#allocation3 + $0x558] sm:$0xff] %v1955
      %2212 = vst [vmem:[#allocation3 + $0x560] sm:$0xff] %v1956
      %2213 = vst [vmem:[#allocation3 + $0x568] sm:$0xff] %v1957
      %2214 = vst [vmem:[#allocation3 + $0x570] sm:$0xff] %v1958
      %2215 = vst [vmem:[#allocation3 + $0x578] sm:$0xff] %v1959
      %2216 = vst [vmem:[#allocation3 + $0x580] sm:$0xff] %v1960
      %2217 = vst [vmem:[#allocation3 + $0x588] sm:$0xff] %v1961
      %2218 = vst [vmem:[#allocation3 + $0x590] sm:$0xff] %v1962
      %2219 = vst [vmem:[#allocation3 + $0x598] sm:$0xff] %v1963
      %2220 = vst [vmem:[#allocation3 + $0x5a0] sm:$0xff] %v1964
      %2221 = vst [vmem:[#allocation3 + $0x5a8] sm:$0xff] %v1965
      %2222 = vst [vmem:[#allocation3 + $0x5b0] sm:$0xff] %v1966
      %2223 = vst [vmem:[#allocation3 + $0x5b8] sm:$0xff] %v1967
      %2224 = vst [vmem:[#allocation3 + $0x5c0] sm:$0xff] %v1968
      %2225 = vst [vmem:[#allocation3 + $0x5c8] sm:$0xff] %v1969
      %2226 = vst [vmem:[#allocation3 + $0x5d0] sm:$0xff] %v1970
      %2227 = vst [vmem:[#allocation3 + $0x5d8] sm:$0xff] %v1971
      %2228 = vst [vmem:[#allocation3 + $0x5e0] sm:$0xff] %v1972
      %2229 = vst [vmem:[#allocation3 + $0x5e8] sm:$0xff] %v1973
      %2230 = vst [vmem:[#allocation3 + $0x5f0] sm:$0xff] %v1974
      %2231 = vst [vmem:[#allocation3 + $0x5f8] sm:$0xff] %v1975
      %2232 = vst [vmem:[#allocation3 + $0x600] sm:$0xff] %v1976
      %2233 = vst [vmem:[#allocation3 + $0x608] sm:$0xff] %v1977
      %2234 = vst [vmem:[#allocation3 + $0x610] sm:$0xff] %v1978
      %2235 = vst [vmem:[#allocation3 + $0x618] sm:$0xff] %v1979
      %2236 = vst [vmem:[#allocation3 + $0x620] sm:$0xff] %v1980
      %2237 = vst [vmem:[#allocation3 + $0x628] sm:$0xff] %v1981
      %2238 = vst [vmem:[#allocation3 + $0x630] sm:$0xff] %v1982
      %2239 = vst [vmem:[#allocation3 + $0x638] sm:$0xff] %v1983
      %2240 = vst [vmem:[#allocation3 + $0x640] sm:$0xff] %v1984
      %2241 = vst [vmem:[#allocation3 + $0x648] sm:$0xff] %v1985
      %2242 = vst [vmem:[#allocation3 + $0x650] sm:$0xff] %v1986
      %2243 = vst [vmem:[#allocation3 + $0x658] sm:$0xff] %v1987
      %2244 = vst [vmem:[#allocation3 + $0x660] sm:$0xff] %v1988
      %2245 = vst [vmem:[#allocation3 + $0x668] sm:$0xff] %v1989
      %2246 = vst [vmem:[#allocation3 + $0x670] sm:$0xff] %v1990
      %2247 = vst [vmem:[#allocation3 + $0x678] sm:$0xff] %v1991
      %2248 = vst [vmem:[#allocation3 + $0x680] sm:$0xff] %v1992
      %2249 = vst [vmem:[#allocation3 + $0x688] sm:$0xff] %v1993
      %2250 = vst [vmem:[#allocation3 + $0x690] sm:$0xff] %v1994
      %2251 = vst [vmem:[#allocation3 + $0x698] sm:$0xff] %v1995
      %2252 = vst [vmem:[#allocation3 + $0x6a0] sm:$0xff] %v1996
      %2253 = vst [vmem:[#allocation3 + $0x6a8] sm:$0xff] %v1997
      %2254 = vst [vmem:[#allocation3 + $0x6b0] sm:$0xff] %v1998
      %2255 = vst [vmem:[#allocation3 + $0x6b8] sm:$0xff] %v1999
      %2256 = vst [vmem:[#allocation3 + $0x6c0] sm:$0xff] %v2000
      %2257 = vst [vmem:[#allocation3 + $0x6c8] sm:$0xff] %v2001
      %2258 = vst [vmem:[#allocation3 + $0x6d0] sm:$0xff] %v2002
      %2259 = vst [vmem:[#allocation3 + $0x6d8] sm:$0xff] %v2003
      %2260 = vst [vmem:[#allocation3 + $0x6e0] sm:$0xff] %v2004
      %2261 = vst [vmem:[#allocation3 + $0x6e8] sm:$0xff] %v2005
      %2262 = vst [vmem:[#allocation3 + $0x6f0] sm:$0xff] %v2006
      %2263 = vst [vmem:[#allocation3 + $0x6f8] sm:$0xff] %v2007
      %2264 = vst [vmem:[#allocation3 + $0x700] sm:$0xff] %v2008
      %2265 = vst [vmem:[#allocation3 + $0x708] sm:$0xff] %v2009
      %2266 = vst [vmem:[#allocation3 + $0x710] sm:$0xff] %v2010
      %2267 = vst [vmem:[#allocation3 + $0x718] sm:$0xff] %v2011
      %2268 = vst [vmem:[#allocation3 + $0x720] sm:$0xff] %v2012
      %2269 = vst [vmem:[#allocation3 + $0x728] sm:$0xff] %v2013
      %2270 = vst [vmem:[#allocation3 + $0x730] sm:$0xff] %v2014
      %2271 = vst [vmem:[#allocation3 + $0x738] sm:$0xff] %v2015
      %2272 = vst [vmem:[#allocation3 + $0x740] sm:$0xff] %v2016
      %2273 = vst [vmem:[#allocation3 + $0x748] sm:$0xff] %v2017
      %2274 = vst [vmem:[#allocation3 + $0x750] sm:$0xff] %v2018
      %2275 = vst [vmem:[#allocation3 + $0x758] sm:$0xff] %v2019
      %2276 = vst [vmem:[#allocation3 + $0x760] sm:$0xff] %v2020
      %2277 = vst [vmem:[#allocation3 + $0x768] sm:$0xff] %v2021
      %2278 = vst [vmem:[#allocation3 + $0x770] sm:$0xff] %v2022
      %2279 = vst [vmem:[#allocation3 + $0x778] sm:$0xff] %v2023
      %2280 = vst [vmem:[#allocation3 + $0x780] sm:$0xff] %v2024
      %2281 = vst [vmem:[#allocation3 + $0x788] sm:$0xff] %v2025
      %2282 = vst [vmem:[#allocation3 + $0x790] sm:$0xff] %v2026
      %2283 = vst [vmem:[#allocation3 + $0x798] sm:$0xff] %v2027
      %2284 = vst [vmem:[#allocation3 + $0x7a0] sm:$0xff] %v2028
      %2285 = vst [vmem:[#allocation3 + $0x7a8] sm:$0xff] %v2029
      %2286 = vst [vmem:[#allocation3 + $0x7b0] sm:$0xff] %v2030
      %2287 = vst [vmem:[#allocation3 + $0x7b8] sm:$0xff] %v2031
      %2288 = vst [vmem:[#allocation3 + $0x7c0] sm:$0xff] %v2032
      %2289 = vst [vmem:[#allocation3 + $0x7c8] sm:$0xff] %v2033
      %2290 = vst [vmem:[#allocation3 + $0x7d0] sm:$0xff] %v2034
      %2291 = vst [vmem:[#allocation3 + $0x7d8] sm:$0xff] %v2035
      %2292 = vst [vmem:[#allocation3 + $0x7e0] sm:$0xff] %v2036
      %2293 = vst [vmem:[#allocation3 + $0x7e8] sm:$0xff] %v2037
      %2294 = vst [vmem:[#allocation3 + $0x7f0] sm:$0xff] %v2038
      %2295 = vst [vmem:[#allocation3 + $0x7f8] sm:$0xff] %v2039
      %v2296 = vld [vmem:[#allocation22] sm:$0xff]
      %v2297 = vld [vmem:[#allocation22 + $0x8] sm:$0xff]
      %v2298 = vld [vmem:[#allocation22 + $0x10] sm:$0xff]
      %v2299 = vld [vmem:[#allocation22 + $0x18] sm:$0xff]
      %v2300 = vld [vmem:[#allocation22 + $0x20] sm:$0xff]
      %v2301 = vld [vmem:[#allocation22 + $0x28] sm:$0xff]
      %v2302 = vld [vmem:[#allocation22 + $0x30] sm:$0xff]
      %v2303 = vld [vmem:[#allocation22 + $0x38] sm:$0xff]
      %v2304 = vld [vmem:[#allocation22 + $0x40] sm:$0xff]
      %v2305 = vld [vmem:[#allocation22 + $0x48] sm:$0xff]
      %v2306 = vld [vmem:[#allocation22 + $0x50] sm:$0xff]
      %v2307 = vld [vmem:[#allocation22 + $0x58] sm:$0xff]
      %v2308 = vld [vmem:[#allocation22 + $0x60] sm:$0xff]
      %v2309 = vld [vmem:[#allocation22 + $0x68] sm:$0xff]
      %v2310 = vld [vmem:[#allocation22 + $0x70] sm:$0xff]
      %v2311 = vld [vmem:[#allocation22 + $0x78] sm:$0xff]
      %v2312 = vld [vmem:[#allocation22 + $0x80] sm:$0xff]
      %v2313 = vld [vmem:[#allocation22 + $0x88] sm:$0xff]
      %v2314 = vld [vmem:[#allocation22 + $0x90] sm:$0xff]
      %v2315 = vld [vmem:[#allocation22 + $0x98] sm:$0xff]
      %v2316 = vld [vmem:[#allocation22 + $0xa0] sm:$0xff]
      %v2317 = vld [vmem:[#allocation22 + $0xa8] sm:$0xff]
      %v2318 = vld [vmem:[#allocation22 + $0xb0] sm:$0xff]
      %v2319 = vld [vmem:[#allocation22 + $0xb8] sm:$0xff]
      %v2320 = vld [vmem:[#allocation22 + $0xc0] sm:$0xff]
      %v2321 = vld [vmem:[#allocation22 + $0xc8] sm:$0xff]
      %v2322 = vld [vmem:[#allocation22 + $0xd0] sm:$0xff]
      %v2323 = vld [vmem:[#allocation22 + $0xd8] sm:$0xff]
      %v2324 = vld [vmem:[#allocation22 + $0xe0] sm:$0xff]
      %v2325 = vld [vmem:[#allocation22 + $0xe8] sm:$0xff]
      %v2326 = vld [vmem:[#allocation22 + $0xf0] sm:$0xff]
      %v2327 = vld [vmem:[#allocation22 + $0xf8] sm:$0xff]
      %v2328 = vld [vmem:[#allocation22 + $0x100] sm:$0xff]
      %v2329 = vld [vmem:[#allocation22 + $0x108] sm:$0xff]
      %v2330 = vld [vmem:[#allocation22 + $0x110] sm:$0xff]
      %v2331 = vld [vmem:[#allocation22 + $0x118] sm:$0xff]
      %v2332 = vld [vmem:[#allocation22 + $0x120] sm:$0xff]
      %v2333 = vld [vmem:[#allocation22 + $0x128] sm:$0xff]
      %v2334 = vld [vmem:[#allocation22 + $0x130] sm:$0xff]
      %v2335 = vld [vmem:[#allocation22 + $0x138] sm:$0xff]
      %v2336 = vld [vmem:[#allocation22 + $0x140] sm:$0xff]
      %v2337 = vld [vmem:[#allocation22 + $0x148] sm:$0xff]
      %v2338 = vld [vmem:[#allocation22 + $0x150] sm:$0xff]
      %v2339 = vld [vmem:[#allocation22 + $0x158] sm:$0xff]
      %v2340 = vld [vmem:[#allocation22 + $0x160] sm:$0xff]
      %v2341 = vld [vmem:[#allocation22 + $0x168] sm:$0xff]
      %v2342 = vld [vmem:[#allocation22 + $0x170] sm:$0xff]
      %v2343 = vld [vmem:[#allocation22 + $0x178] sm:$0xff]
      %v2344 = vld [vmem:[#allocation22 + $0x180] sm:$0xff]
      %v2345 = vld [vmem:[#allocation22 + $0x188] sm:$0xff]
      %v2346 = vld [vmem:[#allocation22 + $0x190] sm:$0xff]
      %v2347 = vld [vmem:[#allocation22 + $0x198] sm:$0xff]
      %v2348 = vld [vmem:[#allocation22 + $0x1a0] sm:$0xff]
      %v2349 = vld [vmem:[#allocation22 + $0x1a8] sm:$0xff]
      %v2350 = vld [vmem:[#allocation22 + $0x1b0] sm:$0xff]
      %v2351 = vld [vmem:[#allocation22 + $0x1b8] sm:$0xff]
      %v2352 = vld [vmem:[#allocation22 + $0x1c0] sm:$0xff]
      %v2353 = vld [vmem:[#allocation22 + $0x1c8] sm:$0xff]
      %v2354 = vld [vmem:[#allocation22 + $0x1d0] sm:$0xff]
      %v2355 = vld [vmem:[#allocation22 + $0x1d8] sm:$0xff]
      %v2356 = vld [vmem:[#allocation22 + $0x1e0] sm:$0xff]
      %v2357 = vld [vmem:[#allocation22 + $0x1e8] sm:$0xff]
      %v2358 = vld [vmem:[#allocation22 + $0x1f0] sm:$0xff]
      %v2359 = vld [vmem:[#allocation22 + $0x1f8] sm:$0xff]
      %v2360 = vunpack.c.0.s8 %v2296
      %v2361 = vunpack.c.0.s8 %v2297
      %v2362 = vunpack.c.1.s8 %v2296
      %v2363 = vunpack.c.1.s8 %v2297
      %v2364 = vunpack.c.2.s8 %v2296
      %v2365 = vunpack.c.2.s8 %v2297
      %v2366 = vunpack.c.3.s8 %v2296
      %v2367 = vunpack.c.3.s8 %v2297
      %v2368 = vunpack.c.0.s8 %v2298
      %v2369 = vunpack.c.0.s8 %v2299
      %v2370 = vunpack.c.1.s8 %v2298
      %v2371 = vunpack.c.1.s8 %v2299
      %v2372 = vunpack.c.2.s8 %v2298
      %v2373 = vunpack.c.2.s8 %v2299
      %v2374 = vunpack.c.3.s8 %v2298
      %v2375 = vunpack.c.3.s8 %v2299
      %v2376 = vunpack.c.0.s8 %v2300
      %v2377 = vunpack.c.0.s8 %v2301
      %v2378 = vunpack.c.1.s8 %v2300
      %v2379 = vunpack.c.1.s8 %v2301
      %v2380 = vunpack.c.2.s8 %v2300
      %v2381 = vunpack.c.2.s8 %v2301
      %v2382 = vunpack.c.3.s8 %v2300
      %v2383 = vunpack.c.3.s8 %v2301
      %v2384 = vunpack.c.0.s8 %v2302
      %v2385 = vunpack.c.0.s8 %v2303
      %v2386 = vunpack.c.1.s8 %v2302
      %v2387 = vunpack.c.1.s8 %v2303
      %v2388 = vunpack.c.2.s8 %v2302
      %v2389 = vunpack.c.2.s8 %v2303
      %v2390 = vunpack.c.3.s8 %v2302
      %v2391 = vunpack.c.3.s8 %v2303
      %v2392 = vunpack.c.0.s8 %v2304
      %v2393 = vunpack.c.0.s8 %v2305
      %v2394 = vunpack.c.1.s8 %v2304
      %v2395 = vunpack.c.1.s8 %v2305
      %v2396 = vunpack.c.2.s8 %v2304
      %v2397 = vunpack.c.2.s8 %v2305
      %v2398 = vunpack.c.3.s8 %v2304
      %v2399 = vunpack.c.3.s8 %v2305
      %v2400 = vunpack.c.0.s8 %v2306
      %v2401 = vunpack.c.0.s8 %v2307
      %v2402 = vunpack.c.1.s8 %v2306
      %v2403 = vunpack.c.1.s8 %v2307
      %v2404 = vunpack.c.2.s8 %v2306
      %v2405 = vunpack.c.2.s8 %v2307
      %v2406 = vunpack.c.3.s8 %v2306
      %v2407 = vunpack.c.3.s8 %v2307
      %v2408 = vunpack.c.0.s8 %v2308
      %v2409 = vunpack.c.0.s8 %v2309
      %v2410 = vunpack.c.1.s8 %v2308
      %v2411 = vunpack.c.1.s8 %v2309
      %v2412 = vunpack.c.2.s8 %v2308
      %v2413 = vunpack.c.2.s8 %v2309
      %v2414 = vunpack.c.3.s8 %v2308
      %v2415 = vunpack.c.3.s8 %v2309
      %v2416 = vunpack.c.0.s8 %v2310
      %v2417 = vunpack.c.0.s8 %v2311
      %v2418 = vunpack.c.1.s8 %v2310
      %v2419 = vunpack.c.1.s8 %v2311
      %v2420 = vunpack.c.2.s8 %v2310
      %v2421 = vunpack.c.2.s8 %v2311
      %v2422 = vunpack.c.3.s8 %v2310
      %v2423 = vunpack.c.3.s8 %v2311
      %v2424 = vunpack.c.0.s8 %v2312
      %v2425 = vunpack.c.0.s8 %v2313
      %v2426 = vunpack.c.1.s8 %v2312
      %v2427 = vunpack.c.1.s8 %v2313
      %v2428 = vunpack.c.2.s8 %v2312
      %v2429 = vunpack.c.2.s8 %v2313
      %v2430 = vunpack.c.3.s8 %v2312
      %v2431 = vunpack.c.3.s8 %v2313
      %v2432 = vunpack.c.0.s8 %v2314
      %v2433 = vunpack.c.0.s8 %v2315
      %v2434 = vunpack.c.1.s8 %v2314
      %v2435 = vunpack.c.1.s8 %v2315
      %v2436 = vunpack.c.2.s8 %v2314
      %v2437 = vunpack.c.2.s8 %v2315
      %v2438 = vunpack.c.3.s8 %v2314
      %v2439 = vunpack.c.3.s8 %v2315
      %v2440 = vunpack.c.0.s8 %v2316
      %v2441 = vunpack.c.0.s8 %v2317
      %v2442 = vunpack.c.1.s8 %v2316
      %v2443 = vunpack.c.1.s8 %v2317
      %v2444 = vunpack.c.2.s8 %v2316
      %v2445 = vunpack.c.2.s8 %v2317
      %v2446 = vunpack.c.3.s8 %v2316
      %v2447 = vunpack.c.3.s8 %v2317
      %v2448 = vunpack.c.0.s8 %v2318
      %v2449 = vunpack.c.0.s8 %v2319
      %v2450 = vunpack.c.1.s8 %v2318
      %v2451 = vunpack.c.1.s8 %v2319
      %v2452 = vunpack.c.2.s8 %v2318
      %v2453 = vunpack.c.2.s8 %v2319
      %v2454 = vunpack.c.3.s8 %v2318
      %v2455 = vunpack.c.3.s8 %v2319
      %v2456 = vunpack.c.0.s8 %v2320
      %v2457 = vunpack.c.0.s8 %v2321
      %v2458 = vunpack.c.1.s8 %v2320
      %v2459 = vunpack.c.1.s8 %v2321
      %v2460 = vunpack.c.2.s8 %v2320
      %v2461 = vunpack.c.2.s8 %v2321
      %v2462 = vunpack.c.3.s8 %v2320
      %v2463 = vunpack.c.3.s8 %v2321
      %v2464 = vunpack.c.0.s8 %v2322
      %v2465 = vunpack.c.0.s8 %v2323
      %v2466 = vunpack.c.1.s8 %v2322
      %v2467 = vunpack.c.1.s8 %v2323
      %v2468 = vunpack.c.2.s8 %v2322
      %v2469 = vunpack.c.2.s8 %v2323
      %v2470 = vunpack.c.3.s8 %v2322
      %v2471 = vunpack.c.3.s8 %v2323
      %v2472 = vunpack.c.0.s8 %v2324
      %v2473 = vunpack.c.0.s8 %v2325
      %v2474 = vunpack.c.1.s8 %v2324
      %v2475 = vunpack.c.1.s8 %v2325
      %v2476 = vunpack.c.2.s8 %v2324
      %v2477 = vunpack.c.2.s8 %v2325
      %v2478 = vunpack.c.3.s8 %v2324
      %v2479 = vunpack.c.3.s8 %v2325
      %v2480 = vunpack.c.0.s8 %v2326
      %v2481 = vunpack.c.0.s8 %v2327
      %v2482 = vunpack.c.1.s8 %v2326
      %v2483 = vunpack.c.1.s8 %v2327
      %v2484 = vunpack.c.2.s8 %v2326
      %v2485 = vunpack.c.2.s8 %v2327
      %v2486 = vunpack.c.3.s8 %v2326
      %v2487 = vunpack.c.3.s8 %v2327
      %v2488 = vunpack.c.0.s8 %v2328
      %v2489 = vunpack.c.0.s8 %v2329
      %v2490 = vunpack.c.1.s8 %v2328
      %v2491 = vunpack.c.1.s8 %v2329
      %v2492 = vunpack.c.2.s8 %v2328
      %v2493 = vunpack.c.2.s8 %v2329
      %v2494 = vunpack.c.3.s8 %v2328
      %v2495 = vunpack.c.3.s8 %v2329
      %v2496 = vunpack.c.0.s8 %v2330
      %v2497 = vunpack.c.0.s8 %v2331
      %v2498 = vunpack.c.1.s8 %v2330
      %v2499 = vunpack.c.1.s8 %v2331
      %v2500 = vunpack.c.2.s8 %v2330
      %v2501 = vunpack.c.2.s8 %v2331
      %v2502 = vunpack.c.3.s8 %v2330
      %v2503 = vunpack.c.3.s8 %v2331
      %v2504 = vunpack.c.0.s8 %v2332
      %v2505 = vunpack.c.0.s8 %v2333
      %v2506 = vunpack.c.1.s8 %v2332
      %v2507 = vunpack.c.1.s8 %v2333
      %v2508 = vunpack.c.2.s8 %v2332
      %v2509 = vunpack.c.2.s8 %v2333
      %v2510 = vunpack.c.3.s8 %v2332
      %v2511 = vunpack.c.3.s8 %v2333
      %v2512 = vunpack.c.0.s8 %v2334
      %v2513 = vunpack.c.0.s8 %v2335
      %v2514 = vunpack.c.1.s8 %v2334
      %v2515 = vunpack.c.1.s8 %v2335
      %v2516 = vunpack.c.2.s8 %v2334
      %v2517 = vunpack.c.2.s8 %v2335
      %v2518 = vunpack.c.3.s8 %v2334
      %v2519 = vunpack.c.3.s8 %v2335
      %v2520 = vunpack.c.0.s8 %v2336
      %v2521 = vunpack.c.0.s8 %v2337
      %v2522 = vunpack.c.1.s8 %v2336
      %v2523 = vunpack.c.1.s8 %v2337
      %v2524 = vunpack.c.2.s8 %v2336
      %v2525 = vunpack.c.2.s8 %v2337
      %v2526 = vunpack.c.3.s8 %v2336
      %v2527 = vunpack.c.3.s8 %v2337
      %v2528 = vunpack.c.0.s8 %v2338
      %v2529 = vunpack.c.0.s8 %v2339
      %v2530 = vunpack.c.1.s8 %v2338
      %v2531 = vunpack.c.1.s8 %v2339
      %v2532 = vunpack.c.2.s8 %v2338
      %v2533 = vunpack.c.2.s8 %v2339
      %v2534 = vunpack.c.3.s8 %v2338
      %v2535 = vunpack.c.3.s8 %v2339
      %v2536 = vunpack.c.0.s8 %v2340
      %v2537 = vunpack.c.0.s8 %v2341
      %v2538 = vunpack.c.1.s8 %v2340
      %v2539 = vunpack.c.1.s8 %v2341
      %v2540 = vunpack.c.2.s8 %v2340
      %v2541 = vunpack.c.2.s8 %v2341
      %v2542 = vunpack.c.3.s8 %v2340
      %v2543 = vunpack.c.3.s8 %v2341
      %v2544 = vunpack.c.0.s8 %v2342
      %v2545 = vunpack.c.0.s8 %v2343
      %v2546 = vunpack.c.1.s8 %v2342
      %v2547 = vunpack.c.1.s8 %v2343
      %v2548 = vunpack.c.2.s8 %v2342
      %v2549 = vunpack.c.2.s8 %v2343
      %v2550 = vunpack.c.3.s8 %v2342
      %v2551 = vunpack.c.3.s8 %v2343
      %v2552 = vunpack.c.0.s8 %v2344
      %v2553 = vunpack.c.0.s8 %v2345
      %v2554 = vunpack.c.1.s8 %v2344
      %v2555 = vunpack.c.1.s8 %v2345
      %v2556 = vunpack.c.2.s8 %v2344
      %v2557 = vunpack.c.2.s8 %v2345
      %v2558 = vunpack.c.3.s8 %v2344
      %v2559 = vunpack.c.3.s8 %v2345
      %v2560 = vunpack.c.0.s8 %v2346
      %v2561 = vunpack.c.0.s8 %v2347
      %v2562 = vunpack.c.1.s8 %v2346
      %v2563 = vunpack.c.1.s8 %v2347
      %v2564 = vunpack.c.2.s8 %v2346
      %v2565 = vunpack.c.2.s8 %v2347
      %v2566 = vunpack.c.3.s8 %v2346
      %v2567 = vunpack.c.3.s8 %v2347
      %v2568 = vunpack.c.0.s8 %v2348
      %v2569 = vunpack.c.0.s8 %v2349
      %v2570 = vunpack.c.1.s8 %v2348
      %v2571 = vunpack.c.1.s8 %v2349
      %v2572 = vunpack.c.2.s8 %v2348
      %v2573 = vunpack.c.2.s8 %v2349
      %v2574 = vunpack.c.3.s8 %v2348
      %v2575 = vunpack.c.3.s8 %v2349
      %v2576 = vunpack.c.0.s8 %v2350
      %v2577 = vunpack.c.0.s8 %v2351
      %v2578 = vunpack.c.1.s8 %v2350
      %v2579 = vunpack.c.1.s8 %v2351
      %v2580 = vunpack.c.2.s8 %v2350
      %v2581 = vunpack.c.2.s8 %v2351
      %v2582 = vunpack.c.3.s8 %v2350
      %v2583 = vunpack.c.3.s8 %v2351
      %v2584 = vunpack.c.0.s8 %v2352
      %v2585 = vunpack.c.0.s8 %v2353
      %v2586 = vunpack.c.1.s8 %v2352
      %v2587 = vunpack.c.1.s8 %v2353
      %v2588 = vunpack.c.2.s8 %v2352
      %v2589 = vunpack.c.2.s8 %v2353
      %v2590 = vunpack.c.3.s8 %v2352
      %v2591 = vunpack.c.3.s8 %v2353
      %v2592 = vunpack.c.0.s8 %v2354
      %v2593 = vunpack.c.0.s8 %v2355
      %v2594 = vunpack.c.1.s8 %v2354
      %v2595 = vunpack.c.1.s8 %v2355
      %v2596 = vunpack.c.2.s8 %v2354
      %v2597 = vunpack.c.2.s8 %v2355
      %v2598 = vunpack.c.3.s8 %v2354
      %v2599 = vunpack.c.3.s8 %v2355
      %v2600 = vunpack.c.0.s8 %v2356
      %v2601 = vunpack.c.0.s8 %v2357
      %v2602 = vunpack.c.1.s8 %v2356
      %v2603 = vunpack.c.1.s8 %v2357
      %v2604 = vunpack.c.2.s8 %v2356
      %v2605 = vunpack.c.2.s8 %v2357
      %v2606 = vunpack.c.3.s8 %v2356
      %v2607 = vunpack.c.3.s8 %v2357
      %v2608 = vunpack.c.0.s8 %v2358
      %v2609 = vunpack.c.0.s8 %v2359
      %v2610 = vunpack.c.1.s8 %v2358
      %v2611 = vunpack.c.1.s8 %v2359
      %v2612 = vunpack.c.2.s8 %v2358
      %v2613 = vunpack.c.2.s8 %v2359
      %v2614 = vunpack.c.3.s8 %v2358
      %v2615 = vunpack.c.3.s8 %v2359
      %v2616 = vcvt.s32.f32 %v2360
      %v2617 = vcvt.s32.f32 %v2361
      %v2618 = vcvt.s32.f32 %v2362
      %v2619 = vcvt.s32.f32 %v2363
      %v2620 = vcvt.s32.f32 %v2364
      %v2621 = vcvt.s32.f32 %v2365
      %v2622 = vcvt.s32.f32 %v2366
      %v2623 = vcvt.s32.f32 %v2367
      %v2624 = vcvt.s32.f32 %v2368
      %v2625 = vcvt.s32.f32 %v2369
      %v2626 = vcvt.s32.f32 %v2370
      %v2627 = vcvt.s32.f32 %v2371
      %v2628 = vcvt.s32.f32 %v2372
      %v2629 = vcvt.s32.f32 %v2373
      %v2630 = vcvt.s32.f32 %v2374
      %v2631 = vcvt.s32.f32 %v2375
      %v2632 = vcvt.s32.f32 %v2376
      %v2633 = vcvt.s32.f32 %v2377
      %v2634 = vcvt.s32.f32 %v2378
      %v2635 = vcvt.s32.f32 %v2379
      %v2636 = vcvt.s32.f32 %v2380
      %v2637 = vcvt.s32.f32 %v2381
      %v2638 = vcvt.s32.f32 %v2382
      %v2639 = vcvt.s32.f32 %v2383
      %v2640 = vcvt.s32.f32 %v2384
      %v2641 = vcvt.s32.f32 %v2385
      %v2642 = vcvt.s32.f32 %v2386
      %v2643 = vcvt.s32.f32 %v2387
      %v2644 = vcvt.s32.f32 %v2388
      %v2645 = vcvt.s32.f32 %v2389
      %v2646 = vcvt.s32.f32 %v2390
      %v2647 = vcvt.s32.f32 %v2391
      %v2648 = vcvt.s32.f32 %v2392
      %v2649 = vcvt.s32.f32 %v2393
      %v2650 = vcvt.s32.f32 %v2394
      %v2651 = vcvt.s32.f32 %v2395
      %v2652 = vcvt.s32.f32 %v2396
      %v2653 = vcvt.s32.f32 %v2397
      %v2654 = vcvt.s32.f32 %v2398
      %v2655 = vcvt.s32.f32 %v2399
      %v2656 = vcvt.s32.f32 %v2400
      %v2657 = vcvt.s32.f32 %v2401
      %v2658 = vcvt.s32.f32 %v2402
      %v2659 = vcvt.s32.f32 %v2403
      %v2660 = vcvt.s32.f32 %v2404
      %v2661 = vcvt.s32.f32 %v2405
      %v2662 = vcvt.s32.f32 %v2406
      %v2663 = vcvt.s32.f32 %v2407
      %v2664 = vcvt.s32.f32 %v2408
      %v2665 = vcvt.s32.f32 %v2409
      %v2666 = vcvt.s32.f32 %v2410
      %v2667 = vcvt.s32.f32 %v2411
      %v2668 = vcvt.s32.f32 %v2412
      %v2669 = vcvt.s32.f32 %v2413
      %v2670 = vcvt.s32.f32 %v2414
      %v2671 = vcvt.s32.f32 %v2415
      %v2672 = vcvt.s32.f32 %v2416
      %v2673 = vcvt.s32.f32 %v2417
      %v2674 = vcvt.s32.f32 %v2418
      %v2675 = vcvt.s32.f32 %v2419
      %v2676 = vcvt.s32.f32 %v2420
      %v2677 = vcvt.s32.f32 %v2421
      %v2678 = vcvt.s32.f32 %v2422
      %v2679 = vcvt.s32.f32 %v2423
      %v2680 = vcvt.s32.f32 %v2424
      %v2681 = vcvt.s32.f32 %v2425
      %v2682 = vcvt.s32.f32 %v2426
      %v2683 = vcvt.s32.f32 %v2427
      %v2684 = vcvt.s32.f32 %v2428
      %v2685 = vcvt.s32.f32 %v2429
      %v2686 = vcvt.s32.f32 %v2430
      %v2687 = vcvt.s32.f32 %v2431
      %v2688 = vcvt.s32.f32 %v2432
      %v2689 = vcvt.s32.f32 %v2433
      %v2690 = vcvt.s32.f32 %v2434
      %v2691 = vcvt.s32.f32 %v2435
      %v2692 = vcvt.s32.f32 %v2436
      %v2693 = vcvt.s32.f32 %v2437
      %v2694 = vcvt.s32.f32 %v2438
      %v2695 = vcvt.s32.f32 %v2439
      %v2696 = vcvt.s32.f32 %v2440
      %v2697 = vcvt.s32.f32 %v2441
      %v2698 = vcvt.s32.f32 %v2442
      %v2699 = vcvt.s32.f32 %v2443
      %v2700 = vcvt.s32.f32 %v2444
      %v2701 = vcvt.s32.f32 %v2445
      %v2702 = vcvt.s32.f32 %v2446
      %v2703 = vcvt.s32.f32 %v2447
      %v2704 = vcvt.s32.f32 %v2448
      %v2705 = vcvt.s32.f32 %v2449
      %v2706 = vcvt.s32.f32 %v2450
      %v2707 = vcvt.s32.f32 %v2451
      %v2708 = vcvt.s32.f32 %v2452
      %v2709 = vcvt.s32.f32 %v2453
      %v2710 = vcvt.s32.f32 %v2454
      %v2711 = vcvt.s32.f32 %v2455
      %v2712 = vcvt.s32.f32 %v2456
      %v2713 = vcvt.s32.f32 %v2457
      %v2714 = vcvt.s32.f32 %v2458
      %v2715 = vcvt.s32.f32 %v2459
      %v2716 = vcvt.s32.f32 %v2460
      %v2717 = vcvt.s32.f32 %v2461
      %v2718 = vcvt.s32.f32 %v2462
      %v2719 = vcvt.s32.f32 %v2463
      %v2720 = vcvt.s32.f32 %v2464
      %v2721 = vcvt.s32.f32 %v2465
      %v2722 = vcvt.s32.f32 %v2466
      %v2723 = vcvt.s32.f32 %v2467
      %v2724 = vcvt.s32.f32 %v2468
      %v2725 = vcvt.s32.f32 %v2469
      %v2726 = vcvt.s32.f32 %v2470
      %v2727 = vcvt.s32.f32 %v2471
      %v2728 = vcvt.s32.f32 %v2472
      %v2729 = vcvt.s32.f32 %v2473
      %v2730 = vcvt.s32.f32 %v2474
      %v2731 = vcvt.s32.f32 %v2475
      %v2732 = vcvt.s32.f32 %v2476
      %v2733 = vcvt.s32.f32 %v2477
      %v2734 = vcvt.s32.f32 %v2478
      %v2735 = vcvt.s32.f32 %v2479
      %v2736 = vcvt.s32.f32 %v2480
      %v2737 = vcvt.s32.f32 %v2481
      %v2738 = vcvt.s32.f32 %v2482
      %v2739 = vcvt.s32.f32 %v2483
      %v2740 = vcvt.s32.f32 %v2484
      %v2741 = vcvt.s32.f32 %v2485
      %v2742 = vcvt.s32.f32 %v2486
      %v2743 = vcvt.s32.f32 %v2487
      %v2744 = vcvt.s32.f32 %v2488
      %v2745 = vcvt.s32.f32 %v2489
      %v2746 = vcvt.s32.f32 %v2490
      %v2747 = vcvt.s32.f32 %v2491
      %v2748 = vcvt.s32.f32 %v2492
      %v2749 = vcvt.s32.f32 %v2493
      %v2750 = vcvt.s32.f32 %v2494
      %v2751 = vcvt.s32.f32 %v2495
      %v2752 = vcvt.s32.f32 %v2496
      %v2753 = vcvt.s32.f32 %v2497
      %v2754 = vcvt.s32.f32 %v2498
      %v2755 = vcvt.s32.f32 %v2499
      %v2756 = vcvt.s32.f32 %v2500
      %v2757 = vcvt.s32.f32 %v2501
      %v2758 = vcvt.s32.f32 %v2502
      %v2759 = vcvt.s32.f32 %v2503
      %v2760 = vcvt.s32.f32 %v2504
      %v2761 = vcvt.s32.f32 %v2505
      %v2762 = vcvt.s32.f32 %v2506
      %v2763 = vcvt.s32.f32 %v2507
      %v2764 = vcvt.s32.f32 %v2508
      %v2765 = vcvt.s32.f32 %v2509
      %v2766 = vcvt.s32.f32 %v2510
      %v2767 = vcvt.s32.f32 %v2511
      %v2768 = vcvt.s32.f32 %v2512
      %v2769 = vcvt.s32.f32 %v2513
      %v2770 = vcvt.s32.f32 %v2514
      %v2771 = vcvt.s32.f32 %v2515
      %v2772 = vcvt.s32.f32 %v2516
      %v2773 = vcvt.s32.f32 %v2517
      %v2774 = vcvt.s32.f32 %v2518
      %v2775 = vcvt.s32.f32 %v2519
      %v2776 = vcvt.s32.f32 %v2520
      %v2777 = vcvt.s32.f32 %v2521
      %v2778 = vcvt.s32.f32 %v2522
      %v2779 = vcvt.s32.f32 %v2523
      %v2780 = vcvt.s32.f32 %v2524
      %v2781 = vcvt.s32.f32 %v2525
      %v2782 = vcvt.s32.f32 %v2526
      %v2783 = vcvt.s32.f32 %v2527
      %v2784 = vcvt.s32.f32 %v2528
      %v2785 = vcvt.s32.f32 %v2529
      %v2786 = vcvt.s32.f32 %v2530
      %v2787 = vcvt.s32.f32 %v2531
      %v2788 = vcvt.s32.f32 %v2532
      %v2789 = vcvt.s32.f32 %v2533
      %v2790 = vcvt.s32.f32 %v2534
      %v2791 = vcvt.s32.f32 %v2535
      %v2792 = vcvt.s32.f32 %v2536
      %v2793 = vcvt.s32.f32 %v2537
      %v2794 = vcvt.s32.f32 %v2538
      %v2795 = vcvt.s32.f32 %v2539
      %v2796 = vcvt.s32.f32 %v2540
      %v2797 = vcvt.s32.f32 %v2541
      %v2798 = vcvt.s32.f32 %v2542
      %v2799 = vcvt.s32.f32 %v2543
      %v2800 = vcvt.s32.f32 %v2544
      %v2801 = vcvt.s32.f32 %v2545
      %v2802 = vcvt.s32.f32 %v2546
      %v2803 = vcvt.s32.f32 %v2547
      %v2804 = vcvt.s32.f32 %v2548
      %v2805 = vcvt.s32.f32 %v2549
      %v2806 = vcvt.s32.f32 %v2550
      %v2807 = vcvt.s32.f32 %v2551
      %v2808 = vcvt.s32.f32 %v2552
      %v2809 = vcvt.s32.f32 %v2553
      %v2810 = vcvt.s32.f32 %v2554
      %v2811 = vcvt.s32.f32 %v2555
      %v2812 = vcvt.s32.f32 %v2556
      %v2813 = vcvt.s32.f32 %v2557
      %v2814 = vcvt.s32.f32 %v2558
      %v2815 = vcvt.s32.f32 %v2559
      %v2816 = vcvt.s32.f32 %v2560
      %v2817 = vcvt.s32.f32 %v2561
      %v2818 = vcvt.s32.f32 %v2562
      %v2819 = vcvt.s32.f32 %v2563
      %v2820 = vcvt.s32.f32 %v2564
      %v2821 = vcvt.s32.f32 %v2565
      %v2822 = vcvt.s32.f32 %v2566
      %v2823 = vcvt.s32.f32 %v2567
      %v2824 = vcvt.s32.f32 %v2568
      %v2825 = vcvt.s32.f32 %v2569
      %v2826 = vcvt.s32.f32 %v2570
      %v2827 = vcvt.s32.f32 %v2571
      %v2828 = vcvt.s32.f32 %v2572
      %v2829 = vcvt.s32.f32 %v2573
      %v2830 = vcvt.s32.f32 %v2574
      %v2831 = vcvt.s32.f32 %v2575
      %v2832 = vcvt.s32.f32 %v2576
      %v2833 = vcvt.s32.f32 %v2577
      %v2834 = vcvt.s32.f32 %v2578
      %v2835 = vcvt.s32.f32 %v2579
      %v2836 = vcvt.s32.f32 %v2580
      %v2837 = vcvt.s32.f32 %v2581
      %v2838 = vcvt.s32.f32 %v2582
      %v2839 = vcvt.s32.f32 %v2583
      %v2840 = vcvt.s32.f32 %v2584
      %v2841 = vcvt.s32.f32 %v2585
      %v2842 = vcvt.s32.f32 %v2586
      %v2843 = vcvt.s32.f32 %v2587
      %v2844 = vcvt.s32.f32 %v2588
      %v2845 = vcvt.s32.f32 %v2589
      %v2846 = vcvt.s32.f32 %v2590
      %v2847 = vcvt.s32.f32 %v2591
      %v2848 = vcvt.s32.f32 %v2592
      %v2849 = vcvt.s32.f32 %v2593
      %v2850 = vcvt.s32.f32 %v2594
      %v2851 = vcvt.s32.f32 %v2595
      %v2852 = vcvt.s32.f32 %v2596
      %v2853 = vcvt.s32.f32 %v2597
      %v2854 = vcvt.s32.f32 %v2598
      %v2855 = vcvt.s32.f32 %v2599
      %v2856 = vcvt.s32.f32 %v2600
      %v2857 = vcvt.s32.f32 %v2601
      %v2858 = vcvt.s32.f32 %v2602
      %v2859 = vcvt.s32.f32 %v2603
      %v2860 = vcvt.s32.f32 %v2604
      %v2861 = vcvt.s32.f32 %v2605
      %v2862 = vcvt.s32.f32 %v2606
      %v2863 = vcvt.s32.f32 %v2607
      %v2864 = vcvt.s32.f32 %v2608
      %v2865 = vcvt.s32.f32 %v2609
      %v2866 = vcvt.s32.f32 %v2610
      %v2867 = vcvt.s32.f32 %v2611
      %v2868 = vcvt.s32.f32 %v2612
      %v2869 = vcvt.s32.f32 %v2613
      %v2870 = vcvt.s32.f32 %v2614
      %v2871 = vcvt.s32.f32 %v2615
      %v2872 = vpack.c.bf16 %v2617, %v2616
      %v2873 = vpack.c.bf16 %v2619, %v2618
      %v2874 = vpack.c.bf16 %v2621, %v2620
      %v2875 = vpack.c.bf16 %v2623, %v2622
      %v2876 = vpack.c.bf16 %v2625, %v2624
      %v2877 = vpack.c.bf16 %v2627, %v2626
      %v2878 = vpack.c.bf16 %v2629, %v2628
      %v2879 = vpack.c.bf16 %v2631, %v2630
      %v2880 = vpack.c.bf16 %v2633, %v2632
      %v2881 = vpack.c.bf16 %v2635, %v2634
      %v2882 = vpack.c.bf16 %v2637, %v2636
      %v2883 = vpack.c.bf16 %v2639, %v2638
      %v2884 = vpack.c.bf16 %v2641, %v2640
      %v2885 = vpack.c.bf16 %v2643, %v2642
      %v2886 = vpack.c.bf16 %v2645, %v2644
      %v2887 = vpack.c.bf16 %v2647, %v2646
      %v2888 = vpack.c.bf16 %v2649, %v2648
      %v2889 = vpack.c.bf16 %v2651, %v2650
      %v2890 = vpack.c.bf16 %v2653, %v2652
      %v2891 = vpack.c.bf16 %v2655, %v2654
      %v2892 = vpack.c.bf16 %v2657, %v2656
      %v2893 = vpack.c.bf16 %v2659, %v2658
      %v2894 = vpack.c.bf16 %v2661, %v2660
      %v2895 = vpack.c.bf16 %v2663, %v2662
      %v2896 = vpack.c.bf16 %v2665, %v2664
      %v2897 = vpack.c.bf16 %v2667, %v2666
      %v2898 = vpack.c.bf16 %v2669, %v2668
      %v2899 = vpack.c.bf16 %v2671, %v2670
      %v2900 = vpack.c.bf16 %v2673, %v2672
      %v2901 = vpack.c.bf16 %v2675, %v2674
      %v2902 = vpack.c.bf16 %v2677, %v2676
      %v2903 = vpack.c.bf16 %v2679, %v2678
      %v2904 = vpack.c.bf16 %v2681, %v2680
      %v2905 = vpack.c.bf16 %v2683, %v2682
      %v2906 = vpack.c.bf16 %v2685, %v2684
      %v2907 = vpack.c.bf16 %v2687, %v2686
      %v2908 = vpack.c.bf16 %v2689, %v2688
      %v2909 = vpack.c.bf16 %v2691, %v2690
      %v2910 = vpack.c.bf16 %v2693, %v2692
      %v2911 = vpack.c.bf16 %v2695, %v2694
      %v2912 = vpack.c.bf16 %v2697, %v2696
      %v2913 = vpack.c.bf16 %v2699, %v2698
      %v2914 = vpack.c.bf16 %v2701, %v2700
      %v2915 = vpack.c.bf16 %v2703, %v2702
      %v2916 = vpack.c.bf16 %v2705, %v2704
      %v2917 = vpack.c.bf16 %v2707, %v2706
      %v2918 = vpack.c.bf16 %v2709, %v2708
      %v2919 = vpack.c.bf16 %v2711, %v2710
      %v2920 = vpack.c.bf16 %v2713, %v2712
      %v2921 = vpack.c.bf16 %v2715, %v2714
      %v2922 = vpack.c.bf16 %v2717, %v2716
      %v2923 = vpack.c.bf16 %v2719, %v2718
      %v2924 = vpack.c.bf16 %v2721, %v2720
      %v2925 = vpack.c.bf16 %v2723, %v2722
      %v2926 = vpack.c.bf16 %v2725, %v2724
      %v2927 = vpack.c.bf16 %v2727, %v2726
      %v2928 = vpack.c.bf16 %v2729, %v2728
      %v2929 = vpack.c.bf16 %v2731, %v2730
      %v2930 = vpack.c.bf16 %v2733, %v2732
      %v2931 = vpack.c.bf16 %v2735, %v2734
      %v2932 = vpack.c.bf16 %v2737, %v2736
      %v2933 = vpack.c.bf16 %v2739, %v2738
      %v2934 = vpack.c.bf16 %v2741, %v2740
      %v2935 = vpack.c.bf16 %v2743, %v2742
      %v2936 = vpack.c.bf16 %v2745, %v2744
      %v2937 = vpack.c.bf16 %v2747, %v2746
      %v2938 = vpack.c.bf16 %v2749, %v2748
      %v2939 = vpack.c.bf16 %v2751, %v2750
      %v2940 = vpack.c.bf16 %v2753, %v2752
      %v2941 = vpack.c.bf16 %v2755, %v2754
      %v2942 = vpack.c.bf16 %v2757, %v2756
      %v2943 = vpack.c.bf16 %v2759, %v2758
      %v2944 = vpack.c.bf16 %v2761, %v2760
      %v2945 = vpack.c.bf16 %v2763, %v2762
      %v2946 = vpack.c.bf16 %v2765, %v2764
      %v2947 = vpack.c.bf16 %v2767, %v2766
      %v2948 = vpack.c.bf16 %v2769, %v2768
      %v2949 = vpack.c.bf16 %v2771, %v2770
      %v2950 = vpack.c.bf16 %v2773, %v2772
      %v2951 = vpack.c.bf16 %v2775, %v2774
      %v2952 = vpack.c.bf16 %v2777, %v2776
      %v2953 = vpack.c.bf16 %v2779, %v2778
      %v2954 = vpack.c.bf16 %v2781, %v2780
      %v2955 = vpack.c.bf16 %v2783, %v2782
      %v2956 = vpack.c.bf16 %v2785, %v2784
      %v2957 = vpack.c.bf16 %v2787, %v2786
      %v2958 = vpack.c.bf16 %v2789, %v2788
      %v2959 = vpack.c.bf16 %v2791, %v2790
      %v2960 = vpack.c.bf16 %v2793, %v2792
      %v2961 = vpack.c.bf16 %v2795, %v2794
      %v2962 = vpack.c.bf16 %v2797, %v2796
      %v2963 = vpack.c.bf16 %v2799, %v2798
      %v2964 = vpack.c.bf16 %v2801, %v2800
      %v2965 = vpack.c.bf16 %v2803, %v2802
      %v2966 = vpack.c.bf16 %v2805, %v2804
      %v2967 = vpack.c.bf16 %v2807, %v2806
      %v2968 = vpack.c.bf16 %v2809, %v2808
      %v2969 = vpack.c.bf16 %v2811, %v2810
      %v2970 = vpack.c.bf16 %v2813, %v2812
      %v2971 = vpack.c.bf16 %v2815, %v2814
      %v2972 = vpack.c.bf16 %v2817, %v2816
      %v2973 = vpack.c.bf16 %v2819, %v2818
      %v2974 = vpack.c.bf16 %v2821, %v2820
      %v2975 = vpack.c.bf16 %v2823, %v2822
      %v2976 = vpack.c.bf16 %v2825, %v2824
      %v2977 = vpack.c.bf16 %v2827, %v2826
      %v2978 = vpack.c.bf16 %v2829, %v2828
      %v2979 = vpack.c.bf16 %v2831, %v2830
      %v2980 = vpack.c.bf16 %v2833, %v2832
      %v2981 = vpack.c.bf16 %v2835, %v2834
      %v2982 = vpack.c.bf16 %v2837, %v2836
      %v2983 = vpack.c.bf16 %v2839, %v2838
      %v2984 = vpack.c.bf16 %v2841, %v2840
      %v2985 = vpack.c.bf16 %v2843, %v2842
      %v2986 = vpack.c.bf16 %v2845, %v2844
      %v2987 = vpack.c.bf16 %v2847, %v2846
      %v2988 = vpack.c.bf16 %v2849, %v2848
      %v2989 = vpack.c.bf16 %v2851, %v2850
      %v2990 = vpack.c.bf16 %v2853, %v2852
      %v2991 = vpack.c.bf16 %v2855, %v2854
      %v2992 = vpack.c.bf16 %v2857, %v2856
      %v2993 = vpack.c.bf16 %v2859, %v2858
      %v2994 = vpack.c.bf16 %v2861, %v2860
      %v2995 = vpack.c.bf16 %v2863, %v2862
      %v2996 = vpack.c.bf16 %v2865, %v2864
      %v2997 = vpack.c.bf16 %v2867, %v2866
      %v2998 = vpack.c.bf16 %v2869, %v2868
      %v2999 = vpack.c.bf16 %v2871, %v2870
      %3000 = vst [vmem:[#allocation4] sm:$0xff] %v2872
      %3001 = vst [vmem:[#allocation4 + $0x8] sm:$0xff] %v2873
      %3002 = vst [vmem:[#allocation4 + $0x10] sm:$0xff] %v2874
      %3003 = vst [vmem:[#allocation4 + $0x18] sm:$0xff] %v2875
      %3004 = vst [vmem:[#allocation4 + $0x20] sm:$0xff] %v2876
      %3005 = vst [vmem:[#allocation4 + $0x28] sm:$0xff] %v2877
      %3006 = vst [vmem:[#allocation4 + $0x30] sm:$0xff] %v2878
      %3007 = vst [vmem:[#allocation4 + $0x38] sm:$0xff] %v2879
      %3008 = vst [vmem:[#allocation4 + $0x40] sm:$0xff] %v2880
      %3009 = vst [vmem:[#allocation4 + $0x48] sm:$0xff] %v2881
      %3010 = vst [vmem:[#allocation4 + $0x50] sm:$0xff] %v2882
      %3011 = vst [vmem:[#allocation4 + $0x58] sm:$0xff] %v2883
      %3012 = vst [vmem:[#allocation4 + $0x60] sm:$0xff] %v2884
      %3013 = vst [vmem:[#allocation4 + $0x68] sm:$0xff] %v2885
      %3014 = vst [vmem:[#allocation4 + $0x70] sm:$0xff] %v2886
      %3015 = vst [vmem:[#allocation4 + $0x78] sm:$0xff] %v2887
      %3016 = vst [vmem:[#allocation4 + $0x80] sm:$0xff] %v2888
      %3017 = vst [vmem:[#allocation4 + $0x88] sm:$0xff] %v2889
      %3018 = vst [vmem:[#allocation4 + $0x90] sm:$0xff] %v2890
      %3019 = vst [vmem:[#allocation4 + $0x98] sm:$0xff] %v2891
      %3020 = vst [vmem:[#allocation4 + $0xa0] sm:$0xff] %v2892
      %3021 = vst [vmem:[#allocation4 + $0xa8] sm:$0xff] %v2893
      %3022 = vst [vmem:[#allocation4 + $0xb0] sm:$0xff] %v2894
      %3023 = vst [vmem:[#allocation4 + $0xb8] sm:$0xff] %v2895
      %3024 = vst [vmem:[#allocation4 + $0xc0] sm:$0xff] %v2896
      %3025 = vst [vmem:[#allocation4 + $0xc8] sm:$0xff] %v2897
      %3026 = vst [vmem:[#allocation4 + $0xd0] sm:$0xff] %v2898
      %3027 = vst [vmem:[#allocation4 + $0xd8] sm:$0xff] %v2899
      %3028 = vst [vmem:[#allocation4 + $0xe0] sm:$0xff] %v2900
      %3029 = vst [vmem:[#allocation4 + $0xe8] sm:$0xff] %v2901
      %3030 = vst [vmem:[#allocation4 + $0xf0] sm:$0xff] %v2902
      %3031 = vst [vmem:[#allocation4 + $0xf8] sm:$0xff] %v2903
      %3032 = vst [vmem:[#allocation4 + $0x100] sm:$0xff] %v2904
      %3033 = vst [vmem:[#allocation4 + $0x108] sm:$0xff] %v2905
      %3034 = vst [vmem:[#allocation4 + $0x110] sm:$0xff] %v2906
      %3035 = vst [vmem:[#allocation4 + $0x118] sm:$0xff] %v2907
      %3036 = vst [vmem:[#allocation4 + $0x120] sm:$0xff] %v2908
      %3037 = vst [vmem:[#allocation4 + $0x128] sm:$0xff] %v2909
      %3038 = vst [vmem:[#allocation4 + $0x130] sm:$0xff] %v2910
      %3039 = vst [vmem:[#allocation4 + $0x138] sm:$0xff] %v2911
      %3040 = vst [vmem:[#allocation4 + $0x140] sm:$0xff] %v2912
      %3041 = vst [vmem:[#allocation4 + $0x148] sm:$0xff] %v2913
      %3042 = vst [vmem:[#allocation4 + $0x150] sm:$0xff] %v2914
      %3043 = vst [vmem:[#allocation4 + $0x158] sm:$0xff] %v2915
      %3044 = vst [vmem:[#allocation4 + $0x160] sm:$0xff] %v2916
      %3045 = vst [vmem:[#allocation4 + $0x168] sm:$0xff] %v2917
      %3046 = vst [vmem:[#allocation4 + $0x170] sm:$0xff] %v2918
      %3047 = vst [vmem:[#allocation4 + $0x178] sm:$0xff] %v2919
      %3048 = vst [vmem:[#allocation4 + $0x180] sm:$0xff] %v2920
      %3049 = vst [vmem:[#allocation4 + $0x188] sm:$0xff] %v2921
      %3050 = vst [vmem:[#allocation4 + $0x190] sm:$0xff] %v2922
      %3051 = vst [vmem:[#allocation4 + $0x198] sm:$0xff] %v2923
      %3052 = vst [vmem:[#allocation4 + $0x1a0] sm:$0xff] %v2924
      %3053 = vst [vmem:[#allocation4 + $0x1a8] sm:$0xff] %v2925
      %3054 = vst [vmem:[#allocation4 + $0x1b0] sm:$0xff] %v2926
      %3055 = vst [vmem:[#allocation4 + $0x1b8] sm:$0xff] %v2927
      %3056 = vst [vmem:[#allocation4 + $0x1c0] sm:$0xff] %v2928
      %3057 = vst [vmem:[#allocation4 + $0x1c8] sm:$0xff] %v2929
      %3058 = vst [vmem:[#allocation4 + $0x1d0] sm:$0xff] %v2930
      %3059 = vst [vmem:[#allocation4 + $0x1d8] sm:$0xff] %v2931
      %3060 = vst [vmem:[#allocation4 + $0x1e0] sm:$0xff] %v2932
      %3061 = vst [vmem:[#allocation4 + $0x1e8] sm:$0xff] %v2933
      %3062 = vst [vmem:[#allocation4 + $0x1f0] sm:$0xff] %v2934
      %3063 = vst [vmem:[#allocation4 + $0x1f8] sm:$0xff] %v2935
      %3064 = vst [vmem:[#allocation4 + $0x200] sm:$0xff] %v2936
      %3065 = vst [vmem:[#allocation4 + $0x208] sm:$0xff] %v2937
      %3066 = vst [vmem:[#allocation4 + $0x210] sm:$0xff] %v2938
      %3067 = vst [vmem:[#allocation4 + $0x218] sm:$0xff] %v2939
      %3068 = vst [vmem:[#allocation4 + $0x220] sm:$0xff] %v2940
      %3069 = vst [vmem:[#allocation4 + $0x228] sm:$0xff] %v2941
      %3070 = vst [vmem:[#allocation4 + $0x230] sm:$0xff] %v2942
      %3071 = vst [vmem:[#allocation4 + $0x238] sm:$0xff] %v2943
      %3072 = vst [vmem:[#allocation4 + $0x240] sm:$0xff] %v2944
      %3073 = vst [vmem:[#allocation4 + $0x248] sm:$0xff] %v2945
      %3074 = vst [vmem:[#allocation4 + $0x250] sm:$0xff] %v2946
      %3075 = vst [vmem:[#allocation4 + $0x258] sm:$0xff] %v2947
      %3076 = vst [vmem:[#allocation4 + $0x260] sm:$0xff] %v2948
      %3077 = vst [vmem:[#allocation4 + $0x268] sm:$0xff] %v2949
      %3078 = vst [vmem:[#allocation4 + $0x270] sm:$0xff] %v2950
      %3079 = vst [vmem:[#allocation4 + $0x278] sm:$0xff] %v2951
      %3080 = vst [vmem:[#allocation4 + $0x280] sm:$0xff] %v2952
      %3081 = vst [vmem:[#allocation4 + $0x288] sm:$0xff] %v2953
      %3082 = vst [vmem:[#allocation4 + $0x290] sm:$0xff] %v2954
      %3083 = vst [vmem:[#allocation4 + $0x298] sm:$0xff] %v2955
      %3084 = vst [vmem:[#allocation4 + $0x2a0] sm:$0xff] %v2956
      %3085 = vst [vmem:[#allocation4 + $0x2a8] sm:$0xff] %v2957
      %3086 = vst [vmem:[#allocation4 + $0x2b0] sm:$0xff] %v2958
      %3087 = vst [vmem:[#allocation4 + $0x2b8] sm:$0xff] %v2959
      %3088 = vst [vmem:[#allocation4 + $0x2c0] sm:$0xff] %v2960
      %3089 = vst [vmem:[#allocation4 + $0x2c8] sm:$0xff] %v2961
      %3090 = vst [vmem:[#allocation4 + $0x2d0] sm:$0xff] %v2962
      %3091 = vst [vmem:[#allocation4 + $0x2d8] sm:$0xff] %v2963
      %3092 = vst [vmem:[#allocation4 + $0x2e0] sm:$0xff] %v2964
      %3093 = vst [vmem:[#allocation4 + $0x2e8] sm:$0xff] %v2965
      %3094 = vst [vmem:[#allocation4 + $0x2f0] sm:$0xff] %v2966
      %3095 = vst [vmem:[#allocation4 + $0x2f8] sm:$0xff] %v2967
      %3096 = vst [vmem:[#allocation4 + $0x300] sm:$0xff] %v2968
      %3097 = vst [vmem:[#allocation4 + $0x308] sm:$0xff] %v2969
      %3098 = vst [vmem:[#allocation4 + $0x310] sm:$0xff] %v2970
      %3099 = vst [vmem:[#allocation4 + $0x318] sm:$0xff] %v2971
      %3100 = vst [vmem:[#allocation4 + $0x320] sm:$0xff] %v2972
      %3101 = vst [vmem:[#allocation4 + $0x328] sm:$0xff] %v2973
      %3102 = vst [vmem:[#allocation4 + $0x330] sm:$0xff] %v2974
      %3103 = vst [vmem:[#allocation4 + $0x338] sm:$0xff] %v2975
      %3104 = vst [vmem:[#allocation4 + $0x340] sm:$0xff] %v2976
      %3105 = vst [vmem:[#allocation4 + $0x348] sm:$0xff] %v2977
      %3106 = vst [vmem:[#allocation4 + $0x350] sm:$0xff] %v2978
      %3107 = vst [vmem:[#allocation4 + $0x358] sm:$0xff] %v2979
      %3108 = vst [vmem:[#allocation4 + $0x360] sm:$0xff] %v2980
      %3109 = vst [vmem:[#allocation4 + $0x368] sm:$0xff] %v2981
      %3110 = vst [vmem:[#allocation4 + $0x370] sm:$0xff] %v2982
      %3111 = vst [vmem:[#allocation4 + $0x378] sm:$0xff] %v2983
      %3112 = vst [vmem:[#allocation4 + $0x380] sm:$0xff] %v2984
      %3113 = vst [vmem:[#allocation4 + $0x388] sm:$0xff] %v2985
      %3114 = vst [vmem:[#allocation4 + $0x390] sm:$0xff] %v2986
      %3115 = vst [vmem:[#allocation4 + $0x398] sm:$0xff] %v2987
      %3116 = vst [vmem:[#allocation4 + $0x3a0] sm:$0xff] %v2988
      %3117 = vst [vmem:[#allocation4 + $0x3a8] sm:$0xff] %v2989
      %3118 = vst [vmem:[#allocation4 + $0x3b0] sm:$0xff] %v2990
      %3119 = vst [vmem:[#allocation4 + $0x3b8] sm:$0xff] %v2991
      %3120 = vst [vmem:[#allocation4 + $0x3c0] sm:$0xff] %v2992
      %3121 = vst [vmem:[#allocation4 + $0x3c8] sm:$0xff] %v2993
      %3122 = vst [vmem:[#allocation4 + $0x3d0] sm:$0xff] %v2994
      %3123 = vst [vmem:[#allocation4 + $0x3d8] sm:$0xff] %v2995
      %3124 = vst [vmem:[#allocation4 + $0x3e0] sm:$0xff] %v2996
      %3125 = vst [vmem:[#allocation4 + $0x3e8] sm:$0xff] %v2997
      %3126 = vst [vmem:[#allocation4 + $0x3f0] sm:$0xff] %v2998
      %3127 = vst [vmem:[#allocation4 + $0x3f8] sm:$0xff] %v2999
    $region113: #{tpu_custom_call.1} parent=1 // pred_fallthru
      _
    %v3128 = vld [vmem:[%s0] sm:$0xff]
    %v3129 = vld [vmem:[%s0 + $0x8] sm:$0xff]
    %v3130 = vpack.c.bf16 %v3129, %v3128
    %v3131 = vld [vmem:[%s1] sm:$0xff]
    %v3132 = vld [vmem:[%s1 + $0x8] sm:$0xff]
    %v3133 = vld [vmem:[#allocation5] sm:$0xff]
    %v3134 = vld [vmem:[#allocation5 + $0x8] sm:$0xff]
    %v3135 = vld [vmem:[#allocation5 + $0x10] sm:$0xff]
    %v3136 = vld [vmem:[#allocation5 + $0x18] sm:$0xff]
    %v3137 = vld [vmem:[#allocation5 + $0x20] sm:$0xff]
    %v3138 = vld [vmem:[#allocation5 + $0x28] sm:$0xff]
    %v3139 = vld [vmem:[#allocation5 + $0x30] sm:$0xff]
    %v3140 = vld [vmem:[#allocation5 + $0x38] sm:$0xff]
    %v3141 = vld [vmem:[#allocation5 + $0x40] sm:$0xff]
    %v3142 = vld [vmem:[#allocation5 + $0x48] sm:$0xff]
    %v3143 = vld [vmem:[#allocation5 + $0x50] sm:$0xff]
    %v3144 = vld [vmem:[#allocation5 + $0x58] sm:$0xff]
    %v3145 = vld [vmem:[#allocation5 + $0x60] sm:$0x33]
    %v3146 = vld [vmem:[#allocation8] sm:$0x3]
    %3148 = vset.pattern.permute.xlu0 0
    %3149 = vperm.xlu0 %3148, %v3131
    %v3150 = vpop.permute.xlu0 %3149
    %3153 = vset.pattern.permute.xlu0 0
    %3154 = vperm.xlu0 %3153, %v3132
    %v3155 = vpop.permute.xlu0 %3154
    %v3158 = vperm.slane %v3146, 0
    %v3159 = vperm.slane %v3146, 1
    %v3162 = vmul.f32 %v3150, %v3158
    %v3163 = vmul.f32 %v3150, %v3159
    %v3164 = vmul.f32 %v3155, %v3158
    %v3165 = vmul.f32 %v3155, %v3159
    %v3179 = vunpack.c.l.b16 %v3133
    %v3180 = vunpack.c.h.b16 %v3133
    %v3181 = vunpack.c.l.b16 %v3134
    %v3182 = vunpack.c.h.b16 %v3134
    %v3183 = vunpack.c.l.b16 %v3135
    %v3184 = vunpack.c.h.b16 %v3135
    %v3185 = vunpack.c.l.b16 %v3136
    %v3186 = vunpack.c.h.b16 %v3136
    %v3187 = vunpack.c.l.b16 %v3137
    %v3188 = vunpack.c.h.b16 %v3137
    %v3189 = vunpack.c.l.b16 %v3138
    %v3190 = vunpack.c.h.b16 %v3138
    %v3191 = vunpack.c.l.b16 %v3139
    %v3192 = vunpack.c.h.b16 %v3139
    %v3193 = vunpack.c.l.b16 %v3140
    %v3194 = vunpack.c.h.b16 %v3140
    %v3195 = vunpack.c.l.b16 %v3141
    %v3196 = vunpack.c.h.b16 %v3141
    %v3197 = vunpack.c.l.b16 %v3142
    %v3198 = vunpack.c.h.b16 %v3142
    %v3199 = vunpack.c.l.b16 %v3143
    %v3200 = vunpack.c.h.b16 %v3143
    %v3201 = vunpack.c.l.b16 %v3144
    %v3202 = vunpack.c.h.b16 %v3144
    %v3203 = vunpack.c.l.b16 %v3145
    %v3204 = vunpack.c.h.b16 %v3145
    %v3205 = vpack.c.b16 %v3181, %v3179
    %v3206 = vpack.c.b16 %v3182, %v3180
    %v3207 = vpack.c.b16 %v3185, %v3183
    %v3208 = vpack.c.b16 %v3186, %v3184
    %v3209 = vpack.c.b16 %v3189, %v3187
    %v3210 = vpack.c.b16 %v3190, %v3188
    %v3211 = vpack.c.b16 %v3193, %v3191
    %v3212 = vpack.c.b16 %v3194, %v3192
    %v3213 = vpack.c.b16 %v3197, %v3195
    %v3214 = vpack.c.b16 %v3198, %v3196
    %v3215 = vpack.c.b16 %v3201, %v3199
    %v3216 = vpack.c.b16 %v3202, %v3200
    %v3217 = vpack.c.b16 %v3203, %v3203
    %v3218 = vpack.c.b16 %v3204, %v3204
    %vm3231 = vcmask 818176
    %v3233 = vsel %vm3231, %v3130, 0
    %vm3235 = vcmask 1041408
    %v3237 = vsel %vm3235, %v3217, 0
    %v3240 = vsel %vm3235, %v3218, 0
    %3242 = vmatpush.bf16.msra.mxu0 0
    %3243 = vmatpush.bf16.msra.mxu0 %v3237
    %3244 = vmatpush.bf16.msra.mxu0 %v3215
    %3245 = vmatpush.bf16.msra.mxu0 %v3213
    %3246 = vmatpush.bf16.msra.mxu0 %v3211
    %3247 = vmatpush.bf16.msra.mxu0 %v3209
    %3248 = vmatpush.bf16.msra.mxu0 %v3207
    %3249 = vmatpush.bf16.msra.mxu0 %v3205
    %3250 = vmatmul.bf16.gmra.mxu0 %v3233
    %v3251 = vpop.f32.mrf.mxu0
    %v3252 = vadd.f32 %v3162, %v3251
    %v3253 = vpop.f32.mrf.mxu0
    %v3254 = vadd.f32 %v3164, %v3253
    %3255 = vdwg.mxu0
    %3256 = vmatpush.bf16.msra.mxu0 0
    %3257 = vmatpush.bf16.msra.mxu0 %v3240
    %3258 = vmatpush.bf16.msra.mxu0 %v3216
    %3259 = vmatpush.bf16.msra.mxu0 %v3214
    %3260 = vmatpush.bf16.msra.mxu0 %v3212
    %3261 = vmatpush.bf16.msra.mxu0 %v3210
    %3262 = vmatpush.bf16.msra.mxu0 %v3208
    %3263 = vmatpush.bf16.msra.mxu0 %v3206
    %3264 = vmatmul.bf16.gmra.mxu0 %v3233
    %v3265 = vpop.f32.mrf.mxu0
    %v3266 = vadd.f32 %v3163, %v3265
    %v3267 = vpop.f32.mrf.mxu0
    %v3268 = vadd.f32 %v3165, %v3267
    %3269 = vdwg.mxu0
    %v3270 = vld [vmem:[#allocation10] sm:$0x3]
    %v3272 = vperm.slane %v3270, 0
    %v3273 = vperm.slane %v3270, 1
    %v3276 = vadd.f32 %v3252, %v3272
    %v3277 = vadd.f32 %v3266, %v3273
    %v3278 = vadd.f32 %v3254, %v3272
    %v3279 = vadd.f32 %v3268, %v3273
    %v3280 = vmax.f32 %v3276, 0.0
    %v3281 = vmax.f32 %v3277, 0.0
    %v3282 = vmax.f32 %v3278, 0.0
    %v3283 = vmax.f32 %v3279, 0.0
    %v3284 = vpack.c.bf16 %v3282, %v3280
    %v3285 = vpack.c.bf16 %v3283, %v3281
    %v3286 = vld [vmem:[#allocation2] sm:$0xff]
    %v3287 = vld [vmem:[#allocation2 + $0x8] sm:$0xff]
    %v3288 = vld [vmem:[#allocation2 + $0x10] sm:$0xff]
    %v3289 = vld [vmem:[#allocation2 + $0x18] sm:$0xff]
    %v3290 = vld [vmem:[#allocation2 + $0x20] sm:$0xff]
    %v3291 = vld [vmem:[#allocation2 + $0x28] sm:$0xff]
    %v3292 = vld [vmem:[#allocation2 + $0x30] sm:$0xff]
    %v3293 = vld [vmem:[#allocation2 + $0x38] sm:$0xff]
    %v3294 = vld [vmem:[#allocation2 + $0x40] sm:$0xff]
    %v3295 = vld [vmem:[#allocation2 + $0x48] sm:$0xff]
    %v3296 = vld [vmem:[#allocation2 + $0x50] sm:$0xff]
    %v3297 = vld [vmem:[#allocation2 + $0x58] sm:$0xff]
    %v3298 = vld [vmem:[#allocation2 + $0x60] sm:$0xff]
    %v3299 = vld [vmem:[#allocation2 + $0x68] sm:$0xff]
    %v3300 = vld [vmem:[#allocation2 + $0x70] sm:$0xff]
    %v3301 = vld [vmem:[#allocation2 + $0x78] sm:$0xff]
    %v3302 = vld [vmem:[#allocation2 + $0x80] sm:$0xff]
    %v3303 = vld [vmem:[#allocation2 + $0x88] sm:$0xff]
    %v3304 = vld [vmem:[#allocation2 + $0x90] sm:$0xff]
    %v3305 = vld [vmem:[#allocation2 + $0x98] sm:$0xff]
    %v3306 = vld [vmem:[#allocation2 + $0xa0] sm:$0xff]
    %v3307 = vld [vmem:[#allocation2 + $0xa8] sm:$0xff]
    %v3308 = vld [vmem:[#allocation2 + $0xb0] sm:$0xff]
    %v3309 = vld [vmem:[#allocation2 + $0xb8] sm:$0xff]
    %v3310 = vld [vmem:[#allocation2 + $0xc0] sm:$0xff]
    %v3311 = vld [vmem:[#allocation2 + $0xc8] sm:$0xff]
    %v3312 = vld [vmem:[#allocation2 + $0xd0] sm:$0xff]
    %v3313 = vld [vmem:[#allocation2 + $0xd8] sm:$0xff]
    %v3314 = vld [vmem:[#allocation2 + $0xe0] sm:$0xff]
    %v3315 = vld [vmem:[#allocation2 + $0xe8] sm:$0xff]
    %v3316 = vld [vmem:[#allocation2 + $0xf0] sm:$0xff]
    %v3317 = vld [vmem:[#allocation2 + $0xf8] sm:$0xff]
    %v3318 = vld [vmem:[#allocation2 + $0x100] sm:$0xff]
    %v3319 = vld [vmem:[#allocation2 + $0x108] sm:$0xff]
    %v3320 = vld [vmem:[#allocation2 + $0x110] sm:$0xff]
    %v3321 = vld [vmem:[#allocation2 + $0x118] sm:$0xff]
    %v3322 = vld [vmem:[#allocation2 + $0x120] sm:$0xff]
    %v3323 = vld [vmem:[#allocation2 + $0x128] sm:$0xff]
    %v3324 = vld [vmem:[#allocation2 + $0x130] sm:$0xff]
    %v3325 = vld [vmem:[#allocation2 + $0x138] sm:$0xff]
    %v3326 = vld [vmem:[#allocation2 + $0x140] sm:$0xff]
    %v3327 = vld [vmem:[#allocation2 + $0x148] sm:$0xff]
    %v3328 = vld [vmem:[#allocation2 + $0x150] sm:$0xff]
    %v3329 = vld [vmem:[#allocation2 + $0x158] sm:$0xff]
    %v3330 = vld [vmem:[#allocation2 + $0x160] sm:$0xff]
    %v3331 = vld [vmem:[#allocation2 + $0x168] sm:$0xff]
    %v3332 = vld [vmem:[#allocation2 + $0x170] sm:$0xff]
    %v3333 = vld [vmem:[#allocation2 + $0x178] sm:$0xff]
    %v3334 = vld [vmem:[#allocation2 + $0x180] sm:$0xff]
    %v3335 = vld [vmem:[#allocation2 + $0x188] sm:$0xff]
    %v3336 = vld [vmem:[#allocation2 + $0x190] sm:$0xff]
    %v3337 = vld [vmem:[#allocation2 + $0x198] sm:$0xff]
    %v3338 = vld [vmem:[#allocation2 + $0x1a0] sm:$0xff]
    %v3339 = vld [vmem:[#allocation2 + $0x1a8] sm:$0xff]
    %v3340 = vld [vmem:[#allocation2 + $0x1b0] sm:$0xff]
    %v3341 = vld [vmem:[#allocation2 + $0x1b8] sm:$0xff]
    %v3342 = vld [vmem:[#allocation2 + $0x1c0] sm:$0xff]
    %v3343 = vld [vmem:[#allocation2 + $0x1c8] sm:$0xff]
    %v3344 = vld [vmem:[#allocation2 + $0x1d0] sm:$0xff]
    %v3345 = vld [vmem:[#allocation2 + $0x1d8] sm:$0xff]
    %v3346 = vld [vmem:[#allocation2 + $0x1e0] sm:$0xff]
    %v3347 = vld [vmem:[#allocation2 + $0x1e8] sm:$0xff]
    %v3348 = vld [vmem:[#allocation2 + $0x1f0] sm:$0xff]
    %v3349 = vld [vmem:[#allocation2 + $0x1f8] sm:$0xff]
    %v3414 = vunpack.c.l.b16 %v3286
    %v3415 = vunpack.c.h.b16 %v3286
    %v3416 = vunpack.c.l.b16 %v3287
    %v3417 = vunpack.c.h.b16 %v3287
    %v3418 = vunpack.c.l.b16 %v3288
    %v3419 = vunpack.c.h.b16 %v3288
    %v3420 = vunpack.c.l.b16 %v3289
    %v3421 = vunpack.c.h.b16 %v3289
    %v3422 = vunpack.c.l.b16 %v3290
    %v3423 = vunpack.c.h.b16 %v3290
    %v3424 = vunpack.c.l.b16 %v3291
    %v3425 = vunpack.c.h.b16 %v3291
    %v3426 = vunpack.c.l.b16 %v3292
    %v3427 = vunpack.c.h.b16 %v3292
    %v3428 = vunpack.c.l.b16 %v3293
    %v3429 = vunpack.c.h.b16 %v3293
    %v3430 = vunpack.c.l.b16 %v3294
    %v3431 = vunpack.c.h.b16 %v3294
    %v3432 = vunpack.c.l.b16 %v3295
    %v3433 = vunpack.c.h.b16 %v3295
    %v3434 = vunpack.c.l.b16 %v3296
    %v3435 = vunpack.c.h.b16 %v3296
    %v3436 = vunpack.c.l.b16 %v3297
    %v3437 = vunpack.c.h.b16 %v3297
    %v3438 = vunpack.c.l.b16 %v3298
    %v3439 = vunpack.c.h.b16 %v3298
    %v3440 = vunpack.c.l.b16 %v3299
    %v3441 = vunpack.c.h.b16 %v3299
    %v3442 = vunpack.c.l.b16 %v3300
    %v3443 = vunpack.c.h.b16 %v3300
    %v3444 = vunpack.c.l.b16 %v3301
    %v3445 = vunpack.c.h.b16 %v3301
    %v3446 = vunpack.c.l.b16 %v3302
    %v3447 = vunpack.c.h.b16 %v3302
    %v3448 = vunpack.c.l.b16 %v3303
    %v3449 = vunpack.c.h.b16 %v3303
    %v3450 = vunpack.c.l.b16 %v3304
    %v3451 = vunpack.c.h.b16 %v3304
    %v3452 = vunpack.c.l.b16 %v3305
    %v3453 = vunpack.c.h.b16 %v3305
    %v3454 = vunpack.c.l.b16 %v3306
    %v3455 = vunpack.c.h.b16 %v3306
    %v3456 = vunpack.c.l.b16 %v3307
    %v3457 = vunpack.c.h.b16 %v3307
    %v3458 = vunpack.c.l.b16 %v3308
    %v3459 = vunpack.c.h.b16 %v3308
    %v3460 = vunpack.c.l.b16 %v3309
    %v3461 = vunpack.c.h.b16 %v3309
    %v3462 = vunpack.c.l.b16 %v3310
    %v3463 = vunpack.c.h.b16 %v3310
    %v3464 = vunpack.c.l.b16 %v3311
    %v3465 = vunpack.c.h.b16 %v3311
    %v3466 = vunpack.c.l.b16 %v3312
    %v3467 = vunpack.c.h.b16 %v3312
    %v3468 = vunpack.c.l.b16 %v3313
    %v3469 = vunpack.c.h.b16 %v3313
    %v3470 = vunpack.c.l.b16 %v3314
    %v3471 = vunpack.c.h.b16 %v3314
    %v3472 = vunpack.c.l.b16 %v3315
    %v3473 = vunpack.c.h.b16 %v3315
    %v3474 = vunpack.c.l.b16 %v3316
    %v3475 = vunpack.c.h.b16 %v3316
    %v3476 = vunpack.c.l.b16 %v3317
    %v3477 = vunpack.c.h.b16 %v3317
    %v3478 = vunpack.c.l.b16 %v3318
    %v3479 = vunpack.c.h.b16 %v3318
    %v3480 = vunpack.c.l.b16 %v3319
    %v3481 = vunpack.c.h.b16 %v3319
    %v3482 = vunpack.c.l.b16 %v3320
    %v3483 = vunpack.c.h.b16 %v3320
    %v3484 = vunpack.c.l.b16 %v3321
    %v3485 = vunpack.c.h.b16 %v3321
    %v3486 = vunpack.c.l.b16 %v3322
    %v3487 = vunpack.c.h.b16 %v3322
    %v3488 = vunpack.c.l.b16 %v3323
    %v3489 = vunpack.c.h.b16 %v3323
    %v3490 = vunpack.c.l.b16 %v3324
    %v3491 = vunpack.c.h.b16 %v3324
    %v3492 = vunpack.c.l.b16 %v3325
    %v3493 = vunpack.c.h.b16 %v3325
    %v3494 = vunpack.c.l.b16 %v3326
    %v3495 = vunpack.c.h.b16 %v3326
    %v3496 = vunpack.c.l.b16 %v3327
    %v3497 = vunpack.c.h.b16 %v3327
    %v3498 = vunpack.c.l.b16 %v3328
    %v3499 = vunpack.c.h.b16 %v3328
    %v3500 = vunpack.c.l.b16 %v3329
    %v3501 = vunpack.c.h.b16 %v3329
    %v3502 = vunpack.c.l.b16 %v3330
    %v3503 = vunpack.c.h.b16 %v3330
    %v3504 = vunpack.c.l.b16 %v3331
    %v3505 = vunpack.c.h.b16 %v3331
    %v3506 = vunpack.c.l.b16 %v3332
    %v3507 = vunpack.c.h.b16 %v3332
    %v3508 = vunpack.c.l.b16 %v3333
    %v3509 = vunpack.c.h.b16 %v3333
    %v3510 = vunpack.c.l.b16 %v3334
    %v3511 = vunpack.c.h.b16 %v3334
    %v3512 = vunpack.c.l.b16 %v3335
    %v3513 = vunpack.c.h.b16 %v3335
    %v3514 = vunpack.c.l.b16 %v3336
    %v3515 = vunpack.c.h.b16 %v3336
    %v3516 = vunpack.c.l.b16 %v3337
    %v3517 = vunpack.c.h.b16 %v3337
    %v3518 = vunpack.c.l.b16 %v3338
    %v3519 = vunpack.c.h.b16 %v3338
    %v3520 = vunpack.c.l.b16 %v3339
    %v3521 = vunpack.c.h.b16 %v3339
    %v3522 = vunpack.c.l.b16 %v3340
    %v3523 = vunpack.c.h.b16 %v3340
    %v3524 = vunpack.c.l.b16 %v3341
    %v3525 = vunpack.c.h.b16 %v3341
    %v3526 = vunpack.c.l.b16 %v3342
    %v3527 = vunpack.c.h.b16 %v3342
    %v3528 = vunpack.c.l.b16 %v3343
    %v3529 = vunpack.c.h.b16 %v3343
    %v3530 = vunpack.c.l.b16 %v3344
    %v3531 = vunpack.c.h.b16 %v3344
    %v3532 = vunpack.c.l.b16 %v3345
    %v3533 = vunpack.c.h.b16 %v3345
    %v3534 = vunpack.c.l.b16 %v3346
    %v3535 = vunpack.c.h.b16 %v3346
    %v3536 = vunpack.c.l.b16 %v3347
    %v3537 = vunpack.c.h.b16 %v3347
    %v3538 = vunpack.c.l.b16 %v3348
    %v3539 = vunpack.c.h.b16 %v3348
    %v3540 = vunpack.c.l.b16 %v3349
    %v3541 = vunpack.c.h.b16 %v3349
    %v3542 = vpack.c.b16 %v3418, %v3414
    %v3543 = vpack.c.b16 %v3419, %v3415
    %v3544 = vpack.c.b16 %v3420, %v3416
    %v3545 = vpack.c.b16 %v3421, %v3417
    %v3546 = vpack.c.b16 %v3426, %v3422
    %v3547 = vpack.c.b16 %v3427, %v3423
    %v3548 = vpack.c.b16 %v3428, %v3424
    %v3549 = vpack.c.b16 %v3429, %v3425
    %v3550 = vpack.c.b16 %v3434, %v3430
    %v3551 = vpack.c.b16 %v3435, %v3431
    %v3552 = vpack.c.b16 %v3436, %v3432
    %v3553 = vpack.c.b16 %v3437, %v3433
    %v3554 = vpack.c.b16 %v3442, %v3438
    %v3555 = vpack.c.b16 %v3443, %v3439
    %v3556 = vpack.c.b16 %v3444, %v3440
    %v3557 = vpack.c.b16 %v3445, %v3441
    %v3558 = vpack.c.b16 %v3450, %v3446
    %v3559 = vpack.c.b16 %v3451, %v3447
    %v3560 = vpack.c.b16 %v3452, %v3448
    %v3561 = vpack.c.b16 %v3453, %v3449
    %v3562 = vpack.c.b16 %v3458, %v3454
    %v3563 = vpack.c.b16 %v3459, %v3455
    %v3564 = vpack.c.b16 %v3460, %v3456
    %v3565 = vpack.c.b16 %v3461, %v3457
    %v3566 = vpack.c.b16 %v3466, %v3462
    %v3567 = vpack.c.b16 %v3467, %v3463
    %v3568 = vpack.c.b16 %v3468, %v3464
    %v3569 = vpack.c.b16 %v3469, %v3465
    %v3570 = vpack.c.b16 %v3474, %v3470
    %v3571 = vpack.c.b16 %v3475, %v3471
    %v3572 = vpack.c.b16 %v3476, %v3472
    %v3573 = vpack.c.b16 %v3477, %v3473
    %v3574 = vpack.c.b16 %v3482, %v3478
    %v3575 = vpack.c.b16 %v3483, %v3479
    %v3576 = vpack.c.b16 %v3484, %v3480
    %v3577 = vpack.c.b16 %v3485, %v3481
    %v3578 = vpack.c.b16 %v3490, %v3486
    %v3579 = vpack.c.b16 %v3491, %v3487
    %v3580 = vpack.c.b16 %v3492, %v3488
    %v3581 = vpack.c.b16 %v3493, %v3489
    %v3582 = vpack.c.b16 %v3498, %v3494
    %v3583 = vpack.c.b16 %v3499, %v3495
    %v3584 = vpack.c.b16 %v3500, %v3496
    %v3585 = vpack.c.b16 %v3501, %v3497
    %v3586 = vpack.c.b16 %v3506, %v3502
    %v3587 = vpack.c.b16 %v3507, %v3503
    %v3588 = vpack.c.b16 %v3508, %v3504
    %v3589 = vpack.c.b16 %v3509, %v3505
    %v3590 = vpack.c.b16 %v3514, %v3510
    %v3591 = vpack.c.b16 %v3515, %v3511
    %v3592 = vpack.c.b16 %v3516, %v3512
    %v3593 = vpack.c.b16 %v3517, %v3513
    %v3594 = vpack.c.b16 %v3522, %v3518
    %v3595 = vpack.c.b16 %v3523, %v3519
    %v3596 = vpack.c.b16 %v3524, %v3520
    %v3597 = vpack.c.b16 %v3525, %v3521
    %v3598 = vpack.c.b16 %v3530, %v3526
    %v3599 = vpack.c.b16 %v3531, %v3527
    %v3600 = vpack.c.b16 %v3532, %v3528
    %v3601 = vpack.c.b16 %v3533, %v3529
    %v3602 = vpack.c.b16 %v3538, %v3534
    %v3603 = vpack.c.b16 %v3539, %v3535
    %v3604 = vpack.c.b16 %v3540, %v3536
    %v3605 = vpack.c.b16 %v3541, %v3537
    %3670 = vmatpush.bf16.msra.mxu0 %v3570
    %3671 = vmatpush.bf16.msra.mxu0 %v3566
    %3672 = vmatpush.bf16.msra.mxu0 %v3562
    %3673 = vmatpush.bf16.msra.mxu0 %v3558
    %3674 = vmatpush.bf16.msra.mxu0 %v3554
    %3675 = vmatpush.bf16.msra.mxu0 %v3550
    %3676 = vmatpush.bf16.msra.mxu0 %v3546
    %3677 = vmatpush.bf16.msra.mxu0 %v3542
    %3678 = vmatmul.bf16.gmra.mxu0 %v3284
    %v3679 = vpop.f32.mrf.mxu0
    %v3680 = vadd.f32 0.0, %v3679
    %v3681 = vpop.f32.mrf.mxu0
    %v3682 = vadd.f32 0.0, %v3681
    %3683 = vdwg.mxu0
    %3684 = vmatpush.bf16.msra.mxu0 %v3602
    %3685 = vmatpush.bf16.msra.mxu0 %v3598
    %3686 = vmatpush.bf16.msra.mxu0 %v3594
    %3687 = vmatpush.bf16.msra.mxu0 %v3590
    %3688 = vmatpush.bf16.msra.mxu0 %v3586
    %3689 = vmatpush.bf16.msra.mxu0 %v3582
    %3690 = vmatpush.bf16.msra.mxu0 %v3578
    %3691 = vmatpush.bf16.msra.mxu0 %v3574
    %3692 = vmatmul.bf16.gmra.mxu0 %v3285
    %v3693 = vpop.f32.mrf.mxu0
    %v3694 = vadd.f32 %v3680, %v3693
    %v3695 = vpop.f32.mrf.mxu0
    %v3696 = vadd.f32 %v3682, %v3695
    %3697 = vdwg.mxu0
    %3698 = vmatpush.bf16.msra.mxu0 %v3571
    %3699 = vmatpush.bf16.msra.mxu0 %v3567
    %3700 = vmatpush.bf16.msra.mxu0 %v3563
    %3701 = vmatpush.bf16.msra.mxu0 %v3559
    %3702 = vmatpush.bf16.msra.mxu0 %v3555
    %3703 = vmatpush.bf16.msra.mxu0 %v3551
    %3704 = vmatpush.bf16.msra.mxu0 %v3547
    %3705 = vmatpush.bf16.msra.mxu0 %v3543
    %3706 = vmatmul.bf16.gmra.mxu0 %v3284
    %v3707 = vpop.f32.mrf.mxu0
    %v3708 = vadd.f32 0.0, %v3707
    %v3709 = vpop.f32.mrf.mxu0
    %v3710 = vadd.f32 0.0, %v3709
    %3711 = vdwg.mxu0
    %3712 = vmatpush.bf16.msra.mxu0 %v3603
    %3713 = vmatpush.bf16.msra.mxu0 %v3599
    %3714 = vmatpush.bf16.msra.mxu0 %v3595
    %3715 = vmatpush.bf16.msra.mxu0 %v3591
    %3716 = vmatpush.bf16.msra.mxu0 %v3587
    %3717 = vmatpush.bf16.msra.mxu0 %v3583
    %3718 = vmatpush.bf16.msra.mxu0 %v3579
    %3719 = vmatpush.bf16.msra.mxu0 %v3575
    %3720 = vmatmul.bf16.gmra.mxu0 %v3285
    %v3721 = vpop.f32.mrf.mxu0
    %v3722 = vadd.f32 %v3708, %v3721
    %v3723 = vpop.f32.mrf.mxu0
    %v3724 = vadd.f32 %v3710, %v3723
    %3725 = vdwg.mxu0
    %3726 = vmatpush.bf16.msra.mxu0 %v3572
    %3727 = vmatpush.bf16.msra.mxu0 %v3568
    %3728 = vmatpush.bf16.msra.mxu0 %v3564
    %3729 = vmatpush.bf16.msra.mxu0 %v3560
    %3730 = vmatpush.bf16.msra.mxu0 %v3556
    %3731 = vmatpush.bf16.msra.mxu0 %v3552
    %3732 = vmatpush.bf16.msra.mxu0 %v3548
    %3733 = vmatpush.bf16.msra.mxu0 %v3544
    %3734 = vmatmul.bf16.gmra.mxu0 %v3284
    %v3735 = vpop.f32.mrf.mxu0
    %v3736 = vadd.f32 0.0, %v3735
    %v3737 = vpop.f32.mrf.mxu0
    %v3738 = vadd.f32 0.0, %v3737
    %3739 = vdwg.mxu0
    %3740 = vmatpush.bf16.msra.mxu0 %v3604
    %3741 = vmatpush.bf16.msra.mxu0 %v3600
    %3742 = vmatpush.bf16.msra.mxu0 %v3596
    %3743 = vmatpush.bf16.msra.mxu0 %v3592
    %3744 = vmatpush.bf16.msra.mxu0 %v3588
    %3745 = vmatpush.bf16.msra.mxu0 %v3584
    %3746 = vmatpush.bf16.msra.mxu0 %v3580
    %3747 = vmatpush.bf16.msra.mxu0 %v3576
    %3748 = vmatmul.bf16.gmra.mxu0 %v3285
    %v3749 = vpop.f32.mrf.mxu0
    %v3750 = vadd.f32 %v3736, %v3749
    %v3751 = vpop.f32.mrf.mxu0
    %v3752 = vadd.f32 %v3738, %v3751
    %3753 = vdwg.mxu0
    %3754 = vmatpush.bf16.msra.mxu0 %v3573
    %3755 = vmatpush.bf16.msra.mxu0 %v3569
    %3756 = vmatpush.bf16.msra.mxu0 %v3565
    %3757 = vmatpush.bf16.msra.mxu0 %v3561
    %3758 = vmatpush.bf16.msra.mxu0 %v3557
    %3759 = vmatpush.bf16.msra.mxu0 %v3553
    %3760 = vmatpush.bf16.msra.mxu0 %v3549
    %3761 = vmatpush.bf16.msra.mxu0 %v3545
    %3762 = vmatmul.bf16.gmra.mxu0 %v3284
    %v3763 = vpop.f32.mrf.mxu0
    %v3764 = vadd.f32 0.0, %v3763
    %v3765 = vpop.f32.mrf.mxu0
    %v3766 = vadd.f32 0.0, %v3765
    %3767 = vdwg.mxu0
    %3768 = vmatpush.bf16.msra.mxu0 %v3605
    %3769 = vmatpush.bf16.msra.mxu0 %v3601
    %3770 = vmatpush.bf16.msra.mxu0 %v3597
    %3771 = vmatpush.bf16.msra.mxu0 %v3593
    %3772 = vmatpush.bf16.msra.mxu0 %v3589
    %3773 = vmatpush.bf16.msra.mxu0 %v3585
    %3774 = vmatpush.bf16.msra.mxu0 %v3581
    %3775 = vmatpush.bf16.msra.mxu0 %v3577
    %3776 = vmatmul.bf16.gmra.mxu0 %v3285
    %v3777 = vpop.f32.mrf.mxu0
    %v3778 = vadd.f32 %v3764, %v3777
    %v3779 = vpop.f32.mrf.mxu0
    %v3780 = vadd.f32 %v3766, %v3779
    %3781 = vdwg.mxu0
    %v3782 = vadd.f32 %v3694, %v3696
    %v3783 = vrot.slane %v3782, 4
    %v3784 = vadd.f32 %v3782, %v3783
    %v3785 = vrot.slane %v3784, 2
    %v3786 = vadd.f32 %v3784, %v3785
    %v3787 = vrot.slane %v3786, 1
    %v3788 = vadd.f32 %v3786, %v3787
    %v3789 = vadd.f32 %v3722, %v3724
    %v3790 = vrot.slane %v3789, 4
    %v3791 = vadd.f32 %v3789, %v3790
    %v3792 = vrot.slane %v3791, 2
    %v3793 = vadd.f32 %v3791, %v3792
    %v3794 = vrot.slane %v3793, 1
    %v3795 = vadd.f32 %v3793, %v3794
    %v3796 = vadd.f32 %v3750, %v3752
    %v3797 = vrot.slane %v3796, 4
    %v3798 = vadd.f32 %v3796, %v3797
    %v3799 = vrot.slane %v3798, 2
    %v3800 = vadd.f32 %v3798, %v3799
    %v3801 = vrot.slane %v3800, 1
    %v3802 = vadd.f32 %v3800, %v3801
    %v3803 = vadd.f32 %v3778, %v3780
    %v3804 = vrot.slane %v3803, 4
    %v3805 = vadd.f32 %v3803, %v3804
    %v3806 = vrot.slane %v3805, 2
    %v3807 = vadd.f32 %v3805, %v3806
    %v3808 = vrot.slane %v3807, 1
    %v3809 = vadd.f32 %v3807, %v3808
    %v3810 = vrcp.pop 16.0
    %v3811 = vmul.f32 16.0, %v3810
    %v3812 = vsub.f32 1.0, %v3811
    %v3813 = vmul.f32 %v3810, %v3812
    %v3814 = vadd.f32 %v3810, %v3813
    %vm3815 = vweird.f32 %v3810
    %v3816 = vsel %vm3815, %v3810, %v3814
    %v3817 = vmul.f32 %v3788, %v3816
    %v3818 = vmul.f32 %v3795, %v3816
    %v3819 = vmul.f32 %v3802, %v3816
    %v3820 = vmul.f32 %v3809, %v3816
    %v3821 = vmul.f32 %v3694, %v3694
    %v3822 = vmul.f32 %v3722, %v3722
    %v3823 = vmul.f32 %v3750, %v3750
    %v3824 = vmul.f32 %v3778, %v3778
    %v3825 = vmul.f32 %v3696, %v3696
    %v3826 = vmul.f32 %v3724, %v3724
    %v3827 = vmul.f32 %v3752, %v3752
    %v3828 = vmul.f32 %v3780, %v3780
    %v3829 = vadd.f32 %v3821, %v3825
    %v3830 = vrot.slane %v3829, 4
    %v3831 = vadd.f32 %v3829, %v3830
    %v3832 = vrot.slane %v3831, 2
    %v3833 = vadd.f32 %v3831, %v3832
    %v3834 = vrot.slane %v3833, 1
    %v3835 = vadd.f32 %v3833, %v3834
    %v3836 = vadd.f32 %v3822, %v3826
    %v3837 = vrot.slane %v3836, 4
    %v3838 = vadd.f32 %v3836, %v3837
    %v3839 = vrot.slane %v3838, 2
    %v3840 = vadd.f32 %v3838, %v3839
    %v3841 = vrot.slane %v3840, 1
    %v3842 = vadd.f32 %v3840, %v3841
    %v3843 = vadd.f32 %v3823, %v3827
    %v3844 = vrot.slane %v3843, 4
    %v3845 = vadd.f32 %v3843, %v3844
    %v3846 = vrot.slane %v3845, 2
    %v3847 = vadd.f32 %v3845, %v3846
    %v3848 = vrot.slane %v3847, 1
    %v3849 = vadd.f32 %v3847, %v3848
    %v3850 = vadd.f32 %v3824, %v3828
    %v3851 = vrot.slane %v3850, 4
    %v3852 = vadd.f32 %v3850, %v3851
    %v3853 = vrot.slane %v3852, 2
    %v3854 = vadd.f32 %v3852, %v3853
    %v3855 = vrot.slane %v3854, 1
    %v3856 = vadd.f32 %v3854, %v3855
    %v3857 = vmul.f32 %v3835, %v3816
    %v3858 = vmul.f32 %v3842, %v3816
    %v3859 = vmul.f32 %v3849, %v3816
    %v3860 = vmul.f32 %v3856, %v3816
    %v3861 = vmul.f32 %v3817, %v3817
    %v3862 = vmul.f32 %v3818, %v3818
    %v3863 = vmul.f32 %v3819, %v3819
    %v3864 = vmul.f32 %v3820, %v3820
    %v3865 = vsub.f32 %v3857, %v3861
    %v3866 = vsub.f32 %v3858, %v3862
    %v3867 = vsub.f32 %v3859, %v3863
    %v3868 = vsub.f32 %v3860, %v3864
    %v3869 = vmax.f32 %v3865, 0.0
    %v3870 = vmax.f32 %v3866, 0.0
    %v3871 = vmax.f32 %v3867, 0.0
    %v3872 = vmax.f32 %v3868, 0.0
    %v3873 = vld [vmem:[#allocation13] sm:$0xf]
    %v3874 = vld [vmem:[#allocation14] sm:$0xf]
    %v3875 = vmul.f32 %v3873, %v3874
    %v3876 = vmul.f32 %v3873, %v3873
    %v3878 = vperm.slane %v3876, 0
    %v3879 = vperm.slane %v3876, 1
    %v3880 = vperm.slane %v3876, 2
    %v3881 = vperm.slane %v3876, 3
    %v3886 = vmul.f32 %v3869, %v3878
    %v3887 = vmul.f32 %v3870, %v3879
    %v3888 = vmul.f32 %v3871, %v3880
    %v3889 = vmul.f32 %v3872, %v3881
    %v3890 = vadd.f32 %v3886, 1e-05
    %v3891 = vadd.f32 %v3887, 1e-05
    %v3892 = vadd.f32 %v3888, 1e-05
    %v3893 = vadd.f32 %v3889, 1e-05
    %v3894 = vrsqrt.pop %v3890
    %v3895 = vmul.f32 %v3894, %v3890
    %v3896 = vmul.f32 %v3895, %v3894
    %v3897 = vmul.f32 0.5, %v3896
    %v3898 = vsub.f32 1.5, %v3897
    %v3899 = vmul.f32 %v3894, %v3898
    %vm3900 = vweird.f32 %v3890
    %vm3901 = vweird.f32 %v3894
    %vm3902 = vmor %vm3900, %vm3901
    %v3903 = vsel %vm3902, %v3894, %v3899
    %v3904 = vrsqrt.pop %v3891
    %v3905 = vmul.f32 %v3904, %v3891
    %v3906 = vmul.f32 %v3905, %v3904
    %v3907 = vmul.f32 0.5, %v3906
    %v3908 = vsub.f32 1.5, %v3907
    %v3909 = vmul.f32 %v3904, %v3908
    %vm3910 = vweird.f32 %v3891
    %vm3911 = vweird.f32 %v3904
    %vm3912 = vmor %vm3910, %vm3911
    %v3913 = vsel %vm3912, %v3904, %v3909
    %v3914 = vrsqrt.pop %v3892
    %v3915 = vmul.f32 %v3914, %v3892
    %v3916 = vmul.f32 %v3915, %v3914
    %v3917 = vmul.f32 0.5, %v3916
    %v3918 = vsub.f32 1.5, %v3917
    %v3919 = vmul.f32 %v3914, %v3918
    %vm3920 = vweird.f32 %v3892
    %vm3921 = vweird.f32 %v3914
    %vm3922 = vmor %vm3920, %vm3921
    %v3923 = vsel %vm3922, %v3914, %v3919
    %v3924 = vrsqrt.pop %v3893
    %v3925 = vmul.f32 %v3924, %v3893
    %v3926 = vmul.f32 %v3925, %v3924
    %v3927 = vmul.f32 0.5, %v3926
    %v3928 = vsub.f32 1.5, %v3927
    %v3929 = vmul.f32 %v3924, %v3928
    %vm3930 = vweird.f32 %v3893
    %vm3931 = vweird.f32 %v3924
    %vm3932 = vmor %vm3930, %vm3931
    %v3933 = vsel %vm3932, %v3924, %v3929
    %v3938 = vrot.slane %v3913, 7
    %v3939 = vrot.slane %v3923, 6
    %v3940 = vrot.slane %v3933, 5
    %vm3941 = vcmask 1040384
    %v3942 = vsel %vm3941, %v3903, %v3938
    %vm3943 = vcmask 1042434
    %v3944 = vsel %vm3943, %v3939, %v3940
    %v3945 = vsel %vm3235, %v3942, %v3944
    %v3947 = vmul.f32 %v3875, %v3945
    %v3948 = vld [vmem:[#allocation16] sm:$0xf]
    %v3950 = vperm.slane %v3947, 0
    %v3951 = vperm.slane %v3947, 1
    %v3952 = vperm.slane %v3947, 2
    %v3953 = vperm.slane %v3947, 3
    %v3958 = vmul.f32 %v3817, %v3950
    %v3959 = vmul.f32 %v3818, %v3951
    %v3960 = vmul.f32 %v3819, %v3952
    %v3961 = vmul.f32 %v3820, %v3953
    %v3966 = vrot.slane %v3959, 7
    %v3967 = vrot.slane %v3960, 6
    %v3968 = vrot.slane %v3961, 5
    %v3969 = vsel %vm3941, %v3958, %v3966
    %v3970 = vsel %vm3943, %v3967, %v3968
    %v3971 = vsel %vm3235, %v3969, %v3970
    %v3973 = vsub.f32 %v3948, %v3971
    %v3974 = vmul.f32 %v3694, %v3950
    %v3975 = vmul.f32 %v3722, %v3951
    %v3976 = vmul.f32 %v3750, %v3952
    %v3977 = vmul.f32 %v3778, %v3953
    %v3978 = vmul.f32 %v3696, %v3950
    %v3979 = vmul.f32 %v3724, %v3951
    %v3980 = vmul.f32 %v3752, %v3952
    %v3981 = vmul.f32 %v3780, %v3953
    %v3983 = vperm.slane %v3973, 0
    %v3984 = vperm.slane %v3973, 1
    %v3985 = vperm.slane %v3973, 2
    %v3986 = vperm.slane %v3973, 3
    %v3991 = vadd.f32 %v3974, %v3983
    %v3992 = vadd.f32 %v3975, %v3984
    %v3993 = vadd.f32 %v3976, %v3985
    %v3994 = vadd.f32 %v3977, %v3986
    %v3995 = vadd.f32 %v3978, %v3983
    %v3996 = vadd.f32 %v3979, %v3984
    %v3997 = vadd.f32 %v3980, %v3985
    %v3998 = vadd.f32 %v3981, %v3986
    %v3999 = vmax.f32 %v3991, 0.0
    %v4000 = vmax.f32 %v3992, 0.0
    %v4001 = vmax.f32 %v3993, 0.0
    %v4002 = vmax.f32 %v3994, 0.0
    %v4003 = vmax.f32 %v3995, 0.0
    %v4004 = vmax.f32 %v3996, 0.0
    %v4005 = vmax.f32 %v3997, 0.0
    %v4006 = vmax.f32 %v3998, 0.0
    %v4007 = vpack.c.bf16 %v4003, %v3999
    %v4008 = vpack.c.bf16 %v4004, %v4000
    %v4009 = vpack.c.bf16 %v4005, %v4001
    %v4010 = vpack.c.bf16 %v4006, %v4002
    %v4011 = vld [vmem:[#allocation3] sm:$0xff]
    %v4012 = vld [vmem:[#allocation3 + $0x8] sm:$0xff]
    %v4013 = vld [vmem:[#allocation3 + $0x10] sm:$0xff]
    %v4014 = vld [vmem:[#allocation3 + $0x18] sm:$0xff]
    %v4015 = vld [vmem:[#allocation3 + $0x20] sm:$0xff]
    %v4016 = vld [vmem:[#allocation3 + $0x28] sm:$0xff]
    %v4017 = vld [vmem:[#allocation3 + $0x30] sm:$0xff]
    %v4018 = vld [vmem:[#allocation3 + $0x38] sm:$0xff]
    %v4019 = vld [vmem:[#allocation3 + $0x40] sm:$0xff]
    %v4020 = vld [vmem:[#allocation3 + $0x48] sm:$0xff]
    %v4021 = vld [vmem:[#allocation3 + $0x50] sm:$0xff]
    %v4022 = vld [vmem:[#allocation3 + $0x58] sm:$0xff]
    %v4023 = vld [vmem:[#allocation3 + $0x60] sm:$0xff]
    %v4024 = vld [vmem:[#allocation3 + $0x68] sm:$0xff]
    %v4025 = vld [vmem:[#allocation3 + $0x70] sm:$0xff]
    %v4026 = vld [vmem:[#allocation3 + $0x78] sm:$0xff]
    %v4027 = vld [vmem:[#allocation3 + $0x80] sm:$0xff]
    %v4028 = vld [vmem:[#allocation3 + $0x88] sm:$0xff]
    %v4029 = vld [vmem:[#allocation3 + $0x90] sm:$0xff]
    %v4030 = vld [vmem:[#allocation3 + $0x98] sm:$0xff]
    %v4031 = vld [vmem:[#allocation3 + $0xa0] sm:$0xff]
    %v4032 = vld [vmem:[#allocation3 + $0xa8] sm:$0xff]
    %v4033 = vld [vmem:[#allocation3 + $0xb0] sm:$0xff]
    %v4034 = vld [vmem:[#allocation3 + $0xb8] sm:$0xff]
    %v4035 = vld [vmem:[#allocation3 + $0xc0] sm:$0xff]
    %v4036 = vld [vmem:[#allocation3 + $0xc8] sm:$0xff]
    %v4037 = vld [vmem:[#allocation3 + $0xd0] sm:$0xff]
    %v4038 = vld [vmem:[#allocation3 + $0xd8] sm:$0xff]
    %v4039 = vld [vmem:[#allocation3 + $0xe0] sm:$0xff]
    %v4040 = vld [vmem:[#allocation3 + $0xe8] sm:$0xff]
    %v4041 = vld [vmem:[#allocation3 + $0xf0] sm:$0xff]
    %v4042 = vld [vmem:[#allocation3 + $0xf8] sm:$0xff]
    %v4043 = vld [vmem:[#allocation3 + $0x100] sm:$0xff]
    %v4044 = vld [vmem:[#allocation3 + $0x108] sm:$0xff]
    %v4045 = vld [vmem:[#allocation3 + $0x110] sm:$0xff]
    %v4046 = vld [vmem:[#allocation3 + $0x118] sm:$0xff]
    %v4047 = vld [vmem:[#allocation3 + $0x120] sm:$0xff]
    %v4048 = vld [vmem:[#allocation3 + $0x128] sm:$0xff]
    %v4049 = vld [vmem:[#allocation3 + $0x130] sm:$0xff]
    %v4050 = vld [vmem:[#allocation3 + $0x138] sm:$0xff]
    %v4051 = vld [vmem:[#allocation3 + $0x140] sm:$0xff]
    %v4052 = vld [vmem:[#allocation3 + $0x148] sm:$0xff]
    %v4053 = vld [vmem:[#allocation3 + $0x150] sm:$0xff]
    %v4054 = vld [vmem:[#allocation3 + $0x158] sm:$0xff]
    %v4055 = vld [vmem:[#allocation3 + $0x160] sm:$0xff]
    %v4056 = vld [vmem:[#allocation3 + $0x168] sm:$0xff]
    %v4057 = vld [vmem:[#allocation3 + $0x170] sm:$0xff]
    %v4058 = vld [vmem:[#allocation3 + $0x178] sm:$0xff]
    %v4059 = vld [vmem:[#allocation3 + $0x180] sm:$0xff]
    %v4060 = vld [vmem:[#allocation3 + $0x188] sm:$0xff]
    %v4061 = vld [vmem:[#allocation3 + $0x190] sm:$0xff]
    %v4062 = vld [vmem:[#allocation3 + $0x198] sm:$0xff]
    %v4063 = vld [vmem:[#allocation3 + $0x1a0] sm:$0xff]
    %v4064 = vld [vmem:[#allocation3 + $0x1a8] sm:$0xff]
    %v4065 = vld [vmem:[#allocation3 + $0x1b0] sm:$0xff]
    %v4066 = vld [vmem:[#allocation3 + $0x1b8] sm:$0xff]
    %v4067 = vld [vmem:[#allocation3 + $0x1c0] sm:$0xff]
    %v4068 = vld [vmem:[#allocation3 + $0x1c8] sm:$0xff]
    %v4069 = vld [vmem:[#allocation3 + $0x1d0] sm:$0xff]
    %v4070 = vld [vmem:[#allocation3 + $0x1d8] sm:$0xff]
    %v4071 = vld [vmem:[#allocation3 + $0x1e0] sm:$0xff]
    %v4072 = vld [vmem:[#allocation3 + $0x1e8] sm:$0xff]
    %v4073 = vld [vmem:[#allocation3 + $0x1f0] sm:$0xff]
    %v4074 = vld [vmem:[#allocation3 + $0x1f8] sm:$0xff]
    %v4075 = vld [vmem:[#allocation3 + $0x200] sm:$0xff]
    %v4076 = vld [vmem:[#allocation3 + $0x208] sm:$0xff]
    %v4077 = vld [vmem:[#allocation3 + $0x210] sm:$0xff]
    %v4078 = vld [vmem:[#allocation3 + $0x218] sm:$0xff]
    %v4079 = vld [vmem:[#allocation3 + $0x220] sm:$0xff]
    %v4080 = vld [vmem:[#allocation3 + $0x228] sm:$0xff]
    %v4081 = vld [vmem:[#allocation3 + $0x230] sm:$0xff]
    %v4082 = vld [vmem:[#allocation3 + $0x238] sm:$0xff]
    %v4083 = vld [vmem:[#allocation3 + $0x240] sm:$0xff]
    %v4084 = vld [vmem:[#allocation3 + $0x248] sm:$0xff]
    %v4085 = vld [vmem:[#allocation3 + $0x250] sm:$0xff]
    %v4086 = vld [vmem:[#allocation3 + $0x258] sm:$0xff]
    %v4087 = vld [vmem:[#allocation3 + $0x260] sm:$0xff]
    %v4088 = vld [vmem:[#allocation3 + $0x268] sm:$0xff]
    %v4089 = vld [vmem:[#allocation3 + $0x270] sm:$0xff]
    %v4090 = vld [vmem:[#allocation3 + $0x278] sm:$0xff]
    %v4091 = vld [vmem:[#allocation3 + $0x280] sm:$0xff]
    %v4092 = vld [vmem:[#allocation3 + $0x288] sm:$0xff]
    %v4093 = vld [vmem:[#allocation3 + $0x290] sm:$0xff]
    %v4094 = vld [vmem:[#allocation3 + $0x298] sm:$0xff]
    %v4095 = vld [vmem:[#allocation3 + $0x2a0] sm:$0xff]
    %v4096 = vld [vmem:[#allocation3 + $0x2a8] sm:$0xff]
    %v4097 = vld [vmem:[#allocation3 + $0x2b0] sm:$0xff]
    %v4098 = vld [vmem:[#allocation3 + $0x2b8] sm:$0xff]
    %v4099 = vld [vmem:[#allocation3 + $0x2c0] sm:$0xff]
    %v4100 = vld [vmem:[#allocation3 + $0x2c8] sm:$0xff]
    %v4101 = vld [vmem:[#allocation3 + $0x2d0] sm:$0xff]
    %v4102 = vld [vmem:[#allocation3 + $0x2d8] sm:$0xff]
    %v4103 = vld [vmem:[#allocation3 + $0x2e0] sm:$0xff]
    %v4104 = vld [vmem:[#allocation3 + $0x2e8] sm:$0xff]
    %v4105 = vld [vmem:[#allocation3 + $0x2f0] sm:$0xff]
    %v4106 = vld [vmem:[#allocation3 + $0x2f8] sm:$0xff]
    %v4107 = vld [vmem:[#allocation3 + $0x300] sm:$0xff]
    %v4108 = vld [vmem:[#allocation3 + $0x308] sm:$0xff]
    %v4109 = vld [vmem:[#allocation3 + $0x310] sm:$0xff]
    %v4110 = vld [vmem:[#allocation3 + $0x318] sm:$0xff]
    %v4111 = vld [vmem:[#allocation3 + $0x320] sm:$0xff]
    %v4112 = vld [vmem:[#allocation3 + $0x328] sm:$0xff]
    %v4113 = vld [vmem:[#allocation3 + $0x330] sm:$0xff]
    %v4114 = vld [vmem:[#allocation3 + $0x338] sm:$0xff]
    %v4115 = vld [vmem:[#allocation3 + $0x340] sm:$0xff]
    %v4116 = vld [vmem:[#allocation3 + $0x348] sm:$0xff]
    %v4117 = vld [vmem:[#allocation3 + $0x350] sm:$0xff]
    %v4118 = vld [vmem:[#allocation3 + $0x358] sm:$0xff]
    %v4119 = vld [vmem:[#allocation3 + $0x360] sm:$0xff]
    %v4120 = vld [vmem:[#allocation3 + $0x368] sm:$0xff]
    %v4121 = vld [vmem:[#allocation3 + $0x370] sm:$0xff]
    %v4122 = vld [vmem:[#allocation3 + $0x378] sm:$0xff]
    %v4123 = vld [vmem:[#allocation3 + $0x380] sm:$0xff]
    %v4124 = vld [vmem:[#allocation3 + $0x388] sm:$0xff]
    %v4125 = vld [vmem:[#allocation3 + $0x390] sm:$0xff]
    %v4126 = vld [vmem:[#allocation3 + $0x398] sm:$0xff]
    %v4127 = vld [vmem:[#allocation3 + $0x3a0] sm:$0xff]
    %v4128 = vld [vmem:[#allocation3 + $0x3a8] sm:$0xff]
    %v4129 = vld [vmem:[#allocation3 + $0x3b0] sm:$0xff]
    %v4130 = vld [vmem:[#allocation3 + $0x3b8] sm:$0xff]
    %v4131 = vld [vmem:[#allocation3 + $0x3c0] sm:$0xff]
    %v4132 = vld [vmem:[#allocation3 + $0x3c8] sm:$0xff]
    %v4133 = vld [vmem:[#allocation3 + $0x3d0] sm:$0xff]
    %v4134 = vld [vmem:[#allocation3 + $0x3d8] sm:$0xff]
    %v4135 = vld [vmem:[#allocation3 + $0x3e0] sm:$0xff]
    %v4136 = vld [vmem:[#allocation3 + $0x3e8] sm:$0xff]
    %v4137 = vld [vmem:[#allocation3 + $0x3f0] sm:$0xff]
    %v4138 = vld [vmem:[#allocation3 + $0x3f8] sm:$0xff]
    %v4139 = vld [vmem:[#allocation3 + $0x400] sm:$0xff]
    %v4140 = vld [vmem:[#allocation3 + $0x408] sm:$0xff]
    %v4141 = vld [vmem:[#allocation3 + $0x410] sm:$0xff]
    %v4142 = vld [vmem:[#allocation3 + $0x418] sm:$0xff]
    %v4143 = vld [vmem:[#allocation3 + $0x420] sm:$0xff]
    %v4144 = vld [vmem:[#allocation3 + $0x428] sm:$0xff]
    %v4145 = vld [vmem:[#allocation3 + $0x430] sm:$0xff]
    %v4146 = vld [vmem:[#allocation3 + $0x438] sm:$0xff]
    %v4147 = vld [vmem:[#allocation3 + $0x440] sm:$0xff]
    %v4148 = vld [vmem:[#allocation3 + $0x448] sm:$0xff]
    %v4149 = vld [vmem:[#allocation3 + $0x450] sm:$0xff]
    %v4150 = vld [vmem:[#allocation3 + $0x458] sm:$0xff]
    %v4151 = vld [vmem:[#allocation3 + $0x460] sm:$0xff]
    %v4152 = vld [vmem:[#allocation3 + $0x468] sm:$0xff]
    %v4153 = vld [vmem:[#allocation3 + $0x470] sm:$0xff]
    %v4154 = vld [vmem:[#allocation3 + $0x478] sm:$0xff]
    %v4155 = vld [vmem:[#allocation3 + $0x480] sm:$0xff]
    %v4156 = vld [vmem:[#allocation3 + $0x488] sm:$0xff]
    %v4157 = vld [vmem:[#allocation3 + $0x490] sm:$0xff]
    %v4158 = vld [vmem:[#allocation3 + $0x498] sm:$0xff]
    %v4159 = vld [vmem:[#allocation3 + $0x4a0] sm:$0xff]
    %v4160 = vld [vmem:[#allocation3 + $0x4a8] sm:$0xff]
    %v4161 = vld [vmem:[#allocation3 + $0x4b0] sm:$0xff]
    %v4162 = vld [vmem:[#allocation3 + $0x4b8] sm:$0xff]
    %v4163 = vld [vmem:[#allocation3 + $0x4c0] sm:$0xff]
    %v4164 = vld [vmem:[#allocation3 + $0x4c8] sm:$0xff]
    %v4165 = vld [vmem:[#allocation3 + $0x4d0] sm:$0xff]
    %v4166 = vld [vmem:[#allocation3 + $0x4d8] sm:$0xff]
    %v4167 = vld [vmem:[#allocation3 + $0x4e0] sm:$0xff]
    %v4168 = vld [vmem:[#allocation3 + $0x4e8] sm:$0xff]
    %v4169 = vld [vmem:[#allocation3 + $0x4f0] sm:$0xff]
    %v4170 = vld [vmem:[#allocation3 + $0x4f8] sm:$0xff]
    %v4171 = vld [vmem:[#allocation3 + $0x500] sm:$0xff]
    %v4172 = vld [vmem:[#allocation3 + $0x508] sm:$0xff]
    %v4173 = vld [vmem:[#allocation3 + $0x510] sm:$0xff]
    %v4174 = vld [vmem:[#allocation3 + $0x518] sm:$0xff]
    %v4175 = vld [vmem:[#allocation3 + $0x520] sm:$0xff]
    %v4176 = vld [vmem:[#allocation3 + $0x528] sm:$0xff]
    %v4177 = vld [vmem:[#allocation3 + $0x530] sm:$0xff]
    %v4178 = vld [vmem:[#allocation3 + $0x538] sm:$0xff]
    %v4179 = vld [vmem:[#allocation3 + $0x540] sm:$0xff]
    %v4180 = vld [vmem:[#allocation3 + $0x548] sm:$0xff]
    %v4181 = vld [vmem:[#allocation3 + $0x550] sm:$0xff]
    %v4182 = vld [vmem:[#allocation3 + $0x558] sm:$0xff]
    %v4183 = vld [vmem:[#allocation3 + $0x560] sm:$0xff]
    %v4184 = vld [vmem:[#allocation3 + $0x568] sm:$0xff]
    %v4185 = vld [vmem:[#allocation3 + $0x570] sm:$0xff]
    %v4186 = vld [vmem:[#allocation3 + $0x578] sm:$0xff]
    %v4187 = vld [vmem:[#allocation3 + $0x580] sm:$0xff]
    %v4188 = vld [vmem:[#allocation3 + $0x588] sm:$0xff]
    %v4189 = vld [vmem:[#allocation3 + $0x590] sm:$0xff]
    %v4190 = vld [vmem:[#allocation3 + $0x598] sm:$0xff]
    %v4191 = vld [vmem:[#allocation3 + $0x5a0] sm:$0xff]
    %v4192 = vld [vmem:[#allocation3 + $0x5a8] sm:$0xff]
    %v4193 = vld [vmem:[#allocation3 + $0x5b0] sm:$0xff]
    %v4194 = vld [vmem:[#allocation3 + $0x5b8] sm:$0xff]
    %v4195 = vld [vmem:[#allocation3 + $0x5c0] sm:$0xff]
    %v4196 = vld [vmem:[#allocation3 + $0x5c8] sm:$0xff]
    %v4197 = vld [vmem:[#allocation3 + $0x5d0] sm:$0xff]
    %v4198 = vld [vmem:[#allocation3 + $0x5d8] sm:$0xff]
    %v4199 = vld [vmem:[#allocation3 + $0x5e0] sm:$0xff]
    %v4200 = vld [vmem:[#allocation3 + $0x5e8] sm:$0xff]
    %v4201 = vld [vmem:[#allocation3 + $0x5f0] sm:$0xff]
    %v4202 = vld [vmem:[#allocation3 + $0x5f8] sm:$0xff]
    %v4203 = vld [vmem:[#allocation3 + $0x600] sm:$0xff]
    %v4204 = vld [vmem:[#allocation3 + $0x608] sm:$0xff]
    %v4205 = vld [vmem:[#allocation3 + $0x610] sm:$0xff]
    %v4206 = vld [vmem:[#allocation3 + $0x618] sm:$0xff]
    %v4207 = vld [vmem:[#allocation3 + $0x620] sm:$0xff]
    %v4208 = vld [vmem:[#allocation3 + $0x628] sm:$0xff]
    %v4209 = vld [vmem:[#allocation3 + $0x630] sm:$0xff]
    %v4210 = vld [vmem:[#allocation3 + $0x638] sm:$0xff]
    %v4211 = vld [vmem:[#allocation3 + $0x640] sm:$0xff]
    %v4212 = vld [vmem:[#allocation3 + $0x648] sm:$0xff]
    %v4213 = vld [vmem:[#allocation3 + $0x650] sm:$0xff]
    %v4214 = vld [vmem:[#allocation3 + $0x658] sm:$0xff]
    %v4215 = vld [vmem:[#allocation3 + $0x660] sm:$0xff]
    %v4216 = vld [vmem:[#allocation3 + $0x668] sm:$0xff]
    %v4217 = vld [vmem:[#allocation3 + $0x670] sm:$0xff]
    %v4218 = vld [vmem:[#allocation3 + $0x678] sm:$0xff]
    %v4219 = vld [vmem:[#allocation3 + $0x680] sm:$0xff]
    %v4220 = vld [vmem:[#allocation3 + $0x688] sm:$0xff]
    %v4221 = vld [vmem:[#allocation3 + $0x690] sm:$0xff]
    %v4222 = vld [vmem:[#allocation3 + $0x698] sm:$0xff]
    %v4223 = vld [vmem:[#allocation3 + $0x6a0] sm:$0xff]
    %v4224 = vld [vmem:[#allocation3 + $0x6a8] sm:$0xff]
    %v4225 = vld [vmem:[#allocation3 + $0x6b0] sm:$0xff]
    %v4226 = vld [vmem:[#allocation3 + $0x6b8] sm:$0xff]
    %v4227 = vld [vmem:[#allocation3 + $0x6c0] sm:$0xff]
    %v4228 = vld [vmem:[#allocation3 + $0x6c8] sm:$0xff]
    %v4229 = vld [vmem:[#allocation3 + $0x6d0] sm:$0xff]
    %v4230 = vld [vmem:[#allocation3 + $0x6d8] sm:$0xff]
    %v4231 = vld [vmem:[#allocation3 + $0x6e0] sm:$0xff]
    %v4232 = vld [vmem:[#allocation3 + $0x6e8] sm:$0xff]
    %v4233 = vld [vmem:[#allocation3 + $0x6f0] sm:$0xff]
    %v4234 = vld [vmem:[#allocation3 + $0x6f8] sm:$0xff]
    %v4235 = vld [vmem:[#allocation3 + $0x700] sm:$0xff]
    %v4236 = vld [vmem:[#allocation3 + $0x708] sm:$0xff]
    %v4237 = vld [vmem:[#allocation3 + $0x710] sm:$0xff]
    %v4238 = vld [vmem:[#allocation3 + $0x718] sm:$0xff]
    %v4239 = vld [vmem:[#allocation3 + $0x720] sm:$0xff]
    %v4240 = vld [vmem:[#allocation3 + $0x728] sm:$0xff]
    %v4241 = vld [vmem:[#allocation3 + $0x730] sm:$0xff]
    %v4242 = vld [vmem:[#allocation3 + $0x738] sm:$0xff]
    %v4243 = vld [vmem:[#allocation3 + $0x740] sm:$0xff]
    %v4244 = vld [vmem:[#allocation3 + $0x748] sm:$0xff]
    %v4245 = vld [vmem:[#allocation3 + $0x750] sm:$0xff]
    %v4246 = vld [vmem:[#allocation3 + $0x758] sm:$0xff]
    %v4247 = vld [vmem:[#allocation3 + $0x760] sm:$0xff]
    %v4248 = vld [vmem:[#allocation3 + $0x768] sm:$0xff]
    %v4249 = vld [vmem:[#allocation3 + $0x770] sm:$0xff]
    %v4250 = vld [vmem:[#allocation3 + $0x778] sm:$0xff]
    %v4251 = vld [vmem:[#allocation3 + $0x780] sm:$0xff]
    %v4252 = vld [vmem:[#allocation3 + $0x788] sm:$0xff]
    %v4253 = vld [vmem:[#allocation3 + $0x790] sm:$0xff]
    %v4254 = vld [vmem:[#allocation3 + $0x798] sm:$0xff]
    %v4255 = vld [vmem:[#allocation3 + $0x7a0] sm:$0xff]
    %v4256 = vld [vmem:[#allocation3 + $0x7a8] sm:$0xff]
    %v4257 = vld [vmem:[#allocation3 + $0x7b0] sm:$0xff]
    %v4258 = vld [vmem:[#allocation3 + $0x7b8] sm:$0xff]
    %v4259 = vld [vmem:[#allocation3 + $0x7c0] sm:$0xff]
    %v4260 = vld [vmem:[#allocation3 + $0x7c8] sm:$0xff]
    %v4261 = vld [vmem:[#allocation3 + $0x7d0] sm:$0xff]
    %v4262 = vld [vmem:[#allocation3 + $0x7d8] sm:$0xff]
    %v4263 = vld [vmem:[#allocation3 + $0x7e0] sm:$0xff]
    %v4264 = vld [vmem:[#allocation3 + $0x7e8] sm:$0xff]
    %v4265 = vld [vmem:[#allocation3 + $0x7f0] sm:$0xff]
    %v4266 = vld [vmem:[#allocation3 + $0x7f8] sm:$0xff]
    %v4523 = vunpack.c.l.b16 %v4011
    %v4524 = vunpack.c.h.b16 %v4011
    %v4525 = vunpack.c.l.b16 %v4012
    %v4526 = vunpack.c.h.b16 %v4012
    %v4527 = vunpack.c.l.b16 %v4013
    %v4528 = vunpack.c.h.b16 %v4013
    %v4529 = vunpack.c.l.b16 %v4014
    %v4530 = vunpack.c.h.b16 %v4014
    %v4531 = vunpack.c.l.b16 %v4015
    %v4532 = vunpack.c.h.b16 %v4015
    %v4533 = vunpack.c.l.b16 %v4016
    %v4534 = vunpack.c.h.b16 %v4016
    %v4535 = vunpack.c.l.b16 %v4017
    %v4536 = vunpack.c.h.b16 %v4017
    %v4537 = vunpack.c.l.b16 %v4018
    %v4538 = vunpack.c.h.b16 %v4018
    %v4539 = vunpack.c.l.b16 %v4019
    %v4540 = vunpack.c.h.b16 %v4019
    %v4541 = vunpack.c.l.b16 %v4020
    %v4542 = vunpack.c.h.b16 %v4020
    %v4543 = vunpack.c.l.b16 %v4021
    %v4544 = vunpack.c.h.b16 %v4021
    %v4545 = vunpack.c.l.b16 %v4022
    %v4546 = vunpack.c.h.b16 %v4022
    %v4547 = vunpack.c.l.b16 %v4023
    %v4548 = vunpack.c.h.b16 %v4023
    %v4549 = vunpack.c.l.b16 %v4024
    %v4550 = vunpack.c.h.b16 %v4024
    %v4551 = vunpack.c.l.b16 %v4025
    %v4552 = vunpack.c.h.b16 %v4025
    %v4553 = vunpack.c.l.b16 %v4026
    %v4554 = vunpack.c.h.b16 %v4026
    %v4555 = vunpack.c.l.b16 %v4027
    %v4556 = vunpack.c.h.b16 %v4027
    %v4557 = vunpack.c.l.b16 %v4028
    %v4558 = vunpack.c.h.b16 %v4028
    %v4559 = vunpack.c.l.b16 %v4029
    %v4560 = vunpack.c.h.b16 %v4029
    %v4561 = vunpack.c.l.b16 %v4030
    %v4562 = vunpack.c.h.b16 %v4030
    %v4563 = vunpack.c.l.b16 %v4031
    %v4564 = vunpack.c.h.b16 %v4031
    %v4565 = vunpack.c.l.b16 %v4032
    %v4566 = vunpack.c.h.b16 %v4032
    %v4567 = vunpack.c.l.b16 %v4033
    %v4568 = vunpack.c.h.b16 %v4033
    %v4569 = vunpack.c.l.b16 %v4034
    %v4570 = vunpack.c.h.b16 %v4034
    %v4571 = vunpack.c.l.b16 %v4035
    %v4572 = vunpack.c.h.b16 %v4035
    %v4573 = vunpack.c.l.b16 %v4036
    %v4574 = vunpack.c.h.b16 %v4036
    %v4575 = vunpack.c.l.b16 %v4037
    %v4576 = vunpack.c.h.b16 %v4037
    %v4577 = vunpack.c.l.b16 %v4038
    %v4578 = vunpack.c.h.b16 %v4038
    %v4579 = vunpack.c.l.b16 %v4039
    %v4580 = vunpack.c.h.b16 %v4039
    %v4581 = vunpack.c.l.b16 %v4040
    %v4582 = vunpack.c.h.b16 %v4040
    %v4583 = vunpack.c.l.b16 %v4041
    %v4584 = vunpack.c.h.b16 %v4041
    %v4585 = vunpack.c.l.b16 %v4042
    %v4586 = vunpack.c.h.b16 %v4042
    %v4587 = vunpack.c.l.b16 %v4043
    %v4588 = vunpack.c.h.b16 %v4043
    %v4589 = vunpack.c.l.b16 %v4044
    %v4590 = vunpack.c.h.b16 %v4044
    %v4591 = vunpack.c.l.b16 %v4045
    %v4592 = vunpack.c.h.b16 %v4045
    %v4593 = vunpack.c.l.b16 %v4046
    %v4594 = vunpack.c.h.b16 %v4046
    %v4595 = vunpack.c.l.b16 %v4047
    %v4596 = vunpack.c.h.b16 %v4047
    %v4597 = vunpack.c.l.b16 %v4048
    %v4598 = vunpack.c.h.b16 %v4048
    %v4599 = vunpack.c.l.b16 %v4049
    %v4600 = vunpack.c.h.b16 %v4049
    %v4601 = vunpack.c.l.b16 %v4050
    %v4602 = vunpack.c.h.b16 %v4050
    %v4603 = vunpack.c.l.b16 %v4051
    %v4604 = vunpack.c.h.b16 %v4051
    %v4605 = vunpack.c.l.b16 %v4052
    %v4606 = vunpack.c.h.b16 %v4052
    %v4607 = vunpack.c.l.b16 %v4053
    %v4608 = vunpack.c.h.b16 %v4053
    %v4609 = vunpack.c.l.b16 %v4054
    %v4610 = vunpack.c.h.b16 %v4054
    %v4611 = vunpack.c.l.b16 %v4055
    %v4612 = vunpack.c.h.b16 %v4055
    %v4613 = vunpack.c.l.b16 %v4056
    %v4614 = vunpack.c.h.b16 %v4056
    %v4615 = vunpack.c.l.b16 %v4057
    %v4616 = vunpack.c.h.b16 %v4057
    %v4617 = vunpack.c.l.b16 %v4058
    %v4618 = vunpack.c.h.b16 %v4058
    %v4619 = vunpack.c.l.b16 %v4059
    %v4620 = vunpack.c.h.b16 %v4059
    %v4621 = vunpack.c.l.b16 %v4060
    %v4622 = vunpack.c.h.b16 %v4060
    %v4623 = vunpack.c.l.b16 %v4061
    %v4624 = vunpack.c.h.b16 %v4061
    %v4625 = vunpack.c.l.b16 %v4062
    %v4626 = vunpack.c.h.b16 %v4062
    %v4627 = vunpack.c.l.b16 %v4063
    %v4628 = vunpack.c.h.b16 %v4063
    %v4629 = vunpack.c.l.b16 %v4064
    %v4630 = vunpack.c.h.b16 %v4064
    %v4631 = vunpack.c.l.b16 %v4065
    %v4632 = vunpack.c.h.b16 %v4065
    %v4633 = vunpack.c.l.b16 %v4066
    %v4634 = vunpack.c.h.b16 %v4066
    %v4635 = vunpack.c.l.b16 %v4067
    %v4636 = vunpack.c.h.b16 %v4067
    %v4637 = vunpack.c.l.b16 %v4068
    %v4638 = vunpack.c.h.b16 %v4068
    %v4639 = vunpack.c.l.b16 %v4069
    %v4640 = vunpack.c.h.b16 %v4069
    %v4641 = vunpack.c.l.b16 %v4070
    %v4642 = vunpack.c.h.b16 %v4070
    %v4643 = vunpack.c.l.b16 %v4071
    %v4644 = vunpack.c.h.b16 %v4071
    %v4645 = vunpack.c.l.b16 %v4072
    %v4646 = vunpack.c.h.b16 %v4072
    %v4647 = vunpack.c.l.b16 %v4073
    %v4648 = vunpack.c.h.b16 %v4073
    %v4649 = vunpack.c.l.b16 %v4074
    %v4650 = vunpack.c.h.b16 %v4074
    %v4651 = vunpack.c.l.b16 %v4075
    %v4652 = vunpack.c.h.b16 %v4075
    %v4653 = vunpack.c.l.b16 %v4076
    %v4654 = vunpack.c.h.b16 %v4076
    %v4655 = vunpack.c.l.b16 %v4077
    %v4656 = vunpack.c.h.b16 %v4077
    %v4657 = vunpack.c.l.b16 %v4078
    %v4658 = vunpack.c.h.b16 %v4078
    %v4659 = vunpack.c.l.b16 %v4079
    %v4660 = vunpack.c.h.b16 %v4079
    %v4661 = vunpack.c.l.b16 %v4080
    %v4662 = vunpack.c.h.b16 %v4080
    %v4663 = vunpack.c.l.b16 %v4081
    %v4664 = vunpack.c.h.b16 %v4081
    %v4665 = vunpack.c.l.b16 %v4082
    %v4666 = vunpack.c.h.b16 %v4082
    %v4667 = vunpack.c.l.b16 %v4083
    %v4668 = vunpack.c.h.b16 %v4083
    %v4669 = vunpack.c.l.b16 %v4084
    %v4670 = vunpack.c.h.b16 %v4084
    %v4671 = vunpack.c.l.b16 %v4085
    %v4672 = vunpack.c.h.b16 %v4085
    %v4673 = vunpack.c.l.b16 %v4086
    %v4674 = vunpack.c.h.b16 %v4086
    %v4675 = vunpack.c.l.b16 %v4087
    %v4676 = vunpack.c.h.b16 %v4087
    %v4677 = vunpack.c.l.b16 %v4088
    %v4678 = vunpack.c.h.b16 %v4088
    %v4679 = vunpack.c.l.b16 %v4089
    %v4680 = vunpack.c.h.b16 %v4089
    %v4681 = vunpack.c.l.b16 %v4090
    %v4682 = vunpack.c.h.b16 %v4090
    %v4683 = vunpack.c.l.b16 %v4091
    %v4684 = vunpack.c.h.b16 %v4091
    %v4685 = vunpack.c.l.b16 %v4092
    %v4686 = vunpack.c.h.b16 %v4092
    %v4687 = vunpack.c.l.b16 %v4093
    %v4688 = vunpack.c.h.b16 %v4093
    %v4689 = vunpack.c.l.b16 %v4094
    %v4690 = vunpack.c.h.b16 %v4094
    %v4691 = vunpack.c.l.b16 %v4095
    %v4692 = vunpack.c.h.b16 %v4095
    %v4693 = vunpack.c.l.b16 %v4096
    %v4694 = vunpack.c.h.b16 %v4096
    %v4695 = vunpack.c.l.b16 %v4097
    %v4696 = vunpack.c.h.b16 %v4097
    %v4697 = vunpack.c.l.b16 %v4098
    %v4698 = vunpack.c.h.b16 %v4098
    %v4699 = vunpack.c.l.b16 %v4099
    %v4700 = vunpack.c.h.b16 %v4099
    %v4701 = vunpack.c.l.b16 %v4100
    %v4702 = vunpack.c.h.b16 %v4100
    %v4703 = vunpack.c.l.b16 %v4101
    %v4704 = vunpack.c.h.b16 %v4101
    %v4705 = vunpack.c.l.b16 %v4102
    %v4706 = vunpack.c.h.b16 %v4102
    %v4707 = vunpack.c.l.b16 %v4103
    %v4708 = vunpack.c.h.b16 %v4103
    %v4709 = vunpack.c.l.b16 %v4104
    %v4710 = vunpack.c.h.b16 %v4104
    %v4711 = vunpack.c.l.b16 %v4105
    %v4712 = vunpack.c.h.b16 %v4105
    %v4713 = vunpack.c.l.b16 %v4106
    %v4714 = vunpack.c.h.b16 %v4106
    %v4715 = vunpack.c.l.b16 %v4107
    %v4716 = vunpack.c.h.b16 %v4107
    %v4717 = vunpack.c.l.b16 %v4108
    %v4718 = vunpack.c.h.b16 %v4108
    %v4719 = vunpack.c.l.b16 %v4109
    %v4720 = vunpack.c.h.b16 %v4109
    %v4721 = vunpack.c.l.b16 %v4110
    %v4722 = vunpack.c.h.b16 %v4110
    %v4723 = vunpack.c.l.b16 %v4111
    %v4724 = vunpack.c.h.b16 %v4111
    %v4725 = vunpack.c.l.b16 %v4112
    %v4726 = vunpack.c.h.b16 %v4112
    %v4727 = vunpack.c.l.b16 %v4113
    %v4728 = vunpack.c.h.b16 %v4113
    %v4729 = vunpack.c.l.b16 %v4114
    %v4730 = vunpack.c.h.b16 %v4114
    %v4731 = vunpack.c.l.b16 %v4115
    %v4732 = vunpack.c.h.b16 %v4115
    %v4733 = vunpack.c.l.b16 %v4116
    %v4734 = vunpack.c.h.b16 %v4116
    %v4735 = vunpack.c.l.b16 %v4117
    %v4736 = vunpack.c.h.b16 %v4117
    %v4737 = vunpack.c.l.b16 %v4118
    %v4738 = vunpack.c.h.b16 %v4118
    %v4739 = vunpack.c.l.b16 %v4119
    %v4740 = vunpack.c.h.b16 %v4119
    %v4741 = vunpack.c.l.b16 %v4120
    %v4742 = vunpack.c.h.b16 %v4120
    %v4743 = vunpack.c.l.b16 %v4121
    %v4744 = vunpack.c.h.b16 %v4121
    %v4745 = vunpack.c.l.b16 %v4122
    %v4746 = vunpack.c.h.b16 %v4122
    %v4747 = vunpack.c.l.b16 %v4123
    %v4748 = vunpack.c.h.b16 %v4123
    %v4749 = vunpack.c.l.b16 %v4124
    %v4750 = vunpack.c.h.b16 %v4124
    %v4751 = vunpack.c.l.b16 %v4125
    %v4752 = vunpack.c.h.b16 %v4125
    %v4753 = vunpack.c.l.b16 %v4126
    %v4754 = vunpack.c.h.b16 %v4126
    %v4755 = vunpack.c.l.b16 %v4127
    %v4756 = vunpack.c.h.b16 %v4127
    %v4757 = vunpack.c.l.b16 %v4128
    %v4758 = vunpack.c.h.b16 %v4128
    %v4759 = vunpack.c.l.b16 %v4129
    %v4760 = vunpack.c.h.b16 %v4129
    %v4761 = vunpack.c.l.b16 %v4130
    %v4762 = vunpack.c.h.b16 %v4130
    %v4763 = vunpack.c.l.b16 %v4131
    %v4764 = vunpack.c.h.b16 %v4131
    %v4765 = vunpack.c.l.b16 %v4132
    %v4766 = vunpack.c.h.b16 %v4132
    %v4767 = vunpack.c.l.b16 %v4133
    %v4768 = vunpack.c.h.b16 %v4133
    %v4769 = vunpack.c.l.b16 %v4134
    %v4770 = vunpack.c.h.b16 %v4134
    %v4771 = vunpack.c.l.b16 %v4135
    %v4772 = vunpack.c.h.b16 %v4135
    %v4773 = vunpack.c.l.b16 %v4136
    %v4774 = vunpack.c.h.b16 %v4136
    %v4775 = vunpack.c.l.b16 %v4137
    %v4776 = vunpack.c.h.b16 %v4137
    %v4777 = vunpack.c.l.b16 %v4138
    %v4778 = vunpack.c.h.b16 %v4138
    %v4779 = vunpack.c.l.b16 %v4139
    %v4780 = vunpack.c.h.b16 %v4139
    %v4781 = vunpack.c.l.b16 %v4140
    %v4782 = vunpack.c.h.b16 %v4140
    %v4783 = vunpack.c.l.b16 %v4141
    %v4784 = vunpack.c.h.b16 %v4141
    %v4785 = vunpack.c.l.b16 %v4142
    %v4786 = vunpack.c.h.b16 %v4142
    %v4787 = vunpack.c.l.b16 %v4143
    %v4788 = vunpack.c.h.b16 %v4143
    %v4789 = vunpack.c.l.b16 %v4144
    %v4790 = vunpack.c.h.b16 %v4144
    %v4791 = vunpack.c.l.b16 %v4145
    %v4792 = vunpack.c.h.b16 %v4145
    %v4793 = vunpack.c.l.b16 %v4146
    %v4794 = vunpack.c.h.b16 %v4146
    %v4795 = vunpack.c.l.b16 %v4147
    %v4796 = vunpack.c.h.b16 %v4147
    %v4797 = vunpack.c.l.b16 %v4148
    %v4798 = vunpack.c.h.b16 %v4148
    %v4799 = vunpack.c.l.b16 %v4149
    %v4800 = vunpack.c.h.b16 %v4149
    %v4801 = vunpack.c.l.b16 %v4150
    %v4802 = vunpack.c.h.b16 %v4150
    %v4803 = vunpack.c.l.b16 %v4151
    %v4804 = vunpack.c.h.b16 %v4151
    %v4805 = vunpack.c.l.b16 %v4152
    %v4806 = vunpack.c.h.b16 %v4152
    %v4807 = vunpack.c.l.b16 %v4153
    %v4808 = vunpack.c.h.b16 %v4153
    %v4809 = vunpack.c.l.b16 %v4154
    %v4810 = vunpack.c.h.b16 %v4154
    %v4811 = vunpack.c.l.b16 %v4155
    %v4812 = vunpack.c.h.b16 %v4155
    %v4813 = vunpack.c.l.b16 %v4156
    %v4814 = vunpack.c.h.b16 %v4156
    %v4815 = vunpack.c.l.b16 %v4157
    %v4816 = vunpack.c.h.b16 %v4157
    %v4817 = vunpack.c.l.b16 %v4158
    %v4818 = vunpack.c.h.b16 %v4158
    %v4819 = vunpack.c.l.b16 %v4159
    %v4820 = vunpack.c.h.b16 %v4159
    %v4821 = vunpack.c.l.b16 %v4160
    %v4822 = vunpack.c.h.b16 %v4160
    %v4823 = vunpack.c.l.b16 %v4161
    %v4824 = vunpack.c.h.b16 %v4161
    %v4825 = vunpack.c.l.b16 %v4162
    %v4826 = vunpack.c.h.b16 %v4162
    %v4827 = vunpack.c.l.b16 %v4163
    %v4828 = vunpack.c.h.b16 %v4163
    %v4829 = vunpack.c.l.b16 %v4164
    %v4830 = vunpack.c.h.b16 %v4164
    %v4831 = vunpack.c.l.b16 %v4165
    %v4832 = vunpack.c.h.b16 %v4165
    %v4833 = vunpack.c.l.b16 %v4166
    %v4834 = vunpack.c.h.b16 %v4166
    %v4835 = vunpack.c.l.b16 %v4167
    %v4836 = vunpack.c.h.b16 %v4167
    %v4837 = vunpack.c.l.b16 %v4168
    %v4838 = vunpack.c.h.b16 %v4168
    %v4839 = vunpack.c.l.b16 %v4169
    %v4840 = vunpack.c.h.b16 %v4169
    %v4841 = vunpack.c.l.b16 %v4170
    %v4842 = vunpack.c.h.b16 %v4170
    %v4843 = vunpack.c.l.b16 %v4171
    %v4844 = vunpack.c.h.b16 %v4171
    %v4845 = vunpack.c.l.b16 %v4172
    %v4846 = vunpack.c.h.b16 %v4172
    %v4847 = vunpack.c.l.b16 %v4173
    %v4848 = vunpack.c.h.b16 %v4173
    %v4849 = vunpack.c.l.b16 %v4174
    %v4850 = vunpack.c.h.b16 %v4174
    %v4851 = vunpack.c.l.b16 %v4175
    %v4852 = vunpack.c.h.b16 %v4175
    %v4853 = vunpack.c.l.b16 %v4176
    %v4854 = vunpack.c.h.b16 %v4176
    %v4855 = vunpack.c.l.b16 %v4177
    %v4856 = vunpack.c.h.b16 %v4177
    %v4857 = vunpack.c.l.b16 %v4178
    %v4858 = vunpack.c.h.b16 %v4178
    %v4859 = vunpack.c.l.b16 %v4179
    %v4860 = vunpack.c.h.b16 %v4179
    %v4861 = vunpack.c.l.b16 %v4180
    %v4862 = vunpack.c.h.b16 %v4180
    %v4863 = vunpack.c.l.b16 %v4181
    %v4864 = vunpack.c.h.b16 %v4181
    %v4865 = vunpack.c.l.b16 %v4182
    %v4866 = vunpack.c.h.b16 %v4182
    %v4867 = vunpack.c.l.b16 %v4183
    %v4868 = vunpack.c.h.b16 %v4183
    %v4869 = vunpack.c.l.b16 %v4184
    %v4870 = vunpack.c.h.b16 %v4184
    %v4871 = vunpack.c.l.b16 %v4185
    %v4872 = vunpack.c.h.b16 %v4185
    %v4873 = vunpack.c.l.b16 %v4186
    %v4874 = vunpack.c.h.b16 %v4186
    %v4875 = vunpack.c.l.b16 %v4187
    %v4876 = vunpack.c.h.b16 %v4187
    %v4877 = vunpack.c.l.b16 %v4188
    %v4878 = vunpack.c.h.b16 %v4188
    %v4879 = vunpack.c.l.b16 %v4189
    %v4880 = vunpack.c.h.b16 %v4189
    %v4881 = vunpack.c.l.b16 %v4190
    %v4882 = vunpack.c.h.b16 %v4190
    %v4883 = vunpack.c.l.b16 %v4191
    %v4884 = vunpack.c.h.b16 %v4191
    %v4885 = vunpack.c.l.b16 %v4192
    %v4886 = vunpack.c.h.b16 %v4192
    %v4887 = vunpack.c.l.b16 %v4193
    %v4888 = vunpack.c.h.b16 %v4193
    %v4889 = vunpack.c.l.b16 %v4194
    %v4890 = vunpack.c.h.b16 %v4194
    %v4891 = vunpack.c.l.b16 %v4195
    %v4892 = vunpack.c.h.b16 %v4195
    %v4893 = vunpack.c.l.b16 %v4196
    %v4894 = vunpack.c.h.b16 %v4196
    %v4895 = vunpack.c.l.b16 %v4197
    %v4896 = vunpack.c.h.b16 %v4197
    %v4897 = vunpack.c.l.b16 %v4198
    %v4898 = vunpack.c.h.b16 %v4198
    %v4899 = vunpack.c.l.b16 %v4199
    %v4900 = vunpack.c.h.b16 %v4199
    %v4901 = vunpack.c.l.b16 %v4200
    %v4902 = vunpack.c.h.b16 %v4200
    %v4903 = vunpack.c.l.b16 %v4201
    %v4904 = vunpack.c.h.b16 %v4201
    %v4905 = vunpack.c.l.b16 %v4202
    %v4906 = vunpack.c.h.b16 %v4202
    %v4907 = vunpack.c.l.b16 %v4203
    %v4908 = vunpack.c.h.b16 %v4203
    %v4909 = vunpack.c.l.b16 %v4204
    %v4910 = vunpack.c.h.b16 %v4204
    %v4911 = vunpack.c.l.b16 %v4205
    %v4912 = vunpack.c.h.b16 %v4205
    %v4913 = vunpack.c.l.b16 %v4206
    %v4914 = vunpack.c.h.b16 %v4206
    %v4915 = vunpack.c.l.b16 %v4207
    %v4916 = vunpack.c.h.b16 %v4207
    %v4917 = vunpack.c.l.b16 %v4208
    %v4918 = vunpack.c.h.b16 %v4208
    %v4919 = vunpack.c.l.b16 %v4209
    %v4920 = vunpack.c.h.b16 %v4209
    %v4921 = vunpack.c.l.b16 %v4210
    %v4922 = vunpack.c.h.b16 %v4210
    %v4923 = vunpack.c.l.b16 %v4211
    %v4924 = vunpack.c.h.b16 %v4211
    %v4925 = vunpack.c.l.b16 %v4212
    %v4926 = vunpack.c.h.b16 %v4212
    %v4927 = vunpack.c.l.b16 %v4213
    %v4928 = vunpack.c.h.b16 %v4213
    %v4929 = vunpack.c.l.b16 %v4214
    %v4930 = vunpack.c.h.b16 %v4214
    %v4931 = vunpack.c.l.b16 %v4215
    %v4932 = vunpack.c.h.b16 %v4215
    %v4933 = vunpack.c.l.b16 %v4216
    %v4934 = vunpack.c.h.b16 %v4216
    %v4935 = vunpack.c.l.b16 %v4217
    %v4936 = vunpack.c.h.b16 %v4217
    %v4937 = vunpack.c.l.b16 %v4218
    %v4938 = vunpack.c.h.b16 %v4218
    %v4939 = vunpack.c.l.b16 %v4219
    %v4940 = vunpack.c.h.b16 %v4219
    %v4941 = vunpack.c.l.b16 %v4220
    %v4942 = vunpack.c.h.b16 %v4220
    %v4943 = vunpack.c.l.b16 %v4221
    %v4944 = vunpack.c.h.b16 %v4221
    %v4945 = vunpack.c.l.b16 %v4222
    %v4946 = vunpack.c.h.b16 %v4222
    %v4947 = vunpack.c.l.b16 %v4223
    %v4948 = vunpack.c.h.b16 %v4223
    %v4949 = vunpack.c.l.b16 %v4224
    %v4950 = vunpack.c.h.b16 %v4224
    %v4951 = vunpack.c.l.b16 %v4225
    %v4952 = vunpack.c.h.b16 %v4225
    %v4953 = vunpack.c.l.b16 %v4226
    %v4954 = vunpack.c.h.b16 %v4226
    %v4955 = vunpack.c.l.b16 %v4227
    %v4956 = vunpack.c.h.b16 %v4227
    %v4957 = vunpack.c.l.b16 %v4228
    %v4958 = vunpack.c.h.b16 %v4228
    %v4959 = vunpack.c.l.b16 %v4229
    %v4960 = vunpack.c.h.b16 %v4229
    %v4961 = vunpack.c.l.b16 %v4230
    %v4962 = vunpack.c.h.b16 %v4230
    %v4963 = vunpack.c.l.b16 %v4231
    %v4964 = vunpack.c.h.b16 %v4231
    %v4965 = vunpack.c.l.b16 %v4232
    %v4966 = vunpack.c.h.b16 %v4232
    %v4967 = vunpack.c.l.b16 %v4233
    %v4968 = vunpack.c.h.b16 %v4233
    %v4969 = vunpack.c.l.b16 %v4234
    %v4970 = vunpack.c.h.b16 %v4234
    %v4971 = vunpack.c.l.b16 %v4235
    %v4972 = vunpack.c.h.b16 %v4235
    %v4973 = vunpack.c.l.b16 %v4236
    %v4974 = vunpack.c.h.b16 %v4236
    %v4975 = vunpack.c.l.b16 %v4237
    %v4976 = vunpack.c.h.b16 %v4237
    %v4977 = vunpack.c.l.b16 %v4238
    %v4978 = vunpack.c.h.b16 %v4238
    %v4979 = vunpack.c.l.b16 %v4239
    %v4980 = vunpack.c.h.b16 %v4239
    %v4981 = vunpack.c.l.b16 %v4240
    %v4982 = vunpack.c.h.b16 %v4240
    %v4983 = vunpack.c.l.b16 %v4241
    %v4984 = vunpack.c.h.b16 %v4241
    %v4985 = vunpack.c.l.b16 %v4242
    %v4986 = vunpack.c.h.b16 %v4242
    %v4987 = vunpack.c.l.b16 %v4243
    %v4988 = vunpack.c.h.b16 %v4243
    %v4989 = vunpack.c.l.b16 %v4244
    %v4990 = vunpack.c.h.b16 %v4244
    %v4991 = vunpack.c.l.b16 %v4245
    %v4992 = vunpack.c.h.b16 %v4245
    %v4993 = vunpack.c.l.b16 %v4246
    %v4994 = vunpack.c.h.b16 %v4246
    %v4995 = vunpack.c.l.b16 %v4247
    %v4996 = vunpack.c.h.b16 %v4247
    %v4997 = vunpack.c.l.b16 %v4248
    %v4998 = vunpack.c.h.b16 %v4248
    %v4999 = vunpack.c.l.b16 %v4249
    %v5000 = vunpack.c.h.b16 %v4249
    %v5001 = vunpack.c.l.b16 %v4250
    %v5002 = vunpack.c.h.b16 %v4250
    %v5003 = vunpack.c.l.b16 %v4251
    %v5004 = vunpack.c.h.b16 %v4251
    %v5005 = vunpack.c.l.b16 %v4252
    %v5006 = vunpack.c.h.b16 %v4252
    %v5007 = vunpack.c.l.b16 %v4253
    %v5008 = vunpack.c.h.b16 %v4253
    %v5009 = vunpack.c.l.b16 %v4254
    %v5010 = vunpack.c.h.b16 %v4254
    %v5011 = vunpack.c.l.b16 %v4255
    %v5012 = vunpack.c.h.b16 %v4255
    %v5013 = vunpack.c.l.b16 %v4256
    %v5014 = vunpack.c.h.b16 %v4256
    %v5015 = vunpack.c.l.b16 %v4257
    %v5016 = vunpack.c.h.b16 %v4257
    %v5017 = vunpack.c.l.b16 %v4258
    %v5018 = vunpack.c.h.b16 %v4258
    %v5019 = vunpack.c.l.b16 %v4259
    %v5020 = vunpack.c.h.b16 %v4259
    %v5021 = vunpack.c.l.b16 %v4260
    %v5022 = vunpack.c.h.b16 %v4260
    %v5023 = vunpack.c.l.b16 %v4261
    %v5024 = vunpack.c.h.b16 %v4261
    %v5025 = vunpack.c.l.b16 %v4262
    %v5026 = vunpack.c.h.b16 %v4262
    %v5027 = vunpack.c.l.b16 %v4263
    %v5028 = vunpack.c.h.b16 %v4263
    %v5029 = vunpack.c.l.b16 %v4264
    %v5030 = vunpack.c.h.b16 %v4264
    %v5031 = vunpack.c.l.b16 %v4265
    %v5032 = vunpack.c.h.b16 %v4265
    %v5033 = vunpack.c.l.b16 %v4266
    %v5034 = vunpack.c.h.b16 %v4266
    %v5035 = vpack.c.b16 %v4531, %v4523
    %v5036 = vpack.c.b16 %v4532, %v4524
    %v5037 = vpack.c.b16 %v4533, %v4525
    %v5038 = vpack.c.b16 %v4534, %v4526
    %v5039 = vpack.c.b16 %v4535, %v4527
    %v5040 = vpack.c.b16 %v4536, %v4528
    %v5041 = vpack.c.b16 %v4537, %v4529
    %v5042 = vpack.c.b16 %v4538, %v4530
    %v5043 = vpack.c.b16 %v4547, %v4539
    %v5044 = vpack.c.b16 %v4548, %v4540
    %v5045 = vpack.c.b16 %v4549, %v4541
    %v5046 = vpack.c.b16 %v4550, %v4542
    %v5047 = vpack.c.b16 %v4551, %v4543
    %v5048 = vpack.c.b16 %v4552, %v4544
    %v5049 = vpack.c.b16 %v4553, %v4545
    %v5050 = vpack.c.b16 %v4554, %v4546
    %v5051 = vpack.c.b16 %v4563, %v4555
    %v5052 = vpack.c.b16 %v4564, %v4556
    %v5053 = vpack.c.b16 %v4565, %v4557
    %v5054 = vpack.c.b16 %v4566, %v4558
    %v5055 = vpack.c.b16 %v4567, %v4559
    %v5056 = vpack.c.b16 %v4568, %v4560
    %v5057 = vpack.c.b16 %v4569, %v4561
    %v5058 = vpack.c.b16 %v4570, %v4562
    %v5059 = vpack.c.b16 %v4579, %v4571
    %v5060 = vpack.c.b16 %v4580, %v4572
    %v5061 = vpack.c.b16 %v4581, %v4573
    %v5062 = vpack.c.b16 %v4582, %v4574
    %v5063 = vpack.c.b16 %v4583, %v4575
    %v5064 = vpack.c.b16 %v4584, %v4576
    %v5065 = vpack.c.b16 %v4585, %v4577
    %v5066 = vpack.c.b16 %v4586, %v4578
    %v5067 = vpack.c.b16 %v4595, %v4587
    %v5068 = vpack.c.b16 %v4596, %v4588
    %v5069 = vpack.c.b16 %v4597, %v4589
    %v5070 = vpack.c.b16 %v4598, %v4590
    %v5071 = vpack.c.b16 %v4599, %v4591
    %v5072 = vpack.c.b16 %v4600, %v4592
    %v5073 = vpack.c.b16 %v4601, %v4593
    %v5074 = vpack.c.b16 %v4602, %v4594
    %v5075 = vpack.c.b16 %v4611, %v4603
    %v5076 = vpack.c.b16 %v4612, %v4604
    %v5077 = vpack.c.b16 %v4613, %v4605
    %v5078 = vpack.c.b16 %v4614, %v4606
    %v5079 = vpack.c.b16 %v4615, %v4607
    %v5080 = vpack.c.b16 %v4616, %v4608
    %v5081 = vpack.c.b16 %v4617, %v4609
    %v5082 = vpack.c.b16 %v4618, %v4610
    %v5083 = vpack.c.b16 %v4627, %v4619
    %v5084 = vpack.c.b16 %v4628, %v4620
    %v5085 = vpack.c.b16 %v4629, %v4621
    %v5086 = vpack.c.b16 %v4630, %v4622
    %v5087 = vpack.c.b16 %v4631, %v4623
    %v5088 = vpack.c.b16 %v4632, %v4624
    %v5089 = vpack.c.b16 %v4633, %v4625
    %v5090 = vpack.c.b16 %v4634, %v4626
    %v5091 = vpack.c.b16 %v4643, %v4635
    %v5092 = vpack.c.b16 %v4644, %v4636
    %v5093 = vpack.c.b16 %v4645, %v4637
    %v5094 = vpack.c.b16 %v4646, %v4638
    %v5095 = vpack.c.b16 %v4647, %v4639
    %v5096 = vpack.c.b16 %v4648, %v4640
    %v5097 = vpack.c.b16 %v4649, %v4641
    %v5098 = vpack.c.b16 %v4650, %v4642
    %v5099 = vpack.c.b16 %v4659, %v4651
    %v5100 = vpack.c.b16 %v4660, %v4652
    %v5101 = vpack.c.b16 %v4661, %v4653
    %v5102 = vpack.c.b16 %v4662, %v4654
    %v5103 = vpack.c.b16 %v4663, %v4655
    %v5104 = vpack.c.b16 %v4664, %v4656
    %v5105 = vpack.c.b16 %v4665, %v4657
    %v5106 = vpack.c.b16 %v4666, %v4658
    %v5107 = vpack.c.b16 %v4675, %v4667
    %v5108 = vpack.c.b16 %v4676, %v4668
    %v5109 = vpack.c.b16 %v4677, %v4669
    %v5110 = vpack.c.b16 %v4678, %v4670
    %v5111 = vpack.c.b16 %v4679, %v4671
    %v5112 = vpack.c.b16 %v4680, %v4672
    %v5113 = vpack.c.b16 %v4681, %v4673
    %v5114 = vpack.c.b16 %v4682, %v4674
    %v5115 = vpack.c.b16 %v4691, %v4683
    %v5116 = vpack.c.b16 %v4692, %v4684
    %v5117 = vpack.c.b16 %v4693, %v4685
    %v5118 = vpack.c.b16 %v4694, %v4686
    %v5119 = vpack.c.b16 %v4695, %v4687
    %v5120 = vpack.c.b16 %v4696, %v4688
    %v5121 = vpack.c.b16 %v4697, %v4689
    %v5122 = vpack.c.b16 %v4698, %v4690
    %v5123 = vpack.c.b16 %v4707, %v4699
    %v5124 = vpack.c.b16 %v4708, %v4700
    %v5125 = vpack.c.b16 %v4709, %v4701
    %v5126 = vpack.c.b16 %v4710, %v4702
    %v5127 = vpack.c.b16 %v4711, %v4703
    %v5128 = vpack.c.b16 %v4712, %v4704
    %v5129 = vpack.c.b16 %v4713, %v4705
    %v5130 = vpack.c.b16 %v4714, %v4706
    %v5131 = vpack.c.b16 %v4723, %v4715
    %v5132 = vpack.c.b16 %v4724, %v4716
    %v5133 = vpack.c.b16 %v4725, %v4717
    %v5134 = vpack.c.b16 %v4726, %v4718
    %v5135 = vpack.c.b16 %v4727, %v4719
    %v5136 = vpack.c.b16 %v4728, %v4720
    %v5137 = vpack.c.b16 %v4729, %v4721
    %v5138 = vpack.c.b16 %v4730, %v4722
    %v5139 = vpack.c.b16 %v4739, %v4731
    %v5140 = vpack.c.b16 %v4740, %v4732
    %v5141 = vpack.c.b16 %v4741, %v4733
    %v5142 = vpack.c.b16 %v4742, %v4734
    %v5143 = vpack.c.b16 %v4743, %v4735
    %v5144 = vpack.c.b16 %v4744, %v4736
    %v5145 = vpack.c.b16 %v4745, %v4737
    %v5146 = vpack.c.b16 %v4746, %v4738
    %v5147 = vpack.c.b16 %v4755, %v4747
    %v5148 = vpack.c.b16 %v4756, %v4748
    %v5149 = vpack.c.b16 %v4757, %v4749
    %v5150 = vpack.c.b16 %v4758, %v4750
    %v5151 = vpack.c.b16 %v4759, %v4751
    %v5152 = vpack.c.b16 %v4760, %v4752
    %v5153 = vpack.c.b16 %v4761, %v4753
    %v5154 = vpack.c.b16 %v4762, %v4754
    %v5155 = vpack.c.b16 %v4771, %v4763
    %v5156 = vpack.c.b16 %v4772, %v4764
    %v5157 = vpack.c.b16 %v4773, %v4765
    %v5158 = vpack.c.b16 %v4774, %v4766
    %v5159 = vpack.c.b16 %v4775, %v4767
    %v5160 = vpack.c.b16 %v4776, %v4768
    %v5161 = vpack.c.b16 %v4777, %v4769
    %v5162 = vpack.c.b16 %v4778, %v4770
    %v5163 = vpack.c.b16 %v4787, %v4779
    %v5164 = vpack.c.b16 %v4788, %v4780
    %v5165 = vpack.c.b16 %v4789, %v4781
    %v5166 = vpack.c.b16 %v4790, %v4782
    %v5167 = vpack.c.b16 %v4791, %v4783
    %v5168 = vpack.c.b16 %v4792, %v4784
    %v5169 = vpack.c.b16 %v4793, %v4785
    %v5170 = vpack.c.b16 %v4794, %v4786
    %v5171 = vpack.c.b16 %v4803, %v4795
    %v5172 = vpack.c.b16 %v4804, %v4796
    %v5173 = vpack.c.b16 %v4805, %v4797
    %v5174 = vpack.c.b16 %v4806, %v4798
    %v5175 = vpack.c.b16 %v4807, %v4799
    %v5176 = vpack.c.b16 %v4808, %v4800
    %v5177 = vpack.c.b16 %v4809, %v4801
    %v5178 = vpack.c.b16 %v4810, %v4802
    %v5179 = vpack.c.b16 %v4819, %v4811
    %v5180 = vpack.c.b16 %v4820, %v4812
    %v5181 = vpack.c.b16 %v4821, %v4813
    %v5182 = vpack.c.b16 %v4822, %v4814
    %v5183 = vpack.c.b16 %v4823, %v4815
    %v5184 = vpack.c.b16 %v4824, %v4816
    %v5185 = vpack.c.b16 %v4825, %v4817
    %v5186 = vpack.c.b16 %v4826, %v4818
    %v5187 = vpack.c.b16 %v4835, %v4827
    %v5188 = vpack.c.b16 %v4836, %v4828
    %v5189 = vpack.c.b16 %v4837, %v4829
    %v5190 = vpack.c.b16 %v4838, %v4830
    %v5191 = vpack.c.b16 %v4839, %v4831
    %v5192 = vpack.c.b16 %v4840, %v4832
    %v5193 = vpack.c.b16 %v4841, %v4833
    %v5194 = vpack.c.b16 %v4842, %v4834
    %v5195 = vpack.c.b16 %v4851, %v4843
    %v5196 = vpack.c.b16 %v4852, %v4844
    %v5197 = vpack.c.b16 %v4853, %v4845
    %v5198 = vpack.c.b16 %v4854, %v4846
    %v5199 = vpack.c.b16 %v4855, %v4847
    %v5200 = vpack.c.b16 %v4856, %v4848
    %v5201 = vpack.c.b16 %v4857, %v4849
    %v5202 = vpack.c.b16 %v4858, %v4850
    %v5203 = vpack.c.b16 %v4867, %v4859
    %v5204 = vpack.c.b16 %v4868, %v4860
    %v5205 = vpack.c.b16 %v4869, %v4861
    %v5206 = vpack.c.b16 %v4870, %v4862
    %v5207 = vpack.c.b16 %v4871, %v4863
    %v5208 = vpack.c.b16 %v4872, %v4864
    %v5209 = vpack.c.b16 %v4873, %v4865
    %v5210 = vpack.c.b16 %v4874, %v4866
    %v5211 = vpack.c.b16 %v4883, %v4875
    %v5212 = vpack.c.b16 %v4884, %v4876
    %v5213 = vpack.c.b16 %v4885, %v4877
    %v5214 = vpack.c.b16 %v4886, %v4878
    %v5215 = vpack.c.b16 %v4887, %v4879
    %v5216 = vpack.c.b16 %v4888, %v4880
    %v5217 = vpack.c.b16 %v4889, %v4881
    %v5218 = vpack.c.b16 %v4890, %v4882
    %v5219 = vpack.c.b16 %v4899, %v4891
    %v5220 = vpack.c.b16 %v4900, %v4892
    %v5221 = vpack.c.b16 %v4901, %v4893
    %v5222 = vpack.c.b16 %v4902, %v4894
    %v5223 = vpack.c.b16 %v4903, %v4895
    %v5224 = vpack.c.b16 %v4904, %v4896
    %v5225 = vpack.c.b16 %v4905, %v4897
    %v5226 = vpack.c.b16 %v4906, %v4898
    %v5227 = vpack.c.b16 %v4915, %v4907
    %v5228 = vpack.c.b16 %v4916, %v4908
    %v5229 = vpack.c.b16 %v4917, %v4909
    %v5230 = vpack.c.b16 %v4918, %v4910
    %v5231 = vpack.c.b16 %v4919, %v4911
    %v5232 = vpack.c.b16 %v4920, %v4912
    %v5233 = vpack.c.b16 %v4921, %v4913
    %v5234 = vpack.c.b16 %v4922, %v4914
    %v5235 = vpack.c.b16 %v4931, %v4923
    %v5236 = vpack.c.b16 %v4932, %v4924
    %v5237 = vpack.c.b16 %v4933, %v4925
    %v5238 = vpack.c.b16 %v4934, %v4926
    %v5239 = vpack.c.b16 %v4935, %v4927
    %v5240 = vpack.c.b16 %v4936, %v4928
    %v5241 = vpack.c.b16 %v4937, %v4929
    %v5242 = vpack.c.b16 %v4938, %v4930
    %v5243 = vpack.c.b16 %v4947, %v4939
    %v5244 = vpack.c.b16 %v4948, %v4940
    %v5245 = vpack.c.b16 %v4949, %v4941
    %v5246 = vpack.c.b16 %v4950, %v4942
    %v5247 = vpack.c.b16 %v4951, %v4943
    %v5248 = vpack.c.b16 %v4952, %v4944
    %v5249 = vpack.c.b16 %v4953, %v4945
    %v5250 = vpack.c.b16 %v4954, %v4946
    %v5251 = vpack.c.b16 %v4963, %v4955
    %v5252 = vpack.c.b16 %v4964, %v4956
    %v5253 = vpack.c.b16 %v4965, %v4957
    %v5254 = vpack.c.b16 %v4966, %v4958
    %v5255 = vpack.c.b16 %v4967, %v4959
    %v5256 = vpack.c.b16 %v4968, %v4960
    %v5257 = vpack.c.b16 %v4969, %v4961
    %v5258 = vpack.c.b16 %v4970, %v4962
    %v5259 = vpack.c.b16 %v4979, %v4971
    %v5260 = vpack.c.b16 %v4980, %v4972
    %v5261 = vpack.c.b16 %v4981, %v4973
    %v5262 = vpack.c.b16 %v4982, %v4974
    %v5263 = vpack.c.b16 %v4983, %v4975
    %v5264 = vpack.c.b16 %v4984, %v4976
    %v5265 = vpack.c.b16 %v4985, %v4977
    %v5266 = vpack.c.b16 %v4986, %v4978
    %v5267 = vpack.c.b16 %v4995, %v4987
    %v5268 = vpack.c.b16 %v4996, %v4988
    %v5269 = vpack.c.b16 %v4997, %v4989
    %v5270 = vpack.c.b16 %v4998, %v4990
    %v5271 = vpack.c.b16 %v4999, %v4991
    %v5272 = vpack.c.b16 %v5000, %v4992
    %v5273 = vpack.c.b16 %v5001, %v4993
    %v5274 = vpack.c.b16 %v5002, %v4994
    %v5275 = vpack.c.b16 %v5011, %v5003
    %v5276 = vpack.c.b16 %v5012, %v5004
    %v5277 = vpack.c.b16 %v5013, %v5005
    %v5278 = vpack.c.b16 %v5014, %v5006
    %v5279 = vpack.c.b16 %v5015, %v5007
    %v5280 = vpack.c.b16 %v5016, %v5008
    %v5281 = vpack.c.b16 %v5017, %v5009
    %v5282 = vpack.c.b16 %v5018, %v5010
    %v5283 = vpack.c.b16 %v5027, %v5019
    %v5284 = vpack.c.b16 %v5028, %v5020
    %v5285 = vpack.c.b16 %v5029, %v5021
    %v5286 = vpack.c.b16 %v5030, %v5022
    %v5287 = vpack.c.b16 %v5031, %v5023
    %v5288 = vpack.c.b16 %v5032, %v5024
    %v5289 = vpack.c.b16 %v5033, %v5025
    %v5290 = vpack.c.b16 %v5034, %v5026
    %5547 = vmatpush.bf16.msra.mxu0 %v5091
    %5548 = vmatpush.bf16.msra.mxu0 %v5083
    %5549 = vmatpush.bf16.msra.mxu0 %v5075
    %5550 = vmatpush.bf16.msra.mxu0 %v5067
    %5551 = vmatpush.bf16.msra.mxu0 %v5059
    %5552 = vmatpush.bf16.msra.mxu0 %v5051
    %5553 = vmatpush.bf16.msra.mxu0 %v5043
    %5554 = vmatpush.bf16.msra.mxu0 %v5035
    %5555 = vmatmul.bf16.gmra.mxu0 %v4007
    %v5556 = vpop.f32.mrf.mxu0
    %v5557 = vadd.f32 0.0, %v5556
    %v5558 = vpop.f32.mrf.mxu0
    %v5559 = vadd.f32 0.0, %v5558
    %5560 = vdwg.mxu0
    %5561 = vmatpush.bf16.msra.mxu0 %v5155
    %5562 = vmatpush.bf16.msra.mxu0 %v5147
    %5563 = vmatpush.bf16.msra.mxu0 %v5139
    %5564 = vmatpush.bf16.msra.mxu0 %v5131
    %5565 = vmatpush.bf16.msra.mxu0 %v5123
    %5566 = vmatpush.bf16.msra.mxu0 %v5115
    %5567 = vmatpush.bf16.msra.mxu0 %v5107
    %5568 = vmatpush.bf16.msra.mxu0 %v5099
    %5569 = vmatmul.bf16.gmra.mxu0 %v4008
    %v5570 = vpop.f32.mrf.mxu0
    %v5571 = vadd.f32 %v5557, %v5570
    %v5572 = vpop.f32.mrf.mxu0
    %v5573 = vadd.f32 %v5559, %v5572
    %5574 = vdwg.mxu0
    %5575 = vmatpush.bf16.msra.mxu0 %v5219
    %5576 = vmatpush.bf16.msra.mxu0 %v5211
    %5577 = vmatpush.bf16.msra.mxu0 %v5203
    %5578 = vmatpush.bf16.msra.mxu0 %v5195
    %5579 = vmatpush.bf16.msra.mxu0 %v5187
    %5580 = vmatpush.bf16.msra.mxu0 %v5179
    %5581 = vmatpush.bf16.msra.mxu0 %v5171
    %5582 = vmatpush.bf16.msra.mxu0 %v5163
    %5583 = vmatmul.bf16.gmra.mxu0 %v4009
    %v5584 = vpop.f32.mrf.mxu0
    %v5585 = vadd.f32 %v5571, %v5584
    %v5586 = vpop.f32.mrf.mxu0
    %v5587 = vadd.f32 %v5573, %v5586
    %5588 = vdwg.mxu0
    %5589 = vmatpush.bf16.msra.mxu0 %v5283
    %5590 = vmatpush.bf16.msra.mxu0 %v5275
    %5591 = vmatpush.bf16.msra.mxu0 %v5267
    %5592 = vmatpush.bf16.msra.mxu0 %v5259
    %5593 = vmatpush.bf16.msra.mxu0 %v5251
    %5594 = vmatpush.bf16.msra.mxu0 %v5243
    %5595 = vmatpush.bf16.msra.mxu0 %v5235
    %5596 = vmatpush.bf16.msra.mxu0 %v5227
    %5597 = vmatmul.bf16.gmra.mxu0 %v4010
    %v5598 = vpop.f32.mrf.mxu0
    %v5599 = vadd.f32 %v5585, %v5598
    %v5600 = vpop.f32.mrf.mxu0
    %v5601 = vadd.f32 %v5587, %v5600
    %5602 = vdwg.mxu0
    %5603 = vmatpush.bf16.msra.mxu0 %v5092
    %5604 = vmatpush.bf16.msra.mxu0 %v5084
    %5605 = vmatpush.bf16.msra.mxu0 %v5076
    %5606 = vmatpush.bf16.msra.mxu0 %v5068
    %5607 = vmatpush.bf16.msra.mxu0 %v5060
    %5608 = vmatpush.bf16.msra.mxu0 %v5052
    %5609 = vmatpush.bf16.msra.mxu0 %v5044
    %5610 = vmatpush.bf16.msra.mxu0 %v5036
    %5611 = vmatmul.bf16.gmra.mxu0 %v4007
    %v5612 = vpop.f32.mrf.mxu0
    %v5613 = vadd.f32 0.0, %v5612
    %v5614 = vpop.f32.mrf.mxu0
    %v5615 = vadd.f32 0.0, %v5614
    %5616 = vdwg.mxu0
    %5617 = vmatpush.bf16.msra.mxu0 %v5156
    %5618 = vmatpush.bf16.msra.mxu0 %v5148
    %5619 = vmatpush.bf16.msra.mxu0 %v5140
    %5620 = vmatpush.bf16.msra.mxu0 %v5132
    %5621 = vmatpush.bf16.msra.mxu0 %v5124
    %5622 = vmatpush.bf16.msra.mxu0 %v5116
    %5623 = vmatpush.bf16.msra.mxu0 %v5108
    %5624 = vmatpush.bf16.msra.mxu0 %v5100
    %5625 = vmatmul.bf16.gmra.mxu0 %v4008
    %v5626 = vpop.f32.mrf.mxu0
    %v5627 = vadd.f32 %v5613, %v5626
    %v5628 = vpop.f32.mrf.mxu0
    %v5629 = vadd.f32 %v5615, %v5628
    %5630 = vdwg.mxu0
    %5631 = vmatpush.bf16.msra.mxu0 %v5220
    %5632 = vmatpush.bf16.msra.mxu0 %v5212
    %5633 = vmatpush.bf16.msra.mxu0 %v5204
    %5634 = vmatpush.bf16.msra.mxu0 %v5196
    %5635 = vmatpush.bf16.msra.mxu0 %v5188
    %5636 = vmatpush.bf16.msra.mxu0 %v5180
    %5637 = vmatpush.bf16.msra.mxu0 %v5172
    %5638 = vmatpush.bf16.msra.mxu0 %v5164
    %5639 = vmatmul.bf16.gmra.mxu0 %v4009
    %v5640 = vpop.f32.mrf.mxu0
    %v5641 = vadd.f32 %v5627, %v5640
    %v5642 = vpop.f32.mrf.mxu0
    %v5643 = vadd.f32 %v5629, %v5642
    %5644 = vdwg.mxu0
    %5645 = vmatpush.bf16.msra.mxu0 %v5284
    %5646 = vmatpush.bf16.msra.mxu0 %v5276
    %5647 = vmatpush.bf16.msra.mxu0 %v5268
    %5648 = vmatpush.bf16.msra.mxu0 %v5260
    %5649 = vmatpush.bf16.msra.mxu0 %v5252
    %5650 = vmatpush.bf16.msra.mxu0 %v5244
    %5651 = vmatpush.bf16.msra.mxu0 %v5236
    %5652 = vmatpush.bf16.msra.mxu0 %v5228
    %5653 = vmatmul.bf16.gmra.mxu0 %v4010
    %v5654 = vpop.f32.mrf.mxu0
    %v5655 = vadd.f32 %v5641, %v5654
    %v5656 = vpop.f32.mrf.mxu0
    %v5657 = vadd.f32 %v5643, %v5656
    %5658 = vdwg.mxu0
    %5659 = vmatpush.bf16.msra.mxu0 %v5093
    %5660 = vmatpush.bf16.msra.mxu0 %v5085
    %5661 = vmatpush.bf16.msra.mxu0 %v5077
    %5662 = vmatpush.bf16.msra.mxu0 %v5069
    %5663 = vmatpush.bf16.msra.mxu0 %v5061
    %5664 = vmatpush.bf16.msra.mxu0 %v5053
    %5665 = vmatpush.bf16.msra.mxu0 %v5045
    %5666 = vmatpush.bf16.msra.mxu0 %v5037
    %5667 = vmatmul.bf16.gmra.mxu0 %v4007
    %v5668 = vpop.f32.mrf.mxu0
    %v5669 = vadd.f32 0.0, %v5668
    %v5670 = vpop.f32.mrf.mxu0
    %v5671 = vadd.f32 0.0, %v5670
    %5672 = vdwg.mxu0
    %5673 = vmatpush.bf16.msra.mxu0 %v5157
    %5674 = vmatpush.bf16.msra.mxu0 %v5149
    %5675 = vmatpush.bf16.msra.mxu0 %v5141
    %5676 = vmatpush.bf16.msra.mxu0 %v5133
    %5677 = vmatpush.bf16.msra.mxu0 %v5125
    %5678 = vmatpush.bf16.msra.mxu0 %v5117
    %5679 = vmatpush.bf16.msra.mxu0 %v5109
    %5680 = vmatpush.bf16.msra.mxu0 %v5101
    %5681 = vmatmul.bf16.gmra.mxu0 %v4008
    %v5682 = vpop.f32.mrf.mxu0
    %v5683 = vadd.f32 %v5669, %v5682
    %v5684 = vpop.f32.mrf.mxu0
    %v5685 = vadd.f32 %v5671, %v5684
    %5686 = vdwg.mxu0
    %5687 = vmatpush.bf16.msra.mxu0 %v5221
    %5688 = vmatpush.bf16.msra.mxu0 %v5213
    %5689 = vmatpush.bf16.msra.mxu0 %v5205
    %5690 = vmatpush.bf16.msra.mxu0 %v5197
    %5691 = vmatpush.bf16.msra.mxu0 %v5189
    %5692 = vmatpush.bf16.msra.mxu0 %v5181
    %5693 = vmatpush.bf16.msra.mxu0 %v5173
    %5694 = vmatpush.bf16.msra.mxu0 %v5165
    %5695 = vmatmul.bf16.gmra.mxu0 %v4009
    %v5696 = vpop.f32.mrf.mxu0
    %v5697 = vadd.f32 %v5683, %v5696
    %v5698 = vpop.f32.mrf.mxu0
    %v5699 = vadd.f32 %v5685, %v5698
    %5700 = vdwg.mxu0
    %5701 = vmatpush.bf16.msra.mxu0 %v5285
    %5702 = vmatpush.bf16.msra.mxu0 %v5277
    %5703 = vmatpush.bf16.msra.mxu0 %v5269
    %5704 = vmatpush.bf16.msra.mxu0 %v5261
    %5705 = vmatpush.bf16.msra.mxu0 %v5253
    %5706 = vmatpush.bf16.msra.mxu0 %v5245
    %5707 = vmatpush.bf16.msra.mxu0 %v5237
    %5708 = vmatpush.bf16.msra.mxu0 %v5229
    %5709 = vmatmul.bf16.gmra.mxu0 %v4010
    %v5710 = vpop.f32.mrf.mxu0
    %v5711 = vadd.f32 %v5697, %v5710
    %v5712 = vpop.f32.mrf.mxu0
    %v5713 = vadd.f32 %v5699, %v5712
    %5714 = vdwg.mxu0
    %5715 = vmatpush.bf16.msra.mxu0 %v5094
    %5716 = vmatpush.bf16.msra.mxu0 %v5086
    %5717 = vmatpush.bf16.msra.mxu0 %v5078
    %5718 = vmatpush.bf16.msra.mxu0 %v5070
    %5719 = vmatpush.bf16.msra.mxu0 %v5062
    %5720 = vmatpush.bf16.msra.mxu0 %v5054
    %5721 = vmatpush.bf16.msra.mxu0 %v5046
    %5722 = vmatpush.bf16.msra.mxu0 %v5038
    %5723 = vmatmul.bf16.gmra.mxu0 %v4007
    %v5724 = vpop.f32.mrf.mxu0
    %v5725 = vadd.f32 0.0, %v5724
    %v5726 = vpop.f32.mrf.mxu0
    %v5727 = vadd.f32 0.0, %v5726
    %5728 = vdwg.mxu0
    %5729 = vmatpush.bf16.msra.mxu0 %v5158
    %5730 = vmatpush.bf16.msra.mxu0 %v5150
    %5731 = vmatpush.bf16.msra.mxu0 %v5142
    %5732 = vmatpush.bf16.msra.mxu0 %v5134
    %5733 = vmatpush.bf16.msra.mxu0 %v5126
    %5734 = vmatpush.bf16.msra.mxu0 %v5118
    %5735 = vmatpush.bf16.msra.mxu0 %v5110
    %5736 = vmatpush.bf16.msra.mxu0 %v5102
    %5737 = vmatmul.bf16.gmra.mxu0 %v4008
    %v5738 = vpop.f32.mrf.mxu0
    %v5739 = vadd.f32 %v5725, %v5738
    %v5740 = vpop.f32.mrf.mxu0
    %v5741 = vadd.f32 %v5727, %v5740
    %5742 = vdwg.mxu0
    %5743 = vmatpush.bf16.msra.mxu0 %v5222
    %5744 = vmatpush.bf16.msra.mxu0 %v5214
    %5745 = vmatpush.bf16.msra.mxu0 %v5206
    %5746 = vmatpush.bf16.msra.mxu0 %v5198
    %5747 = vmatpush.bf16.msra.mxu0 %v5190
    %5748 = vmatpush.bf16.msra.mxu0 %v5182
    %5749 = vmatpush.bf16.msra.mxu0 %v5174
    %5750 = vmatpush.bf16.msra.mxu0 %v5166
    %5751 = vmatmul.bf16.gmra.mxu0 %v4009
    %v5752 = vpop.f32.mrf.mxu0
    %v5753 = vadd.f32 %v5739, %v5752
    %v5754 = vpop.f32.mrf.mxu0
    %v5755 = vadd.f32 %v5741, %v5754
    %5756 = vdwg.mxu0
    %5757 = vmatpush.bf16.msra.mxu0 %v5286
    %5758 = vmatpush.bf16.msra.mxu0 %v5278
    %5759 = vmatpush.bf16.msra.mxu0 %v5270
    %5760 = vmatpush.bf16.msra.mxu0 %v5262
    %5761 = vmatpush.bf16.msra.mxu0 %v5254
    %5762 = vmatpush.bf16.msra.mxu0 %v5246
    %5763 = vmatpush.bf16.msra.mxu0 %v5238
    %5764 = vmatpush.bf16.msra.mxu0 %v5230
    %5765 = vmatmul.bf16.gmra.mxu0 %v4010
    %v5766 = vpop.f32.mrf.mxu0
    %v5767 = vadd.f32 %v5753, %v5766
    %v5768 = vpop.f32.mrf.mxu0
    %v5769 = vadd.f32 %v5755, %v5768
    %5770 = vdwg.mxu0
    %5771 = vmatpush.bf16.msra.mxu0 %v5095
    %5772 = vmatpush.bf16.msra.mxu0 %v5087
    %5773 = vmatpush.bf16.msra.mxu0 %v5079
    %5774 = vmatpush.bf16.msra.mxu0 %v5071
    %5775 = vmatpush.bf16.msra.mxu0 %v5063
    %5776 = vmatpush.bf16.msra.mxu0 %v5055
    %5777 = vmatpush.bf16.msra.mxu0 %v5047
    %5778 = vmatpush.bf16.msra.mxu0 %v5039
    %5779 = vmatmul.bf16.gmra.mxu0 %v4007
    %v5780 = vpop.f32.mrf.mxu0
    %v5781 = vadd.f32 0.0, %v5780
    %v5782 = vpop.f32.mrf.mxu0
    %v5783 = vadd.f32 0.0, %v5782
    %5784 = vdwg.mxu0
    %5785 = vmatpush.bf16.msra.mxu0 %v5159
    %5786 = vmatpush.bf16.msra.mxu0 %v5151
    %5787 = vmatpush.bf16.msra.mxu0 %v5143
    %5788 = vmatpush.bf16.msra.mxu0 %v5135
    %5789 = vmatpush.bf16.msra.mxu0 %v5127
    %5790 = vmatpush.bf16.msra.mxu0 %v5119
    %5791 = vmatpush.bf16.msra.mxu0 %v5111
    %5792 = vmatpush.bf16.msra.mxu0 %v5103
    %5793 = vmatmul.bf16.gmra.mxu0 %v4008
    %v5794 = vpop.f32.mrf.mxu0
    %v5795 = vadd.f32 %v5781, %v5794
    %v5796 = vpop.f32.mrf.mxu0
    %v5797 = vadd.f32 %v5783, %v5796
    %5798 = vdwg.mxu0
    %5799 = vmatpush.bf16.msra.mxu0 %v5223
    %5800 = vmatpush.bf16.msra.mxu0 %v5215
    %5801 = vmatpush.bf16.msra.mxu0 %v5207
    %5802 = vmatpush.bf16.msra.mxu0 %v5199
    %5803 = vmatpush.bf16.msra.mxu0 %v5191
    %5804 = vmatpush.bf16.msra.mxu0 %v5183
    %5805 = vmatpush.bf16.msra.mxu0 %v5175
    %5806 = vmatpush.bf16.msra.mxu0 %v5167
    %5807 = vmatmul.bf16.gmra.mxu0 %v4009
    %v5808 = vpop.f32.mrf.mxu0
    %v5809 = vadd.f32 %v5795, %v5808
    %v5810 = vpop.f32.mrf.mxu0
    %v5811 = vadd.f32 %v5797, %v5810
    %5812 = vdwg.mxu0
    %5813 = vmatpush.bf16.msra.mxu0 %v5287
    %5814 = vmatpush.bf16.msra.mxu0 %v5279
    %5815 = vmatpush.bf16.msra.mxu0 %v5271
    %5816 = vmatpush.bf16.msra.mxu0 %v5263
    %5817 = vmatpush.bf16.msra.mxu0 %v5255
    %5818 = vmatpush.bf16.msra.mxu0 %v5247
    %5819 = vmatpush.bf16.msra.mxu0 %v5239
    %5820 = vmatpush.bf16.msra.mxu0 %v5231
    %5821 = vmatmul.bf16.gmra.mxu0 %v4010
    %v5822 = vpop.f32.mrf.mxu0
    %v5823 = vadd.f32 %v5809, %v5822
    %v5824 = vpop.f32.mrf.mxu0
    %v5825 = vadd.f32 %v5811, %v5824
    %5826 = vdwg.mxu0
    %5827 = vmatpush.bf16.msra.mxu0 %v5096
    %5828 = vmatpush.bf16.msra.mxu0 %v5088
    %5829 = vmatpush.bf16.msra.mxu0 %v5080
    %5830 = vmatpush.bf16.msra.mxu0 %v5072
    %5831 = vmatpush.bf16.msra.mxu0 %v5064
    %5832 = vmatpush.bf16.msra.mxu0 %v5056
    %5833 = vmatpush.bf16.msra.mxu0 %v5048
    %5834 = vmatpush.bf16.msra.mxu0 %v5040
    %5835 = vmatmul.bf16.gmra.mxu0 %v4007
    %v5836 = vpop.f32.mrf.mxu0
    %v5837 = vadd.f32 0.0, %v5836
    %v5838 = vpop.f32.mrf.mxu0
    %v5839 = vadd.f32 0.0, %v5838
    %5840 = vdwg.mxu0
    %5841 = vmatpush.bf16.msra.mxu0 %v5160
    %5842 = vmatpush.bf16.msra.mxu0 %v5152
    %5843 = vmatpush.bf16.msra.mxu0 %v5144
    %5844 = vmatpush.bf16.msra.mxu0 %v5136
    %5845 = vmatpush.bf16.msra.mxu0 %v5128
    %5846 = vmatpush.bf16.msra.mxu0 %v5120
    %5847 = vmatpush.bf16.msra.mxu0 %v5112
    %5848 = vmatpush.bf16.msra.mxu0 %v5104
    %5849 = vmatmul.bf16.gmra.mxu0 %v4008
    %v5850 = vpop.f32.mrf.mxu0
    %v5851 = vadd.f32 %v5837, %v5850
    %v5852 = vpop.f32.mrf.mxu0
    %v5853 = vadd.f32 %v5839, %v5852
    %5854 = vdwg.mxu0
    %5855 = vmatpush.bf16.msra.mxu0 %v5224
    %5856 = vmatpush.bf16.msra.mxu0 %v5216
    %5857 = vmatpush.bf16.msra.mxu0 %v5208
    %5858 = vmatpush.bf16.msra.mxu0 %v5200
    %5859 = vmatpush.bf16.msra.mxu0 %v5192
    %5860 = vmatpush.bf16.msra.mxu0 %v5184
    %5861 = vmatpush.bf16.msra.mxu0 %v5176
    %5862 = vmatpush.bf16.msra.mxu0 %v5168
    %5863 = vmatmul.bf16.gmra.mxu0 %v4009
    %v5864 = vpop.f32.mrf.mxu0
    %v5865 = vadd.f32 %v5851, %v5864
    %v5866 = vpop.f32.mrf.mxu0
    %v5867 = vadd.f32 %v5853, %v5866
    %5868 = vdwg.mxu0
    %5869 = vmatpush.bf16.msra.mxu0 %v5288
    %5870 = vmatpush.bf16.msra.mxu0 %v5280
    %5871 = vmatpush.bf16.msra.mxu0 %v5272
    %5872 = vmatpush.bf16.msra.mxu0 %v5264
    %5873 = vmatpush.bf16.msra.mxu0 %v5256
    %5874 = vmatpush.bf16.msra.mxu0 %v5248
    %5875 = vmatpush.bf16.msra.mxu0 %v5240
    %5876 = vmatpush.bf16.msra.mxu0 %v5232
    %5877 = vmatmul.bf16.gmra.mxu0 %v4010
    %v5878 = vpop.f32.mrf.mxu0
    %v5879 = vadd.f32 %v5865, %v5878
    %v5880 = vpop.f32.mrf.mxu0
    %v5881 = vadd.f32 %v5867, %v5880
    %5882 = vdwg.mxu0
    %5883 = vmatpush.bf16.msra.mxu0 %v5097
    %5884 = vmatpush.bf16.msra.mxu0 %v5089
    %5885 = vmatpush.bf16.msra.mxu0 %v5081
    %5886 = vmatpush.bf16.msra.mxu0 %v5073
    %5887 = vmatpush.bf16.msra.mxu0 %v5065
    %5888 = vmatpush.bf16.msra.mxu0 %v5057
    %5889 = vmatpush.bf16.msra.mxu0 %v5049
    %5890 = vmatpush.bf16.msra.mxu0 %v5041
    %5891 = vmatmul.bf16.gmra.mxu0 %v4007
    %v5892 = vpop.f32.mrf.mxu0
    %v5893 = vadd.f32 0.0, %v5892
    %v5894 = vpop.f32.mrf.mxu0
    %v5895 = vadd.f32 0.0, %v5894
    %5896 = vdwg.mxu0
    %5897 = vmatpush.bf16.msra.mxu0 %v5161
    %5898 = vmatpush.bf16.msra.mxu0 %v5153
    %5899 = vmatpush.bf16.msra.mxu0 %v5145
    %5900 = vmatpush.bf16.msra.mxu0 %v5137
    %5901 = vmatpush.bf16.msra.mxu0 %v5129
    %5902 = vmatpush.bf16.msra.mxu0 %v5121
    %5903 = vmatpush.bf16.msra.mxu0 %v5113
    %5904 = vmatpush.bf16.msra.mxu0 %v5105
    %5905 = vmatmul.bf16.gmra.mxu0 %v4008
    %v5906 = vpop.f32.mrf.mxu0
    %v5907 = vadd.f32 %v5893, %v5906
    %v5908 = vpop.f32.mrf.mxu0
    %v5909 = vadd.f32 %v5895, %v5908
    %5910 = vdwg.mxu0
    %5911 = vmatpush.bf16.msra.mxu0 %v5225
    %5912 = vmatpush.bf16.msra.mxu0 %v5217
    %5913 = vmatpush.bf16.msra.mxu0 %v5209
    %5914 = vmatpush.bf16.msra.mxu0 %v5201
    %5915 = vmatpush.bf16.msra.mxu0 %v5193
    %5916 = vmatpush.bf16.msra.mxu0 %v5185
    %5917 = vmatpush.bf16.msra.mxu0 %v5177
    %5918 = vmatpush.bf16.msra.mxu0 %v5169
    %5919 = vmatmul.bf16.gmra.mxu0 %v4009
    %v5920 = vpop.f32.mrf.mxu0
    %v5921 = vadd.f32 %v5907, %v5920
    %v5922 = vpop.f32.mrf.mxu0
    %v5923 = vadd.f32 %v5909, %v5922
    %5924 = vdwg.mxu0
    %5925 = vmatpush.bf16.msra.mxu0 %v5289
    %5926 = vmatpush.bf16.msra.mxu0 %v5281
    %5927 = vmatpush.bf16.msra.mxu0 %v5273
    %5928 = vmatpush.bf16.msra.mxu0 %v5265
    %5929 = vmatpush.bf16.msra.mxu0 %v5257
    %5930 = vmatpush.bf16.msra.mxu0 %v5249
    %5931 = vmatpush.bf16.msra.mxu0 %v5241
    %5932 = vmatpush.bf16.msra.mxu0 %v5233
    %5933 = vmatmul.bf16.gmra.mxu0 %v4010
    %v5934 = vpop.f32.mrf.mxu0
    %v5935 = vadd.f32 %v5921, %v5934
    %v5936 = vpop.f32.mrf.mxu0
    %v5937 = vadd.f32 %v5923, %v5936
    %5938 = vdwg.mxu0
    %5939 = vmatpush.bf16.msra.mxu0 %v5098
    %5940 = vmatpush.bf16.msra.mxu0 %v5090
    %5941 = vmatpush.bf16.msra.mxu0 %v5082
    %5942 = vmatpush.bf16.msra.mxu0 %v5074
    %5943 = vmatpush.bf16.msra.mxu0 %v5066
    %5944 = vmatpush.bf16.msra.mxu0 %v5058
    %5945 = vmatpush.bf16.msra.mxu0 %v5050
    %5946 = vmatpush.bf16.msra.mxu0 %v5042
    %5947 = vmatmul.bf16.gmra.mxu0 %v4007
    %v5948 = vpop.f32.mrf.mxu0
    %v5949 = vadd.f32 0.0, %v5948
    %v5950 = vpop.f32.mrf.mxu0
    %v5951 = vadd.f32 0.0, %v5950
    %5952 = vdwg.mxu0
    %5953 = vmatpush.bf16.msra.mxu0 %v5162
    %5954 = vmatpush.bf16.msra.mxu0 %v5154
    %5955 = vmatpush.bf16.msra.mxu0 %v5146
    %5956 = vmatpush.bf16.msra.mxu0 %v5138
    %5957 = vmatpush.bf16.msra.mxu0 %v5130
    %5958 = vmatpush.bf16.msra.mxu0 %v5122
    %5959 = vmatpush.bf16.msra.mxu0 %v5114
    %5960 = vmatpush.bf16.msra.mxu0 %v5106
    %5961 = vmatmul.bf16.gmra.mxu0 %v4008
    %v5962 = vpop.f32.mrf.mxu0
    %v5963 = vadd.f32 %v5949, %v5962
    %v5964 = vpop.f32.mrf.mxu0
    %v5965 = vadd.f32 %v5951, %v5964
    %5966 = vdwg.mxu0
    %5967 = vmatpush.bf16.msra.mxu0 %v5226
    %5968 = vmatpush.bf16.msra.mxu0 %v5218
    %5969 = vmatpush.bf16.msra.mxu0 %v5210
    %5970 = vmatpush.bf16.msra.mxu0 %v5202
    %5971 = vmatpush.bf16.msra.mxu0 %v5194
    %5972 = vmatpush.bf16.msra.mxu0 %v5186
    %5973 = vmatpush.bf16.msra.mxu0 %v5178
    %5974 = vmatpush.bf16.msra.mxu0 %v5170
    %5975 = vmatmul.bf16.gmra.mxu0 %v4009
    %v5976 = vpop.f32.mrf.mxu0
    %v5977 = vadd.f32 %v5963, %v5976
    %v5978 = vpop.f32.mrf.mxu0
    %v5979 = vadd.f32 %v5965, %v5978
    %5980 = vdwg.mxu0
    %5981 = vmatpush.bf16.msra.mxu0 %v5290
    %5982 = vmatpush.bf16.msra.mxu0 %v5282
    %5983 = vmatpush.bf16.msra.mxu0 %v5274
    %5984 = vmatpush.bf16.msra.mxu0 %v5266
    %5985 = vmatpush.bf16.msra.mxu0 %v5258
    %5986 = vmatpush.bf16.msra.mxu0 %v5250
    %5987 = vmatpush.bf16.msra.mxu0 %v5242
    %5988 = vmatpush.bf16.msra.mxu0 %v5234
    %5989 = vmatmul.bf16.gmra.mxu0 %v4010
    %v5990 = vpop.f32.mrf.mxu0
    %v5991 = vadd.f32 %v5977, %v5990
    %v5992 = vpop.f32.mrf.mxu0
    %v5993 = vadd.f32 %v5979, %v5992
    %5994 = vdwg.mxu0
    %v5995 = vadd.f32 %v5599, %v5601
    %v5996 = vrot.slane %v5995, 4
    %v5997 = vadd.f32 %v5995, %v5996
    %v5998 = vrot.slane %v5997, 2
    %v5999 = vadd.f32 %v5997, %v5998
    %v6000 = vrot.slane %v5999, 1
    %v6001 = vadd.f32 %v5999, %v6000
    %v6002 = vadd.f32 %v5655, %v5657
    %v6003 = vrot.slane %v6002, 4
    %v6004 = vadd.f32 %v6002, %v6003
    %v6005 = vrot.slane %v6004, 2
    %v6006 = vadd.f32 %v6004, %v6005
    %v6007 = vrot.slane %v6006, 1
    %v6008 = vadd.f32 %v6006, %v6007
    %v6009 = vadd.f32 %v5711, %v5713
    %v6010 = vrot.slane %v6009, 4
    %v6011 = vadd.f32 %v6009, %v6010
    %v6012 = vrot.slane %v6011, 2
    %v6013 = vadd.f32 %v6011, %v6012
    %v6014 = vrot.slane %v6013, 1
    %v6015 = vadd.f32 %v6013, %v6014
    %v6016 = vadd.f32 %v5767, %v5769
    %v6017 = vrot.slane %v6016, 4
    %v6018 = vadd.f32 %v6016, %v6017
    %v6019 = vrot.slane %v6018, 2
    %v6020 = vadd.f32 %v6018, %v6019
    %v6021 = vrot.slane %v6020, 1
    %v6022 = vadd.f32 %v6020, %v6021
    %v6023 = vadd.f32 %v5823, %v5825
    %v6024 = vrot.slane %v6023, 4
    %v6025 = vadd.f32 %v6023, %v6024
    %v6026 = vrot.slane %v6025, 2
    %v6027 = vadd.f32 %v6025, %v6026
    %v6028 = vrot.slane %v6027, 1
    %v6029 = vadd.f32 %v6027, %v6028
    %v6030 = vadd.f32 %v5879, %v5881
    %v6031 = vrot.slane %v6030, 4
    %v6032 = vadd.f32 %v6030, %v6031
    %v6033 = vrot.slane %v6032, 2
    %v6034 = vadd.f32 %v6032, %v6033
    %v6035 = vrot.slane %v6034, 1
    %v6036 = vadd.f32 %v6034, %v6035
    %v6037 = vadd.f32 %v5935, %v5937
    %v6038 = vrot.slane %v6037, 4
    %v6039 = vadd.f32 %v6037, %v6038
    %v6040 = vrot.slane %v6039, 2
    %v6041 = vadd.f32 %v6039, %v6040
    %v6042 = vrot.slane %v6041, 1
    %v6043 = vadd.f32 %v6041, %v6042
    %v6044 = vadd.f32 %v5991, %v5993
    %v6045 = vrot.slane %v6044, 4
    %v6046 = vadd.f32 %v6044, %v6045
    %v6047 = vrot.slane %v6046, 2
    %v6048 = vadd.f32 %v6046, %v6047
    %v6049 = vrot.slane %v6048, 1
    %v6050 = vadd.f32 %v6048, %v6049
    %v6051 = vmul.f32 %v6001, %v3816
    %v6052 = vmul.f32 %v6008, %v3816
    %v6053 = vmul.f32 %v6015, %v3816
    %v6054 = vmul.f32 %v6022, %v3816
    %v6055 = vmul.f32 %v6029, %v3816
    %v6056 = vmul.f32 %v6036, %v3816
    %v6057 = vmul.f32 %v6043, %v3816
    %v6058 = vmul.f32 %v6050, %v3816
    %v6059 = vmul.f32 %v5599, %v5599
    %v6060 = vmul.f32 %v5655, %v5655
    %v6061 = vmul.f32 %v5711, %v5711
    %v6062 = vmul.f32 %v5767, %v5767
    %v6063 = vmul.f32 %v5823, %v5823
    %v6064 = vmul.f32 %v5879, %v5879
    %v6065 = vmul.f32 %v5935, %v5935
    %v6066 = vmul.f32 %v5991, %v5991
    %v6067 = vmul.f32 %v5601, %v5601
    %v6068 = vmul.f32 %v5657, %v5657
    %v6069 = vmul.f32 %v5713, %v5713
    %v6070 = vmul.f32 %v5769, %v5769
    %v6071 = vmul.f32 %v5825, %v5825
    %v6072 = vmul.f32 %v5881, %v5881
    %v6073 = vmul.f32 %v5937, %v5937
    %v6074 = vmul.f32 %v5993, %v5993
    %v6075 = vadd.f32 %v6059, %v6067
    %v6076 = vrot.slane %v6075, 4
    %v6077 = vadd.f32 %v6075, %v6076
    %v6078 = vrot.slane %v6077, 2
    %v6079 = vadd.f32 %v6077, %v6078
    %v6080 = vrot.slane %v6079, 1
    %v6081 = vadd.f32 %v6079, %v6080
    %v6082 = vadd.f32 %v6060, %v6068
    %v6083 = vrot.slane %v6082, 4
    %v6084 = vadd.f32 %v6082, %v6083
    %v6085 = vrot.slane %v6084, 2
    %v6086 = vadd.f32 %v6084, %v6085
    %v6087 = vrot.slane %v6086, 1
    %v6088 = vadd.f32 %v6086, %v6087
    %v6089 = vadd.f32 %v6061, %v6069
    %v6090 = vrot.slane %v6089, 4
    %v6091 = vadd.f32 %v6089, %v6090
    %v6092 = vrot.slane %v6091, 2
    %v6093 = vadd.f32 %v6091, %v6092
    %v6094 = vrot.slane %v6093, 1
    %v6095 = vadd.f32 %v6093, %v6094
    %v6096 = vadd.f32 %v6062, %v6070
    %v6097 = vrot.slane %v6096, 4
    %v6098 = vadd.f32 %v6096, %v6097
    %v6099 = vrot.slane %v6098, 2
    %v6100 = vadd.f32 %v6098, %v6099
    %v6101 = vrot.slane %v6100, 1
    %v6102 = vadd.f32 %v6100, %v6101
    %v6103 = vadd.f32 %v6063, %v6071
    %v6104 = vrot.slane %v6103, 4
    %v6105 = vadd.f32 %v6103, %v6104
    %v6106 = vrot.slane %v6105, 2
    %v6107 = vadd.f32 %v6105, %v6106
    %v6108 = vrot.slane %v6107, 1
    %v6109 = vadd.f32 %v6107, %v6108
    %v6110 = vadd.f32 %v6064, %v6072
    %v6111 = vrot.slane %v6110, 4
    %v6112 = vadd.f32 %v6110, %v6111
    %v6113 = vrot.slane %v6112, 2
    %v6114 = vadd.f32 %v6112, %v6113
    %v6115 = vrot.slane %v6114, 1
    %v6116 = vadd.f32 %v6114, %v6115
    %v6117 = vadd.f32 %v6065, %v6073
    %v6118 = vrot.slane %v6117, 4
    %v6119 = vadd.f32 %v6117, %v6118
    %v6120 = vrot.slane %v6119, 2
    %v6121 = vadd.f32 %v6119, %v6120
    %v6122 = vrot.slane %v6121, 1
    %v6123 = vadd.f32 %v6121, %v6122
    %v6124 = vadd.f32 %v6066, %v6074
    %v6125 = vrot.slane %v6124, 4
    %v6126 = vadd.f32 %v6124, %v6125
    %v6127 = vrot.slane %v6126, 2
    %v6128 = vadd.f32 %v6126, %v6127
    %v6129 = vrot.slane %v6128, 1
    %v6130 = vadd.f32 %v6128, %v6129
    %v6131 = vmul.f32 %v6081, %v3816
    %v6132 = vmul.f32 %v6088, %v3816
    %v6133 = vmul.f32 %v6095, %v3816
    %v6134 = vmul.f32 %v6102, %v3816
    %v6135 = vmul.f32 %v6109, %v3816
    %v6136 = vmul.f32 %v6116, %v3816
    %v6137 = vmul.f32 %v6123, %v3816
    %v6138 = vmul.f32 %v6130, %v3816
    %v6139 = vmul.f32 %v6051, %v6051
    %v6140 = vmul.f32 %v6052, %v6052
    %v6141 = vmul.f32 %v6053, %v6053
    %v6142 = vmul.f32 %v6054, %v6054
    %v6143 = vmul.f32 %v6055, %v6055
    %v6144 = vmul.f32 %v6056, %v6056
    %v6145 = vmul.f32 %v6057, %v6057
    %v6146 = vmul.f32 %v6058, %v6058
    %v6147 = vsub.f32 %v6131, %v6139
    %v6148 = vsub.f32 %v6132, %v6140
    %v6149 = vsub.f32 %v6133, %v6141
    %v6150 = vsub.f32 %v6134, %v6142
    %v6151 = vsub.f32 %v6135, %v6143
    %v6152 = vsub.f32 %v6136, %v6144
    %v6153 = vsub.f32 %v6137, %v6145
    %v6154 = vsub.f32 %v6138, %v6146
    %v6155 = vmax.f32 %v6147, 0.0
    %v6156 = vmax.f32 %v6148, 0.0
    %v6157 = vmax.f32 %v6149, 0.0
    %v6158 = vmax.f32 %v6150, 0.0
    %v6159 = vmax.f32 %v6151, 0.0
    %v6160 = vmax.f32 %v6152, 0.0
    %v6161 = vmax.f32 %v6153, 0.0
    %v6162 = vmax.f32 %v6154, 0.0
    %v6163 = vld [vmem:[%s10] sm:$0xff]
    %v6164 = vld [vmem:[#allocation19] sm:$0xff]
    %v6165 = vmul.f32 %v6163, %v6164
    %v6166 = vmul.f32 %v6163, %v6163
    %v6168 = vperm.slane %v6166, 0
    %v6169 = vperm.slane %v6166, 1
    %v6170 = vperm.slane %v6166, 2
    %v6171 = vperm.slane %v6166, 3
    %v6172 = vperm.slane %v6166, 4
    %v6173 = vperm.slane %v6166, 5
    %v6174 = vperm.slane %v6166, 6
    %v6175 = vperm.slane %v6166, 7
    %v6184 = vmul.f32 %v6155, %v6168
    %v6185 = vmul.f32 %v6156, %v6169
    %v6186 = vmul.f32 %v6157, %v6170
    %v6187 = vmul.f32 %v6158, %v6171
    %v6188 = vmul.f32 %v6159, %v6172
    %v6189 = vmul.f32 %v6160, %v6173
    %v6190 = vmul.f32 %v6161, %v6174
    %v6191 = vmul.f32 %v6162, %v6175
    %v6192 = vadd.f32 %v6184, 1e-05
    %v6193 = vadd.f32 %v6185, 1e-05
    %v6194 = vadd.f32 %v6186, 1e-05
    %v6195 = vadd.f32 %v6187, 1e-05
    %v6196 = vadd.f32 %v6188, 1e-05
    %v6197 = vadd.f32 %v6189, 1e-05
    %v6198 = vadd.f32 %v6190, 1e-05
    %v6199 = vadd.f32 %v6191, 1e-05
    %v6200 = vrsqrt.pop %v6192
    %v6201 = vmul.f32 %v6200, %v6192
    %v6202 = vmul.f32 %v6201, %v6200
    %v6203 = vmul.f32 0.5, %v6202
    %v6204 = vsub.f32 1.5, %v6203
    %v6205 = vmul.f32 %v6200, %v6204
    %vm6206 = vweird.f32 %v6192
    %vm6207 = vweird.f32 %v6200
    %vm6208 = vmor %vm6206, %vm6207
    %v6209 = vsel %vm6208, %v6200, %v6205
    %v6210 = vrsqrt.pop %v6193
    %v6211 = vmul.f32 %v6210, %v6193
    %v6212 = vmul.f32 %v6211, %v6210
    %v6213 = vmul.f32 0.5, %v6212
    %v6214 = vsub.f32 1.5, %v6213
    %v6215 = vmul.f32 %v6210, %v6214
    %vm6216 = vweird.f32 %v6193
    %vm6217 = vweird.f32 %v6210
    %vm6218 = vmor %vm6216, %vm6217
    %v6219 = vsel %vm6218, %v6210, %v6215
    %v6220 = vrsqrt.pop %v6194
    %v6221 = vmul.f32 %v6220, %v6194
    %v6222 = vmul.f32 %v6221, %v6220
    %v6223 = vmul.f32 0.5, %v6222
    %v6224 = vsub.f32 1.5, %v6223
    %v6225 = vmul.f32 %v6220, %v6224
    %vm6226 = vweird.f32 %v6194
    %vm6227 = vweird.f32 %v6220
    %vm6228 = vmor %vm6226, %vm6227
    %v6229 = vsel %vm6228, %v6220, %v6225
    %v6230 = vrsqrt.pop %v6195
    %v6231 = vmul.f32 %v6230, %v6195
    %v6232 = vmul.f32 %v6231, %v6230
    %v6233 = vmul.f32 0.5, %v6232
    %v6234 = vsub.f32 1.5, %v6233
    %v6235 = vmul.f32 %v6230, %v6234
    %vm6236 = vweird.f32 %v6195
    %vm6237 = vweird.f32 %v6230
    %vm6238 = vmor %vm6236, %vm6237
    %v6239 = vsel %vm6238, %v6230, %v6235
    %v6240 = vrsqrt.pop %v6196
    %v6241 = vmul.f32 %v6240, %v6196
    %v6242 = vmul.f32 %v6241, %v6240
    %v6243 = vmul.f32 0.5, %v6242
    %v6244 = vsub.f32 1.5, %v6243
    %v6245 = vmul.f32 %v6240, %v6244
    %vm6246 = vweird.f32 %v6196
    %vm6247 = vweird.f32 %v6240
    %vm6248 = vmor %vm6246, %vm6247
    %v6249 = vsel %vm6248, %v6240, %v6245
    %v6250 = vrsqrt.pop %v6197
    %v6251 = vmul.f32 %v6250, %v6197
    %v6252 = vmul.f32 %v6251, %v6250
    %v6253 = vmul.f32 0.5, %v6252
    %v6254 = vsub.f32 1.5, %v6253
    %v6255 = vmul.f32 %v6250, %v6254
    %vm6256 = vweird.f32 %v6197
    %vm6257 = vweird.f32 %v6250
    %vm6258 = vmor %vm6256, %vm6257
    %v6259 = vsel %vm6258, %v6250, %v6255
    %v6260 = vrsqrt.pop %v6198
    %v6261 = vmul.f32 %v6260, %v6198
    %v6262 = vmul.f32 %v6261, %v6260
    %v6263 = vmul.f32 0.5, %v6262
    %v6264 = vsub.f32 1.5, %v6263
    %v6265 = vmul.f32 %v6260, %v6264
    %vm6266 = vweird.f32 %v6198
    %vm6267 = vweird.f32 %v6260
    %vm6268 = vmor %vm6266, %vm6267
    %v6269 = vsel %vm6268, %v6260, %v6265
    %v6270 = vrsqrt.pop %v6199
    %v6271 = vmul.f32 %v6270, %v6199
    %v6272 = vmul.f32 %v6271, %v6270
    %v6273 = vmul.f32 0.5, %v6272
    %v6274 = vsub.f32 1.5, %v6273
    %v6275 = vmul.f32 %v6270, %v6274
    %vm6276 = vweird.f32 %v6199
    %vm6277 = vweird.f32 %v6270
    %vm6278 = vmor %vm6276, %vm6277
    %v6279 = vsel %vm6278, %v6270, %v6275
    %v6288 = vrot.slane %v6219, 7
    %v6289 = vrot.slane %v6229, 6
    %v6290 = vrot.slane %v6239, 5
    %v6291 = vrot.slane %v6249, 4
    %v6292 = vrot.slane %v6259, 3
    %v6293 = vrot.slane %v6269, 2
    %v6294 = vrot.slane %v6279, 1
    %v6295 = vsel %vm3941, %v6209, %v6288
    %v6296 = vsel %vm3943, %v6289, %v6290
    %v6297 = vsel %vm3235, %v6295, %v6296
    %vm6298 = vcmask 1044484
    %v6299 = vsel %vm6298, %v6291, %v6292
    %vm6300 = vcmask 1046534
    %v6301 = vsel %vm6300, %v6293, %v6294
    %vm6302 = vcmask 1045508
    %v6303 = vsel %vm6302, %v6299, %v6301
    %vm6304 = vcmask 1043456
    %v6305 = vsel %vm6304, %v6297, %v6303
    %v6307 = vmul.f32 %v6165, %v6305
    %v6308 = vld [vmem:[#allocation20] sm:$0xff]
    %v6310 = vperm.slane %v6307, 0
    %v6311 = vperm.slane %v6307, 1
    %v6312 = vperm.slane %v6307, 2
    %v6313 = vperm.slane %v6307, 3
    %v6314 = vperm.slane %v6307, 4
    %v6315 = vperm.slane %v6307, 5
    %v6316 = vperm.slane %v6307, 6
    %v6317 = vperm.slane %v6307, 7
    %v6326 = vmul.f32 %v6051, %v6310
    %v6327 = vmul.f32 %v6052, %v6311
    %v6328 = vmul.f32 %v6053, %v6312
    %v6329 = vmul.f32 %v6054, %v6313
    %v6330 = vmul.f32 %v6055, %v6314
    %v6331 = vmul.f32 %v6056, %v6315
    %v6332 = vmul.f32 %v6057, %v6316
    %v6333 = vmul.f32 %v6058, %v6317
    %v6342 = vrot.slane %v6327, 7
    %v6343 = vrot.slane %v6328, 6
    %v6344 = vrot.slane %v6329, 5
    %v6345 = vrot.slane %v6330, 4
    %v6346 = vrot.slane %v6331, 3
    %v6347 = vrot.slane %v6332, 2
    %v6348 = vrot.slane %v6333, 1
    %v6349 = vsel %vm3941, %v6326, %v6342
    %v6350 = vsel %vm3943, %v6343, %v6344
    %v6351 = vsel %vm3235, %v6349, %v6350
    %v6352 = vsel %vm6298, %v6345, %v6346
    %v6353 = vsel %vm6300, %v6347, %v6348
    %v6354 = vsel %vm6302, %v6352, %v6353
    %v6355 = vsel %vm6304, %v6351, %v6354
    %v6357 = vsub.f32 %v6308, %v6355
    %v6358 = vmul.f32 %v5599, %v6310
    %v6359 = vmul.f32 %v5655, %v6311
    %v6360 = vmul.f32 %v5711, %v6312
    %v6361 = vmul.f32 %v5767, %v6313
    %v6362 = vmul.f32 %v5823, %v6314
    %v6363 = vmul.f32 %v5879, %v6315
    %v6364 = vmul.f32 %v5935, %v6316
    %v6365 = vmul.f32 %v5991, %v6317
    %v6366 = vmul.f32 %v5601, %v6310
    %v6367 = vmul.f32 %v5657, %v6311
    %v6368 = vmul.f32 %v5713, %v6312
    %v6369 = vmul.f32 %v5769, %v6313
    %v6370 = vmul.f32 %v5825, %v6314
    %v6371 = vmul.f32 %v5881, %v6315
    %v6372 = vmul.f32 %v5937, %v6316
    %v6373 = vmul.f32 %v5993, %v6317
    %v6375 = vperm.slane %v6357, 0
    %v6376 = vperm.slane %v6357, 1
    %v6377 = vperm.slane %v6357, 2
    %v6378 = vperm.slane %v6357, 3
    %v6379 = vperm.slane %v6357, 4
    %v6380 = vperm.slane %v6357, 5
    %v6381 = vperm.slane %v6357, 6
    %v6382 = vperm.slane %v6357, 7
    %v6391 = vadd.f32 %v6358, %v6375
    %v6392 = vadd.f32 %v6359, %v6376
    %v6393 = vadd.f32 %v6360, %v6377
    %v6394 = vadd.f32 %v6361, %v6378
    %v6395 = vadd.f32 %v6362, %v6379
    %v6396 = vadd.f32 %v6363, %v6380
    %v6397 = vadd.f32 %v6364, %v6381
    %v6398 = vadd.f32 %v6365, %v6382
    %v6399 = vadd.f32 %v6366, %v6375
    %v6400 = vadd.f32 %v6367, %v6376
    %v6401 = vadd.f32 %v6368, %v6377
    %v6402 = vadd.f32 %v6369, %v6378
    %v6403 = vadd.f32 %v6370, %v6379
    %v6404 = vadd.f32 %v6371, %v6380
    %v6405 = vadd.f32 %v6372, %v6381
    %v6406 = vadd.f32 %v6373, %v6382
    %v6407 = vmax.f32 %v6391, 0.0
    %v6408 = vmax.f32 %v6392, 0.0
    %v6409 = vmax.f32 %v6393, 0.0
    %v6410 = vmax.f32 %v6394, 0.0
    %v6411 = vmax.f32 %v6395, 0.0
    %v6412 = vmax.f32 %v6396, 0.0
    %v6413 = vmax.f32 %v6397, 0.0
    %v6414 = vmax.f32 %v6398, 0.0
    %v6415 = vmax.f32 %v6399, 0.0
    %v6416 = vmax.f32 %v6400, 0.0
    %v6417 = vmax.f32 %v6401, 0.0
    %v6418 = vmax.f32 %v6402, 0.0
    %v6419 = vmax.f32 %v6403, 0.0
    %v6420 = vmax.f32 %v6404, 0.0
    %v6421 = vmax.f32 %v6405, 0.0
    %v6422 = vmax.f32 %v6406, 0.0
    %v6423 = vpack.c.bf16 %v6415, %v6407
    %v6424 = vpack.c.bf16 %v6416, %v6408
    %v6425 = vpack.c.bf16 %v6417, %v6409
    %v6426 = vpack.c.bf16 %v6418, %v6410
    %v6427 = vpack.c.bf16 %v6419, %v6411
    %v6428 = vpack.c.bf16 %v6420, %v6412
    %v6429 = vpack.c.bf16 %v6421, %v6413
    %v6430 = vpack.c.bf16 %v6422, %v6414
    %v6431 = vld [vmem:[#allocation4] sm:$0xff]
    %v6432 = vld [vmem:[#allocation4 + $0x8] sm:$0xff]
    %v6433 = vld [vmem:[#allocation4 + $0x10] sm:$0xff]
    %v6434 = vld [vmem:[#allocation4 + $0x18] sm:$0xff]
    %v6435 = vld [vmem:[#allocation4 + $0x20] sm:$0xff]
    %v6436 = vld [vmem:[#allocation4 + $0x28] sm:$0xff]
    %v6437 = vld [vmem:[#allocation4 + $0x30] sm:$0xff]
    %v6438 = vld [vmem:[#allocation4 + $0x38] sm:$0xff]
    %v6439 = vld [vmem:[#allocation4 + $0x40] sm:$0xff]
    %v6440 = vld [vmem:[#allocation4 + $0x48] sm:$0xff]
    %v6441 = vld [vmem:[#allocation4 + $0x50] sm:$0xff]
    %v6442 = vld [vmem:[#allocation4 + $0x58] sm:$0xff]
    %v6443 = vld [vmem:[#allocation4 + $0x60] sm:$0xff]
    %v6444 = vld [vmem:[#allocation4 + $0x68] sm:$0xff]
    %v6445 = vld [vmem:[#allocation4 + $0x70] sm:$0xff]
    %v6446 = vld [vmem:[#allocation4 + $0x78] sm:$0xff]
    %v6447 = vld [vmem:[#allocation4 + $0x80] sm:$0xff]
    %v6448 = vld [vmem:[#allocation4 + $0x88] sm:$0xff]
    %v6449 = vld [vmem:[#allocation4 + $0x90] sm:$0xff]
    %v6450 = vld [vmem:[#allocation4 + $0x98] sm:$0xff]
    %v6451 = vld [vmem:[#allocation4 + $0xa0] sm:$0xff]
    %v6452 = vld [vmem:[#allocation4 + $0xa8] sm:$0xff]
    %v6453 = vld [vmem:[#allocation4 + $0xb0] sm:$0xff]
    %v6454 = vld [vmem:[#allocation4 + $0xb8] sm:$0xff]
    %v6455 = vld [vmem:[#allocation4 + $0xc0] sm:$0xff]
    %v6456 = vld [vmem:[#allocation4 + $0xc8] sm:$0xff]
    %v6457 = vld [vmem:[#allocation4 + $0xd0] sm:$0xff]
    %v6458 = vld [vmem:[#allocation4 + $0xd8] sm:$0xff]
    %v6459 = vld [vmem:[#allocation4 + $0xe0] sm:$0xff]
    %v6460 = vld [vmem:[#allocation4 + $0xe8] sm:$0xff]
    %v6461 = vld [vmem:[#allocation4 + $0xf0] sm:$0xff]
    %v6462 = vld [vmem:[#allocation4 + $0xf8] sm:$0xff]
    %v6463 = vld [vmem:[#allocation4 + $0x100] sm:$0xff]
    %v6464 = vld [vmem:[#allocation4 + $0x108] sm:$0xff]
    %v6465 = vld [vmem:[#allocation4 + $0x110] sm:$0xff]
    %v6466 = vld [vmem:[#allocation4 + $0x118] sm:$0xff]
    %v6467 = vld [vmem:[#allocation4 + $0x120] sm:$0xff]
    %v6468 = vld [vmem:[#allocation4 + $0x128] sm:$0xff]
    %v6469 = vld [vmem:[#allocation4 + $0x130] sm:$0xff]
    %v6470 = vld [vmem:[#allocation4 + $0x138] sm:$0xff]
    %v6471 = vld [vmem:[#allocation4 + $0x140] sm:$0xff]
    %v6472 = vld [vmem:[#allocation4 + $0x148] sm:$0xff]
    %v6473 = vld [vmem:[#allocation4 + $0x150] sm:$0xff]
    %v6474 = vld [vmem:[#allocation4 + $0x158] sm:$0xff]
    %v6475 = vld [vmem:[#allocation4 + $0x160] sm:$0xff]
    %v6476 = vld [vmem:[#allocation4 + $0x168] sm:$0xff]
    %v6477 = vld [vmem:[#allocation4 + $0x170] sm:$0xff]
    %v6478 = vld [vmem:[#allocation4 + $0x178] sm:$0xff]
    %v6479 = vld [vmem:[#allocation4 + $0x180] sm:$0xff]
    %v6480 = vld [vmem:[#allocation4 + $0x188] sm:$0xff]
    %v6481 = vld [vmem:[#allocation4 + $0x190] sm:$0xff]
    %v6482 = vld [vmem:[#allocation4 + $0x198] sm:$0xff]
    %v6483 = vld [vmem:[#allocation4 + $0x1a0] sm:$0xff]
    %v6484 = vld [vmem:[#allocation4 + $0x1a8] sm:$0xff]
    %v6485 = vld [vmem:[#allocation4 + $0x1b0] sm:$0xff]
    %v6486 = vld [vmem:[#allocation4 + $0x1b8] sm:$0xff]
    %v6487 = vld [vmem:[#allocation4 + $0x1c0] sm:$0xff]
    %v6488 = vld [vmem:[#allocation4 + $0x1c8] sm:$0xff]
    %v6489 = vld [vmem:[#allocation4 + $0x1d0] sm:$0xff]
    %v6490 = vld [vmem:[#allocation4 + $0x1d8] sm:$0xff]
    %v6491 = vld [vmem:[#allocation4 + $0x1e0] sm:$0xff]
    %v6492 = vld [vmem:[#allocation4 + $0x1e8] sm:$0xff]
    %v6493 = vld [vmem:[#allocation4 + $0x1f0] sm:$0xff]
    %v6494 = vld [vmem:[#allocation4 + $0x1f8] sm:$0xff]
    %v6495 = vld [vmem:[#allocation4 + $0x200] sm:$0xff]
    %v6496 = vld [vmem:[#allocation4 + $0x208] sm:$0xff]
    %v6497 = vld [vmem:[#allocation4 + $0x210] sm:$0xff]
    %v6498 = vld [vmem:[#allocation4 + $0x218] sm:$0xff]
    %v6499 = vld [vmem:[#allocation4 + $0x220] sm:$0xff]
    %v6500 = vld [vmem:[#allocation4 + $0x228] sm:$0xff]
    %v6501 = vld [vmem:[#allocation4 + $0x230] sm:$0xff]
    %v6502 = vld [vmem:[#allocation4 + $0x238] sm:$0xff]
    %v6503 = vld [vmem:[#allocation4 + $0x240] sm:$0xff]
    %v6504 = vld [vmem:[#allocation4 + $0x248] sm:$0xff]
    %v6505 = vld [vmem:[#allocation4 + $0x250] sm:$0xff]
    %v6506 = vld [vmem:[#allocation4 + $0x258] sm:$0xff]
    %v6507 = vld [vmem:[#allocation4 + $0x260] sm:$0xff]
    %v6508 = vld [vmem:[#allocation4 + $0x268] sm:$0xff]
    %v6509 = vld [vmem:[#allocation4 + $0x270] sm:$0xff]
    %v6510 = vld [vmem:[#allocation4 + $0x278] sm:$0xff]
    %v6511 = vld [vmem:[#allocation4 + $0x280] sm:$0xff]
    %v6512 = vld [vmem:[#allocation4 + $0x288] sm:$0xff]
    %v6513 = vld [vmem:[#allocation4 + $0x290] sm:$0xff]
    %v6514 = vld [vmem:[#allocation4 + $0x298] sm:$0xff]
    %v6515 = vld [vmem:[#allocation4 + $0x2a0] sm:$0xff]
    %v6516 = vld [vmem:[#allocation4 + $0x2a8] sm:$0xff]
    %v6517 = vld [vmem:[#allocation4 + $0x2b0] sm:$0xff]
    %v6518 = vld [vmem:[#allocation4 + $0x2b8] sm:$0xff]
    %v6519 = vld [vmem:[#allocation4 + $0x2c0] sm:$0xff]
    %v6520 = vld [vmem:[#allocation4 + $0x2c8] sm:$0xff]
    %v6521 = vld [vmem:[#allocation4 + $0x2d0] sm:$0xff]
    %v6522 = vld [vmem:[#allocation4 + $0x2d8] sm:$0xff]
    %v6523 = vld [vmem:[#allocation4 + $0x2e0] sm:$0xff]
    %v6524 = vld [vmem:[#allocation4 + $0x2e8] sm:$0xff]
    %v6525 = vld [vmem:[#allocation4 + $0x2f0] sm:$0xff]
    %v6526 = vld [vmem:[#allocation4 + $0x2f8] sm:$0xff]
    %v6527 = vld [vmem:[#allocation4 + $0x300] sm:$0xff]
    %v6528 = vld [vmem:[#allocation4 + $0x308] sm:$0xff]
    %v6529 = vld [vmem:[#allocation4 + $0x310] sm:$0xff]
    %v6530 = vld [vmem:[#allocation4 + $0x318] sm:$0xff]
    %v6531 = vld [vmem:[#allocation4 + $0x320] sm:$0xff]
    %v6532 = vld [vmem:[#allocation4 + $0x328] sm:$0xff]
    %v6533 = vld [vmem:[#allocation4 + $0x330] sm:$0xff]
    %v6534 = vld [vmem:[#allocation4 + $0x338] sm:$0xff]
    %v6535 = vld [vmem:[#allocation4 + $0x340] sm:$0xff]
    %v6536 = vld [vmem:[#allocation4 + $0x348] sm:$0xff]
    %v6537 = vld [vmem:[#allocation4 + $0x350] sm:$0xff]
    %v6538 = vld [vmem:[#allocation4 + $0x358] sm:$0xff]
    %v6539 = vld [vmem:[#allocation4 + $0x360] sm:$0xff]
    %v6540 = vld [vmem:[#allocation4 + $0x368] sm:$0xff]
    %v6541 = vld [vmem:[#allocation4 + $0x370] sm:$0xff]
    %v6542 = vld [vmem:[#allocation4 + $0x378] sm:$0xff]
    %v6543 = vld [vmem:[#allocation4 + $0x380] sm:$0xff]
    %v6544 = vld [vmem:[#allocation4 + $0x388] sm:$0xff]
    %v6545 = vld [vmem:[#allocation4 + $0x390] sm:$0xff]
    %v6546 = vld [vmem:[#allocation4 + $0x398] sm:$0xff]
    %v6547 = vld [vmem:[#allocation4 + $0x3a0] sm:$0xff]
    %v6548 = vld [vmem:[#allocation4 + $0x3a8] sm:$0xff]
    %v6549 = vld [vmem:[#allocation4 + $0x3b0] sm:$0xff]
    %v6550 = vld [vmem:[#allocation4 + $0x3b8] sm:$0xff]
    %v6551 = vld [vmem:[#allocation4 + $0x3c0] sm:$0xff]
    %v6552 = vld [vmem:[#allocation4 + $0x3c8] sm:$0xff]
    %v6553 = vld [vmem:[#allocation4 + $0x3d0] sm:$0xff]
    %v6554 = vld [vmem:[#allocation4 + $0x3d8] sm:$0xff]
    %v6555 = vld [vmem:[#allocation4 + $0x3e0] sm:$0xff]
    %v6556 = vld [vmem:[#allocation4 + $0x3e8] sm:$0xff]
    %v6557 = vld [vmem:[#allocation4 + $0x3f0] sm:$0xff]
    %v6558 = vld [vmem:[#allocation4 + $0x3f8] sm:$0xff]
    %v6687 = vunpack.c.l.b16 %v6431
    %v6688 = vunpack.c.h.b16 %v6431
    %v6689 = vunpack.c.l.b16 %v6432
    %v6690 = vunpack.c.h.b16 %v6432
    %v6691 = vunpack.c.l.b16 %v6433
    %v6692 = vunpack.c.h.b16 %v6433
    %v6693 = vunpack.c.l.b16 %v6434
    %v6694 = vunpack.c.h.b16 %v6434
    %v6695 = vunpack.c.l.b16 %v6435
    %v6696 = vunpack.c.h.b16 %v6435
    %v6697 = vunpack.c.l.b16 %v6436
    %v6698 = vunpack.c.h.b16 %v6436
    %v6699 = vunpack.c.l.b16 %v6437
    %v6700 = vunpack.c.h.b16 %v6437
    %v6701 = vunpack.c.l.b16 %v6438
    %v6702 = vunpack.c.h.b16 %v6438
    %v6703 = vunpack.c.l.b16 %v6439
    %v6704 = vunpack.c.h.b16 %v6439
    %v6705 = vunpack.c.l.b16 %v6440
    %v6706 = vunpack.c.h.b16 %v6440
    %v6707 = vunpack.c.l.b16 %v6441
    %v6708 = vunpack.c.h.b16 %v6441
    %v6709 = vunpack.c.l.b16 %v6442
    %v6710 = vunpack.c.h.b16 %v6442
    %v6711 = vunpack.c.l.b16 %v6443
    %v6712 = vunpack.c.h.b16 %v6443
    %v6713 = vunpack.c.l.b16 %v6444
    %v6714 = vunpack.c.h.b16 %v6444
    %v6715 = vunpack.c.l.b16 %v6445
    %v6716 = vunpack.c.h.b16 %v6445
    %v6717 = vunpack.c.l.b16 %v6446
    %v6718 = vunpack.c.h.b16 %v6446
    %v6719 = vunpack.c.l.b16 %v6447
    %v6720 = vunpack.c.h.b16 %v6447
    %v6721 = vunpack.c.l.b16 %v6448
    %v6722 = vunpack.c.h.b16 %v6448
    %v6723 = vunpack.c.l.b16 %v6449
    %v6724 = vunpack.c.h.b16 %v6449
    %v6725 = vunpack.c.l.b16 %v6450
    %v6726 = vunpack.c.h.b16 %v6450
    %v6727 = vunpack.c.l.b16 %v6451
    %v6728 = vunpack.c.h.b16 %v6451
    %v6729 = vunpack.c.l.b16 %v6452
    %v6730 = vunpack.c.h.b16 %v6452
    %v6731 = vunpack.c.l.b16 %v6453
    %v6732 = vunpack.c.h.b16 %v6453
    %v6733 = vunpack.c.l.b16 %v6454
    %v6734 = vunpack.c.h.b16 %v6454
    %v6735 = vunpack.c.l.b16 %v6455
    %v6736 = vunpack.c.h.b16 %v6455
    %v6737 = vunpack.c.l.b16 %v6456
    %v6738 = vunpack.c.h.b16 %v6456
    %v6739 = vunpack.c.l.b16 %v6457
    %v6740 = vunpack.c.h.b16 %v6457
    %v6741 = vunpack.c.l.b16 %v6458
    %v6742 = vunpack.c.h.b16 %v6458
    %v6743 = vunpack.c.l.b16 %v6459
    %v6744 = vunpack.c.h.b16 %v6459
    %v6745 = vunpack.c.l.b16 %v6460
    %v6746 = vunpack.c.h.b16 %v6460
    %v6747 = vunpack.c.l.b16 %v6461
    %v6748 = vunpack.c.h.b16 %v6461
    %v6749 = vunpack.c.l.b16 %v6462
    %v6750 = vunpack.c.h.b16 %v6462
    %v6751 = vunpack.c.l.b16 %v6463
    %v6752 = vunpack.c.h.b16 %v6463
    %v6753 = vunpack.c.l.b16 %v6464
    %v6754 = vunpack.c.h.b16 %v6464
    %v6755 = vunpack.c.l.b16 %v6465
    %v6756 = vunpack.c.h.b16 %v6465
    %v6757 = vunpack.c.l.b16 %v6466
    %v6758 = vunpack.c.h.b16 %v6466
    %v6759 = vunpack.c.l.b16 %v6467
    %v6760 = vunpack.c.h.b16 %v6467
    %v6761 = vunpack.c.l.b16 %v6468
    %v6762 = vunpack.c.h.b16 %v6468
    %v6763 = vunpack.c.l.b16 %v6469
    %v6764 = vunpack.c.h.b16 %v6469
    %v6765 = vunpack.c.l.b16 %v6470
    %v6766 = vunpack.c.h.b16 %v6470
    %v6767 = vunpack.c.l.b16 %v6471
    %v6768 = vunpack.c.h.b16 %v6471
    %v6769 = vunpack.c.l.b16 %v6472
    %v6770 = vunpack.c.h.b16 %v6472
    %v6771 = vunpack.c.l.b16 %v6473
    %v6772 = vunpack.c.h.b16 %v6473
    %v6773 = vunpack.c.l.b16 %v6474
    %v6774 = vunpack.c.h.b16 %v6474
    %v6775 = vunpack.c.l.b16 %v6475
    %v6776 = vunpack.c.h.b16 %v6475
    %v6777 = vunpack.c.l.b16 %v6476
    %v6778 = vunpack.c.h.b16 %v6476
    %v6779 = vunpack.c.l.b16 %v6477
    %v6780 = vunpack.c.h.b16 %v6477
    %v6781 = vunpack.c.l.b16 %v6478
    %v6782 = vunpack.c.h.b16 %v6478
    %v6783 = vunpack.c.l.b16 %v6479
    %v6784 = vunpack.c.h.b16 %v6479
    %v6785 = vunpack.c.l.b16 %v6480
    %v6786 = vunpack.c.h.b16 %v6480
    %v6787 = vunpack.c.l.b16 %v6481
    %v6788 = vunpack.c.h.b16 %v6481
    %v6789 = vunpack.c.l.b16 %v6482
    %v6790 = vunpack.c.h.b16 %v6482
    %v6791 = vunpack.c.l.b16 %v6483
    %v6792 = vunpack.c.h.b16 %v6483
    %v6793 = vunpack.c.l.b16 %v6484
    %v6794 = vunpack.c.h.b16 %v6484
    %v6795 = vunpack.c.l.b16 %v6485
    %v6796 = vunpack.c.h.b16 %v6485
    %v6797 = vunpack.c.l.b16 %v6486
    %v6798 = vunpack.c.h.b16 %v6486
    %v6799 = vunpack.c.l.b16 %v6487
    %v6800 = vunpack.c.h.b16 %v6487
    %v6801 = vunpack.c.l.b16 %v6488
    %v6802 = vunpack.c.h.b16 %v6488
    %v6803 = vunpack.c.l.b16 %v6489
    %v6804 = vunpack.c.h.b16 %v6489
    %v6805 = vunpack.c.l.b16 %v6490
    %v6806 = vunpack.c.h.b16 %v6490
    %v6807 = vunpack.c.l.b16 %v6491
    %v6808 = vunpack.c.h.b16 %v6491
    %v6809 = vunpack.c.l.b16 %v6492
    %v6810 = vunpack.c.h.b16 %v6492
    %v6811 = vunpack.c.l.b16 %v6493
    %v6812 = vunpack.c.h.b16 %v6493
    %v6813 = vunpack.c.l.b16 %v6494
    %v6814 = vunpack.c.h.b16 %v6494
    %v6815 = vunpack.c.l.b16 %v6495
    %v6816 = vunpack.c.h.b16 %v6495
    %v6817 = vunpack.c.l.b16 %v6496
    %v6818 = vunpack.c.h.b16 %v6496
    %v6819 = vunpack.c.l.b16 %v6497
    %v6820 = vunpack.c.h.b16 %v6497
    %v6821 = vunpack.c.l.b16 %v6498
    %v6822 = vunpack.c.h.b16 %v6498
    %v6823 = vunpack.c.l.b16 %v6499
    %v6824 = vunpack.c.h.b16 %v6499
    %v6825 = vunpack.c.l.b16 %v6500
    %v6826 = vunpack.c.h.b16 %v6500
    %v6827 = vunpack.c.l.b16 %v6501
    %v6828 = vunpack.c.h.b16 %v6501
    %v6829 = vunpack.c.l.b16 %v6502
    %v6830 = vunpack.c.h.b16 %v6502
    %v6831 = vunpack.c.l.b16 %v6503
    %v6832 = vunpack.c.h.b16 %v6503
    %v6833 = vunpack.c.l.b16 %v6504
    %v6834 = vunpack.c.h.b16 %v6504
    %v6835 = vunpack.c.l.b16 %v6505
    %v6836 = vunpack.c.h.b16 %v6505
    %v6837 = vunpack.c.l.b16 %v6506
    %v6838 = vunpack.c.h.b16 %v6506
    %v6839 = vunpack.c.l.b16 %v6507
    %v6840 = vunpack.c.h.b16 %v6507
    %v6841 = vunpack.c.l.b16 %v6508
    %v6842 = vunpack.c.h.b16 %v6508
    %v6843 = vunpack.c.l.b16 %v6509
    %v6844 = vunpack.c.h.b16 %v6509
    %v6845 = vunpack.c.l.b16 %v6510
    %v6846 = vunpack.c.h.b16 %v6510
    %v6847 = vunpack.c.l.b16 %v6511
    %v6848 = vunpack.c.h.b16 %v6511
    %v6849 = vunpack.c.l.b16 %v6512
    %v6850 = vunpack.c.h.b16 %v6512
    %v6851 = vunpack.c.l.b16 %v6513
    %v6852 = vunpack.c.h.b16 %v6513
    %v6853 = vunpack.c.l.b16 %v6514
    %v6854 = vunpack.c.h.b16 %v6514
    %v6855 = vunpack.c.l.b16 %v6515
    %v6856 = vunpack.c.h.b16 %v6515
    %v6857 = vunpack.c.l.b16 %v6516
    %v6858 = vunpack.c.h.b16 %v6516
    %v6859 = vunpack.c.l.b16 %v6517
    %v6860 = vunpack.c.h.b16 %v6517
    %v6861 = vunpack.c.l.b16 %v6518
    %v6862 = vunpack.c.h.b16 %v6518
    %v6863 = vunpack.c.l.b16 %v6519
    %v6864 = vunpack.c.h.b16 %v6519
    %v6865 = vunpack.c.l.b16 %v6520
    %v6866 = vunpack.c.h.b16 %v6520
    %v6867 = vunpack.c.l.b16 %v6521
    %v6868 = vunpack.c.h.b16 %v6521
    %v6869 = vunpack.c.l.b16 %v6522
    %v6870 = vunpack.c.h.b16 %v6522
    %v6871 = vunpack.c.l.b16 %v6523
    %v6872 = vunpack.c.h.b16 %v6523
    %v6873 = vunpack.c.l.b16 %v6524
    %v6874 = vunpack.c.h.b16 %v6524
    %v6875 = vunpack.c.l.b16 %v6525
    %v6876 = vunpack.c.h.b16 %v6525
    %v6877 = vunpack.c.l.b16 %v6526
    %v6878 = vunpack.c.h.b16 %v6526
    %v6879 = vunpack.c.l.b16 %v6527
    %v6880 = vunpack.c.h.b16 %v6527
    %v6881 = vunpack.c.l.b16 %v6528
    %v6882 = vunpack.c.h.b16 %v6528
    %v6883 = vunpack.c.l.b16 %v6529
    %v6884 = vunpack.c.h.b16 %v6529
    %v6885 = vunpack.c.l.b16 %v6530
    %v6886 = vunpack.c.h.b16 %v6530
    %v6887 = vunpack.c.l.b16 %v6531
    %v6888 = vunpack.c.h.b16 %v6531
    %v6889 = vunpack.c.l.b16 %v6532
    %v6890 = vunpack.c.h.b16 %v6532
    %v6891 = vunpack.c.l.b16 %v6533
    %v6892 = vunpack.c.h.b16 %v6533
    %v6893 = vunpack.c.l.b16 %v6534
    %v6894 = vunpack.c.h.b16 %v6534
    %v6895 = vunpack.c.l.b16 %v6535
    %v6896 = vunpack.c.h.b16 %v6535
    %v6897 = vunpack.c.l.b16 %v6536
    %v6898 = vunpack.c.h.b16 %v6536
    %v6899 = vunpack.c.l.b16 %v6537
    %v6900 = vunpack.c.h.b16 %v6537
    %v6901 = vunpack.c.l.b16 %v6538
    %v6902 = vunpack.c.h.b16 %v6538
    %v6903 = vunpack.c.l.b16 %v6539
    %v6904 = vunpack.c.h.b16 %v6539
    %v6905 = vunpack.c.l.b16 %v6540
    %v6906 = vunpack.c.h.b16 %v6540
    %v6907 = vunpack.c.l.b16 %v6541
    %v6908 = vunpack.c.h.b16 %v6541
    %v6909 = vunpack.c.l.b16 %v6542
    %v6910 = vunpack.c.h.b16 %v6542
    %v6911 = vunpack.c.l.b16 %v6543
    %v6912 = vunpack.c.h.b16 %v6543
    %v6913 = vunpack.c.l.b16 %v6544
    %v6914 = vunpack.c.h.b16 %v6544
    %v6915 = vunpack.c.l.b16 %v6545
    %v6916 = vunpack.c.h.b16 %v6545
    %v6917 = vunpack.c.l.b16 %v6546
    %v6918 = vunpack.c.h.b16 %v6546
    %v6919 = vunpack.c.l.b16 %v6547
    %v6920 = vunpack.c.h.b16 %v6547
    %v6921 = vunpack.c.l.b16 %v6548
    %v6922 = vunpack.c.h.b16 %v6548
    %v6923 = vunpack.c.l.b16 %v6549
    %v6924 = vunpack.c.h.b16 %v6549
    %v6925 = vunpack.c.l.b16 %v6550
    %v6926 = vunpack.c.h.b16 %v6550
    %v6927 = vunpack.c.l.b16 %v6551
    %v6928 = vunpack.c.h.b16 %v6551
    %v6929 = vunpack.c.l.b16 %v6552
    %v6930 = vunpack.c.h.b16 %v6552
    %v6931 = vunpack.c.l.b16 %v6553
    %v6932 = vunpack.c.h.b16 %v6553
    %v6933 = vunpack.c.l.b16 %v6554
    %v6934 = vunpack.c.h.b16 %v6554
    %v6935 = vunpack.c.l.b16 %v6555
    %v6936 = vunpack.c.h.b16 %v6555
    %v6937 = vunpack.c.l.b16 %v6556
    %v6938 = vunpack.c.h.b16 %v6556
    %v6939 = vunpack.c.l.b16 %v6557
    %v6940 = vunpack.c.h.b16 %v6557
    %v6941 = vunpack.c.l.b16 %v6558
    %v6942 = vunpack.c.h.b16 %v6558
    %v6943 = vpack.c.b16 %v6689, %v6687
    %v6944 = vpack.c.b16 %v6690, %v6688
    %v6945 = vpack.c.b16 %v6693, %v6691
    %v6946 = vpack.c.b16 %v6694, %v6692
    %v6947 = vpack.c.b16 %v6697, %v6695
    %v6948 = vpack.c.b16 %v6698, %v6696
    %v6949 = vpack.c.b16 %v6701, %v6699
    %v6950 = vpack.c.b16 %v6702, %v6700
    %v6951 = vpack.c.b16 %v6705, %v6703
    %v6952 = vpack.c.b16 %v6706, %v6704
    %v6953 = vpack.c.b16 %v6709, %v6707
    %v6954 = vpack.c.b16 %v6710, %v6708
    %v6955 = vpack.c.b16 %v6713, %v6711
    %v6956 = vpack.c.b16 %v6714, %v6712
    %v6957 = vpack.c.b16 %v6717, %v6715
    %v6958 = vpack.c.b16 %v6718, %v6716
    %v6959 = vpack.c.b16 %v6721, %v6719
    %v6960 = vpack.c.b16 %v6722, %v6720
    %v6961 = vpack.c.b16 %v6725, %v6723
    %v6962 = vpack.c.b16 %v6726, %v6724
    %v6963 = vpack.c.b16 %v6729, %v6727
    %v6964 = vpack.c.b16 %v6730, %v6728
    %v6965 = vpack.c.b16 %v6733, %v6731
    %v6966 = vpack.c.b16 %v6734, %v6732
    %v6967 = vpack.c.b16 %v6737, %v6735
    %v6968 = vpack.c.b16 %v6738, %v6736
    %v6969 = vpack.c.b16 %v6741, %v6739
    %v6970 = vpack.c.b16 %v6742, %v6740
    %v6971 = vpack.c.b16 %v6745, %v6743
    %v6972 = vpack.c.b16 %v6746, %v6744
    %v6973 = vpack.c.b16 %v6749, %v6747
    %v6974 = vpack.c.b16 %v6750, %v6748
    %v6975 = vpack.c.b16 %v6753, %v6751
    %v6976 = vpack.c.b16 %v6754, %v6752
    %v6977 = vpack.c.b16 %v6757, %v6755
    %v6978 = vpack.c.b16 %v6758, %v6756
    %v6979 = vpack.c.b16 %v6761, %v6759
    %v6980 = vpack.c.b16 %v6762, %v6760
    %v6981 = vpack.c.b16 %v6765, %v6763
    %v6982 = vpack.c.b16 %v6766, %v6764
    %v6983 = vpack.c.b16 %v6769, %v6767
    %v6984 = vpack.c.b16 %v6770, %v6768
    %v6985 = vpack.c.b16 %v6773, %v6771
    %v6986 = vpack.c.b16 %v6774, %v6772
    %v6987 = vpack.c.b16 %v6777, %v6775
    %v6988 = vpack.c.b16 %v6778, %v6776
    %v6989 = vpack.c.b16 %v6781, %v6779
    %v6990 = vpack.c.b16 %v6782, %v6780
    %v6991 = vpack.c.b16 %v6785, %v6783
    %v6992 = vpack.c.b16 %v6786, %v6784
    %v6993 = vpack.c.b16 %v6789, %v6787
    %v6994 = vpack.c.b16 %v6790, %v6788
    %v6995 = vpack.c.b16 %v6793, %v6791
    %v6996 = vpack.c.b16 %v6794, %v6792
    %v6997 = vpack.c.b16 %v6797, %v6795
    %v6998 = vpack.c.b16 %v6798, %v6796
    %v6999 = vpack.c.b16 %v6801, %v6799
    %v7000 = vpack.c.b16 %v6802, %v6800
    %v7001 = vpack.c.b16 %v6805, %v6803
    %v7002 = vpack.c.b16 %v6806, %v6804
    %v7003 = vpack.c.b16 %v6809, %v6807
    %v7004 = vpack.c.b16 %v6810, %v6808
    %v7005 = vpack.c.b16 %v6813, %v6811
    %v7006 = vpack.c.b16 %v6814, %v6812
    %v7007 = vpack.c.b16 %v6817, %v6815
    %v7008 = vpack.c.b16 %v6818, %v6816
    %v7009 = vpack.c.b16 %v6821, %v6819
    %v7010 = vpack.c.b16 %v6822, %v6820
    %v7011 = vpack.c.b16 %v6825, %v6823
    %v7012 = vpack.c.b16 %v6826, %v6824
    %v7013 = vpack.c.b16 %v6829, %v6827
    %v7014 = vpack.c.b16 %v6830, %v6828
    %v7015 = vpack.c.b16 %v6833, %v6831
    %v7016 = vpack.c.b16 %v6834, %v6832
    %v7017 = vpack.c.b16 %v6837, %v6835
    %v7018 = vpack.c.b16 %v6838, %v6836
    %v7019 = vpack.c.b16 %v6841, %v6839
    %v7020 = vpack.c.b16 %v6842, %v6840
    %v7021 = vpack.c.b16 %v6845, %v6843
    %v7022 = vpack.c.b16 %v6846, %v6844
    %v7023 = vpack.c.b16 %v6849, %v6847
    %v7024 = vpack.c.b16 %v6850, %v6848
    %v7025 = vpack.c.b16 %v6853, %v6851
    %v7026 = vpack.c.b16 %v6854, %v6852
    %v7027 = vpack.c.b16 %v6857, %v6855
    %v7028 = vpack.c.b16 %v6858, %v6856
    %v7029 = vpack.c.b16 %v6861, %v6859
    %v7030 = vpack.c.b16 %v6862, %v6860
    %v7031 = vpack.c.b16 %v6865, %v6863
    %v7032 = vpack.c.b16 %v6866, %v6864
    %v7033 = vpack.c.b16 %v6869, %v6867
    %v7034 = vpack.c.b16 %v6870, %v6868
    %v7035 = vpack.c.b16 %v6873, %v6871
    %v7036 = vpack.c.b16 %v6874, %v6872
    %v7037 = vpack.c.b16 %v6877, %v6875
    %v7038 = vpack.c.b16 %v6878, %v6876
    %v7039 = vpack.c.b16 %v6881, %v6879
    %v7040 = vpack.c.b16 %v6882, %v6880
    %v7041 = vpack.c.b16 %v6885, %v6883
    %v7042 = vpack.c.b16 %v6886, %v6884
    %v7043 = vpack.c.b16 %v6889, %v6887
    %v7044 = vpack.c.b16 %v6890, %v6888
    %v7045 = vpack.c.b16 %v6893, %v6891
    %v7046 = vpack.c.b16 %v6894, %v6892
    %v7047 = vpack.c.b16 %v6897, %v6895
    %v7048 = vpack.c.b16 %v6898, %v6896
    %v7049 = vpack.c.b16 %v6901, %v6899
    %v7050 = vpack.c.b16 %v6902, %v6900
    %v7051 = vpack.c.b16 %v6905, %v6903
    %v7052 = vpack.c.b16 %v6906, %v6904
    %v7053 = vpack.c.b16 %v6909, %v6907
    %v7054 = vpack.c.b16 %v6910, %v6908
    %v7055 = vpack.c.b16 %v6913, %v6911
    %v7056 = vpack.c.b16 %v6914, %v6912
    %v7057 = vpack.c.b16 %v6917, %v6915
    %v7058 = vpack.c.b16 %v6918, %v6916
    %v7059 = vpack.c.b16 %v6921, %v6919
    %v7060 = vpack.c.b16 %v6922, %v6920
    %v7061 = vpack.c.b16 %v6925, %v6923
    %v7062 = vpack.c.b16 %v6926, %v6924
    %v7063 = vpack.c.b16 %v6929, %v6927
    %v7064 = vpack.c.b16 %v6930, %v6928
    %v7065 = vpack.c.b16 %v6933, %v6931
    %v7066 = vpack.c.b16 %v6934, %v6932
    %v7067 = vpack.c.b16 %v6937, %v6935
    %v7068 = vpack.c.b16 %v6938, %v6936
    %v7069 = vpack.c.b16 %v6941, %v6939
    %v7070 = vpack.c.b16 %v6942, %v6940
    %7199 = vmatpush.bf16.msra.mxu0 %v6957
    %7200 = vmatpush.bf16.msra.mxu0 %v6955
    %7201 = vmatpush.bf16.msra.mxu0 %v6953
    %7202 = vmatpush.bf16.msra.mxu0 %v6951
    %7203 = vmatpush.bf16.msra.mxu0 %v6949
    %7204 = vmatpush.bf16.msra.mxu0 %v6947
    %7205 = vmatpush.bf16.msra.mxu0 %v6945
    %7206 = vmatpush.bf16.msra.mxu0 %v6943
    %7207 = vmatmul.bf16.gmra.mxu0 %v6423
    %v7208 = vpop.f32.mrf.mxu0
    %v7209 = vadd.f32 0.0, %v7208
    %v7210 = vpop.f32.mrf.mxu0
    %v7211 = vadd.f32 0.0, %v7210
    %7212 = vdwg.mxu0
    %7213 = vmatpush.bf16.msra.mxu0 %v6973
    %7214 = vmatpush.bf16.msra.mxu0 %v6971
    %7215 = vmatpush.bf16.msra.mxu0 %v6969
    %7216 = vmatpush.bf16.msra.mxu0 %v6967
    %7217 = vmatpush.bf16.msra.mxu0 %v6965
    %7218 = vmatpush.bf16.msra.mxu0 %v6963
    %7219 = vmatpush.bf16.msra.mxu0 %v6961
    %7220 = vmatpush.bf16.msra.mxu0 %v6959
    %7221 = vmatmul.bf16.gmra.mxu0 %v6424
    %v7222 = vpop.f32.mrf.mxu0
    %v7223 = vadd.f32 %v7209, %v7222
    %v7224 = vpop.f32.mrf.mxu0
    %v7225 = vadd.f32 %v7211, %v7224
    %7226 = vdwg.mxu0
    %7227 = vmatpush.bf16.msra.mxu0 %v6989
    %7228 = vmatpush.bf16.msra.mxu0 %v6987
    %7229 = vmatpush.bf16.msra.mxu0 %v6985
    %7230 = vmatpush.bf16.msra.mxu0 %v6983
    %7231 = vmatpush.bf16.msra.mxu0 %v6981
    %7232 = vmatpush.bf16.msra.mxu0 %v6979
    %7233 = vmatpush.bf16.msra.mxu0 %v6977
    %7234 = vmatpush.bf16.msra.mxu0 %v6975
    %7235 = vmatmul.bf16.gmra.mxu0 %v6425
    %v7236 = vpop.f32.mrf.mxu0
    %v7237 = vadd.f32 %v7223, %v7236
    %v7238 = vpop.f32.mrf.mxu0
    %v7239 = vadd.f32 %v7225, %v7238
    %7240 = vdwg.mxu0
    %7241 = vmatpush.bf16.msra.mxu0 %v7005
    %7242 = vmatpush.bf16.msra.mxu0 %v7003
    %7243 = vmatpush.bf16.msra.mxu0 %v7001
    %7244 = vmatpush.bf16.msra.mxu0 %v6999
    %7245 = vmatpush.bf16.msra.mxu0 %v6997
    %7246 = vmatpush.bf16.msra.mxu0 %v6995
    %7247 = vmatpush.bf16.msra.mxu0 %v6993
    %7248 = vmatpush.bf16.msra.mxu0 %v6991
    %7249 = vmatmul.bf16.gmra.mxu0 %v6426
    %v7250 = vpop.f32.mrf.mxu0
    %v7251 = vadd.f32 %v7237, %v7250
    %v7252 = vpop.f32.mrf.mxu0
    %v7253 = vadd.f32 %v7239, %v7252
    %7254 = vdwg.mxu0
    %7255 = vmatpush.bf16.msra.mxu0 %v7021
    %7256 = vmatpush.bf16.msra.mxu0 %v7019
    %7257 = vmatpush.bf16.msra.mxu0 %v7017
    %7258 = vmatpush.bf16.msra.mxu0 %v7015
    %7259 = vmatpush.bf16.msra.mxu0 %v7013
    %7260 = vmatpush.bf16.msra.mxu0 %v7011
    %7261 = vmatpush.bf16.msra.mxu0 %v7009
    %7262 = vmatpush.bf16.msra.mxu0 %v7007
    %7263 = vmatmul.bf16.gmra.mxu0 %v6427
    %v7264 = vpop.f32.mrf.mxu0
    %v7265 = vadd.f32 %v7251, %v7264
    %v7266 = vpop.f32.mrf.mxu0
    %v7267 = vadd.f32 %v7253, %v7266
    %7268 = vdwg.mxu0
    %7269 = vmatpush.bf16.msra.mxu0 %v7037
    %7270 = vmatpush.bf16.msra.mxu0 %v7035
    %7271 = vmatpush.bf16.msra.mxu0 %v7033
    %7272 = vmatpush.bf16.msra.mxu0 %v7031
    %7273 = vmatpush.bf16.msra.mxu0 %v7029
    %7274 = vmatpush.bf16.msra.mxu0 %v7027
    %7275 = vmatpush.bf16.msra.mxu0 %v7025
    %7276 = vmatpush.bf16.msra.mxu0 %v7023
    %7277 = vmatmul.bf16.gmra.mxu0 %v6428
    %v7278 = vpop.f32.mrf.mxu0
    %v7279 = vadd.f32 %v7265, %v7278
    %v7280 = vpop.f32.mrf.mxu0
    %v7281 = vadd.f32 %v7267, %v7280
    %7282 = vdwg.mxu0
    %7283 = vmatpush.bf16.msra.mxu0 %v7053
    %7284 = vmatpush.bf16.msra.mxu0 %v7051
    %7285 = vmatpush.bf16.msra.mxu0 %v7049
    %7286 = vmatpush.bf16.msra.mxu0 %v7047
    %7287 = vmatpush.bf16.msra.mxu0 %v7045
    %7288 = vmatpush.bf16.msra.mxu0 %v7043
    %7289 = vmatpush.bf16.msra.mxu0 %v7041
    %7290 = vmatpush.bf16.msra.mxu0 %v7039
    %7291 = vmatmul.bf16.gmra.mxu0 %v6429
    %v7292 = vpop.f32.mrf.mxu0
    %v7293 = vadd.f32 %v7279, %v7292
    %v7294 = vpop.f32.mrf.mxu0
    %v7295 = vadd.f32 %v7281, %v7294
    %7296 = vdwg.mxu0
    %7297 = vmatpush.bf16.msra.mxu0 %v7069
    %7298 = vmatpush.bf16.msra.mxu0 %v7067
    %7299 = vmatpush.bf16.msra.mxu0 %v7065
    %7300 = vmatpush.bf16.msra.mxu0 %v7063
    %7301 = vmatpush.bf16.msra.mxu0 %v7061
    %7302 = vmatpush.bf16.msra.mxu0 %v7059
    %7303 = vmatpush.bf16.msra.mxu0 %v7057
    %7304 = vmatpush.bf16.msra.mxu0 %v7055
    %7305 = vmatmul.bf16.gmra.mxu0 %v6430
    %v7306 = vpop.f32.mrf.mxu0
    %v7307 = vadd.f32 %v7293, %v7306
    %v7308 = vpop.f32.mrf.mxu0
    %v7309 = vadd.f32 %v7295, %v7308
    %7310 = vdwg.mxu0
    %7311 = vmatpush.bf16.msra.mxu0 %v6958
    %7312 = vmatpush.bf16.msra.mxu0 %v6956
    %7313 = vmatpush.bf16.msra.mxu0 %v6954
    %7314 = vmatpush.bf16.msra.mxu0 %v6952
    %7315 = vmatpush.bf16.msra.mxu0 %v6950
    %7316 = vmatpush.bf16.msra.mxu0 %v6948
    %7317 = vmatpush.bf16.msra.mxu0 %v6946
    %7318 = vmatpush.bf16.msra.mxu0 %v6944
    %7319 = vmatmul.bf16.gmra.mxu0 %v6423
    %v7320 = vpop.f32.mrf.mxu0
    %v7321 = vadd.f32 0.0, %v7320
    %v7322 = vpop.f32.mrf.mxu0
    %v7323 = vadd.f32 0.0, %v7322
    %7324 = vdwg.mxu0
    %7325 = vmatpush.bf16.msra.mxu0 %v6974
    %7326 = vmatpush.bf16.msra.mxu0 %v6972
    %7327 = vmatpush.bf16.msra.mxu0 %v6970
    %7328 = vmatpush.bf16.msra.mxu0 %v6968
    %7329 = vmatpush.bf16.msra.mxu0 %v6966
    %7330 = vmatpush.bf16.msra.mxu0 %v6964
    %7331 = vmatpush.bf16.msra.mxu0 %v6962
    %7332 = vmatpush.bf16.msra.mxu0 %v6960
    %7333 = vmatmul.bf16.gmra.mxu0 %v6424
    %v7334 = vpop.f32.mrf.mxu0
    %v7335 = vadd.f32 %v7321, %v7334
    %v7336 = vpop.f32.mrf.mxu0
    %v7337 = vadd.f32 %v7323, %v7336
    %7338 = vdwg.mxu0
    %7339 = vmatpush.bf16.msra.mxu0 %v6990
    %7340 = vmatpush.bf16.msra.mxu0 %v6988
    %7341 = vmatpush.bf16.msra.mxu0 %v6986
    %7342 = vmatpush.bf16.msra.mxu0 %v6984
    %7343 = vmatpush.bf16.msra.mxu0 %v6982
    %7344 = vmatpush.bf16.msra.mxu0 %v6980
    %7345 = vmatpush.bf16.msra.mxu0 %v6978
    %7346 = vmatpush.bf16.msra.mxu0 %v6976
    %7347 = vmatmul.bf16.gmra.mxu0 %v6425
    %v7348 = vpop.f32.mrf.mxu0
    %v7349 = vadd.f32 %v7335, %v7348
    %v7350 = vpop.f32.mrf.mxu0
    %v7351 = vadd.f32 %v7337, %v7350
    %7352 = vdwg.mxu0
    %7353 = vmatpush.bf16.msra.mxu0 %v7006
    %7354 = vmatpush.bf16.msra.mxu0 %v7004
    %7355 = vmatpush.bf16.msra.mxu0 %v7002
    %7356 = vmatpush.bf16.msra.mxu0 %v7000
    %7357 = vmatpush.bf16.msra.mxu0 %v6998
    %7358 = vmatpush.bf16.msra.mxu0 %v6996
    %7359 = vmatpush.bf16.msra.mxu0 %v6994
    %7360 = vmatpush.bf16.msra.mxu0 %v6992
    %7361 = vmatmul.bf16.gmra.mxu0 %v6426
    %v7362 = vpop.f32.mrf.mxu0
    %v7363 = vadd.f32 %v7349, %v7362
    %v7364 = vpop.f32.mrf.mxu0
    %v7365 = vadd.f32 %v7351, %v7364
    %7366 = vdwg.mxu0
    %7367 = vmatpush.bf16.msra.mxu0 %v7022
    %7368 = vmatpush.bf16.msra.mxu0 %v7020
    %7369 = vmatpush.bf16.msra.mxu0 %v7018
    %7370 = vmatpush.bf16.msra.mxu0 %v7016
    %7371 = vmatpush.bf16.msra.mxu0 %v7014
    %7372 = vmatpush.bf16.msra.mxu0 %v7012
    %7373 = vmatpush.bf16.msra.mxu0 %v7010
    %7374 = vmatpush.bf16.msra.mxu0 %v7008
    %7375 = vmatmul.bf16.gmra.mxu0 %v6427
    %v7376 = vpop.f32.mrf.mxu0
    %v7377 = vadd.f32 %v7363, %v7376
    %v7378 = vpop.f32.mrf.mxu0
    %v7379 = vadd.f32 %v7365, %v7378
    %7380 = vdwg.mxu0
    %7381 = vmatpush.bf16.msra.mxu0 %v7038
    %7382 = vmatpush.bf16.msra.mxu0 %v7036
    %7383 = vmatpush.bf16.msra.mxu0 %v7034
    %7384 = vmatpush.bf16.msra.mxu0 %v7032
    %7385 = vmatpush.bf16.msra.mxu0 %v7030
    %7386 = vmatpush.bf16.msra.mxu0 %v7028
    %7387 = vmatpush.bf16.msra.mxu0 %v7026
    %7388 = vmatpush.bf16.msra.mxu0 %v7024
    %7389 = vmatmul.bf16.gmra.mxu0 %v6428
    %v7390 = vpop.f32.mrf.mxu0
    %v7391 = vadd.f32 %v7377, %v7390
    %v7392 = vpop.f32.mrf.mxu0
    %v7393 = vadd.f32 %v7379, %v7392
    %7394 = vdwg.mxu0
    %7395 = vmatpush.bf16.msra.mxu0 %v7054
    %7396 = vmatpush.bf16.msra.mxu0 %v7052
    %7397 = vmatpush.bf16.msra.mxu0 %v7050
    %7398 = vmatpush.bf16.msra.mxu0 %v7048
    %7399 = vmatpush.bf16.msra.mxu0 %v7046
    %7400 = vmatpush.bf16.msra.mxu0 %v7044
    %7401 = vmatpush.bf16.msra.mxu0 %v7042
    %7402 = vmatpush.bf16.msra.mxu0 %v7040
    %7403 = vmatmul.bf16.gmra.mxu0 %v6429
    %v7404 = vpop.f32.mrf.mxu0
    %v7405 = vadd.f32 %v7391, %v7404
    %v7406 = vpop.f32.mrf.mxu0
    %v7407 = vadd.f32 %v7393, %v7406
    %7408 = vdwg.mxu0
    %7409 = vmatpush.bf16.msra.mxu0 %v7070
    %7410 = vmatpush.bf16.msra.mxu0 %v7068
    %7411 = vmatpush.bf16.msra.mxu0 %v7066
    %7412 = vmatpush.bf16.msra.mxu0 %v7064
    %7413 = vmatpush.bf16.msra.mxu0 %v7062
    %7414 = vmatpush.bf16.msra.mxu0 %v7060
    %7415 = vmatpush.bf16.msra.mxu0 %v7058
    %7416 = vmatpush.bf16.msra.mxu0 %v7056
    %7417 = vmatmul.bf16.gmra.mxu0 %v6430
    %v7418 = vpop.f32.mrf.mxu0
    %v7419 = vadd.f32 %v7405, %v7418
    %v7420 = vpop.f32.mrf.mxu0
    %v7421 = vadd.f32 %v7407, %v7420
    %7422 = vdwg.mxu0
    %v7423 = vld [vmem:[%s14] sm:$0x3]
    %v7425 = vperm.slane %v7423, 0
    %v7426 = vperm.slane %v7423, 1
    %v7429 = vmul.f32 %v7307, %v7425
    %v7430 = vmul.f32 %v7419, %v7426
    %v7431 = vmul.f32 %v7309, %v7425
    %v7432 = vmul.f32 %v7421, %v7426
    %v7433 = vld [vmem:[%s15] sm:$0x3]
    %v7435 = vperm.slane %v7433, 0
    %v7436 = vperm.slane %v7433, 1
    %v7439 = vadd.f32 %v7429, %v7435
    %v7440 = vadd.f32 %v7430, %v7436
    %v7441 = vadd.f32 %v7431, %v7435
    %v7442 = vadd.f32 %v7432, %v7436
    %v7443 = vtanh.pop %v7439
    %v7444 = vtanh.pop %v7440
    %v7445 = vtanh.pop %v7441
    %v7446 = vtanh.pop %v7442
    %7447 = vst [vmem:[#allocation23] sm:$0xff] %v7443
    %7448 = vst [vmem:[#allocation23 + $0x8] sm:$0xff] %v7444
    %7449 = vst [vmem:[#allocation23 + $0x10] sm:$0xff] %v7445
    %7450 = vst [vmem:[#allocation23 + $0x18] sm:$0xff] %v7446
    // Predicated region
    $region114: #{tpu_custom_call.1} parent=1 // pred_check
      _
    $region115: #{tpu_custom_call.1} parent=1 // pred_check_branch
      %7452 = sbr.rel (0) target = $region117
    $region116: #{tpu_custom_call.1} parent=1 // pred_region
      %7454 = vsyncadd [#allocation7], 0
      %s7455 = sshll.u32 [#allocation23], 4
      %s7456 = int_to_ptr.vmem [resolvable:$true] %s7455
      %s7457 = sshll.u32 %s16, 4
      %s7458 = int_to_ptr.hbm [resolvable:$true] %s7457
      %7463 = dma.vmem_to_hbm [thread:$0]  %s7456, 512, %s7458, [#allocation7], 256, 256, 16
    $region117: #{tpu_custom_call.1} parent=1 // pred_fallthru
      _
    // Predicated region
    $region118: #{tpu_custom_call.1} parent=1 // pred_check
      _
    $region119: #{tpu_custom_call.1} parent=1 // pred_check_branch
      %7465 = sbr.rel (0) target = $region121
    $region120: #{tpu_custom_call.1} parent=1 // pred_region
      %7467 = dma.done [#allocation7], 512
    $region121: #{tpu_custom_call.1} parent=1 // pred_fallthru
      _
    %7468 = vsyncpa [#allocation6], 1
    %7469 = vsyncpa [#allocation9], 1
    %7470 = vsyncpa [#allocation12], 1
    %7471 = vsyncpa [#allocation15], 1
    %7472 = vsyncpa [#allocation18], 1
    %7473 = vsyncpa [#allocation21], 1
    %7474 = vsyncpa [#allocation7], 1

</llo_original>
